<compile_context>
chip_gen: v7x
topology: tpu7x:2x2x1
jax: 0.10.0
libtpu: 0.0.40
codegen_flags: <defaults>
</compile_context>

<pallas_src>
import functools

import jax
import jax.numpy as jnp
import numpy as np
from jax.experimental import pallas as pl
from jax.experimental.pallas import tpu as pltpu

# ----------------------------- model hyperparams -----------------------------
N_LAYERS = 2
HIDDEN = 128      # hidden_size (lane-aligned; module default is 512)
FC = 128          # fc_size
VOC = 256         # voc_size
BATCH = 8         # batch size (sublane-aligned)
SEQ = 8           # decode steps processed per pallas_call


# --------------------------------- kernel ------------------------------------
def _decoder_kernel(pre0_ref,        # VMEM (T, B, 4H) f32  layer-0 x@W_ih0 + b0 (precomputed)
                    h0_ref, c0_ref,  # VMEM (L, B, H)  f32  initial state
                    w_hh_ref,        # VMEM (L, H, 4H) f32  recurrent weights (all layers)
                    w_ih_up_ref,     # VMEM (L-1, H, 4H) f32  input weights, layers 1..L-1
                    b_up_ref,        # VMEM (L-1, B, 4H) f32  combined bias, layers 1..L-1
                    w_fc_ref,        # VMEM (H, V) f32  folded fc1@fc2 weight
                    b_fc_ref,        # VMEM (B, V) f32  folded fc bias (pre-broadcast)
                    out_ref,         # VMEM (T, B, V) f32  log-probs
                    h_out_ref,       # VMEM (L, B, H) f32  final h
                    c_out_ref,       # VMEM (L, B, H) f32  final c
                    *, seq_len, n_layers, hidden):
    H = hidden

    # Weights are VMEM-resident; load once outside the step loop.
    w_fc = w_fc_ref[...]
    b_fc = b_fc_ref[...]

    hs = [h0_ref[l] for l in range(n_layers)]     # each (B, H) f32
    cs = [c0_ref[l] for l in range(n_layers)]

    def lstm_cell(gates, c_prev):
        # PyTorch gate order: i, f, g, o.
        i_g = jax.nn.sigmoid(gates[:, 0 * H:1 * H])
        f_g = jax.nn.sigmoid(gates[:, 1 * H:2 * H])
        g_g = jnp.tanh(gates[:, 2 * H:3 * H])
        o_g = jax.nn.sigmoid(gates[:, 3 * H:4 * H])
        c_new = f_g * c_prev + i_g * g_g
        h_new = o_g * jnp.tanh(c_new)
        return h_new, c_new

    for t in range(seq_len):                       # static unroll (T small)
        for l in range(n_layers):                  # static unroll (L = 2)
            if l == 0:
                # Layer-0 input projection (incl. bias) precomputed in XLA.
                gates = pre0_ref[t] + jnp.dot(
                    hs[0], w_hh_ref[0], preferred_element_type=jnp.float32)
            else:
                # Two dots (no [x, h] lane concat): x@W_ih + h@W_hh + b.
                gates = (jnp.dot(hs[l - 1], w_ih_up_ref[l - 1],
                                 preferred_element_type=jnp.float32)
                         + jnp.dot(hs[l], w_hh_ref[l],
                                   preferred_element_type=jnp.float32)
                         + b_up_ref[l - 1])
            hs[l], cs[l] = lstm_cell(gates, cs[l])

        # Folded fc (fc2(fc1(x)) == x @ (w1@w2) + (b1@w2 + b2)).
        z = jnp.dot(hs[-1], w_fc, preferred_element_type=jnp.float32) + b_fc   # (B, V)

        # LogSoftmax over the vocab (lane) axis.
        m = jnp.max(z, axis=-1, keepdims=True)
        s = z - m
        lse = jnp.log(jnp.sum(jnp.exp(s), axis=-1, keepdims=True))
        out_ref[t] = s - lse

    for l in range(n_layers):
        h_out_ref[l] = hs[l]
        c_out_ref[l] = cs[l]


# --------------------------------- wrapper -----------------------------------
def decoder_forward(token_ids, hidden_cell, kp):
    """token_ids: (T, B) int32; hidden_cell: (h, c) each (L, B, H) f32."""
    h0, c0 = hidden_cell
    T, B = token_ids.shape
    L, _, H = h0.shape
    V = kp["w_fc"].shape[1]

    # --- hoisted out of the kernel (does not touch the recurrence) ---
    # Embedding gather for all steps + layer-0 input projection as one batched
    # matmul (T*B, H) @ (H, 4H), with the combined layer-0 bias folded in.
    x = kp["emb"][token_ids]                                        # (T, B, H)
    pre0 = (x.reshape(T * B, H) @ kp["w_ih0"]).reshape(T, B, 4 * H) + kp["b0"]

    vmem = pl.BlockSpec(memory_space=pltpu.MemorySpace.VMEM)
    kernel = functools.partial(_decoder_kernel, seq_len=T, n_layers=L, hidden=H)

    logp, h1, c1 = pl.pallas_call(
        kernel,
        out_shape=(
            jax.ShapeDtypeStruct((T, B, V), jnp.float32),
            jax.ShapeDtypeStruct((L, B, H), jnp.float32),
            jax.ShapeDtypeStruct((L, B, H), jnp.float32),
        ),
        in_specs=[vmem] * 8,
        out_specs=[vmem] * 3,
    )(pre0, h0, c0, kp["w_hh"], kp["w_ih_up"], kp["b_up"], kp["w_fc"], kp["b_fc"])
    return logp, (h1, c1)


# ------------------------------- parameters ----------------------------------
def init_params(key):
    """PyTorch-like f32 parameters (uniform(-1/sqrt(H), 1/sqrt(H)))."""
    ks = jax.random.split(key, 10)
    bound = 1.0 / np.sqrt(HIDDEN)

    def u(k, shape, b=bound):
        return jax.random.uniform(k, shape, jnp.float32, -b, b)

    return {
        "embedding": jax.random.normal(ks[0], (VOC, HIDDEN), jnp.float32),
        # LSTM weights pre-transposed to (in, 4H); gate order i,f,g,o.
        "w_ih": u(ks[1], (N_LAYERS, HIDDEN, 4 * HIDDEN)),
        "w_hh": u(ks[2], (N_LAYERS, HIDDEN, 4 * HIDDEN)),
        "b_ih": u(ks[3], (N_LAYERS, 4 * HIDDEN)),
        "b_hh": u(ks[4], (N_LAYERS, 4 * HIDDEN)),
        # fc1: (H -> FC), fc2: (FC -> VOC), pre-transposed to (in, out).
        "w1": u(ks[5], (HIDDEN, FC)),
        "b1": u(ks[6], (FC,)),
        "w2": u(ks[7], (FC, VOC), 1.0 / np.sqrt(FC)),
        "b2": u(ks[8], (VOC,), 1.0 / np.sqrt(FC)),
    }


def prepare_kernel_params(params, batch):
    """One-time host-side fusions for the kernel (all f32)."""
    # Combined layer-0 bias (folded into the precomputed input projection).
    b0 = (params["b_ih"][0] + params["b_hh"][0]).astype(jnp.float32)        # (4H,)
    # Combined, pre-broadcast biases for layers 1..L-1.
    b_up = jnp.broadcast_to(
        (params["b_ih"][1:] + params["b_hh"][1:])[:, None, :],
        (N_LAYERS - 1, batch, 4 * HIDDEN)).astype(jnp.float32)              # (L-1, B, 4H)
    # Exact fc1*fc2 fold (no nonlinearity between them in the module).
    w_fc = (params["w1"] @ params["w2"]).astype(jnp.float32)                # (H, V)
    b_fc = jnp.broadcast_to(
        (params["b1"] @ params["w2"] + params["b2"])[None, :],
        (batch, VOC)).astype(jnp.float32)                                   # (B, V)
    return {
        "emb": params["embedding"],
        "w_ih0": params["w_ih"][0],            # (H, 4H)  used only in XLA precompute
        "b0": b0,
        "w_hh": params["w_hh"],                # (L, H, 4H)
        "w_ih_up": params["w_ih"][1:],         # (L-1, H, 4H)
        "b_up": b_up,                          # (L-1, B, 4H)
        "w_fc": w_fc,
        "b_fc": b_fc,
    }


# ----------------------------- pure-JAX reference ----------------------------
def decoder_forward_ref(token_ids, hidden_cell, params):
    """Module semantics in plain JAX/f32 (teacher-forced T steps)."""
    h0, c0 = hidden_cell
    T, _ = token_ids.shape
    L, _, H = h0.shape
    h = [h0[l] for l in range(L)]
    c = [c0[l] for l in range(L)]
    outs = []
    for t in range(T):
        x = params["embedding"][token_ids[t]]
        for l in range(L):
            gates = (x @ params["w_ih"][l] + params["b_ih"][l]
                     + h[l] @ params["w_hh"][l] + params["b_hh"][l])
            i = jax.nn.sigmoid(gates[:, 0 * H:1 * H])
            f = jax.nn.sigmoid(gates[:, 1 * H:2 * H])
            g = jnp.tanh(gates[:, 2 * H:3 * H])
            o = jax.nn.sigmoid(gates[:, 3 * H:4 * H])
            c[l] = f * c[l] + i * g
            h[l] = o * jnp.tanh(c[l])
            x = h[l]
        z = (x @ params["w1"] + params["b1"]) @ params["w2"] + params["b2"]
        outs.append(jax.nn.log_softmax(z, axis=-1))
    return jnp.stack(outs), (jnp.stack(h), jnp.stack(c))


# ----------------------------------- main -------------------------------------
if __name__ == "__main__":
    key = jax.random.PRNGKey(0)
    pkey, ikey, hkey, ckey = jax.random.split(key, 4)

    params = init_params(pkey)
    kparams = prepare_kernel_params(params, BATCH)

    token_ids = jax.random.randint(ikey, (SEQ, BATCH), 0, VOC, dtype=jnp.int32)
    h0 = jax.random.normal(hkey, (N_LAYERS, BATCH, HIDDEN), jnp.float32)
    c0 = jax.random.normal(ckey, (N_LAYERS, BATCH, HIDDEN), jnp.float32)

    fwd = jax.jit(decoder_forward)
    logp, (h1, c1) = fwd(token_ids, (h0, c0), kparams)
    jax.block_until_ready((logp, h1, c1))

    # Sanity check against the f32 pure-JAX reference.  The all-f32 kernel path
    # typically matches much tighter; tolerance covers default MXU matmul
    # precision and the exact-but-reassociated fc1*fc2 fold.
    logp_r, (h1_r, c1_r) = decoder_forward_ref(token_ids, (h0, c0), params)
    np.testing.assert_allclose(np.asarray(logp), np.asarray(logp_r), atol=5e-2, rtol=5e-2)
    np.testing.assert_allclose(np.asarray(h1), np.asarray(h1_r), atol=5e-2, rtol=5e-2)
    np.testing.assert_allclose(np.asarray(c1), np.asarray(c1_r), atol=5e-2, rtol=5e-2)

    print("KERNEL_OK")
</pallas_src>

<mosaic_0001>
module attributes {stable_mosaic.version = 11 : i64} {
  func.func @_decoder_kernel(%arg0: memref<8x8x512xf32, #tpu.memory_space<vmem>>, %arg1: memref<2x8x128xf32, #tpu.memory_space<vmem>>, %arg2: memref<2x8x128xf32, #tpu.memory_space<vmem>>, %arg3: memref<2x128x512xf32, #tpu.memory_space<vmem>>, %arg4: memref<1x128x512xf32, #tpu.memory_space<vmem>>, %arg5: memref<1x8x512xf32, #tpu.memory_space<vmem>>, %arg6: memref<128x256xf32, #tpu.memory_space<vmem>>, %arg7: memref<8x256xf32, #tpu.memory_space<vmem>>, %arg8: memref<8x8x256xf32, #tpu.memory_space<vmem>>, %arg9: memref<2x8x128xf32, #tpu.memory_space<vmem>>, %arg10: memref<2x8x128xf32, #tpu.memory_space<vmem>>) attributes {dimension_semantics = [], scalar_prefetch = 0 : i64, scratch_operands = 0 : i64, tpu.core_type = #tpu.core_type<tc>} {
    %c0 = arith.constant 0 : index
    %c0_0 = arith.constant 0 : index
    %0 = vector.load %arg6[%c0, %c0_0] : memref<128x256xf32, #tpu.memory_space<vmem>>, vector<128x256xf32>
    %c0_1 = arith.constant 0 : index
    %c0_2 = arith.constant 0 : index
    %1 = vector.load %arg7[%c0_1, %c0_2] : memref<8x256xf32, #tpu.memory_space<vmem>>, vector<8x256xf32>
    %c0_3 = arith.constant 0 : index
    %c0_4 = arith.constant 0 : index
    %c0_5 = arith.constant 0 : index
    %2 = vector.load %arg1[%c0_3, %c0_4, %c0_5] : memref<2x8x128xf32, #tpu.memory_space<vmem>>, vector<1x8x128xf32>
    %3 = vector.shape_cast %2 : vector<1x8x128xf32> to vector<8x128xf32>
    %c1 = arith.constant 1 : index
    %c0_6 = arith.constant 0 : index
    %c0_7 = arith.constant 0 : index
    %4 = vector.load %arg1[%c1, %c0_6, %c0_7] : memref<2x8x128xf32, #tpu.memory_space<vmem>>, vector<1x8x128xf32>
    %5 = vector.shape_cast %4 : vector<1x8x128xf32> to vector<8x128xf32>
    %c0_8 = arith.constant 0 : index
    %c0_9 = arith.constant 0 : index
    %c0_10 = arith.constant 0 : index
    %6 = vector.load %arg2[%c0_8, %c0_9, %c0_10] : memref<2x8x128xf32, #tpu.memory_space<vmem>>, vector<1x8x128xf32>
    %7 = vector.shape_cast %6 : vector<1x8x128xf32> to vector<8x128xf32>
    %c1_11 = arith.constant 1 : index
    %c0_12 = arith.constant 0 : index
    %c0_13 = arith.constant 0 : index
    %8 = vector.load %arg2[%c1_11, %c0_12, %c0_13] : memref<2x8x128xf32, #tpu.memory_space<vmem>>, vector<1x8x128xf32>
    %9 = vector.shape_cast %8 : vector<1x8x128xf32> to vector<8x128xf32>
    %c0_14 = arith.constant 0 : index
    %c0_15 = arith.constant 0 : index
    %c0_16 = arith.constant 0 : index
    %10 = vector.load %arg0[%c0_14, %c0_15, %c0_16] : memref<8x8x512xf32, #tpu.memory_space<vmem>>, vector<1x8x512xf32>
    %11 = vector.shape_cast %10 : vector<1x8x512xf32> to vector<8x512xf32>
    %c0_17 = arith.constant 0 : index
    %c0_18 = arith.constant 0 : index
    %c0_19 = arith.constant 0 : index
    %12 = vector.load %arg3[%c0_17, %c0_18, %c0_19] : memref<2x128x512xf32, #tpu.memory_space<vmem>>, vector<1x128x512xf32>
    %13 = vector.shape_cast %12 : vector<1x128x512xf32> to vector<128x512xf32>
    %cst = arith.constant dense<0.000000e+00> : vector<8x512xf32>
    %14 = tpu.matmul %3, %13, %cst {dimension_numbers = #tpu.dot_dimension_numbers<[1], [0], [0], [1], [0, 0, 1, 1], [], []>} : vector<8x128xf32>, vector<128x512xf32>, vector<8x512xf32> -> vector<8x512xf32>
    %15 = arith.addf %11, %14 : vector<8x512xf32>
    %16 = vector.extract_strided_slice %15 {offsets = [0, 0], sizes = [8, 128], strides = [1, 1]} : vector<8x512xf32> to vector<8x128xf32>
    %17 = arith.negf %16 : vector<8x128xf32>
    %18 = math.exp %17 : vector<8x128xf32>
    %cst_20 = arith.constant 1.000000e+00 : f32
    %19 = vector.broadcast %cst_20 : f32 to vector<8x128xf32>
    %20 = arith.addf %19, %18 : vector<8x128xf32>
    %21 = arith.divf %19, %20 : vector<8x128xf32>
    %22 = vector.extract_strided_slice %15 {offsets = [0, 128], sizes = [8, 128], strides = [1, 1]} : vector<8x512xf32> to vector<8x128xf32>
    %23 = arith.negf %22 : vector<8x128xf32>
    %24 = math.exp %23 : vector<8x128xf32>
    %cst_21 = arith.constant 1.000000e+00 : f32
    %25 = vector.broadcast %cst_21 : f32 to vector<8x128xf32>
    %26 = arith.addf %25, %24 : vector<8x128xf32>
    %27 = arith.divf %25, %26 : vector<8x128xf32>
    %28 = vector.extract_strided_slice %15 {offsets = [0, 256], sizes = [8, 128], strides = [1, 1]} : vector<8x512xf32> to vector<8x128xf32>
    %29 = math.tanh %28 : vector<8x128xf32>
    %30 = vector.extract_strided_slice %15 {offsets = [0, 384], sizes = [8, 128], strides = [1, 1]} : vector<8x512xf32> to vector<8x128xf32>
    %31 = arith.negf %30 : vector<8x128xf32>
    %32 = math.exp %31 : vector<8x128xf32>
    %cst_22 = arith.constant 1.000000e+00 : f32
    %33 = vector.broadcast %cst_22 : f32 to vector<8x128xf32>
    %34 = arith.addf %33, %32 : vector<8x128xf32>
    %35 = arith.divf %33, %34 : vector<8x128xf32>
    %36 = arith.mulf %27, %7 : vector<8x128xf32>
    %37 = arith.mulf %21, %29 : vector<8x128xf32>
    %38 = arith.addf %36, %37 : vector<8x128xf32>
    %39 = math.tanh %38 : vector<8x128xf32>
    %40 = arith.mulf %35, %39 : vector<8x128xf32>
    %c0_23 = arith.constant 0 : index
    %c0_24 = arith.constant 0 : index
    %c0_25 = arith.constant 0 : index
    %41 = vector.load %arg4[%c0_23, %c0_24, %c0_25] : memref<1x128x512xf32, #tpu.memory_space<vmem>>, vector<1x128x512xf32>
    %42 = vector.shape_cast %41 : vector<1x128x512xf32> to vector<128x512xf32>
    %cst_26 = arith.constant dense<0.000000e+00> : vector<8x512xf32>
    %43 = tpu.matmul %40, %42, %cst_26 {dimension_numbers = #tpu.dot_dimension_numbers<[1], [0], [0], [1], [0, 0, 1, 1], [], []>} : vector<8x128xf32>, vector<128x512xf32>, vector<8x512xf32> -> vector<8x512xf32>
    %c1_27 = arith.constant 1 : index
    %c0_28 = arith.constant 0 : index
    %c0_29 = arith.constant 0 : index
    %44 = vector.load %arg3[%c1_27, %c0_28, %c0_29] : memref<2x128x512xf32, #tpu.memory_space<vmem>>, vector<1x128x512xf32>
    %45 = vector.shape_cast %44 : vector<1x128x512xf32> to vector<128x512xf32>
    %cst_30 = arith.constant dense<0.000000e+00> : vector<8x512xf32>
    %46 = tpu.matmul %5, %45, %cst_30 {dimension_numbers = #tpu.dot_dimension_numbers<[1], [0], [0], [1], [0, 0, 1, 1], [], []>} : vector<8x128xf32>, vector<128x512xf32>, vector<8x512xf32> -> vector<8x512xf32>
    %47 = arith.addf %43, %46 : vector<8x512xf32>
    %c0_31 = arith.constant 0 : index
    %c0_32 = arith.constant 0 : index
    %c0_33 = arith.constant 0 : index
    %48 = vector.load %arg5[%c0_31, %c0_32, %c0_33] : memref<1x8x512xf32, #tpu.memory_space<vmem>>, vector<1x8x512xf32>
    %49 = vector.shape_cast %48 : vector<1x8x512xf32> to vector<8x512xf32>
    %50 = arith.addf %47, %49 : vector<8x512xf32>
    %51 = vector.extract_strided_slice %50 {offsets = [0, 0], sizes = [8, 128], strides = [1, 1]} : vector<8x512xf32> to vector<8x128xf32>
    %52 = arith.negf %51 : vector<8x128xf32>
    %53 = math.exp %52 : vector<8x128xf32>
    %cst_34 = arith.constant 1.000000e+00 : f32
    %54 = vector.broadcast %cst_34 : f32 to vector<8x128xf32>
    %55 = arith.addf %54, %53 : vector<8x128xf32>
    %56 = arith.divf %54, %55 : vector<8x128xf32>
    %57 = vector.extract_strided_slice %50 {offsets = [0, 128], sizes = [8, 128], strides = [1, 1]} : vector<8x512xf32> to vector<8x128xf32>
    %58 = arith.negf %57 : vector<8x128xf32>
    %59 = math.exp %58 : vector<8x128xf32>
    %cst_35 = arith.constant 1.000000e+00 : f32
    %60 = vector.broadcast %cst_35 : f32 to vector<8x128xf32>
    %61 = arith.addf %60, %59 : vector<8x128xf32>
    %62 = arith.divf %60, %61 : vector<8x128xf32>
    %63 = vector.extract_strided_slice %50 {offsets = [0, 256], sizes = [8, 128], strides = [1, 1]} : vector<8x512xf32> to vector<8x128xf32>
    %64 = math.tanh %63 : vector<8x128xf32>
    %65 = vector.extract_strided_slice %50 {offsets = [0, 384], sizes = [8, 128], strides = [1, 1]} : vector<8x512xf32> to vector<8x128xf32>
    %66 = arith.negf %65 : vector<8x128xf32>
    %67 = math.exp %66 : vector<8x128xf32>
    %cst_36 = arith.constant 1.000000e+00 : f32
    %68 = vector.broadcast %cst_36 : f32 to vector<8x128xf32>
    %69 = arith.addf %68, %67 : vector<8x128xf32>
    %70 = arith.divf %68, %69 : vector<8x128xf32>
    %71 = arith.mulf %62, %9 : vector<8x128xf32>
    %72 = arith.mulf %56, %64 : vector<8x128xf32>
    %73 = arith.addf %71, %72 : vector<8x128xf32>
    %74 = math.tanh %73 : vector<8x128xf32>
    %75 = arith.mulf %70, %74 : vector<8x128xf32>
    %cst_37 = arith.constant dense<0.000000e+00> : vector<8x256xf32>
    %76 = tpu.matmul %75, %0, %cst_37 {dimension_numbers = #tpu.dot_dimension_numbers<[1], [0], [0], [1], [0, 0, 1, 1], [], []>} : vector<8x128xf32>, vector<128x256xf32>, vector<8x256xf32> -> vector<8x256xf32>
    %77 = arith.addf %76, %1 : vector<8x256xf32>
    %cst_38 = arith.constant dense<0xFF800000> : vector<8xf32>
    %78 = vector.multi_reduction <maximumf>, %77, %cst_38 [1] : vector<8x256xf32> to vector<8xf32>
    %79 = vector.shape_cast %78 : vector<8xf32> to vector<8x1xf32>
    %80 = vector.broadcast %79 : vector<8x1xf32> to vector<8x256xf32>
    %81 = arith.subf %77, %80 : vector<8x256xf32>
    %82 = math.exp %81 : vector<8x256xf32>
    %cst_39 = arith.constant dense<0.000000e+00> : vector<8xf32>
    %83 = vector.multi_reduction <add>, %82, %cst_39 [1] : vector<8x256xf32> to vector<8xf32>
    %84 = vector.shape_cast %83 : vector<8xf32> to vector<8x1xf32>
    %85 = math.log %84 : vector<8x1xf32>
    %86 = vector.broadcast %85 : vector<8x1xf32> to vector<8x256xf32>
    %87 = arith.subf %81, %86 : vector<8x256xf32>
    %c0_40 = arith.constant 0 : index
    %c0_41 = arith.constant 0 : index
    %c0_42 = arith.constant 0 : index
    %88 = vector.load %arg8[%c0_40, %c0_41, %c0_42] : memref<8x8x256xf32, #tpu.memory_space<vmem>>, vector<1x8x256xf32>
    %89 = vector.shape_cast %88 : vector<1x8x256xf32> to vector<8x256xf32>
    %90 = vector.shape_cast %87 : vector<8x256xf32> to vector<1x8x256xf32>
    tpu.vector_store %arg8[%c0_40, %c0_41, %c0_42], %90 {strides = array<i32>} : memref<8x8x256xf32, #tpu.memory_space<vmem>>, vector<1x8x256xf32>,
    %c1_43 = arith.constant 1 : index
    %c0_44 = arith.constant 0 : index
    %c0_45 = arith.constant 0 : index
    %91 = vector.load %arg0[%c1_43, %c0_44, %c0_45] : memref<8x8x512xf32, #tpu.memory_space<vmem>>, vector<1x8x512xf32>
    %92 = vector.shape_cast %91 : vector<1x8x512xf32> to vector<8x512xf32>
    %c0_46 = arith.constant 0 : index
    %c0_47 = arith.constant 0 : index
    %c0_48 = arith.constant 0 : index
    %93 = vector.load %arg3[%c0_46, %c0_47, %c0_48] : memref<2x128x512xf32, #tpu.memory_space<vmem>>, vector<1x128x512xf32>
    %94 = vector.shape_cast %93 : vector<1x128x512xf32> to vector<128x512xf32>
    %cst_49 = arith.constant dense<0.000000e+00> : vector<8x512xf32>
    %95 = tpu.matmul %40, %94, %cst_49 {dimension_numbers = #tpu.dot_dimension_numbers<[1], [0], [0], [1], [0, 0, 1, 1], [], []>} : vector<8x128xf32>, vector<128x512xf32>, vector<8x512xf32> -> vector<8x512xf32>
    %96 = arith.addf %92, %95 : vector<8x512xf32>
    %97 = vector.extract_strided_slice %96 {offsets = [0, 0], sizes = [8, 128], strides = [1, 1]} : vector<8x512xf32> to vector<8x128xf32>
    %98 = arith.negf %97 : vector<8x128xf32>
    %99 = math.exp %98 : vector<8x128xf32>
    %cst_50 = arith.constant 1.000000e+00 : f32
    %100 = vector.broadcast %cst_50 : f32 to vector<8x128xf32>
    %101 = arith.addf %100, %99 : vector<8x128xf32>
    %102 = arith.divf %100, %101 : vector<8x128xf32>
    %103 = vector.extract_strided_slice %96 {offsets = [0, 128], sizes = [8, 128], strides = [1, 1]} : vector<8x512xf32> to vector<8x128xf32>
    %104 = arith.negf %103 : vector<8x128xf32>
    %105 = math.exp %104 : vector<8x128xf32>
    %cst_51 = arith.constant 1.000000e+00 : f32
    %106 = vector.broadcast %cst_51 : f32 to vector<8x128xf32>
    %107 = arith.addf %106, %105 : vector<8x128xf32>
    %108 = arith.divf %106, %107 : vector<8x128xf32>
    %109 = vector.extract_strided_slice %96 {offsets = [0, 256], sizes = [8, 128], strides = [1, 1]} : vector<8x512xf32> to vector<8x128xf32>
    %110 = math.tanh %109 : vector<8x128xf32>
    %111 = vector.extract_strided_slice %96 {offsets = [0, 384], sizes = [8, 128], strides = [1, 1]} : vector<8x512xf32> to vector<8x128xf32>
    %112 = arith.negf %111 : vector<8x128xf32>
    %113 = math.exp %112 : vector<8x128xf32>
    %cst_52 = arith.constant 1.000000e+00 : f32
    %114 = vector.broadcast %cst_52 : f32 to vector<8x128xf32>
    %115 = arith.addf %114, %113 : vector<8x128xf32>
    %116 = arith.divf %114, %115 : vector<8x128xf32>
    %117 = arith.mulf %108, %38 : vector<8x128xf32>
    %118 = arith.mulf %102, %110 : vector<8x128xf32>
    %119 = arith.addf %117, %118 : vector<8x128xf32>
    %120 = math.tanh %119 : vector<8x128xf32>
    %121 = arith.mulf %116, %120 : vector<8x128xf32>
    %c0_53 = arith.constant 0 : index
    %c0_54 = arith.constant 0 : index
    %c0_55 = arith.constant 0 : index
    %122 = vector.load %arg4[%c0_53, %c0_54, %c0_55] : memref<1x128x512xf32, #tpu.memory_space<vmem>>, vector<1x128x512xf32>
    %123 = vector.shape_cast %122 : vector<1x128x512xf32> to vector<128x512xf32>
    %cst_56 = arith.constant dense<0.000000e+00> : vector<8x512xf32>
    %124 = tpu.matmul %121, %123, %cst_56 {dimension_numbers = #tpu.dot_dimension_numbers<[1], [0], [0], [1], [0, 0, 1, 1], [], []>} : vector<8x128xf32>, vector<128x512xf32>, vector<8x512xf32> -> vector<8x512xf32>
    %c1_57 = arith.constant 1 : index
    %c0_58 = arith.constant 0 : index
    %c0_59 = arith.constant 0 : index
    %125 = vector.load %arg3[%c1_57, %c0_58, %c0_59] : memref<2x128x512xf32, #tpu.memory_space<vmem>>, vector<1x128x512xf32>
    %126 = vector.shape_cast %125 : vector<1x128x512xf32> to vector<128x512xf32>
    %cst_60 = arith.constant dense<0.000000e+00> : vector<8x512xf32>
    %127 = tpu.matmul %75, %126, %cst_60 {dimension_numbers = #tpu.dot_dimension_numbers<[1], [0], [0], [1], [0, 0, 1, 1], [], []>} : vector<8x128xf32>, vector<128x512xf32>, vector<8x512xf32> -> vector<8x512xf32>
    %128 = arith.addf %124, %127 : vector<8x512xf32>
    %c0_61 = arith.constant 0 : index
    %c0_62 = arith.constant 0 : index
    %c0_63 = arith.constant 0 : index
    %129 = vector.load %arg5[%c0_61, %c0_62, %c0_63] : memref<1x8x512xf32, #tpu.memory_space<vmem>>, vector<1x8x512xf32>
    %130 = vector.shape_cast %129 : vector<1x8x512xf32> to vector<8x512xf32>
    %131 = arith.addf %128, %130 : vector<8x512xf32>
    %132 = vector.extract_strided_slice %131 {offsets = [0, 0], sizes = [8, 128], strides = [1, 1]} : vector<8x512xf32> to vector<8x128xf32>
    %133 = arith.negf %132 : vector<8x128xf32>
    %134 = math.exp %133 : vector<8x128xf32>
    %cst_64 = arith.constant 1.000000e+00 : f32
    %135 = vector.broadcast %cst_64 : f32 to vector<8x128xf32>
    %136 = arith.addf %135, %134 : vector<8x128xf32>
    %137 = arith.divf %135, %136 : vector<8x128xf32>
    %138 = vector.extract_strided_slice %131 {offsets = [0, 128], sizes = [8, 128], strides = [1, 1]} : vector<8x512xf32> to vector<8x128xf32>
    %139 = arith.negf %138 : vector<8x128xf32>
    %140 = math.exp %139 : vector<8x128xf32>
    %cst_65 = arith.constant 1.000000e+00 : f32
    %141 = vector.broadcast %cst_65 : f32 to vector<8x128xf32>
    %142 = arith.addf %141, %140 : vector<8x128xf32>
    %143 = arith.divf %141, %142 : vector<8x128xf32>
    %144 = vector.extract_strided_slice %131 {offsets = [0, 256], sizes = [8, 128], strides = [1, 1]} : vector<8x512xf32> to vector<8x128xf32>
    %145 = math.tanh %144 : vector<8x128xf32>
    %146 = vector.extract_strided_slice %131 {offsets = [0, 384], sizes = [8, 128], strides = [1, 1]} : vector<8x512xf32> to vector<8x128xf32>
    %147 = arith.negf %146 : vector<8x128xf32>
    %148 = math.exp %147 : vector<8x128xf32>
    %cst_66 = arith.constant 1.000000e+00 : f32
    %149 = vector.broadcast %cst_66 : f32 to vector<8x128xf32>
    %150 = arith.addf %149, %148 : vector<8x128xf32>
    %151 = arith.divf %149, %150 : vector<8x128xf32>
    %152 = arith.mulf %143, %73 : vector<8x128xf32>
    %153 = arith.mulf %137, %145 : vector<8x128xf32>
    %154 = arith.addf %152, %153 : vector<8x128xf32>
    %155 = math.tanh %154 : vector<8x128xf32>
    %156 = arith.mulf %151, %155 : vector<8x128xf32>
    %cst_67 = arith.constant dense<0.000000e+00> : vector<8x256xf32>
    %157 = tpu.matmul %156, %0, %cst_67 {dimension_numbers = #tpu.dot_dimension_numbers<[1], [0], [0], [1], [0, 0, 1, 1], [], []>} : vector<8x128xf32>, vector<128x256xf32>, vector<8x256xf32> -> vector<8x256xf32>
    %158 = arith.addf %157, %1 : vector<8x256xf32>
    %cst_68 = arith.constant dense<0xFF800000> : vector<8xf32>
    %159 = vector.multi_reduction <maximumf>, %158, %cst_68 [1] : vector<8x256xf32> to vector<8xf32>
    %160 = vector.shape_cast %159 : vector<8xf32> to vector<8x1xf32>
    %161 = vector.broadcast %160 : vector<8x1xf32> to vector<8x256xf32>
    %162 = arith.subf %158, %161 : vector<8x256xf32>
    %163 = math.exp %162 : vector<8x256xf32>
    %cst_69 = arith.constant dense<0.000000e+00> : vector<8xf32>
    %164 = vector.multi_reduction <add>, %163, %cst_69 [1] : vector<8x256xf32> to vector<8xf32>
    %165 = vector.shape_cast %164 : vector<8xf32> to vector<8x1xf32>
    %166 = math.log %165 : vector<8x1xf32>
    %167 = vector.broadcast %166 : vector<8x1xf32> to vector<8x256xf32>
    %168 = arith.subf %162, %167 : vector<8x256xf32>
    %c1_70 = arith.constant 1 : index
    %c0_71 = arith.constant 0 : index
    %c0_72 = arith.constant 0 : index
    %169 = vector.load %arg8[%c1_70, %c0_71, %c0_72] : memref<8x8x256xf32, #tpu.memory_space<vmem>>, vector<1x8x256xf32>
    %170 = vector.shape_cast %169 : vector<1x8x256xf32> to vector<8x256xf32>
    %171 = vector.shape_cast %168 : vector<8x256xf32> to vector<1x8x256xf32>
    tpu.vector_store %arg8[%c1_70, %c0_71, %c0_72], %171 {strides = array<i32>} : memref<8x8x256xf32, #tpu.memory_space<vmem>>, vector<1x8x256xf32>,
    %c2 = arith.constant 2 : index
    %c0_73 = arith.constant 0 : index
    %c0_74 = arith.constant 0 : index
    %172 = vector.load %arg0[%c2, %c0_73, %c0_74] : memref<8x8x512xf32, #tpu.memory_space<vmem>>, vector<1x8x512xf32>
    %173 = vector.shape_cast %172 : vector<1x8x512xf32> to vector<8x512xf32>
    %c0_75 = arith.constant 0 : index
    %c0_76 = arith.constant 0 : index
    %c0_77 = arith.constant 0 : index
    %174 = vector.load %arg3[%c0_75, %c0_76, %c0_77] : memref<2x128x512xf32, #tpu.memory_space<vmem>>, vector<1x128x512xf32>
    %175 = vector.shape_cast %174 : vector<1x128x512xf32> to vector<128x512xf32>
    %cst_78 = arith.constant dense<0.000000e+00> : vector<8x512xf32>
    %176 = tpu.matmul %121, %175, %cst_78 {dimension_numbers = #tpu.dot_dimension_numbers<[1], [0], [0], [1], [0, 0, 1, 1], [], []>} : vector<8x128xf32>, vector<128x512xf32>, vector<8x512xf32> -> vector<8x512xf32>
    %177 = arith.addf %173, %176 : vector<8x512xf32>
    %178 = vector.extract_strided_slice %177 {offsets = [0, 0], sizes = [8, 128], strides = [1, 1]} : vector<8x512xf32> to vector<8x128xf32>
    %179 = arith.negf %178 : vector<8x128xf32>
    %180 = math.exp %179 : vector<8x128xf32>
    %cst_79 = arith.constant 1.000000e+00 : f32
    %181 = vector.broadcast %cst_79 : f32 to vector<8x128xf32>
    %182 = arith.addf %181, %180 : vector<8x128xf32>
    %183 = arith.divf %181, %182 : vector<8x128xf32>
    %184 = vector.extract_strided_slice %177 {offsets = [0, 128], sizes = [8, 128], strides = [1, 1]} : vector<8x512xf32> to vector<8x128xf32>
    %185 = arith.negf %184 : vector<8x128xf32>
    %186 = math.exp %185 : vector<8x128xf32>
    %cst_80 = arith.constant 1.000000e+00 : f32
    %187 = vector.broadcast %cst_80 : f32 to vector<8x128xf32>
    %188 = arith.addf %187, %186 : vector<8x128xf32>
    %189 = arith.divf %187, %188 : vector<8x128xf32>
    %190 = vector.extract_strided_slice %177 {offsets = [0, 256], sizes = [8, 128], strides = [1, 1]} : vector<8x512xf32> to vector<8x128xf32>
    %191 = math.tanh %190 : vector<8x128xf32>
    %192 = vector.extract_strided_slice %177 {offsets = [0, 384], sizes = [8, 128], strides = [1, 1]} : vector<8x512xf32> to vector<8x128xf32>
    %193 = arith.negf %192 : vector<8x128xf32>
    %194 = math.exp %193 : vector<8x128xf32>
    %cst_81 = arith.constant 1.000000e+00 : f32
    %195 = vector.broadcast %cst_81 : f32 to vector<8x128xf32>
    %196 = arith.addf %195, %194 : vector<8x128xf32>
    %197 = arith.divf %195, %196 : vector<8x128xf32>
    %198 = arith.mulf %189, %119 : vector<8x128xf32>
    %199 = arith.mulf %183, %191 : vector<8x128xf32>
    %200 = arith.addf %198, %199 : vector<8x128xf32>
    %201 = math.tanh %200 : vector<8x128xf32>
    %202 = arith.mulf %197, %201 : vector<8x128xf32>
    %c0_82 = arith.constant 0 : index
    %c0_83 = arith.constant 0 : index
    %c0_84 = arith.constant 0 : index
    %203 = vector.load %arg4[%c0_82, %c0_83, %c0_84] : memref<1x128x512xf32, #tpu.memory_space<vmem>>, vector<1x128x512xf32>
    %204 = vector.shape_cast %203 : vector<1x128x512xf32> to vector<128x512xf32>
    %cst_85 = arith.constant dense<0.000000e+00> : vector<8x512xf32>
    %205 = tpu.matmul %202, %204, %cst_85 {dimension_numbers = #tpu.dot_dimension_numbers<[1], [0], [0], [1], [0, 0, 1, 1], [], []>} : vector<8x128xf32>, vector<128x512xf32>, vector<8x512xf32> -> vector<8x512xf32>
    %c1_86 = arith.constant 1 : index
    %c0_87 = arith.constant 0 : index
    %c0_88 = arith.constant 0 : index
    %206 = vector.load %arg3[%c1_86, %c0_87, %c0_88] : memref<2x128x512xf32, #tpu.memory_space<vmem>>, vector<1x128x512xf32>
    %207 = vector.shape_cast %206 : vector<1x128x512xf32> to vector<128x512xf32>
    %cst_89 = arith.constant dense<0.000000e+00> : vector<8x512xf32>
    %208 = tpu.matmul %156, %207, %cst_89 {dimension_numbers = #tpu.dot_dimension_numbers<[1], [0], [0], [1], [0, 0, 1, 1], [], []>} : vector<8x128xf32>, vector<128x512xf32>, vector<8x512xf32> -> vector<8x512xf32>
    %209 = arith.addf %205, %208 : vector<8x512xf32>
    %c0_90 = arith.constant 0 : index
    %c0_91 = arith.constant 0 : index
    %c0_92 = arith.constant 0 : index
    %210 = vector.load %arg5[%c0_90, %c0_91, %c0_92] : memref<1x8x512xf32, #tpu.memory_space<vmem>>, vector<1x8x512xf32>
    %211 = vector.shape_cast %210 : vector<1x8x512xf32> to vector<8x512xf32>
    %212 = arith.addf %209, %211 : vector<8x512xf32>
    %213 = vector.extract_strided_slice %212 {offsets = [0, 0], sizes = [8, 128], strides = [1, 1]} : vector<8x512xf32> to vector<8x128xf32>
    %214 = arith.negf %213 : vector<8x128xf32>
    %215 = math.exp %214 : vector<8x128xf32>
    %cst_93 = arith.constant 1.000000e+00 : f32
    %216 = vector.broadcast %cst_93 : f32 to vector<8x128xf32>
    %217 = arith.addf %216, %215 : vector<8x128xf32>
    %218 = arith.divf %216, %217 : vector<8x128xf32>
    %219 = vector.extract_strided_slice %212 {offsets = [0, 128], sizes = [8, 128], strides = [1, 1]} : vector<8x512xf32> to vector<8x128xf32>
    %220 = arith.negf %219 : vector<8x128xf32>
    %221 = math.exp %220 : vector<8x128xf32>
    %cst_94 = arith.constant 1.000000e+00 : f32
    %222 = vector.broadcast %cst_94 : f32 to vector<8x128xf32>
    %223 = arith.addf %222, %221 : vector<8x128xf32>
    %224 = arith.divf %222, %223 : vector<8x128xf32>
    %225 = vector.extract_strided_slice %212 {offsets = [0, 256], sizes = [8, 128], strides = [1, 1]} : vector<8x512xf32> to vector<8x128xf32>
    %226 = math.tanh %225 : vector<8x128xf32>
    %227 = vector.extract_strided_slice %212 {offsets = [0, 384], sizes = [8, 128], strides = [1, 1]} : vector<8x512xf32> to vector<8x128xf32>
    %228 = arith.negf %227 : vector<8x128xf32>
    %229 = math.exp %228 : vector<8x128xf32>
    %cst_95 = arith.constant 1.000000e+00 : f32
    %230 = vector.broadcast %cst_95 : f32 to vector<8x128xf32>
    %231 = arith.addf %230, %229 : vector<8x128xf32>
    %232 = arith.divf %230, %231 : vector<8x128xf32>
    %233 = arith.mulf %224, %154 : vector<8x128xf32>
    %234 = arith.mulf %218, %226 : vector<8x128xf32>
    %235 = arith.addf %233, %234 : vector<8x128xf32>
    %236 = math.tanh %235 : vector<8x128xf32>
    %237 = arith.mulf %232, %236 : vector<8x128xf32>
    %cst_96 = arith.constant dense<0.000000e+00> : vector<8x256xf32>
    %238 = tpu.matmul %237, %0, %cst_96 {dimension_numbers = #tpu.dot_dimension_numbers<[1], [0], [0], [1], [0, 0, 1, 1], [], []>} : vector<8x128xf32>, vector<128x256xf32>, vector<8x256xf32> -> vector<8x256xf32>
    %239 = arith.addf %238, %1 : vector<8x256xf32>
    %cst_97 = arith.constant dense<0xFF800000> : vector<8xf32>
    %240 = vector.multi_reduction <maximumf>, %239, %cst_97 [1] : vector<8x256xf32> to vector<8xf32>
    %241 = vector.shape_cast %240 : vector<8xf32> to vector<8x1xf32>
    %242 = vector.broadcast %241 : vector<8x1xf32> to vector<8x256xf32>
    %243 = arith.subf %239, %242 : vector<8x256xf32>
    %244 = math.exp %243 : vector<8x256xf32>
    %cst_98 = arith.constant dense<0.000000e+00> : vector<8xf32>
    %245 = vector.multi_reduction <add>, %244, %cst_98 [1] : vector<8x256xf32> to vector<8xf32>
    %246 = vector.shape_cast %245 : vector<8xf32> to vector<8x1xf32>
    %247 = math.log %246 : vector<8x1xf32>
    %248 = vector.broadcast %247 : vector<8x1xf32> to vector<8x256xf32>
    %249 = arith.subf %243, %248 : vector<8x256xf32>
    %c2_99 = arith.constant 2 : index
    %c0_100 = arith.constant 0 : index
    %c0_101 = arith.constant 0 : index
    %250 = vector.load %arg8[%c2_99, %c0_100, %c0_101] : memref<8x8x256xf32, #tpu.memory_space<vmem>>, vector<1x8x256xf32>
    %251 = vector.shape_cast %250 : vector<1x8x256xf32> to vector<8x256xf32>
    %252 = vector.shape_cast %249 : vector<8x256xf32> to vector<1x8x256xf32>
    tpu.vector_store %arg8[%c2_99, %c0_100, %c0_101], %252 {strides = array<i32>} : memref<8x8x256xf32, #tpu.memory_space<vmem>>, vector<1x8x256xf32>,
    %c3 = arith.constant 3 : index
    %c0_102 = arith.constant 0 : index
    %c0_103 = arith.constant 0 : index
    %253 = vector.load %arg0[%c3, %c0_102, %c0_103] : memref<8x8x512xf32, #tpu.memory_space<vmem>>, vector<1x8x512xf32>
    %254 = vector.shape_cast %253 : vector<1x8x512xf32> to vector<8x512xf32>
    %c0_104 = arith.constant 0 : index
    %c0_105 = arith.constant 0 : index
    %c0_106 = arith.constant 0 : index
    %255 = vector.load %arg3[%c0_104, %c0_105, %c0_106] : memref<2x128x512xf32, #tpu.memory_space<vmem>>, vector<1x128x512xf32>
    %256 = vector.shape_cast %255 : vector<1x128x512xf32> to vector<128x512xf32>
    %cst_107 = arith.constant dense<0.000000e+00> : vector<8x512xf32>
    %257 = tpu.matmul %202, %256, %cst_107 {dimension_numbers = #tpu.dot_dimension_numbers<[1], [0], [0], [1], [0, 0, 1, 1], [], []>} : vector<8x128xf32>, vector<128x512xf32>, vector<8x512xf32> -> vector<8x512xf32>
    %258 = arith.addf %254, %257 : vector<8x512xf32>
    %259 = vector.extract_strided_slice %258 {offsets = [0, 0], sizes = [8, 128], strides = [1, 1]} : vector<8x512xf32> to vector<8x128xf32>
    %260 = arith.negf %259 : vector<8x128xf32>
    %261 = math.exp %260 : vector<8x128xf32>
    %cst_108 = arith.constant 1.000000e+00 : f32
    %262 = vector.broadcast %cst_108 : f32 to vector<8x128xf32>
    %263 = arith.addf %262, %261 : vector<8x128xf32>
    %264 = arith.divf %262, %263 : vector<8x128xf32>
    %265 = vector.extract_strided_slice %258 {offsets = [0, 128], sizes = [8, 128], strides = [1, 1]} : vector<8x512xf32> to vector<8x128xf32>
    %266 = arith.negf %265 : vector<8x128xf32>
    %267 = math.exp %266 : vector<8x128xf32>
    %cst_109 = arith.constant 1.000000e+00 : f32
    %268 = vector.broadcast %cst_109 : f32 to vector<8x128xf32>
    %269 = arith.addf %268, %267 : vector<8x128xf32>
    %270 = arith.divf %268, %269 : vector<8x128xf32>
    %271 = vector.extract_strided_slice %258 {offsets = [0, 256], sizes = [8, 128], strides = [1, 1]} : vector<8x512xf32> to vector<8x128xf32>
    %272 = math.tanh %271 : vector<8x128xf32>
    %273 = vector.extract_strided_slice %258 {offsets = [0, 384], sizes = [8, 128], strides = [1, 1]} : vector<8x512xf32> to vector<8x128xf32>
    %274 = arith.negf %273 : vector<8x128xf32>
    %275 = math.exp %274 : vector<8x128xf32>
    %cst_110 = arith.constant 1.000000e+00 : f32
    %276 = vector.broadcast %cst_110 : f32 to vector<8x128xf32>
    %277 = arith.addf %276, %275 : vector<8x128xf32>
    %278 = arith.divf %276, %277 : vector<8x128xf32>
    %279 = arith.mulf %270, %200 : vector<8x128xf32>
    %280 = arith.mulf %264, %272 : vector<8x128xf32>
    %281 = arith.addf %279, %280 : vector<8x128xf32>
    %282 = math.tanh %281 : vector<8x128xf32>
    %283 = arith.mulf %278, %282 : vector<8x128xf32>
    %c0_111 = arith.constant 0 : index
    %c0_112 = arith.constant 0 : index
    %c0_113 = arith.constant 0 : index
    %284 = vector.load %arg4[%c0_111, %c0_112, %c0_113] : memref<1x128x512xf32, #tpu.memory_space<vmem>>, vector<1x128x512xf32>
    %285 = vector.shape_cast %284 : vector<1x128x512xf32> to vector<128x512xf32>
    %cst_114 = arith.constant dense<0.000000e+00> : vector<8x512xf32>
    %286 = tpu.matmul %283, %285, %cst_114 {dimension_numbers = #tpu.dot_dimension_numbers<[1], [0], [0], [1], [0, 0, 1, 1], [], []>} : vector<8x128xf32>, vector<128x512xf32>, vector<8x512xf32> -> vector<8x512xf32>
    %c1_115 = arith.constant 1 : index
    %c0_116 = arith.constant 0 : index
    %c0_117 = arith.constant 0 : index
    %287 = vector.load %arg3[%c1_115, %c0_116, %c0_117] : memref<2x128x512xf32, #tpu.memory_space<vmem>>, vector<1x128x512xf32>
    %288 = vector.shape_cast %287 : vector<1x128x512xf32> to vector<128x512xf32>
    %cst_118 = arith.constant dense<0.000000e+00> : vector<8x512xf32>
    %289 = tpu.matmul %237, %288, %cst_118 {dimension_numbers = #tpu.dot_dimension_numbers<[1], [0], [0], [1], [0, 0, 1, 1], [], []>} : vector<8x128xf32>, vector<128x512xf32>, vector<8x512xf32> -> vector<8x512xf32>
    %290 = arith.addf %286, %289 : vector<8x512xf32>
    %c0_119 = arith.constant 0 : index
    %c0_120 = arith.constant 0 : index
    %c0_121 = arith.constant 0 : index
    %291 = vector.load %arg5[%c0_119, %c0_120, %c0_121] : memref<1x8x512xf32, #tpu.memory_space<vmem>>, vector<1x8x512xf32>
    %292 = vector.shape_cast %291 : vector<1x8x512xf32> to vector<8x512xf32>
    %293 = arith.addf %290, %292 : vector<8x512xf32>
    %294 = vector.extract_strided_slice %293 {offsets = [0, 0], sizes = [8, 128], strides = [1, 1]} : vector<8x512xf32> to vector<8x128xf32>
    %295 = arith.negf %294 : vector<8x128xf32>
    %296 = math.exp %295 : vector<8x128xf32>
    %cst_122 = arith.constant 1.000000e+00 : f32
    %297 = vector.broadcast %cst_122 : f32 to vector<8x128xf32>
    %298 = arith.addf %297, %296 : vector<8x128xf32>
    %299 = arith.divf %297, %298 : vector<8x128xf32>
    %300 = vector.extract_strided_slice %293 {offsets = [0, 128], sizes = [8, 128], strides = [1, 1]} : vector<8x512xf32> to vector<8x128xf32>
    %301 = arith.negf %300 : vector<8x128xf32>
    %302 = math.exp %301 : vector<8x128xf32>
    %cst_123 = arith.constant 1.000000e+00 : f32
    %303 = vector.broadcast %cst_123 : f32 to vector<8x128xf32>
    %304 = arith.addf %303, %302 : vector<8x128xf32>
    %305 = arith.divf %303, %304 : vector<8x128xf32>
    %306 = vector.extract_strided_slice %293 {offsets = [0, 256], sizes = [8, 128], strides = [1, 1]} : vector<8x512xf32> to vector<8x128xf32>
    %307 = math.tanh %306 : vector<8x128xf32>
    %308 = vector.extract_strided_slice %293 {offsets = [0, 384], sizes = [8, 128], strides = [1, 1]} : vector<8x512xf32> to vector<8x128xf32>
    %309 = arith.negf %308 : vector<8x128xf32>
    %310 = math.exp %309 : vector<8x128xf32>
    %cst_124 = arith.constant 1.000000e+00 : f32
    %311 = vector.broadcast %cst_124 : f32 to vector<8x128xf32>
    %312 = arith.addf %311, %310 : vector<8x128xf32>
    %313 = arith.divf %311, %312 : vector<8x128xf32>
    %314 = arith.mulf %305, %235 : vector<8x128xf32>
    %315 = arith.mulf %299, %307 : vector<8x128xf32>
    %316 = arith.addf %314, %315 : vector<8x128xf32>
    %317 = math.tanh %316 : vector<8x128xf32>
    %318 = arith.mulf %313, %317 : vector<8x128xf32>
    %cst_125 = arith.constant dense<0.000000e+00> : vector<8x256xf32>
    %319 = tpu.matmul %318, %0, %cst_125 {dimension_numbers = #tpu.dot_dimension_numbers<[1], [0], [0], [1], [0, 0, 1, 1], [], []>} : vector<8x128xf32>, vector<128x256xf32>, vector<8x256xf32> -> vector<8x256xf32>
    %320 = arith.addf %319, %1 : vector<8x256xf32>
    %cst_126 = arith.constant dense<0xFF800000> : vector<8xf32>
    %321 = vector.multi_reduction <maximumf>, %320, %cst_126 [1] : vector<8x256xf32> to vector<8xf32>
    %322 = vector.shape_cast %321 : vector<8xf32> to vector<8x1xf32>
    %323 = vector.broadcast %322 : vector<8x1xf32> to vector<8x256xf32>
    %324 = arith.subf %320, %323 : vector<8x256xf32>
    %325 = math.exp %324 : vector<8x256xf32>
    %cst_127 = arith.constant dense<0.000000e+00> : vector<8xf32>
    %326 = vector.multi_reduction <add>, %325, %cst_127 [1] : vector<8x256xf32> to vector<8xf32>
    %327 = vector.shape_cast %326 : vector<8xf32> to vector<8x1xf32>
    %328 = math.log %327 : vector<8x1xf32>
    %329 = vector.broadcast %328 : vector<8x1xf32> to vector<8x256xf32>
    %330 = arith.subf %324, %329 : vector<8x256xf32>
    %c3_128 = arith.constant 3 : index
    %c0_129 = arith.constant 0 : index
    %c0_130 = arith.constant 0 : index
    %331 = vector.load %arg8[%c3_128, %c0_129, %c0_130] : memref<8x8x256xf32, #tpu.memory_space<vmem>>, vector<1x8x256xf32>
    %332 = vector.shape_cast %331 : vector<1x8x256xf32> to vector<8x256xf32>
    %333 = vector.shape_cast %330 : vector<8x256xf32> to vector<1x8x256xf32>
    tpu.vector_store %arg8[%c3_128, %c0_129, %c0_130], %333 {strides = array<i32>} : memref<8x8x256xf32, #tpu.memory_space<vmem>>, vector<1x8x256xf32>,
    %c4 = arith.constant 4 : index
    %c0_131 = arith.constant 0 : index
    %c0_132 = arith.constant 0 : index
    %334 = vector.load %arg0[%c4, %c0_131, %c0_132] : memref<8x8x512xf32, #tpu.memory_space<vmem>>, vector<1x8x512xf32>
    %335 = vector.shape_cast %334 : vector<1x8x512xf32> to vector<8x512xf32>
    %c0_133 = arith.constant 0 : index
    %c0_134 = arith.constant 0 : index
    %c0_135 = arith.constant 0 : index
    %336 = vector.load %arg3[%c0_133, %c0_134, %c0_135] : memref<2x128x512xf32, #tpu.memory_space<vmem>>, vector<1x128x512xf32>
    %337 = vector.shape_cast %336 : vector<1x128x512xf32> to vector<128x512xf32>
    %cst_136 = arith.constant dense<0.000000e+00> : vector<8x512xf32>
    %338 = tpu.matmul %283, %337, %cst_136 {dimension_numbers = #tpu.dot_dimension_numbers<[1], [0], [0], [1], [0, 0, 1, 1], [], []>} : vector<8x128xf32>, vector<128x512xf32>, vector<8x512xf32> -> vector<8x512xf32>
    %339 = arith.addf %335, %338 : vector<8x512xf32>
    %340 = vector.extract_strided_slice %339 {offsets = [0, 0], sizes = [8, 128], strides = [1, 1]} : vector<8x512xf32> to vector<8x128xf32>
    %341 = arith.negf %340 : vector<8x128xf32>
    %342 = math.exp %341 : vector<8x128xf32>
    %cst_137 = arith.constant 1.000000e+00 : f32
    %343 = vector.broadcast %cst_137 : f32 to vector<8x128xf32>
    %344 = arith.addf %343, %342 : vector<8x128xf32>
    %345 = arith.divf %343, %344 : vector<8x128xf32>
    %346 = vector.extract_strided_slice %339 {offsets = [0, 128], sizes = [8, 128], strides = [1, 1]} : vector<8x512xf32> to vector<8x128xf32>
    %347 = arith.negf %346 : vector<8x128xf32>
    %348 = math.exp %347 : vector<8x128xf32>
    %cst_138 = arith.constant 1.000000e+00 : f32
    %349 = vector.broadcast %cst_138 : f32 to vector<8x128xf32>
    %350 = arith.addf %349, %348 : vector<8x128xf32>
    %351 = arith.divf %349, %350 : vector<8x128xf32>
    %352 = vector.extract_strided_slice %339 {offsets = [0, 256], sizes = [8, 128], strides = [1, 1]} : vector<8x512xf32> to vector<8x128xf32>
    %353 = math.tanh %352 : vector<8x128xf32>
    %354 = vector.extract_strided_slice %339 {offsets = [0, 384], sizes = [8, 128], strides = [1, 1]} : vector<8x512xf32> to vector<8x128xf32>
    %355 = arith.negf %354 : vector<8x128xf32>
    %356 = math.exp %355 : vector<8x128xf32>
    %cst_139 = arith.constant 1.000000e+00 : f32
    %357 = vector.broadcast %cst_139 : f32 to vector<8x128xf32>
    %358 = arith.addf %357, %356 : vector<8x128xf32>
    %359 = arith.divf %357, %358 : vector<8x128xf32>
    %360 = arith.mulf %351, %281 : vector<8x128xf32>
    %361 = arith.mulf %345, %353 : vector<8x128xf32>
    %362 = arith.addf %360, %361 : vector<8x128xf32>
    %363 = math.tanh %362 : vector<8x128xf32>
    %364 = arith.mulf %359, %363 : vector<8x128xf32>
    %c0_140 = arith.constant 0 : index
    %c0_141 = arith.constant 0 : index
    %c0_142 = arith.constant 0 : index
    %365 = vector.load %arg4[%c0_140, %c0_141, %c0_142] : memref<1x128x512xf32, #tpu.memory_space<vmem>>, vector<1x128x512xf32>
    %366 = vector.shape_cast %365 : vector<1x128x512xf32> to vector<128x512xf32>
    %cst_143 = arith.constant dense<0.000000e+00> : vector<8x512xf32>
    %367 = tpu.matmul %364, %366, %cst_143 {dimension_numbers = #tpu.dot_dimension_numbers<[1], [0], [0], [1], [0, 0, 1, 1], [], []>} : vector<8x128xf32>, vector<128x512xf32>, vector<8x512xf32> -> vector<8x512xf32>
    %c1_144 = arith.constant 1 : index
    %c0_145 = arith.constant 0 : index
    %c0_146 = arith.constant 0 : index
    %368 = vector.load %arg3[%c1_144, %c0_145, %c0_146] : memref<2x128x512xf32, #tpu.memory_space<vmem>>, vector<1x128x512xf32>
    %369 = vector.shape_cast %368 : vector<1x128x512xf32> to vector<128x512xf32>
    %cst_147 = arith.constant dense<0.000000e+00> : vector<8x512xf32>
    %370 = tpu.matmul %318, %369, %cst_147 {dimension_numbers = #tpu.dot_dimension_numbers<[1], [0], [0], [1], [0, 0, 1, 1], [], []>} : vector<8x128xf32>, vector<128x512xf32>, vector<8x512xf32> -> vector<8x512xf32>
    %371 = arith.addf %367, %370 : vector<8x512xf32>
    %c0_148 = arith.constant 0 : index
    %c0_149 = arith.constant 0 : index
    %c0_150 = arith.constant 0 : index
    %372 = vector.load %arg5[%c0_148, %c0_149, %c0_150] : memref<1x8x512xf32, #tpu.memory_space<vmem>>, vector<1x8x512xf32>
    %373 = vector.shape_cast %372 : vector<1x8x512xf32> to vector<8x512xf32>
    %374 = arith.addf %371, %373 : vector<8x512xf32>
    %375 = vector.extract_strided_slice %374 {offsets = [0, 0], sizes = [8, 128], strides = [1, 1]} : vector<8x512xf32> to vector<8x128xf32>
    %376 = arith.negf %375 : vector<8x128xf32>
    %377 = math.exp %376 : vector<8x128xf32>
    %cst_151 = arith.constant 1.000000e+00 : f32
    %378 = vector.broadcast %cst_151 : f32 to vector<8x128xf32>
    %379 = arith.addf %378, %377 : vector<8x128xf32>
    %380 = arith.divf %378, %379 : vector<8x128xf32>
    %381 = vector.extract_strided_slice %374 {offsets = [0, 128], sizes = [8, 128], strides = [1, 1]} : vector<8x512xf32> to vector<8x128xf32>
    %382 = arith.negf %381 : vector<8x128xf32>
    %383 = math.exp %382 : vector<8x128xf32>
    %cst_152 = arith.constant 1.000000e+00 : f32
    %384 = vector.broadcast %cst_152 : f32 to vector<8x128xf32>
    %385 = arith.addf %384, %383 : vector<8x128xf32>
    %386 = arith.divf %384, %385 : vector<8x128xf32>
    %387 = vector.extract_strided_slice %374 {offsets = [0, 256], sizes = [8, 128], strides = [1, 1]} : vector<8x512xf32> to vector<8x128xf32>
    %388 = math.tanh %387 : vector<8x128xf32>
    %389 = vector.extract_strided_slice %374 {offsets = [0, 384], sizes = [8, 128], strides = [1, 1]} : vector<8x512xf32> to vector<8x128xf32>
    %390 = arith.negf %389 : vector<8x128xf32>
    %391 = math.exp %390 : vector<8x128xf32>
    %cst_153 = arith.constant 1.000000e+00 : f32
    %392 = vector.broadcast %cst_153 : f32 to vector<8x128xf32>
    %393 = arith.addf %392, %391 : vector<8x128xf32>
    %394 = arith.divf %392, %393 : vector<8x128xf32>
    %395 = arith.mulf %386, %316 : vector<8x128xf32>
    %396 = arith.mulf %380, %388 : vector<8x128xf32>
    %397 = arith.addf %395, %396 : vector<8x128xf32>
    %398 = math.tanh %397 : vector<8x128xf32>
    %399 = arith.mulf %394, %398 : vector<8x128xf32>
    %cst_154 = arith.constant dense<0.000000e+00> : vector<8x256xf32>
    %400 = tpu.matmul %399, %0, %cst_154 {dimension_numbers = #tpu.dot_dimension_numbers<[1], [0], [0], [1], [0, 0, 1, 1], [], []>} : vector<8x128xf32>, vector<128x256xf32>, vector<8x256xf32> -> vector<8x256xf32>
    %401 = arith.addf %400, %1 : vector<8x256xf32>
    %cst_155 = arith.constant dense<0xFF800000> : vector<8xf32>
    %402 = vector.multi_reduction <maximumf>, %401, %cst_155 [1] : vector<8x256xf32> to vector<8xf32>
    %403 = vector.shape_cast %402 : vector<8xf32> to vector<8x1xf32>
    %404 = vector.broadcast %403 : vector<8x1xf32> to vector<8x256xf32>
    %405 = arith.subf %401, %404 : vector<8x256xf32>
    %406 = math.exp %405 : vector<8x256xf32>
    %cst_156 = arith.constant dense<0.000000e+00> : vector<8xf32>
    %407 = vector.multi_reduction <add>, %406, %cst_156 [1] : vector<8x256xf32> to vector<8xf32>
    %408 = vector.shape_cast %407 : vector<8xf32> to vector<8x1xf32>
    %409 = math.log %408 : vector<8x1xf32>
    %410 = vector.broadcast %409 : vector<8x1xf32> to vector<8x256xf32>
    %411 = arith.subf %405, %410 : vector<8x256xf32>
    %c4_157 = arith.constant 4 : index
    %c0_158 = arith.constant 0 : index
    %c0_159 = arith.constant 0 : index
    %412 = vector.load %arg8[%c4_157, %c0_158, %c0_159] : memref<8x8x256xf32, #tpu.memory_space<vmem>>, vector<1x8x256xf32>
    %413 = vector.shape_cast %412 : vector<1x8x256xf32> to vector<8x256xf32>
    %414 = vector.shape_cast %411 : vector<8x256xf32> to vector<1x8x256xf32>
    tpu.vector_store %arg8[%c4_157, %c0_158, %c0_159], %414 {strides = array<i32>} : memref<8x8x256xf32, #tpu.memory_space<vmem>>, vector<1x8x256xf32>,
    %c5 = arith.constant 5 : index
    %c0_160 = arith.constant 0 : index
    %c0_161 = arith.constant 0 : index
    %415 = vector.load %arg0[%c5, %c0_160, %c0_161] : memref<8x8x512xf32, #tpu.memory_space<vmem>>, vector<1x8x512xf32>
    %416 = vector.shape_cast %415 : vector<1x8x512xf32> to vector<8x512xf32>
    %c0_162 = arith.constant 0 : index
    %c0_163 = arith.constant 0 : index
    %c0_164 = arith.constant 0 : index
    %417 = vector.load %arg3[%c0_162, %c0_163, %c0_164] : memref<2x128x512xf32, #tpu.memory_space<vmem>>, vector<1x128x512xf32>
    %418 = vector.shape_cast %417 : vector<1x128x512xf32> to vector<128x512xf32>
    %cst_165 = arith.constant dense<0.000000e+00> : vector<8x512xf32>
    %419 = tpu.matmul %364, %418, %cst_165 {dimension_numbers = #tpu.dot_dimension_numbers<[1], [0], [0], [1], [0, 0, 1, 1], [], []>} : vector<8x128xf32>, vector<128x512xf32>, vector<8x512xf32> -> vector<8x512xf32>
    %420 = arith.addf %416, %419 : vector<8x512xf32>
    %421 = vector.extract_strided_slice %420 {offsets = [0, 0], sizes = [8, 128], strides = [1, 1]} : vector<8x512xf32> to vector<8x128xf32>
    %422 = arith.negf %421 : vector<8x128xf32>
    %423 = math.exp %422 : vector<8x128xf32>
    %cst_166 = arith.constant 1.000000e+00 : f32
    %424 = vector.broadcast %cst_166 : f32 to vector<8x128xf32>
    %425 = arith.addf %424, %423 : vector<8x128xf32>
    %426 = arith.divf %424, %425 : vector<8x128xf32>
    %427 = vector.extract_strided_slice %420 {offsets = [0, 128], sizes = [8, 128], strides = [1, 1]} : vector<8x512xf32> to vector<8x128xf32>
    %428 = arith.negf %427 : vector<8x128xf32>
    %429 = math.exp %428 : vector<8x128xf32>
    %cst_167 = arith.constant 1.000000e+00 : f32
    %430 = vector.broadcast %cst_167 : f32 to vector<8x128xf32>
    %431 = arith.addf %430, %429 : vector<8x128xf32>
    %432 = arith.divf %430, %431 : vector<8x128xf32>
    %433 = vector.extract_strided_slice %420 {offsets = [0, 256], sizes = [8, 128], strides = [1, 1]} : vector<8x512xf32> to vector<8x128xf32>
    %434 = math.tanh %433 : vector<8x128xf32>
    %435 = vector.extract_strided_slice %420 {offsets = [0, 384], sizes = [8, 128], strides = [1, 1]} : vector<8x512xf32> to vector<8x128xf32>
    %436 = arith.negf %435 : vector<8x128xf32>
    %437 = math.exp %436 : vector<8x128xf32>
    %cst_168 = arith.constant 1.000000e+00 : f32
    %438 = vector.broadcast %cst_168 : f32 to vector<8x128xf32>
    %439 = arith.addf %438, %437 : vector<8x128xf32>
    %440 = arith.divf %438, %439 : vector<8x128xf32>
    %441 = arith.mulf %432, %362 : vector<8x128xf32>
    %442 = arith.mulf %426, %434 : vector<8x128xf32>
    %443 = arith.addf %441, %442 : vector<8x128xf32>
    %444 = math.tanh %443 : vector<8x128xf32>
    %445 = arith.mulf %440, %444 : vector<8x128xf32>
    %c0_169 = arith.constant 0 : index
    %c0_170 = arith.constant 0 : index
    %c0_171 = arith.constant 0 : index
    %446 = vector.load %arg4[%c0_169, %c0_170, %c0_171] : memref<1x128x512xf32, #tpu.memory_space<vmem>>, vector<1x128x512xf32>
    %447 = vector.shape_cast %446 : vector<1x128x512xf32> to vector<128x512xf32>
    %cst_172 = arith.constant dense<0.000000e+00> : vector<8x512xf32>
    %448 = tpu.matmul %445, %447, %cst_172 {dimension_numbers = #tpu.dot_dimension_numbers<[1], [0], [0], [1], [0, 0, 1, 1], [], []>} : vector<8x128xf32>, vector<128x512xf32>, vector<8x512xf32> -> vector<8x512xf32>
    %c1_173 = arith.constant 1 : index
    %c0_174 = arith.constant 0 : index
    %c0_175 = arith.constant 0 : index
    %449 = vector.load %arg3[%c1_173, %c0_174, %c0_175] : memref<2x128x512xf32, #tpu.memory_space<vmem>>, vector<1x128x512xf32>
    %450 = vector.shape_cast %449 : vector<1x128x512xf32> to vector<128x512xf32>
    %cst_176 = arith.constant dense<0.000000e+00> : vector<8x512xf32>
    %451 = tpu.matmul %399, %450, %cst_176 {dimension_numbers = #tpu.dot_dimension_numbers<[1], [0], [0], [1], [0, 0, 1, 1], [], []>} : vector<8x128xf32>, vector<128x512xf32>, vector<8x512xf32> -> vector<8x512xf32>
    %452 = arith.addf %448, %451 : vector<8x512xf32>
    %c0_177 = arith.constant 0 : index
    %c0_178 = arith.constant 0 : index
    %c0_179 = arith.constant 0 : index
    %453 = vector.load %arg5[%c0_177, %c0_178, %c0_179] : memref<1x8x512xf32, #tpu.memory_space<vmem>>, vector<1x8x512xf32>
    %454 = vector.shape_cast %453 : vector<1x8x512xf32> to vector<8x512xf32>
    %455 = arith.addf %452, %454 : vector<8x512xf32>
    %456 = vector.extract_strided_slice %455 {offsets = [0, 0], sizes = [8, 128], strides = [1, 1]} : vector<8x512xf32> to vector<8x128xf32>
    %457 = arith.negf %456 : vector<8x128xf32>
    %458 = math.exp %457 : vector<8x128xf32>
    %cst_180 = arith.constant 1.000000e+00 : f32
    %459 = vector.broadcast %cst_180 : f32 to vector<8x128xf32>
    %460 = arith.addf %459, %458 : vector<8x128xf32>
    %461 = arith.divf %459, %460 : vector<8x128xf32>
    %462 = vector.extract_strided_slice %455 {offsets = [0, 128], sizes = [8, 128], strides = [1, 1]} : vector<8x512xf32> to vector<8x128xf32>
    %463 = arith.negf %462 : vector<8x128xf32>
    %464 = math.exp %463 : vector<8x128xf32>
    %cst_181 = arith.constant 1.000000e+00 : f32
    %465 = vector.broadcast %cst_181 : f32 to vector<8x128xf32>
    %466 = arith.addf %465, %464 : vector<8x128xf32>
    %467 = arith.divf %465, %466 : vector<8x128xf32>
    %468 = vector.extract_strided_slice %455 {offsets = [0, 256], sizes = [8, 128], strides = [1, 1]} : vector<8x512xf32> to vector<8x128xf32>
    %469 = math.tanh %468 : vector<8x128xf32>
    %470 = vector.extract_strided_slice %455 {offsets = [0, 384], sizes = [8, 128], strides = [1, 1]} : vector<8x512xf32> to vector<8x128xf32>
    %471 = arith.negf %470 : vector<8x128xf32>
    %472 = math.exp %471 : vector<8x128xf32>
    %cst_182 = arith.constant 1.000000e+00 : f32
    %473 = vector.broadcast %cst_182 : f32 to vector<8x128xf32>
    %474 = arith.addf %473, %472 : vector<8x128xf32>
    %475 = arith.divf %473, %474 : vector<8x128xf32>
    %476 = arith.mulf %467, %397 : vector<8x128xf32>
    %477 = arith.mulf %461, %469 : vector<8x128xf32>
    %478 = arith.addf %476, %477 : vector<8x128xf32>
    %479 = math.tanh %478 : vector<8x128xf32>
    %480 = arith.mulf %475, %479 : vector<8x128xf32>
    %cst_183 = arith.constant dense<0.000000e+00> : vector<8x256xf32>
    %481 = tpu.matmul %480, %0, %cst_183 {dimension_numbers = #tpu.dot_dimension_numbers<[1], [0], [0], [1], [0, 0, 1, 1], [], []>} : vector<8x128xf32>, vector<128x256xf32>, vector<8x256xf32> -> vector<8x256xf32>
    %482 = arith.addf %481, %1 : vector<8x256xf32>
    %cst_184 = arith.constant dense<0xFF800000> : vector<8xf32>
    %483 = vector.multi_reduction <maximumf>, %482, %cst_184 [1] : vector<8x256xf32> to vector<8xf32>
    %484 = vector.shape_cast %483 : vector<8xf32> to vector<8x1xf32>
    %485 = vector.broadcast %484 : vector<8x1xf32> to vector<8x256xf32>
    %486 = arith.subf %482, %485 : vector<8x256xf32>
    %487 = math.exp %486 : vector<8x256xf32>
    %cst_185 = arith.constant dense<0.000000e+00> : vector<8xf32>
    %488 = vector.multi_reduction <add>, %487, %cst_185 [1] : vector<8x256xf32> to vector<8xf32>
    %489 = vector.shape_cast %488 : vector<8xf32> to vector<8x1xf32>
    %490 = math.log %489 : vector<8x1xf32>
    %491 = vector.broadcast %490 : vector<8x1xf32> to vector<8x256xf32>
    %492 = arith.subf %486, %491 : vector<8x256xf32>
    %c5_186 = arith.constant 5 : index
    %c0_187 = arith.constant 0 : index
    %c0_188 = arith.constant 0 : index
    %493 = vector.load %arg8[%c5_186, %c0_187, %c0_188] : memref<8x8x256xf32, #tpu.memory_space<vmem>>, vector<1x8x256xf32>
    %494 = vector.shape_cast %493 : vector<1x8x256xf32> to vector<8x256xf32>
    %495 = vector.shape_cast %492 : vector<8x256xf32> to vector<1x8x256xf32>
    tpu.vector_store %arg8[%c5_186, %c0_187, %c0_188], %495 {strides = array<i32>} : memref<8x8x256xf32, #tpu.memory_space<vmem>>, vector<1x8x256xf32>,
    %c6 = arith.constant 6 : index
    %c0_189 = arith.constant 0 : index
    %c0_190 = arith.constant 0 : index
    %496 = vector.load %arg0[%c6, %c0_189, %c0_190] : memref<8x8x512xf32, #tpu.memory_space<vmem>>, vector<1x8x512xf32>
    %497 = vector.shape_cast %496 : vector<1x8x512xf32> to vector<8x512xf32>
    %c0_191 = arith.constant 0 : index
    %c0_192 = arith.constant 0 : index
    %c0_193 = arith.constant 0 : index
    %498 = vector.load %arg3[%c0_191, %c0_192, %c0_193] : memref<2x128x512xf32, #tpu.memory_space<vmem>>, vector<1x128x512xf32>
    %499 = vector.shape_cast %498 : vector<1x128x512xf32> to vector<128x512xf32>
    %cst_194 = arith.constant dense<0.000000e+00> : vector<8x512xf32>
    %500 = tpu.matmul %445, %499, %cst_194 {dimension_numbers = #tpu.dot_dimension_numbers<[1], [0], [0], [1], [0, 0, 1, 1], [], []>} : vector<8x128xf32>, vector<128x512xf32>, vector<8x512xf32> -> vector<8x512xf32>
    %501 = arith.addf %497, %500 : vector<8x512xf32>
    %502 = vector.extract_strided_slice %501 {offsets = [0, 0], sizes = [8, 128], strides = [1, 1]} : vector<8x512xf32> to vector<8x128xf32>
    %503 = arith.negf %502 : vector<8x128xf32>
    %504 = math.exp %503 : vector<8x128xf32>
    %cst_195 = arith.constant 1.000000e+00 : f32
    %505 = vector.broadcast %cst_195 : f32 to vector<8x128xf32>
    %506 = arith.addf %505, %504 : vector<8x128xf32>
    %507 = arith.divf %505, %506 : vector<8x128xf32>
    %508 = vector.extract_strided_slice %501 {offsets = [0, 128], sizes = [8, 128], strides = [1, 1]} : vector<8x512xf32> to vector<8x128xf32>
    %509 = arith.negf %508 : vector<8x128xf32>
    %510 = math.exp %509 : vector<8x128xf32>
    %cst_196 = arith.constant 1.000000e+00 : f32
    %511 = vector.broadcast %cst_196 : f32 to vector<8x128xf32>
    %512 = arith.addf %511, %510 : vector<8x128xf32>
    %513 = arith.divf %511, %512 : vector<8x128xf32>
    %514 = vector.extract_strided_slice %501 {offsets = [0, 256], sizes = [8, 128], strides = [1, 1]} : vector<8x512xf32> to vector<8x128xf32>
    %515 = math.tanh %514 : vector<8x128xf32>
    %516 = vector.extract_strided_slice %501 {offsets = [0, 384], sizes = [8, 128], strides = [1, 1]} : vector<8x512xf32> to vector<8x128xf32>
    %517 = arith.negf %516 : vector<8x128xf32>
    %518 = math.exp %517 : vector<8x128xf32>
    %cst_197 = arith.constant 1.000000e+00 : f32
    %519 = vector.broadcast %cst_197 : f32 to vector<8x128xf32>
    %520 = arith.addf %519, %518 : vector<8x128xf32>
    %521 = arith.divf %519, %520 : vector<8x128xf32>
    %522 = arith.mulf %513, %443 : vector<8x128xf32>
    %523 = arith.mulf %507, %515 : vector<8x128xf32>
    %524 = arith.addf %522, %523 : vector<8x128xf32>
    %525 = math.tanh %524 : vector<8x128xf32>
    %526 = arith.mulf %521, %525 : vector<8x128xf32>
    %c0_198 = arith.constant 0 : index
    %c0_199 = arith.constant 0 : index
    %c0_200 = arith.constant 0 : index
    %527 = vector.load %arg4[%c0_198, %c0_199, %c0_200] : memref<1x128x512xf32, #tpu.memory_space<vmem>>, vector<1x128x512xf32>
    %528 = vector.shape_cast %527 : vector<1x128x512xf32> to vector<128x512xf32>
    %cst_201 = arith.constant dense<0.000000e+00> : vector<8x512xf32>
    %529 = tpu.matmul %526, %528, %cst_201 {dimension_numbers = #tpu.dot_dimension_numbers<[1], [0], [0], [1], [0, 0, 1, 1], [], []>} : vector<8x128xf32>, vector<128x512xf32>, vector<8x512xf32> -> vector<8x512xf32>
    %c1_202 = arith.constant 1 : index
    %c0_203 = arith.constant 0 : index
    %c0_204 = arith.constant 0 : index
    %530 = vector.load %arg3[%c1_202, %c0_203, %c0_204] : memref<2x128x512xf32, #tpu.memory_space<vmem>>, vector<1x128x512xf32>
    %531 = vector.shape_cast %530 : vector<1x128x512xf32> to vector<128x512xf32>
    %cst_205 = arith.constant dense<0.000000e+00> : vector<8x512xf32>
    %532 = tpu.matmul %480, %531, %cst_205 {dimension_numbers = #tpu.dot_dimension_numbers<[1], [0], [0], [1], [0, 0, 1, 1], [], []>} : vector<8x128xf32>, vector<128x512xf32>, vector<8x512xf32> -> vector<8x512xf32>
    %533 = arith.addf %529, %532 : vector<8x512xf32>
    %c0_206 = arith.constant 0 : index
    %c0_207 = arith.constant 0 : index
    %c0_208 = arith.constant 0 : index
    %534 = vector.load %arg5[%c0_206, %c0_207, %c0_208] : memref<1x8x512xf32, #tpu.memory_space<vmem>>, vector<1x8x512xf32>
    %535 = vector.shape_cast %534 : vector<1x8x512xf32> to vector<8x512xf32>
    %536 = arith.addf %533, %535 : vector<8x512xf32>
    %537 = vector.extract_strided_slice %536 {offsets = [0, 0], sizes = [8, 128], strides = [1, 1]} : vector<8x512xf32> to vector<8x128xf32>
    %538 = arith.negf %537 : vector<8x128xf32>
    %539 = math.exp %538 : vector<8x128xf32>
    %cst_209 = arith.constant 1.000000e+00 : f32
    %540 = vector.broadcast %cst_209 : f32 to vector<8x128xf32>
    %541 = arith.addf %540, %539 : vector<8x128xf32>
    %542 = arith.divf %540, %541 : vector<8x128xf32>
    %543 = vector.extract_strided_slice %536 {offsets = [0, 128], sizes = [8, 128], strides = [1, 1]} : vector<8x512xf32> to vector<8x128xf32>
    %544 = arith.negf %543 : vector<8x128xf32>
    %545 = math.exp %544 : vector<8x128xf32>
    %cst_210 = arith.constant 1.000000e+00 : f32
    %546 = vector.broadcast %cst_210 : f32 to vector<8x128xf32>
    %547 = arith.addf %546, %545 : vector<8x128xf32>
    %548 = arith.divf %546, %547 : vector<8x128xf32>
    %549 = vector.extract_strided_slice %536 {offsets = [0, 256], sizes = [8, 128], strides = [1, 1]} : vector<8x512xf32> to vector<8x128xf32>
    %550 = math.tanh %549 : vector<8x128xf32>
    %551 = vector.extract_strided_slice %536 {offsets = [0, 384], sizes = [8, 128], strides = [1, 1]} : vector<8x512xf32> to vector<8x128xf32>
    %552 = arith.negf %551 : vector<8x128xf32>
    %553 = math.exp %552 : vector<8x128xf32>
    %cst_211 = arith.constant 1.000000e+00 : f32
    %554 = vector.broadcast %cst_211 : f32 to vector<8x128xf32>
    %555 = arith.addf %554, %553 : vector<8x128xf32>
    %556 = arith.divf %554, %555 : vector<8x128xf32>
    %557 = arith.mulf %548, %478 : vector<8x128xf32>
    %558 = arith.mulf %542, %550 : vector<8x128xf32>
    %559 = arith.addf %557, %558 : vector<8x128xf32>
    %560 = math.tanh %559 : vector<8x128xf32>
    %561 = arith.mulf %556, %560 : vector<8x128xf32>
    %cst_212 = arith.constant dense<0.000000e+00> : vector<8x256xf32>
    %562 = tpu.matmul %561, %0, %cst_212 {dimension_numbers = #tpu.dot_dimension_numbers<[1], [0], [0], [1], [0, 0, 1, 1], [], []>} : vector<8x128xf32>, vector<128x256xf32>, vector<8x256xf32> -> vector<8x256xf32>
    %563 = arith.addf %562, %1 : vector<8x256xf32>
    %cst_213 = arith.constant dense<0xFF800000> : vector<8xf32>
    %564 = vector.multi_reduction <maximumf>, %563, %cst_213 [1] : vector<8x256xf32> to vector<8xf32>
    %565 = vector.shape_cast %564 : vector<8xf32> to vector<8x1xf32>
    %566 = vector.broadcast %565 : vector<8x1xf32> to vector<8x256xf32>
    %567 = arith.subf %563, %566 : vector<8x256xf32>
    %568 = math.exp %567 : vector<8x256xf32>
    %cst_214 = arith.constant dense<0.000000e+00> : vector<8xf32>
    %569 = vector.multi_reduction <add>, %568, %cst_214 [1] : vector<8x256xf32> to vector<8xf32>
    %570 = vector.shape_cast %569 : vector<8xf32> to vector<8x1xf32>
    %571 = math.log %570 : vector<8x1xf32>
    %572 = vector.broadcast %571 : vector<8x1xf32> to vector<8x256xf32>
    %573 = arith.subf %567, %572 : vector<8x256xf32>
    %c6_215 = arith.constant 6 : index
    %c0_216 = arith.constant 0 : index
    %c0_217 = arith.constant 0 : index
    %574 = vector.load %arg8[%c6_215, %c0_216, %c0_217] : memref<8x8x256xf32, #tpu.memory_space<vmem>>, vector<1x8x256xf32>
    %575 = vector.shape_cast %574 : vector<1x8x256xf32> to vector<8x256xf32>
    %576 = vector.shape_cast %573 : vector<8x256xf32> to vector<1x8x256xf32>
    tpu.vector_store %arg8[%c6_215, %c0_216, %c0_217], %576 {strides = array<i32>} : memref<8x8x256xf32, #tpu.memory_space<vmem>>, vector<1x8x256xf32>,
    %c7 = arith.constant 7 : index
    %c0_218 = arith.constant 0 : index
    %c0_219 = arith.constant 0 : index
    %577 = vector.load %arg0[%c7, %c0_218, %c0_219] : memref<8x8x512xf32, #tpu.memory_space<vmem>>, vector<1x8x512xf32>
    %578 = vector.shape_cast %577 : vector<1x8x512xf32> to vector<8x512xf32>
    %c0_220 = arith.constant 0 : index
    %c0_221 = arith.constant 0 : index
    %c0_222 = arith.constant 0 : index
    %579 = vector.load %arg3[%c0_220, %c0_221, %c0_222] : memref<2x128x512xf32, #tpu.memory_space<vmem>>, vector<1x128x512xf32>
    %580 = vector.shape_cast %579 : vector<1x128x512xf32> to vector<128x512xf32>
    %cst_223 = arith.constant dense<0.000000e+00> : vector<8x512xf32>
    %581 = tpu.matmul %526, %580, %cst_223 {dimension_numbers = #tpu.dot_dimension_numbers<[1], [0], [0], [1], [0, 0, 1, 1], [], []>} : vector<8x128xf32>, vector<128x512xf32>, vector<8x512xf32> -> vector<8x512xf32>
    %582 = arith.addf %578, %581 : vector<8x512xf32>
    %583 = vector.extract_strided_slice %582 {offsets = [0, 0], sizes = [8, 128], strides = [1, 1]} : vector<8x512xf32> to vector<8x128xf32>
    %584 = arith.negf %583 : vector<8x128xf32>
    %585 = math.exp %584 : vector<8x128xf32>
    %cst_224 = arith.constant 1.000000e+00 : f32
    %586 = vector.broadcast %cst_224 : f32 to vector<8x128xf32>
    %587 = arith.addf %586, %585 : vector<8x128xf32>
    %588 = arith.divf %586, %587 : vector<8x128xf32>
    %589 = vector.extract_strided_slice %582 {offsets = [0, 128], sizes = [8, 128], strides = [1, 1]} : vector<8x512xf32> to vector<8x128xf32>
    %590 = arith.negf %589 : vector<8x128xf32>
    %591 = math.exp %590 : vector<8x128xf32>
    %cst_225 = arith.constant 1.000000e+00 : f32
    %592 = vector.broadcast %cst_225 : f32 to vector<8x128xf32>
    %593 = arith.addf %592, %591 : vector<8x128xf32>
    %594 = arith.divf %592, %593 : vector<8x128xf32>
    %595 = vector.extract_strided_slice %582 {offsets = [0, 256], sizes = [8, 128], strides = [1, 1]} : vector<8x512xf32> to vector<8x128xf32>
    %596 = math.tanh %595 : vector<8x128xf32>
    %597 = vector.extract_strided_slice %582 {offsets = [0, 384], sizes = [8, 128], strides = [1, 1]} : vector<8x512xf32> to vector<8x128xf32>
    %598 = arith.negf %597 : vector<8x128xf32>
    %599 = math.exp %598 : vector<8x128xf32>
    %cst_226 = arith.constant 1.000000e+00 : f32
    %600 = vector.broadcast %cst_226 : f32 to vector<8x128xf32>
    %601 = arith.addf %600, %599 : vector<8x128xf32>
    %602 = arith.divf %600, %601 : vector<8x128xf32>
    %603 = arith.mulf %594, %524 : vector<8x128xf32>
    %604 = arith.mulf %588, %596 : vector<8x128xf32>
    %605 = arith.addf %603, %604 : vector<8x128xf32>
    %606 = math.tanh %605 : vector<8x128xf32>
    %607 = arith.mulf %602, %606 : vector<8x128xf32>
    %c0_227 = arith.constant 0 : index
    %c0_228 = arith.constant 0 : index
    %c0_229 = arith.constant 0 : index
    %608 = vector.load %arg4[%c0_227, %c0_228, %c0_229] : memref<1x128x512xf32, #tpu.memory_space<vmem>>, vector<1x128x512xf32>
    %609 = vector.shape_cast %608 : vector<1x128x512xf32> to vector<128x512xf32>
    %cst_230 = arith.constant dense<0.000000e+00> : vector<8x512xf32>
    %610 = tpu.matmul %607, %609, %cst_230 {dimension_numbers = #tpu.dot_dimension_numbers<[1], [0], [0], [1], [0, 0, 1, 1], [], []>} : vector<8x128xf32>, vector<128x512xf32>, vector<8x512xf32> -> vector<8x512xf32>
    %c1_231 = arith.constant 1 : index
    %c0_232 = arith.constant 0 : index
    %c0_233 = arith.constant 0 : index
    %611 = vector.load %arg3[%c1_231, %c0_232, %c0_233] : memref<2x128x512xf32, #tpu.memory_space<vmem>>, vector<1x128x512xf32>
    %612 = vector.shape_cast %611 : vector<1x128x512xf32> to vector<128x512xf32>
    %cst_234 = arith.constant dense<0.000000e+00> : vector<8x512xf32>
    %613 = tpu.matmul %561, %612, %cst_234 {dimension_numbers = #tpu.dot_dimension_numbers<[1], [0], [0], [1], [0, 0, 1, 1], [], []>} : vector<8x128xf32>, vector<128x512xf32>, vector<8x512xf32> -> vector<8x512xf32>
    %614 = arith.addf %610, %613 : vector<8x512xf32>
    %c0_235 = arith.constant 0 : index
    %c0_236 = arith.constant 0 : index
    %c0_237 = arith.constant 0 : index
    %615 = vector.load %arg5[%c0_235, %c0_236, %c0_237] : memref<1x8x512xf32, #tpu.memory_space<vmem>>, vector<1x8x512xf32>
    %616 = vector.shape_cast %615 : vector<1x8x512xf32> to vector<8x512xf32>
    %617 = arith.addf %614, %616 : vector<8x512xf32>
    %618 = vector.extract_strided_slice %617 {offsets = [0, 0], sizes = [8, 128], strides = [1, 1]} : vector<8x512xf32> to vector<8x128xf32>
    %619 = arith.negf %618 : vector<8x128xf32>
    %620 = math.exp %619 : vector<8x128xf32>
    %cst_238 = arith.constant 1.000000e+00 : f32
    %621 = vector.broadcast %cst_238 : f32 to vector<8x128xf32>
    %622 = arith.addf %621, %620 : vector<8x128xf32>
    %623 = arith.divf %621, %622 : vector<8x128xf32>
    %624 = vector.extract_strided_slice %617 {offsets = [0, 128], sizes = [8, 128], strides = [1, 1]} : vector<8x512xf32> to vector<8x128xf32>
    %625 = arith.negf %624 : vector<8x128xf32>
    %626 = math.exp %625 : vector<8x128xf32>
    %cst_239 = arith.constant 1.000000e+00 : f32
    %627 = vector.broadcast %cst_239 : f32 to vector<8x128xf32>
    %628 = arith.addf %627, %626 : vector<8x128xf32>
    %629 = arith.divf %627, %628 : vector<8x128xf32>
    %630 = vector.extract_strided_slice %617 {offsets = [0, 256], sizes = [8, 128], strides = [1, 1]} : vector<8x512xf32> to vector<8x128xf32>
    %631 = math.tanh %630 : vector<8x128xf32>
    %632 = vector.extract_strided_slice %617 {offsets = [0, 384], sizes = [8, 128], strides = [1, 1]} : vector<8x512xf32> to vector<8x128xf32>
    %633 = arith.negf %632 : vector<8x128xf32>
    %634 = math.exp %633 : vector<8x128xf32>
    %cst_240 = arith.constant 1.000000e+00 : f32
    %635 = vector.broadcast %cst_240 : f32 to vector<8x128xf32>
    %636 = arith.addf %635, %634 : vector<8x128xf32>
    %637 = arith.divf %635, %636 : vector<8x128xf32>
    %638 = arith.mulf %629, %559 : vector<8x128xf32>
    %639 = arith.mulf %623, %631 : vector<8x128xf32>
    %640 = arith.addf %638, %639 : vector<8x128xf32>
    %641 = math.tanh %640 : vector<8x128xf32>
    %642 = arith.mulf %637, %641 : vector<8x128xf32>
    %cst_241 = arith.constant dense<0.000000e+00> : vector<8x256xf32>
    %643 = tpu.matmul %642, %0, %cst_241 {dimension_numbers = #tpu.dot_dimension_numbers<[1], [0], [0], [1], [0, 0, 1, 1], [], []>} : vector<8x128xf32>, vector<128x256xf32>, vector<8x256xf32> -> vector<8x256xf32>
    %644 = arith.addf %643, %1 : vector<8x256xf32>
    %cst_242 = arith.constant dense<0xFF800000> : vector<8xf32>
    %645 = vector.multi_reduction <maximumf>, %644, %cst_242 [1] : vector<8x256xf32> to vector<8xf32>
    %646 = vector.shape_cast %645 : vector<8xf32> to vector<8x1xf32>
    %647 = vector.broadcast %646 : vector<8x1xf32> to vector<8x256xf32>
    %648 = arith.subf %644, %647 : vector<8x256xf32>
    %649 = math.exp %648 : vector<8x256xf32>
    %cst_243 = arith.constant dense<0.000000e+00> : vector<8xf32>
    %650 = vector.multi_reduction <add>, %649, %cst_243 [1] : vector<8x256xf32> to vector<8xf32>
    %651 = vector.shape_cast %650 : vector<8xf32> to vector<8x1xf32>
    %652 = math.log %651 : vector<8x1xf32>
    %653 = vector.broadcast %652 : vector<8x1xf32> to vector<8x256xf32>
    %654 = arith.subf %648, %653 : vector<8x256xf32>
    %c7_244 = arith.constant 7 : index
    %c0_245 = arith.constant 0 : index
    %c0_246 = arith.constant 0 : index
    %655 = vector.load %arg8[%c7_244, %c0_245, %c0_246] : memref<8x8x256xf32, #tpu.memory_space<vmem>>, vector<1x8x256xf32>
    %656 = vector.shape_cast %655 : vector<1x8x256xf32> to vector<8x256xf32>
    %657 = vector.shape_cast %654 : vector<8x256xf32> to vector<1x8x256xf32>
    tpu.vector_store %arg8[%c7_244, %c0_245, %c0_246], %657 {strides = array<i32>} : memref<8x8x256xf32, #tpu.memory_space<vmem>>, vector<1x8x256xf32>,
    %c0_247 = arith.constant 0 : index
    %c0_248 = arith.constant 0 : index
    %c0_249 = arith.constant 0 : index
    %658 = vector.load %arg9[%c0_247, %c0_248, %c0_249] : memref<2x8x128xf32, #tpu.memory_space<vmem>>, vector<1x8x128xf32>
    %659 = vector.shape_cast %658 : vector<1x8x128xf32> to vector<8x128xf32>
    %660 = vector.shape_cast %607 : vector<8x128xf32> to vector<1x8x128xf32>
    tpu.vector_store %arg9[%c0_247, %c0_248, %c0_249], %660 {strides = array<i32>} : memref<2x8x128xf32, #tpu.memory_space<vmem>>, vector<1x8x128xf32>,
    %c0_250 = arith.constant 0 : index
    %c0_251 = arith.constant 0 : index
    %c0_252 = arith.constant 0 : index
    %661 = vector.load %arg10[%c0_250, %c0_251, %c0_252] : memref<2x8x128xf32, #tpu.memory_space<vmem>>, vector<1x8x128xf32>
    %662 = vector.shape_cast %661 : vector<1x8x128xf32> to vector<8x128xf32>
    %663 = vector.shape_cast %605 : vector<8x128xf32> to vector<1x8x128xf32>
    tpu.vector_store %arg10[%c0_250, %c0_251, %c0_252], %663 {strides = array<i32>} : memref<2x8x128xf32, #tpu.memory_space<vmem>>, vector<1x8x128xf32>,
    %c1_253 = arith.constant 1 : index
    %c0_254 = arith.constant 0 : index
    %c0_255 = arith.constant 0 : index
    %664 = vector.load %arg9[%c1_253, %c0_254, %c0_255] : memref<2x8x128xf32, #tpu.memory_space<vmem>>, vector<1x8x128xf32>
    %665 = vector.shape_cast %664 : vector<1x8x128xf32> to vector<8x128xf32>
    %666 = vector.shape_cast %642 : vector<8x128xf32> to vector<1x8x128xf32>
    tpu.vector_store %arg9[%c1_253, %c0_254, %c0_255], %666 {strides = array<i32>} : memref<2x8x128xf32, #tpu.memory_space<vmem>>, vector<1x8x128xf32>,
    %c1_256 = arith.constant 1 : index
    %c0_257 = arith.constant 0 : index
    %c0_258 = arith.constant 0 : index
    %667 = vector.load %arg10[%c1_256, %c0_257, %c0_258] : memref<2x8x128xf32, #tpu.memory_space<vmem>>, vector<1x8x128xf32>
    %668 = vector.shape_cast %667 : vector<1x8x128xf32> to vector<8x128xf32>
    %669 = vector.shape_cast %640 : vector<8x128xf32> to vector<1x8x128xf32>
    tpu.vector_store %arg10[%c1_256, %c0_257, %c0_258], %669 {strides = array<i32>} : memref<2x8x128xf32, #tpu.memory_space<vmem>>, vector<1x8x128xf32>,
    return
  }
}

</mosaic_0001>

<llo_original>
// kernel: decoder_forward.1
$region0: #{decoder_forward.1}
  #allocation0 [shape = 'u32[]', space=smem, size = 0x4, offset = 0x4, fixed_abs, tag = 'smem constant byte address 0x4 - core index']
  #allocation1 [shape = 'u32[144,128]{1,0:T(1,128)}', space=vmem, size = 0x12000, scoped, tag = 'internal scratch']
  %s0 = inlined_call_operand.vmem [shape: f32[8,8,512], index: 0, kind: input, shape index: {}]
  %s1 = inlined_call_operand.vmem [shape: f32[2,8,128], index: 1, kind: input, shape index: {}]
  %s2 = inlined_call_operand.vmem [shape: f32[2,8,128], index: 2, kind: input, shape index: {}]
  %s3 = inlined_call_operand.vmem [shape: f32[2,128,512], index: 3, kind: input, shape index: {}]
  %s4 = inlined_call_operand.hbm [shape: f32[1,128,512], index: 4, kind: input, shape index: {}]
  %s5 = inlined_call_operand.vmem [shape: f32[1,8,512], index: 5, kind: input, shape index: {}]
  %s6 = inlined_call_operand.hbm [shape: f32[128,256], index: 6, kind: input, shape index: {}]
  %s7 = inlined_call_operand.vmem [shape: f32[8,256], index: 7, kind: input, shape index: {}]
  %s8 = inlined_call_operand.hbm [shape: f32[8,8,256], index: 8, kind: output, shape index: {0}]
  %s9 = inlined_call_operand.hbm [shape: f32[2,8,128], index: 9, kind: output, shape index: {1}]
  %s10 = inlined_call_operand.hbm [shape: f32[2,8,128], index: 10, kind: output, shape index: {2}]
  %11 = xla_tuple %s8, %s9, %s10
  %s12 = sld [smem:[#allocation0]]
  $region66: #{decoder_forward.1} parent=0
    _
  %s14 = ssub.s32 1, %s12
  %s15 = scalar_select 0, %s14, %s12
  $region1: #{decoder_forward.1} parent=0
    #allocation2 [shape = 'u8[262144]{0}', space=vmem, size = 0x40000, scoped, tag = 'input window, operand 4, single buffered']
    #allocation3 [shape = 's32[1]{0}', space=sflag, size = 0x4, scoped, tag = 'scoped memory for decoder_forward.1']
    #allocation4 [shape = 's32[1]{0}', space=sflag, size = 0x4, scoped, tag = 'scoped memory for decoder_forward.1']
    #allocation5 [shape = 'u8[131072]{0}', space=vmem, size = 0x20000, scoped, tag = 'input window, operand 6, single buffered']
    #allocation6 [shape = 's32[1]{0}', space=sflag, size = 0x4, scoped, tag = 'scoped memory for decoder_forward.1']
    #allocation7 [shape = 'u8[65536]{0}', space=vmem, size = 0x10000, scoped, tag = 'output window, operand 0, single buffered']
    #allocation8 [shape = 'u8[8192]{0}', space=vmem, size = 0x2000, scoped, tag = 'output window, operand 1, single buffered']
    #allocation9 [shape = 's32[1]{0}', space=sflag, size = 0x4, scoped, tag = 'scoped memory for decoder_forward.1']
    #allocation10 [shape = 'u8[8192]{0}', space=vmem, size = 0x2000, scoped, tag = 'output window, operand 2, single buffered']
    %16 = vsyncpa [#allocation3], 0
    %17 = vsyncpa [#allocation6], 0
    %18 = vsyncpa [#allocation4], 0
    %19 = vsyncpa [#allocation9], 0
    // Predicated region
    $region2: #{decoder_forward.1} parent=1 // pred_check
      _
    $region3: #{decoder_forward.1} parent=1 // pred_check_branch
      %21 = sbr.rel (0) target = $region5
    $region4: #{decoder_forward.1} parent=1 // pred_region
      _
    $region5: #{decoder_forward.1} parent=1 // pred_fallthru
      _
    // Predicated region
    $region6: #{decoder_forward.1} parent=1 // pred_check
      _
    $region7: #{decoder_forward.1} parent=1 // pred_check_branch
      %23 = sbr.rel (0) target = $region9
    $region8: #{decoder_forward.1} parent=1 // pred_region
      _
    $region9: #{decoder_forward.1} parent=1 // pred_fallthru
      _
    // Predicated region
    $region10: #{decoder_forward.1} parent=1 // pred_check
      _
    $region11: #{decoder_forward.1} parent=1 // pred_check_branch
      %25 = sbr.rel (0) target = $region13
    $region12: #{decoder_forward.1} parent=1 // pred_region
      _
    $region13: #{decoder_forward.1} parent=1 // pred_fallthru
      _
    // Predicated region
    $region14: #{decoder_forward.1} parent=1 // pred_check
      _
    $region15: #{decoder_forward.1} parent=1 // pred_check_branch
      %27 = sbr.rel (0) target = $region17
    $region16: #{decoder_forward.1} parent=1 // pred_region
      _
    $region17: #{decoder_forward.1} parent=1 // pred_fallthru
      _
    // Predicated region
    $region18: #{decoder_forward.1} parent=1 // pred_check
      _
    $region19: #{decoder_forward.1} parent=1 // pred_check_branch
      %29 = sbr.rel (0) target = $region21
    $region20: #{decoder_forward.1} parent=1 // pred_region
      %s31 = ssub.s32 8192, 8192
      %32 = vsyncadd [#allocation3], %s31
      %s33 = sshll.u32 [#allocation2], 4
      %s34 = int_to_ptr.vmem [resolvable:$true] %s33
      %39 = dma.hbm_to_vmem [thread:$0]  %s4, 8192, %s34, [#allocation3], 512, 512, 32
    $region21: #{decoder_forward.1} parent=1 // pred_fallthru
      _
    // Predicated region
    $region22: #{decoder_forward.1} parent=1 // pred_check
      _
    $region23: #{decoder_forward.1} parent=1 // pred_check_branch
      %41 = sbr.rel (0) target = $region25
    $region24: #{decoder_forward.1} parent=1 // pred_region
      _
    $region25: #{decoder_forward.1} parent=1 // pred_fallthru
      _
    // Predicated region
    $region26: #{decoder_forward.1} parent=1 // pred_check
      _
    $region27: #{decoder_forward.1} parent=1 // pred_check_branch
      %43 = sbr.rel (0) target = $region29
    $region28: #{decoder_forward.1} parent=1 // pred_region
      %s45 = ssub.s32 4096, 4096
      %46 = vsyncadd [#allocation6], %s45
      %s47 = sshll.u32 [#allocation5], 4
      %s48 = int_to_ptr.vmem [resolvable:$true] %s47
      %53 = dma.hbm_to_vmem [thread:$0]  %s6, 4096, %s48, [#allocation6], 256, 256, 16
    $region29: #{decoder_forward.1} parent=1 // pred_fallthru
      _
    // Predicated region
    $region30: #{decoder_forward.1} parent=1 // pred_check
      _
    $region31: #{decoder_forward.1} parent=1 // pred_check_branch
      %55 = sbr.rel (0) target = $region33
    $region32: #{decoder_forward.1} parent=1 // pred_region
      _
    $region33: #{decoder_forward.1} parent=1 // pred_fallthru
      _
    // Predicated region
    $region34: #{decoder_forward.1} parent=1 // pred_check
      _
    $region35: #{decoder_forward.1} parent=1 // pred_check_branch
      %57 = sbr.rel (0) target = $region37
    $region36: #{decoder_forward.1} parent=1 // pred_region
      %58 = dma.done [#allocation3], 8192
    $region37: #{decoder_forward.1} parent=1 // pred_fallthru
      _
    // Predicated region
    $region38: #{decoder_forward.1} parent=1 // pred_check
      _
    $region39: #{decoder_forward.1} parent=1 // pred_check_branch
      %60 = sbr.rel (0) target = $region41
    $region40: #{decoder_forward.1} parent=1 // pred_region
      %61 = dma.done [#allocation6], 4096
    $region41: #{decoder_forward.1} parent=1 // pred_fallthru
      _
    %v62 = vld [vmem:[#allocation5] sm:$0xff]
    %v63 = vld [vmem:[#allocation5 + $0x8] sm:$0xff]
    %v64 = vld [vmem:[#allocation5 + $0x10] sm:$0xff]
    %v65 = vld [vmem:[#allocation5 + $0x18] sm:$0xff]
    %v66 = vld [vmem:[#allocation5 + $0x20] sm:$0xff]
    %v67 = vld [vmem:[#allocation5 + $0x28] sm:$0xff]
    %v68 = vld [vmem:[#allocation5 + $0x30] sm:$0xff]
    %v69 = vld [vmem:[#allocation5 + $0x38] sm:$0xff]
    %v70 = vld [vmem:[#allocation5 + $0x40] sm:$0xff]
    %v71 = vld [vmem:[#allocation5 + $0x48] sm:$0xff]
    %v72 = vld [vmem:[#allocation5 + $0x50] sm:$0xff]
    %v73 = vld [vmem:[#allocation5 + $0x58] sm:$0xff]
    %v74 = vld [vmem:[#allocation5 + $0x60] sm:$0xff]
    %v75 = vld [vmem:[#allocation5 + $0x68] sm:$0xff]
    %v76 = vld [vmem:[#allocation5 + $0x70] sm:$0xff]
    %v77 = vld [vmem:[#allocation5 + $0x78] sm:$0xff]
    %v78 = vld [vmem:[#allocation5 + $0x80] sm:$0xff]
    %v79 = vld [vmem:[#allocation5 + $0x88] sm:$0xff]
    %v80 = vld [vmem:[#allocation5 + $0x90] sm:$0xff]
    %v81 = vld [vmem:[#allocation5 + $0x98] sm:$0xff]
    %v82 = vld [vmem:[#allocation5 + $0xa0] sm:$0xff]
    %v83 = vld [vmem:[#allocation5 + $0xa8] sm:$0xff]
    %v84 = vld [vmem:[#allocation5 + $0xb0] sm:$0xff]
    %v85 = vld [vmem:[#allocation5 + $0xb8] sm:$0xff]
    %v86 = vld [vmem:[#allocation5 + $0xc0] sm:$0xff]
    %v87 = vld [vmem:[#allocation5 + $0xc8] sm:$0xff]
    %v88 = vld [vmem:[#allocation5 + $0xd0] sm:$0xff]
    %v89 = vld [vmem:[#allocation5 + $0xd8] sm:$0xff]
    %v90 = vld [vmem:[#allocation5 + $0xe0] sm:$0xff]
    %v91 = vld [vmem:[#allocation5 + $0xe8] sm:$0xff]
    %v92 = vld [vmem:[#allocation5 + $0xf0] sm:$0xff]
    %v93 = vld [vmem:[#allocation5 + $0xf8] sm:$0xff]
    %v94 = vld [vmem:[%s7] sm:$0xff]
    %v95 = vld [vmem:[%s7 + $0x8] sm:$0xff]
    %v96 = vld [vmem:[%s1] sm:$0xff]
    %s97 = scalar_lea.vmem %s1, 8
    %v98 = vld [vmem:[%s97] sm:$0xff]
    %v99 = vld [vmem:[%s2] sm:$0xff]
    %s100 = scalar_lea.vmem %s2, 8
    %v101 = vld [vmem:[%s100] sm:$0xff]
    %v102 = vld [vmem:[%s0] sm:$0xff]
    %v103 = vld [vmem:[%s0 + $0x8] sm:$0xff]
    %v104 = vld [vmem:[%s0 + $0x10] sm:$0xff]
    %v105 = vld [vmem:[%s0 + $0x18] sm:$0xff]
    %v106 = vld [vmem:[%s3] sm:$0xff]
    %v107 = vld [vmem:[%s3 + $0x8] sm:$0xff]
    %v108 = vld [vmem:[%s3 + $0x10] sm:$0xff]
    %v109 = vld [vmem:[%s3 + $0x18] sm:$0xff]
    %v110 = vld [vmem:[%s3 + $0x20] sm:$0xff]
    %v111 = vld [vmem:[%s3 + $0x28] sm:$0xff]
    %v112 = vld [vmem:[%s3 + $0x30] sm:$0xff]
    %v113 = vld [vmem:[%s3 + $0x38] sm:$0xff]
    %v114 = vld [vmem:[%s3 + $0x40] sm:$0xff]
    %v115 = vld [vmem:[%s3 + $0x48] sm:$0xff]
    %v116 = vld [vmem:[%s3 + $0x50] sm:$0xff]
    %v117 = vld [vmem:[%s3 + $0x58] sm:$0xff]
    %v118 = vld [vmem:[%s3 + $0x60] sm:$0xff]
    %v119 = vld [vmem:[%s3 + $0x68] sm:$0xff]
    %v120 = vld [vmem:[%s3 + $0x70] sm:$0xff]
    %v121 = vld [vmem:[%s3 + $0x78] sm:$0xff]
    %v122 = vld [vmem:[%s3 + $0x80] sm:$0xff]
    %v123 = vld [vmem:[%s3 + $0x88] sm:$0xff]
    %v124 = vld [vmem:[%s3 + $0x90] sm:$0xff]
    %v125 = vld [vmem:[%s3 + $0x98] sm:$0xff]
    %v126 = vld [vmem:[%s3 + $0xa0] sm:$0xff]
    %v127 = vld [vmem:[%s3 + $0xa8] sm:$0xff]
    %v128 = vld [vmem:[%s3 + $0xb0] sm:$0xff]
    %v129 = vld [vmem:[%s3 + $0xb8] sm:$0xff]
    %v130 = vld [vmem:[%s3 + $0xc0] sm:$0xff]
    %v131 = vld [vmem:[%s3 + $0xc8] sm:$0xff]
    %v132 = vld [vmem:[%s3 + $0xd0] sm:$0xff]
    %v133 = vld [vmem:[%s3 + $0xd8] sm:$0xff]
    %v134 = vld [vmem:[%s3 + $0xe0] sm:$0xff]
    %v135 = vld [vmem:[%s3 + $0xe8] sm:$0xff]
    %v136 = vld [vmem:[%s3 + $0xf0] sm:$0xff]
    %v137 = vld [vmem:[%s3 + $0xf8] sm:$0xff]
    %v138 = vld [vmem:[%s3 + $0x100] sm:$0xff]
    %v139 = vld [vmem:[%s3 + $0x108] sm:$0xff]
    %v140 = vld [vmem:[%s3 + $0x110] sm:$0xff]
    %v141 = vld [vmem:[%s3 + $0x118] sm:$0xff]
    %v142 = vld [vmem:[%s3 + $0x120] sm:$0xff]
    %v143 = vld [vmem:[%s3 + $0x128] sm:$0xff]
    %v144 = vld [vmem:[%s3 + $0x130] sm:$0xff]
    %v145 = vld [vmem:[%s3 + $0x138] sm:$0xff]
    %v146 = vld [vmem:[%s3 + $0x140] sm:$0xff]
    %v147 = vld [vmem:[%s3 + $0x148] sm:$0xff]
    %v148 = vld [vmem:[%s3 + $0x150] sm:$0xff]
    %v149 = vld [vmem:[%s3 + $0x158] sm:$0xff]
    %v150 = vld [vmem:[%s3 + $0x160] sm:$0xff]
    %v151 = vld [vmem:[%s3 + $0x168] sm:$0xff]
    %v152 = vld [vmem:[%s3 + $0x170] sm:$0xff]
    %v153 = vld [vmem:[%s3 + $0x178] sm:$0xff]
    %v154 = vld [vmem:[%s3 + $0x180] sm:$0xff]
    %v155 = vld [vmem:[%s3 + $0x188] sm:$0xff]
    %v156 = vld [vmem:[%s3 + $0x190] sm:$0xff]
    %v157 = vld [vmem:[%s3 + $0x198] sm:$0xff]
    %v158 = vld [vmem:[%s3 + $0x1a0] sm:$0xff]
    %v159 = vld [vmem:[%s3 + $0x1a8] sm:$0xff]
    %v160 = vld [vmem:[%s3 + $0x1b0] sm:$0xff]
    %v161 = vld [vmem:[%s3 + $0x1b8] sm:$0xff]
    %v162 = vld [vmem:[%s3 + $0x1c0] sm:$0xff]
    %v163 = vld [vmem:[%s3 + $0x1c8] sm:$0xff]
    %v164 = vld [vmem:[%s3 + $0x1d0] sm:$0xff]
    %v165 = vld [vmem:[%s3 + $0x1d8] sm:$0xff]
    %v166 = vld [vmem:[%s3 + $0x1e0] sm:$0xff]
    %v167 = vld [vmem:[%s3 + $0x1e8] sm:$0xff]
    %v168 = vld [vmem:[%s3 + $0x1f0] sm:$0xff]
    %v169 = vld [vmem:[%s3 + $0x1f8] sm:$0xff]
    %170 = vmatprep.subr.mxu0 %v107
    %171 = vmatpush1.msra.mxu0 %v106
    %172 = vmatprep.subr.mxu0 %v111
    %173 = vmatpush1.msra.mxu0 %v110
    %174 = vmatprep.subr.mxu0 %v115
    %175 = vmatpush1.msra.mxu0 %v114
    %176 = vmatprep.subr.mxu0 %v119
    %177 = vmatpush1.msra.mxu0 %v118
    %178 = vmatprep.subr.mxu0 %v123
    %179 = vmatpush1.msra.mxu0 %v122
    %180 = vmatprep.subr.mxu0 %v127
    %181 = vmatpush1.msra.mxu0 %v126
    %182 = vmatprep.subr.mxu0 %v131
    %183 = vmatpush1.msra.mxu0 %v130
    %184 = vmatprep.subr.mxu0 %v135
    %185 = vmatpush1.msra.mxu0 %v134
    %186 = vmatprep.subr.mxu0 %v139
    %187 = vmatpush1.msra.mxu0 %v138
    %188 = vmatprep.subr.mxu0 %v143
    %189 = vmatpush1.msra.mxu0 %v142
    %190 = vmatprep.subr.mxu0 %v147
    %191 = vmatpush1.msra.mxu0 %v146
    %192 = vmatprep.subr.mxu0 %v151
    %193 = vmatpush1.msra.mxu0 %v150
    %194 = vmatprep.subr.mxu0 %v155
    %195 = vmatpush1.msra.mxu0 %v154
    %196 = vmatprep.subr.mxu0 %v159
    %197 = vmatpush1.msra.mxu0 %v158
    %198 = vmatprep.subr.mxu0 %v163
    %199 = vmatpush1.msra.mxu0 %v162
    %200 = vmatprep.subr.mxu0 %v167
    %201 = vmatpush1.msra.mxu0 %v166
    %202 = vmatprep.subr.mxu0 0.0
    %203 = vmatpush1.msra.mxu0 0.0
    %204 = vmatprep.subr.mxu0 0.0
    %205 = vmatpush1.msra.mxu0 0.0
    %206 = vmatprep.subr.mxu0 0.0
    %207 = vmatpush1.msra.mxu0 0.0
    %208 = vmatprep.subr.mxu0 0.0
    %209 = vmatpush1.msra.mxu0 0.0
    %210 = vmatprep.subr.mxu0 0.0
    %211 = vmatpush1.msra.mxu0 0.0
    %212 = vmatprep.subr.mxu0 0.0
    %213 = vmatpush1.msra.mxu0 0.0
    %214 = vmatprep.subr.mxu0 0.0
    %215 = vmatpush1.msra.mxu0 0.0
    %216 = vmatprep.subr.mxu0 0.0
    %217 = vmatpush1.msra.mxu0 0.0
    %218 = vmatprep.subr.mxu0 0.0
    %219 = vmatpush1.msra.mxu0 0.0
    %220 = vmatprep.subr.mxu0 0.0
    %221 = vmatpush1.msra.mxu0 0.0
    %222 = vmatprep.subr.mxu0 0.0
    %223 = vmatpush1.msra.mxu0 0.0
    %224 = vmatprep.subr.mxu0 0.0
    %225 = vmatpush1.msra.mxu0 0.0
    %226 = vmatprep.subr.mxu0 0.0
    %227 = vmatpush1.msra.mxu0 0.0
    %228 = vmatprep.subr.mxu0 0.0
    %229 = vmatpush1.msra.mxu0 0.0
    %230 = vmatprep.subr.mxu0 0.0
    %231 = vmatpush1.msra.mxu0 0.0
    %232 = vmatprep.subr.mxu0 0.0
    %233 = vmatpush1.msra.mxu0 0.0
    %234 = vmatprep.mubr.f32.mxu0 0.0
    %235 = vmatmul.mubr.f32.gmra.mrb[0].mxu0 %v96
    %v236 = vpop.f32.mrb[0].mxu0
    %v237 = vadd.f32 0.0, %v236
    %v238 = vpop.f32.mrb[0].mxu0
    %v239 = vadd.f32 0.0, %v238
    %240 = vdwg.mxu0
    %241 = vmatprep.subr.mxu0 %v109
    %242 = vmatpush1.msra.mxu0 %v108
    %243 = vmatprep.subr.mxu0 %v113
    %244 = vmatpush1.msra.mxu0 %v112
    %245 = vmatprep.subr.mxu0 %v117
    %246 = vmatpush1.msra.mxu0 %v116
    %247 = vmatprep.subr.mxu0 %v121
    %248 = vmatpush1.msra.mxu0 %v120
    %249 = vmatprep.subr.mxu0 %v125
    %250 = vmatpush1.msra.mxu0 %v124
    %251 = vmatprep.subr.mxu0 %v129
    %252 = vmatpush1.msra.mxu0 %v128
    %253 = vmatprep.subr.mxu0 %v133
    %254 = vmatpush1.msra.mxu0 %v132
    %255 = vmatprep.subr.mxu0 %v137
    %256 = vmatpush1.msra.mxu0 %v136
    %257 = vmatprep.subr.mxu0 %v141
    %258 = vmatpush1.msra.mxu0 %v140
    %259 = vmatprep.subr.mxu0 %v145
    %260 = vmatpush1.msra.mxu0 %v144
    %261 = vmatprep.subr.mxu0 %v149
    %262 = vmatpush1.msra.mxu0 %v148
    %263 = vmatprep.subr.mxu0 %v153
    %264 = vmatpush1.msra.mxu0 %v152
    %265 = vmatprep.subr.mxu0 %v157
    %266 = vmatpush1.msra.mxu0 %v156
    %267 = vmatprep.subr.mxu0 %v161
    %268 = vmatpush1.msra.mxu0 %v160
    %269 = vmatprep.subr.mxu0 %v165
    %270 = vmatpush1.msra.mxu0 %v164
    %271 = vmatprep.subr.mxu0 %v169
    %272 = vmatpush1.msra.mxu0 %v168
    %273 = vmatprep.subr.mxu0 0.0
    %274 = vmatpush1.msra.mxu0 0.0
    %275 = vmatprep.subr.mxu0 0.0
    %276 = vmatpush1.msra.mxu0 0.0
    %277 = vmatprep.subr.mxu0 0.0
    %278 = vmatpush1.msra.mxu0 0.0
    %279 = vmatprep.subr.mxu0 0.0
    %280 = vmatpush1.msra.mxu0 0.0
    %281 = vmatprep.subr.mxu0 0.0
    %282 = vmatpush1.msra.mxu0 0.0
    %283 = vmatprep.subr.mxu0 0.0
    %284 = vmatpush1.msra.mxu0 0.0
    %285 = vmatprep.subr.mxu0 0.0
    %286 = vmatpush1.msra.mxu0 0.0
    %287 = vmatprep.subr.mxu0 0.0
    %288 = vmatpush1.msra.mxu0 0.0
    %289 = vmatprep.subr.mxu0 0.0
    %290 = vmatpush1.msra.mxu0 0.0
    %291 = vmatprep.subr.mxu0 0.0
    %292 = vmatpush1.msra.mxu0 0.0
    %293 = vmatprep.subr.mxu0 0.0
    %294 = vmatpush1.msra.mxu0 0.0
    %295 = vmatprep.subr.mxu0 0.0
    %296 = vmatpush1.msra.mxu0 0.0
    %297 = vmatprep.subr.mxu0 0.0
    %298 = vmatpush1.msra.mxu0 0.0
    %299 = vmatprep.subr.mxu0 0.0
    %300 = vmatpush1.msra.mxu0 0.0
    %301 = vmatprep.subr.mxu0 0.0
    %302 = vmatpush1.msra.mxu0 0.0
    %303 = vmatprep.subr.mxu0 0.0
    %304 = vmatpush1.msra.mxu0 0.0
    %305 = vmatprep.mubr.f32.mxu0 0.0
    %306 = vmatmul.mubr.f32.gmra.mrb[0].mxu0 %v96
    %v307 = vpop.f32.mrb[0].mxu0
    %v308 = vadd.f32 0.0, %v307
    %v309 = vpop.f32.mrb[0].mxu0
    %v310 = vadd.f32 0.0, %v309
    %311 = vdwg.mxu0
    %v312 = vadd.f32 %v102, %v237
    %v313 = vadd.f32 %v103, %v239
    %v314 = vadd.f32 %v104, %v308
    %v315 = vadd.f32 %v105, %v310
    %v316 = vxor.u32 %v312, 2147483648
    %v317 = vmul.f32 %v316, 1.442695
    %v318 = vpow.pop %v317
    %v319 = vadd.f32 %v318, 1.0
    %v320 = vrcp.pop %v319
    %v321 = vmul.f32 1.0, %v320
    %v322 = vxor.u32 %v313, 2147483648
    %v323 = vmul.f32 %v322, 1.442695
    %v324 = vpow.pop %v323
    %v325 = vadd.f32 %v324, 1.0
    %v326 = vrcp.pop %v325
    %v327 = vmul.f32 1.0, %v326
    %v328 = vtanh.pop %v314
    %v329 = vxor.u32 %v315, 2147483648
    %v330 = vmul.f32 %v329, 1.442695
    %v331 = vpow.pop %v330
    %v332 = vadd.f32 %v331, 1.0
    %v333 = vrcp.pop %v332
    %v334 = vmul.f32 1.0, %v333
    %v335 = vmul.f32 %v327, %v99
    %v336 = vmul.f32 %v321, %v328
    %v337 = vadd.f32 %v335, %v336
    %v338 = vtanh.pop %v337
    %v339 = vmul.f32 %v334, %v338
    %v340 = vld [vmem:[#allocation2] sm:$0xff]
    %v341 = vld [vmem:[#allocation2 + $0x8] sm:$0xff]
    %v342 = vld [vmem:[#allocation2 + $0x10] sm:$0xff]
    %v343 = vld [vmem:[#allocation2 + $0x18] sm:$0xff]
    %v344 = vld [vmem:[#allocation2 + $0x20] sm:$0xff]
    %v345 = vld [vmem:[#allocation2 + $0x28] sm:$0xff]
    %v346 = vld [vmem:[#allocation2 + $0x30] sm:$0xff]
    %v347 = vld [vmem:[#allocation2 + $0x38] sm:$0xff]
    %v348 = vld [vmem:[#allocation2 + $0x40] sm:$0xff]
    %v349 = vld [vmem:[#allocation2 + $0x48] sm:$0xff]
    %v350 = vld [vmem:[#allocation2 + $0x50] sm:$0xff]
    %v351 = vld [vmem:[#allocation2 + $0x58] sm:$0xff]
    %v352 = vld [vmem:[#allocation2 + $0x60] sm:$0xff]
    %v353 = vld [vmem:[#allocation2 + $0x68] sm:$0xff]
    %v354 = vld [vmem:[#allocation2 + $0x70] sm:$0xff]
    %v355 = vld [vmem:[#allocation2 + $0x78] sm:$0xff]
    %v356 = vld [vmem:[#allocation2 + $0x80] sm:$0xff]
    %v357 = vld [vmem:[#allocation2 + $0x88] sm:$0xff]
    %v358 = vld [vmem:[#allocation2 + $0x90] sm:$0xff]
    %v359 = vld [vmem:[#allocation2 + $0x98] sm:$0xff]
    %v360 = vld [vmem:[#allocation2 + $0xa0] sm:$0xff]
    %v361 = vld [vmem:[#allocation2 + $0xa8] sm:$0xff]
    %v362 = vld [vmem:[#allocation2 + $0xb0] sm:$0xff]
    %v363 = vld [vmem:[#allocation2 + $0xb8] sm:$0xff]
    %v364 = vld [vmem:[#allocation2 + $0xc0] sm:$0xff]
    %v365 = vld [vmem:[#allocation2 + $0xc8] sm:$0xff]
    %v366 = vld [vmem:[#allocation2 + $0xd0] sm:$0xff]
    %v367 = vld [vmem:[#allocation2 + $0xd8] sm:$0xff]
    %v368 = vld [vmem:[#allocation2 + $0xe0] sm:$0xff]
    %v369 = vld [vmem:[#allocation2 + $0xe8] sm:$0xff]
    %v370 = vld [vmem:[#allocation2 + $0xf0] sm:$0xff]
    %v371 = vld [vmem:[#allocation2 + $0xf8] sm:$0xff]
    %v372 = vld [vmem:[#allocation2 + $0x100] sm:$0xff]
    %v373 = vld [vmem:[#allocation2 + $0x108] sm:$0xff]
    %v374 = vld [vmem:[#allocation2 + $0x110] sm:$0xff]
    %v375 = vld [vmem:[#allocation2 + $0x118] sm:$0xff]
    %v376 = vld [vmem:[#allocation2 + $0x120] sm:$0xff]
    %v377 = vld [vmem:[#allocation2 + $0x128] sm:$0xff]
    %v378 = vld [vmem:[#allocation2 + $0x130] sm:$0xff]
    %v379 = vld [vmem:[#allocation2 + $0x138] sm:$0xff]
    %v380 = vld [vmem:[#allocation2 + $0x140] sm:$0xff]
    %v381 = vld [vmem:[#allocation2 + $0x148] sm:$0xff]
    %v382 = vld [vmem:[#allocation2 + $0x150] sm:$0xff]
    %v383 = vld [vmem:[#allocation2 + $0x158] sm:$0xff]
    %v384 = vld [vmem:[#allocation2 + $0x160] sm:$0xff]
    %v385 = vld [vmem:[#allocation2 + $0x168] sm:$0xff]
    %v386 = vld [vmem:[#allocation2 + $0x170] sm:$0xff]
    %v387 = vld [vmem:[#allocation2 + $0x178] sm:$0xff]
    %v388 = vld [vmem:[#allocation2 + $0x180] sm:$0xff]
    %v389 = vld [vmem:[#allocation2 + $0x188] sm:$0xff]
    %v390 = vld [vmem:[#allocation2 + $0x190] sm:$0xff]
    %v391 = vld [vmem:[#allocation2 + $0x198] sm:$0xff]
    %v392 = vld [vmem:[#allocation2 + $0x1a0] sm:$0xff]
    %v393 = vld [vmem:[#allocation2 + $0x1a8] sm:$0xff]
    %v394 = vld [vmem:[#allocation2 + $0x1b0] sm:$0xff]
    %v395 = vld [vmem:[#allocation2 + $0x1b8] sm:$0xff]
    %v396 = vld [vmem:[#allocation2 + $0x1c0] sm:$0xff]
    %v397 = vld [vmem:[#allocation2 + $0x1c8] sm:$0xff]
    %v398 = vld [vmem:[#allocation2 + $0x1d0] sm:$0xff]
    %v399 = vld [vmem:[#allocation2 + $0x1d8] sm:$0xff]
    %v400 = vld [vmem:[#allocation2 + $0x1e0] sm:$0xff]
    %v401 = vld [vmem:[#allocation2 + $0x1e8] sm:$0xff]
    %v402 = vld [vmem:[#allocation2 + $0x1f0] sm:$0xff]
    %v403 = vld [vmem:[#allocation2 + $0x1f8] sm:$0xff]
    %s404 = scalar_lea.vmem %s3, 512
    %v405 = vld [vmem:[%s404] sm:$0xff]
    %v406 = vld [vmem:[%s404 + $0x8] sm:$0xff]
    %v407 = vld [vmem:[%s404 + $0x10] sm:$0xff]
    %v408 = vld [vmem:[%s404 + $0x18] sm:$0xff]
    %v409 = vld [vmem:[%s404 + $0x20] sm:$0xff]
    %v410 = vld [vmem:[%s404 + $0x28] sm:$0xff]
    %v411 = vld [vmem:[%s404 + $0x30] sm:$0xff]
    %v412 = vld [vmem:[%s404 + $0x38] sm:$0xff]
    %v413 = vld [vmem:[%s404 + $0x40] sm:$0xff]
    %v414 = vld [vmem:[%s404 + $0x48] sm:$0xff]
    %v415 = vld [vmem:[%s404 + $0x50] sm:$0xff]
    %v416 = vld [vmem:[%s404 + $0x58] sm:$0xff]
    %v417 = vld [vmem:[%s404 + $0x60] sm:$0xff]
    %v418 = vld [vmem:[%s404 + $0x68] sm:$0xff]
    %v419 = vld [vmem:[%s404 + $0x70] sm:$0xff]
    %v420 = vld [vmem:[%s404 + $0x78] sm:$0xff]
    %v421 = vld [vmem:[%s404 + $0x80] sm:$0xff]
    %v422 = vld [vmem:[%s404 + $0x88] sm:$0xff]
    %v423 = vld [vmem:[%s404 + $0x90] sm:$0xff]
    %v424 = vld [vmem:[%s404 + $0x98] sm:$0xff]
    %v425 = vld [vmem:[%s404 + $0xa0] sm:$0xff]
    %v426 = vld [vmem:[%s404 + $0xa8] sm:$0xff]
    %v427 = vld [vmem:[%s404 + $0xb0] sm:$0xff]
    %v428 = vld [vmem:[%s404 + $0xb8] sm:$0xff]
    %v429 = vld [vmem:[%s404 + $0xc0] sm:$0xff]
    %v430 = vld [vmem:[%s404 + $0xc8] sm:$0xff]
    %v431 = vld [vmem:[%s404 + $0xd0] sm:$0xff]
    %v432 = vld [vmem:[%s404 + $0xd8] sm:$0xff]
    %v433 = vld [vmem:[%s404 + $0xe0] sm:$0xff]
    %v434 = vld [vmem:[%s404 + $0xe8] sm:$0xff]
    %v435 = vld [vmem:[%s404 + $0xf0] sm:$0xff]
    %v436 = vld [vmem:[%s404 + $0xf8] sm:$0xff]
    %v437 = vld [vmem:[%s404 + $0x100] sm:$0xff]
    %v438 = vld [vmem:[%s404 + $0x108] sm:$0xff]
    %v439 = vld [vmem:[%s404 + $0x110] sm:$0xff]
    %v440 = vld [vmem:[%s404 + $0x118] sm:$0xff]
    %v441 = vld [vmem:[%s404 + $0x120] sm:$0xff]
    %v442 = vld [vmem:[%s404 + $0x128] sm:$0xff]
    %v443 = vld [vmem:[%s404 + $0x130] sm:$0xff]
    %v444 = vld [vmem:[%s404 + $0x138] sm:$0xff]
    %v445 = vld [vmem:[%s404 + $0x140] sm:$0xff]
    %v446 = vld [vmem:[%s404 + $0x148] sm:$0xff]
    %v447 = vld [vmem:[%s404 + $0x150] sm:$0xff]
    %v448 = vld [vmem:[%s404 + $0x158] sm:$0xff]
    %v449 = vld [vmem:[%s404 + $0x160] sm:$0xff]
    %v450 = vld [vmem:[%s404 + $0x168] sm:$0xff]
    %v451 = vld [vmem:[%s404 + $0x170] sm:$0xff]
    %v452 = vld [vmem:[%s404 + $0x178] sm:$0xff]
    %v453 = vld [vmem:[%s404 + $0x180] sm:$0xff]
    %v454 = vld [vmem:[%s404 + $0x188] sm:$0xff]
    %v455 = vld [vmem:[%s404 + $0x190] sm:$0xff]
    %v456 = vld [vmem:[%s404 + $0x198] sm:$0xff]
    %v457 = vld [vmem:[%s404 + $0x1a0] sm:$0xff]
    %v458 = vld [vmem:[%s404 + $0x1a8] sm:$0xff]
    %v459 = vld [vmem:[%s404 + $0x1b0] sm:$0xff]
    %v460 = vld [vmem:[%s404 + $0x1b8] sm:$0xff]
    %v461 = vld [vmem:[%s404 + $0x1c0] sm:$0xff]
    %v462 = vld [vmem:[%s404 + $0x1c8] sm:$0xff]
    %v463 = vld [vmem:[%s404 + $0x1d0] sm:$0xff]
    %v464 = vld [vmem:[%s404 + $0x1d8] sm:$0xff]
    %v465 = vld [vmem:[%s404 + $0x1e0] sm:$0xff]
    %v466 = vld [vmem:[%s404 + $0x1e8] sm:$0xff]
    %v467 = vld [vmem:[%s404 + $0x1f0] sm:$0xff]
    %v468 = vld [vmem:[%s404 + $0x1f8] sm:$0xff]
    %469 = vmatprep.subr.mxu0 %v406
    %470 = vmatpush1.msra.mxu0 %v405
    %471 = vmatprep.subr.mxu0 %v410
    %472 = vmatpush1.msra.mxu0 %v409
    %473 = vmatprep.subr.mxu0 %v414
    %474 = vmatpush1.msra.mxu0 %v413
    %475 = vmatprep.subr.mxu0 %v418
    %476 = vmatpush1.msra.mxu0 %v417
    %477 = vmatprep.subr.mxu0 %v422
    %478 = vmatpush1.msra.mxu0 %v421
    %479 = vmatprep.subr.mxu0 %v426
    %480 = vmatpush1.msra.mxu0 %v425
    %481 = vmatprep.subr.mxu0 %v430
    %482 = vmatpush1.msra.mxu0 %v429
    %483 = vmatprep.subr.mxu0 %v434
    %484 = vmatpush1.msra.mxu0 %v433
    %485 = vmatprep.subr.mxu0 %v438
    %486 = vmatpush1.msra.mxu0 %v437
    %487 = vmatprep.subr.mxu0 %v442
    %488 = vmatpush1.msra.mxu0 %v441
    %489 = vmatprep.subr.mxu0 %v446
    %490 = vmatpush1.msra.mxu0 %v445
    %491 = vmatprep.subr.mxu0 %v450
    %492 = vmatpush1.msra.mxu0 %v449
    %493 = vmatprep.subr.mxu0 %v454
    %494 = vmatpush1.msra.mxu0 %v453
    %495 = vmatprep.subr.mxu0 %v458
    %496 = vmatpush1.msra.mxu0 %v457
    %497 = vmatprep.subr.mxu0 %v462
    %498 = vmatpush1.msra.mxu0 %v461
    %499 = vmatprep.subr.mxu0 %v466
    %500 = vmatpush1.msra.mxu0 %v465
    %501 = vmatprep.subr.mxu0 0.0
    %502 = vmatpush1.msra.mxu0 0.0
    %503 = vmatprep.subr.mxu0 0.0
    %504 = vmatpush1.msra.mxu0 0.0
    %505 = vmatprep.subr.mxu0 0.0
    %506 = vmatpush1.msra.mxu0 0.0
    %507 = vmatprep.subr.mxu0 0.0
    %508 = vmatpush1.msra.mxu0 0.0
    %509 = vmatprep.subr.mxu0 0.0
    %510 = vmatpush1.msra.mxu0 0.0
    %511 = vmatprep.subr.mxu0 0.0
    %512 = vmatpush1.msra.mxu0 0.0
    %513 = vmatprep.subr.mxu0 0.0
    %514 = vmatpush1.msra.mxu0 0.0
    %515 = vmatprep.subr.mxu0 0.0
    %516 = vmatpush1.msra.mxu0 0.0
    %517 = vmatprep.subr.mxu0 0.0
    %518 = vmatpush1.msra.mxu0 0.0
    %519 = vmatprep.subr.mxu0 0.0
    %520 = vmatpush1.msra.mxu0 0.0
    %521 = vmatprep.subr.mxu0 0.0
    %522 = vmatpush1.msra.mxu0 0.0
    %523 = vmatprep.subr.mxu0 0.0
    %524 = vmatpush1.msra.mxu0 0.0
    %525 = vmatprep.subr.mxu0 0.0
    %526 = vmatpush1.msra.mxu0 0.0
    %527 = vmatprep.subr.mxu0 0.0
    %528 = vmatpush1.msra.mxu0 0.0
    %529 = vmatprep.subr.mxu0 0.0
    %530 = vmatpush1.msra.mxu0 0.0
    %531 = vmatprep.subr.mxu0 0.0
    %532 = vmatpush1.msra.mxu0 0.0
    %533 = vmatprep.mubr.f32.mxu0 0.0
    %534 = vmatmul.mubr.f32.gmra.mrb[0].mxu0 %v98
    %v535 = vpop.f32.mrb[0].mxu0
    %v536 = vadd.f32 0.0, %v535
    %v537 = vpop.f32.mrb[0].mxu0
    %v538 = vadd.f32 0.0, %v537
    %539 = vdwg.mxu0
    %540 = vmatprep.subr.mxu0 %v408
    %541 = vmatpush1.msra.mxu0 %v407
    %542 = vmatprep.subr.mxu0 %v412
    %543 = vmatpush1.msra.mxu0 %v411
    %544 = vmatprep.subr.mxu0 %v416
    %545 = vmatpush1.msra.mxu0 %v415
    %546 = vmatprep.subr.mxu0 %v420
    %547 = vmatpush1.msra.mxu0 %v419
    %548 = vmatprep.subr.mxu0 %v424
    %549 = vmatpush1.msra.mxu0 %v423
    %550 = vmatprep.subr.mxu0 %v428
    %551 = vmatpush1.msra.mxu0 %v427
    %552 = vmatprep.subr.mxu0 %v432
    %553 = vmatpush1.msra.mxu0 %v431
    %554 = vmatprep.subr.mxu0 %v436
    %555 = vmatpush1.msra.mxu0 %v435
    %556 = vmatprep.subr.mxu0 %v440
    %557 = vmatpush1.msra.mxu0 %v439
    %558 = vmatprep.subr.mxu0 %v444
    %559 = vmatpush1.msra.mxu0 %v443
    %560 = vmatprep.subr.mxu0 %v448
    %561 = vmatpush1.msra.mxu0 %v447
    %562 = vmatprep.subr.mxu0 %v452
    %563 = vmatpush1.msra.mxu0 %v451
    %564 = vmatprep.subr.mxu0 %v456
    %565 = vmatpush1.msra.mxu0 %v455
    %566 = vmatprep.subr.mxu0 %v460
    %567 = vmatpush1.msra.mxu0 %v459
    %568 = vmatprep.subr.mxu0 %v464
    %569 = vmatpush1.msra.mxu0 %v463
    %570 = vmatprep.subr.mxu0 %v468
    %571 = vmatpush1.msra.mxu0 %v467
    %572 = vmatprep.subr.mxu0 0.0
    %573 = vmatpush1.msra.mxu0 0.0
    %574 = vmatprep.subr.mxu0 0.0
    %575 = vmatpush1.msra.mxu0 0.0
    %576 = vmatprep.subr.mxu0 0.0
    %577 = vmatpush1.msra.mxu0 0.0
    %578 = vmatprep.subr.mxu0 0.0
    %579 = vmatpush1.msra.mxu0 0.0
    %580 = vmatprep.subr.mxu0 0.0
    %581 = vmatpush1.msra.mxu0 0.0
    %582 = vmatprep.subr.mxu0 0.0
    %583 = vmatpush1.msra.mxu0 0.0
    %584 = vmatprep.subr.mxu0 0.0
    %585 = vmatpush1.msra.mxu0 0.0
    %586 = vmatprep.subr.mxu0 0.0
    %587 = vmatpush1.msra.mxu0 0.0
    %588 = vmatprep.subr.mxu0 0.0
    %589 = vmatpush1.msra.mxu0 0.0
    %590 = vmatprep.subr.mxu0 0.0
    %591 = vmatpush1.msra.mxu0 0.0
    %592 = vmatprep.subr.mxu0 0.0
    %593 = vmatpush1.msra.mxu0 0.0
    %594 = vmatprep.subr.mxu0 0.0
    %595 = vmatpush1.msra.mxu0 0.0
    %596 = vmatprep.subr.mxu0 0.0
    %597 = vmatpush1.msra.mxu0 0.0
    %598 = vmatprep.subr.mxu0 0.0
    %599 = vmatpush1.msra.mxu0 0.0
    %600 = vmatprep.subr.mxu0 0.0
    %601 = vmatpush1.msra.mxu0 0.0
    %602 = vmatprep.subr.mxu0 0.0
    %603 = vmatpush1.msra.mxu0 0.0
    %604 = vmatprep.mubr.f32.mxu0 0.0
    %605 = vmatmul.mubr.f32.gmra.mrb[0].mxu0 %v98
    %v606 = vpop.f32.mrb[0].mxu0
    %v607 = vadd.f32 0.0, %v606
    %v608 = vpop.f32.mrb[0].mxu0
    %v609 = vadd.f32 0.0, %v608
    %610 = vdwg.mxu0
    %611 = vmatprep.subr.mxu0 %v341
    %612 = vmatpush1.msra.mxu0 %v340
    %613 = vmatprep.subr.mxu0 %v345
    %614 = vmatpush1.msra.mxu0 %v344
    %615 = vmatprep.subr.mxu0 %v349
    %616 = vmatpush1.msra.mxu0 %v348
    %617 = vmatprep.subr.mxu0 %v353
    %618 = vmatpush1.msra.mxu0 %v352
    %619 = vmatprep.subr.mxu0 %v357
    %620 = vmatpush1.msra.mxu0 %v356
    %621 = vmatprep.subr.mxu0 %v361
    %622 = vmatpush1.msra.mxu0 %v360
    %623 = vmatprep.subr.mxu0 %v365
    %624 = vmatpush1.msra.mxu0 %v364
    %625 = vmatprep.subr.mxu0 %v369
    %626 = vmatpush1.msra.mxu0 %v368
    %627 = vmatprep.subr.mxu0 %v373
    %628 = vmatpush1.msra.mxu0 %v372
    %629 = vmatprep.subr.mxu0 %v377
    %630 = vmatpush1.msra.mxu0 %v376
    %631 = vmatprep.subr.mxu0 %v381
    %632 = vmatpush1.msra.mxu0 %v380
    %633 = vmatprep.subr.mxu0 %v385
    %634 = vmatpush1.msra.mxu0 %v384
    %635 = vmatprep.subr.mxu0 %v389
    %636 = vmatpush1.msra.mxu0 %v388
    %637 = vmatprep.subr.mxu0 %v393
    %638 = vmatpush1.msra.mxu0 %v392
    %639 = vmatprep.subr.mxu0 %v397
    %640 = vmatpush1.msra.mxu0 %v396
    %641 = vmatprep.subr.mxu0 %v401
    %642 = vmatpush1.msra.mxu0 %v400
    %643 = vmatprep.subr.mxu0 0.0
    %644 = vmatpush1.msra.mxu0 0.0
    %645 = vmatprep.subr.mxu0 0.0
    %646 = vmatpush1.msra.mxu0 0.0
    %647 = vmatprep.subr.mxu0 0.0
    %648 = vmatpush1.msra.mxu0 0.0
    %649 = vmatprep.subr.mxu0 0.0
    %650 = vmatpush1.msra.mxu0 0.0
    %651 = vmatprep.subr.mxu0 0.0
    %652 = vmatpush1.msra.mxu0 0.0
    %653 = vmatprep.subr.mxu0 0.0
    %654 = vmatpush1.msra.mxu0 0.0
    %655 = vmatprep.subr.mxu0 0.0
    %656 = vmatpush1.msra.mxu0 0.0
    %657 = vmatprep.subr.mxu0 0.0
    %658 = vmatpush1.msra.mxu0 0.0
    %659 = vmatprep.subr.mxu0 0.0
    %660 = vmatpush1.msra.mxu0 0.0
    %661 = vmatprep.subr.mxu0 0.0
    %662 = vmatpush1.msra.mxu0 0.0
    %663 = vmatprep.subr.mxu0 0.0
    %664 = vmatpush1.msra.mxu0 0.0
    %665 = vmatprep.subr.mxu0 0.0
    %666 = vmatpush1.msra.mxu0 0.0
    %667 = vmatprep.subr.mxu0 0.0
    %668 = vmatpush1.msra.mxu0 0.0
    %669 = vmatprep.subr.mxu0 0.0
    %670 = vmatpush1.msra.mxu0 0.0
    %671 = vmatprep.subr.mxu0 0.0
    %672 = vmatpush1.msra.mxu0 0.0
    %673 = vmatprep.subr.mxu0 0.0
    %674 = vmatpush1.msra.mxu0 0.0
    %675 = vmatprep.mubr.f32.mxu0 0.0
    %676 = vmatmul.mubr.f32.gmra.mrb[0].mxu0 %v339
    %v677 = vpop.f32.mrb[0].mxu0
    %v678 = vadd.f32 %v536, %v677
    %v679 = vpop.f32.mrb[0].mxu0
    %v680 = vadd.f32 %v538, %v679
    %681 = vdwg.mxu0
    %682 = vmatprep.subr.mxu0 %v343
    %683 = vmatpush1.msra.mxu0 %v342
    %684 = vmatprep.subr.mxu0 %v347
    %685 = vmatpush1.msra.mxu0 %v346
    %686 = vmatprep.subr.mxu0 %v351
    %687 = vmatpush1.msra.mxu0 %v350
    %688 = vmatprep.subr.mxu0 %v355
    %689 = vmatpush1.msra.mxu0 %v354
    %690 = vmatprep.subr.mxu0 %v359
    %691 = vmatpush1.msra.mxu0 %v358
    %692 = vmatprep.subr.mxu0 %v363
    %693 = vmatpush1.msra.mxu0 %v362
    %694 = vmatprep.subr.mxu0 %v367
    %695 = vmatpush1.msra.mxu0 %v366
    %696 = vmatprep.subr.mxu0 %v371
    %697 = vmatpush1.msra.mxu0 %v370
    %698 = vmatprep.subr.mxu0 %v375
    %699 = vmatpush1.msra.mxu0 %v374
    %700 = vmatprep.subr.mxu0 %v379
    %701 = vmatpush1.msra.mxu0 %v378
    %702 = vmatprep.subr.mxu0 %v383
    %703 = vmatpush1.msra.mxu0 %v382
    %704 = vmatprep.subr.mxu0 %v387
    %705 = vmatpush1.msra.mxu0 %v386
    %706 = vmatprep.subr.mxu0 %v391
    %707 = vmatpush1.msra.mxu0 %v390
    %708 = vmatprep.subr.mxu0 %v395
    %709 = vmatpush1.msra.mxu0 %v394
    %710 = vmatprep.subr.mxu0 %v399
    %711 = vmatpush1.msra.mxu0 %v398
    %712 = vmatprep.subr.mxu0 %v403
    %713 = vmatpush1.msra.mxu0 %v402
    %714 = vmatprep.subr.mxu0 0.0
    %715 = vmatpush1.msra.mxu0 0.0
    %716 = vmatprep.subr.mxu0 0.0
    %717 = vmatpush1.msra.mxu0 0.0
    %718 = vmatprep.subr.mxu0 0.0
    %719 = vmatpush1.msra.mxu0 0.0
    %720 = vmatprep.subr.mxu0 0.0
    %721 = vmatpush1.msra.mxu0 0.0
    %722 = vmatprep.subr.mxu0 0.0
    %723 = vmatpush1.msra.mxu0 0.0
    %724 = vmatprep.subr.mxu0 0.0
    %725 = vmatpush1.msra.mxu0 0.0
    %726 = vmatprep.subr.mxu0 0.0
    %727 = vmatpush1.msra.mxu0 0.0
    %728 = vmatprep.subr.mxu0 0.0
    %729 = vmatpush1.msra.mxu0 0.0
    %730 = vmatprep.subr.mxu0 0.0
    %731 = vmatpush1.msra.mxu0 0.0
    %732 = vmatprep.subr.mxu0 0.0
    %733 = vmatpush1.msra.mxu0 0.0
    %734 = vmatprep.subr.mxu0 0.0
    %735 = vmatpush1.msra.mxu0 0.0
    %736 = vmatprep.subr.mxu0 0.0
    %737 = vmatpush1.msra.mxu0 0.0
    %738 = vmatprep.subr.mxu0 0.0
    %739 = vmatpush1.msra.mxu0 0.0
    %740 = vmatprep.subr.mxu0 0.0
    %741 = vmatpush1.msra.mxu0 0.0
    %742 = vmatprep.subr.mxu0 0.0
    %743 = vmatpush1.msra.mxu0 0.0
    %744 = vmatprep.subr.mxu0 0.0
    %745 = vmatpush1.msra.mxu0 0.0
    %746 = vmatprep.mubr.f32.mxu0 0.0
    %747 = vmatmul.mubr.f32.gmra.mrb[0].mxu0 %v339
    %v748 = vpop.f32.mrb[0].mxu0
    %v749 = vadd.f32 %v607, %v748
    %v750 = vpop.f32.mrb[0].mxu0
    %v751 = vadd.f32 %v609, %v750
    %752 = vdwg.mxu0
    %v753 = vld [vmem:[%s5] sm:$0xff]
    %v754 = vld [vmem:[%s5 + $0x8] sm:$0xff]
    %v755 = vld [vmem:[%s5 + $0x10] sm:$0xff]
    %v756 = vld [vmem:[%s5 + $0x18] sm:$0xff]
    %v757 = vadd.f32 %v678, %v753
    %v758 = vadd.f32 %v680, %v754
    %v759 = vadd.f32 %v749, %v755
    %v760 = vadd.f32 %v751, %v756
    %v761 = vxor.u32 %v757, 2147483648
    %v762 = vmul.f32 %v761, 1.442695
    %v763 = vpow.pop %v762
    %v764 = vadd.f32 %v763, 1.0
    %v765 = vrcp.pop %v764
    %v766 = vmul.f32 1.0, %v765
    %v767 = vxor.u32 %v758, 2147483648
    %v768 = vmul.f32 %v767, 1.442695
    %v769 = vpow.pop %v768
    %v770 = vadd.f32 %v769, 1.0
    %v771 = vrcp.pop %v770
    %v772 = vmul.f32 1.0, %v771
    %v773 = vtanh.pop %v759
    %v774 = vxor.u32 %v760, 2147483648
    %v775 = vmul.f32 %v774, 1.442695
    %v776 = vpow.pop %v775
    %v777 = vadd.f32 %v776, 1.0
    %v778 = vrcp.pop %v777
    %v779 = vmul.f32 1.0, %v778
    %v780 = vmul.f32 %v772, %v101
    %v781 = vmul.f32 %v766, %v773
    %v782 = vadd.f32 %v780, %v781
    %v783 = vtanh.pop %v782
    %v784 = vmul.f32 %v779, %v783
    %785 = vmatprep.subr.mxu0 %v63
    %786 = vmatpush1.msra.mxu0 %v62
    %787 = vmatprep.subr.mxu0 %v65
    %788 = vmatpush1.msra.mxu0 %v64
    %789 = vmatprep.subr.mxu0 %v67
    %790 = vmatpush1.msra.mxu0 %v66
    %791 = vmatprep.subr.mxu0 %v69
    %792 = vmatpush1.msra.mxu0 %v68
    %793 = vmatprep.subr.mxu0 %v71
    %794 = vmatpush1.msra.mxu0 %v70
    %795 = vmatprep.subr.mxu0 %v73
    %796 = vmatpush1.msra.mxu0 %v72
    %797 = vmatprep.subr.mxu0 %v75
    %798 = vmatpush1.msra.mxu0 %v74
    %799 = vmatprep.subr.mxu0 %v77
    %800 = vmatpush1.msra.mxu0 %v76
    %801 = vmatprep.subr.mxu0 %v79
    %802 = vmatpush1.msra.mxu0 %v78
    %803 = vmatprep.subr.mxu0 %v81
    %804 = vmatpush1.msra.mxu0 %v80
    %805 = vmatprep.subr.mxu0 %v83
    %806 = vmatpush1.msra.mxu0 %v82
    %807 = vmatprep.subr.mxu0 %v85
    %808 = vmatpush1.msra.mxu0 %v84
    %809 = vmatprep.subr.mxu0 %v87
    %810 = vmatpush1.msra.mxu0 %v86
    %811 = vmatprep.subr.mxu0 %v89
    %812 = vmatpush1.msra.mxu0 %v88
    %813 = vmatprep.subr.mxu0 %v91
    %814 = vmatpush1.msra.mxu0 %v90
    %815 = vmatprep.subr.mxu0 %v93
    %816 = vmatpush1.msra.mxu0 %v92
    %817 = vmatprep.subr.mxu0 0.0
    %818 = vmatpush1.msra.mxu0 0.0
    %819 = vmatprep.subr.mxu0 0.0
    %820 = vmatpush1.msra.mxu0 0.0
    %821 = vmatprep.subr.mxu0 0.0
    %822 = vmatpush1.msra.mxu0 0.0
    %823 = vmatprep.subr.mxu0 0.0
    %824 = vmatpush1.msra.mxu0 0.0
    %825 = vmatprep.subr.mxu0 0.0
    %826 = vmatpush1.msra.mxu0 0.0
    %827 = vmatprep.subr.mxu0 0.0
    %828 = vmatpush1.msra.mxu0 0.0
    %829 = vmatprep.subr.mxu0 0.0
    %830 = vmatpush1.msra.mxu0 0.0
    %831 = vmatprep.subr.mxu0 0.0
    %832 = vmatpush1.msra.mxu0 0.0
    %833 = vmatprep.subr.mxu0 0.0
    %834 = vmatpush1.msra.mxu0 0.0
    %835 = vmatprep.subr.mxu0 0.0
    %836 = vmatpush1.msra.mxu0 0.0
    %837 = vmatprep.subr.mxu0 0.0
    %838 = vmatpush1.msra.mxu0 0.0
    %839 = vmatprep.subr.mxu0 0.0
    %840 = vmatpush1.msra.mxu0 0.0
    %841 = vmatprep.subr.mxu0 0.0
    %842 = vmatpush1.msra.mxu0 0.0
    %843 = vmatprep.subr.mxu0 0.0
    %844 = vmatpush1.msra.mxu0 0.0
    %845 = vmatprep.subr.mxu0 0.0
    %846 = vmatpush1.msra.mxu0 0.0
    %847 = vmatprep.subr.mxu0 0.0
    %848 = vmatpush1.msra.mxu0 0.0
    %849 = vmatprep.mubr.f32.mxu0 0.0
    %850 = vmatmul.mubr.f32.gmra.mrb[0].mxu0 %v784
    %v851 = vpop.f32.mrb[0].mxu0
    %v852 = vadd.f32 %v94, %v851
    %v853 = vpop.f32.mrb[0].mxu0
    %v854 = vadd.f32 %v95, %v853
    %855 = vdwg.mxu0
    %v856 = vmax.f32 %v852, %v854
    %857 = vmax.xlane.f32.xlu0 %v856
    %v858 = vpop.xlane.xlu0 %857
    %v859 = vsub.f32 %v852, %v858
    %v860 = vsub.f32 %v854, %v858
    %v861 = vmul.f32 %v859, 1.442695
    %v862 = vpow.pop %v861
    %v863 = vmul.f32 %v860, 1.442695
    %v864 = vpow.pop %v863
    %v865 = vadd.f32 %v862, %v864
    %866 = vadd.xlane.f32.xlu0 %v865
    %v867 = vpop.xlane.xlu0 %866
    %v868 = vlog2.pop %v867
    %v869 = vmul.f32 %v868, 0.6931472
    %v870 = vsub.f32 %v859, %v869
    %v871 = vsub.f32 %v860, %v869
    %872 = vst [vmem:[#allocation7] sm:$0xff] %v870
    %873 = vst [vmem:[#allocation7 + $0x8] sm:$0xff] %v871
    %s874 = scalar_lea.vmem %s0, 32
    %v875 = vld [vmem:[%s874] sm:$0xff]
    %v876 = vld [vmem:[%s874 + $0x8] sm:$0xff]
    %v877 = vld [vmem:[%s874 + $0x10] sm:$0xff]
    %v878 = vld [vmem:[%s874 + $0x18] sm:$0xff]
    %v879 = vld [vmem:[%s3] sm:$0xff]
    %v880 = vld [vmem:[%s3 + $0x8] sm:$0xff]
    %v881 = vld [vmem:[%s3 + $0x10] sm:$0xff]
    %v882 = vld [vmem:[%s3 + $0x18] sm:$0xff]
    %v883 = vld [vmem:[%s3 + $0x20] sm:$0xff]
    %v884 = vld [vmem:[%s3 + $0x28] sm:$0xff]
    %v885 = vld [vmem:[%s3 + $0x30] sm:$0xff]
    %v886 = vld [vmem:[%s3 + $0x38] sm:$0xff]
    %v887 = vld [vmem:[%s3 + $0x40] sm:$0xff]
    %v888 = vld [vmem:[%s3 + $0x48] sm:$0xff]
    %v889 = vld [vmem:[%s3 + $0x50] sm:$0xff]
    %v890 = vld [vmem:[%s3 + $0x58] sm:$0xff]
    %v891 = vld [vmem:[%s3 + $0x60] sm:$0xff]
    %v892 = vld [vmem:[%s3 + $0x68] sm:$0xff]
    %v893 = vld [vmem:[%s3 + $0x70] sm:$0xff]
    %v894 = vld [vmem:[%s3 + $0x78] sm:$0xff]
    %v895 = vld [vmem:[%s3 + $0x80] sm:$0xff]
    %v896 = vld [vmem:[%s3 + $0x88] sm:$0xff]
    %v897 = vld [vmem:[%s3 + $0x90] sm:$0xff]
    %v898 = vld [vmem:[%s3 + $0x98] sm:$0xff]
    %v899 = vld [vmem:[%s3 + $0xa0] sm:$0xff]
    %v900 = vld [vmem:[%s3 + $0xa8] sm:$0xff]
    %v901 = vld [vmem:[%s3 + $0xb0] sm:$0xff]
    %v902 = vld [vmem:[%s3 + $0xb8] sm:$0xff]
    %v903 = vld [vmem:[%s3 + $0xc0] sm:$0xff]
    %v904 = vld [vmem:[%s3 + $0xc8] sm:$0xff]
    %v905 = vld [vmem:[%s3 + $0xd0] sm:$0xff]
    %v906 = vld [vmem:[%s3 + $0xd8] sm:$0xff]
    %v907 = vld [vmem:[%s3 + $0xe0] sm:$0xff]
    %v908 = vld [vmem:[%s3 + $0xe8] sm:$0xff]
    %v909 = vld [vmem:[%s3 + $0xf0] sm:$0xff]
    %v910 = vld [vmem:[%s3 + $0xf8] sm:$0xff]
    %v911 = vld [vmem:[%s3 + $0x100] sm:$0xff]
    %v912 = vld [vmem:[%s3 + $0x108] sm:$0xff]
    %v913 = vld [vmem:[%s3 + $0x110] sm:$0xff]
    %v914 = vld [vmem:[%s3 + $0x118] sm:$0xff]
    %v915 = vld [vmem:[%s3 + $0x120] sm:$0xff]
    %v916 = vld [vmem:[%s3 + $0x128] sm:$0xff]
    %v917 = vld [vmem:[%s3 + $0x130] sm:$0xff]
    %v918 = vld [vmem:[%s3 + $0x138] sm:$0xff]
    %v919 = vld [vmem:[%s3 + $0x140] sm:$0xff]
    %v920 = vld [vmem:[%s3 + $0x148] sm:$0xff]
    %v921 = vld [vmem:[%s3 + $0x150] sm:$0xff]
    %v922 = vld [vmem:[%s3 + $0x158] sm:$0xff]
    %v923 = vld [vmem:[%s3 + $0x160] sm:$0xff]
    %v924 = vld [vmem:[%s3 + $0x168] sm:$0xff]
    %v925 = vld [vmem:[%s3 + $0x170] sm:$0xff]
    %v926 = vld [vmem:[%s3 + $0x178] sm:$0xff]
    %v927 = vld [vmem:[%s3 + $0x180] sm:$0xff]
    %v928 = vld [vmem:[%s3 + $0x188] sm:$0xff]
    %v929 = vld [vmem:[%s3 + $0x190] sm:$0xff]
    %v930 = vld [vmem:[%s3 + $0x198] sm:$0xff]
    %v931 = vld [vmem:[%s3 + $0x1a0] sm:$0xff]
    %v932 = vld [vmem:[%s3 + $0x1a8] sm:$0xff]
    %v933 = vld [vmem:[%s3 + $0x1b0] sm:$0xff]
    %v934 = vld [vmem:[%s3 + $0x1b8] sm:$0xff]
    %v935 = vld [vmem:[%s3 + $0x1c0] sm:$0xff]
    %v936 = vld [vmem:[%s3 + $0x1c8] sm:$0xff]
    %v937 = vld [vmem:[%s3 + $0x1d0] sm:$0xff]
    %v938 = vld [vmem:[%s3 + $0x1d8] sm:$0xff]
    %v939 = vld [vmem:[%s3 + $0x1e0] sm:$0xff]
    %v940 = vld [vmem:[%s3 + $0x1e8] sm:$0xff]
    %v941 = vld [vmem:[%s3 + $0x1f0] sm:$0xff]
    %v942 = vld [vmem:[%s3 + $0x1f8] sm:$0xff]
    %943 = vmatprep.subr.mxu0 %v880
    %944 = vmatpush1.msra.mxu0 %v879
    %945 = vmatprep.subr.mxu0 %v884
    %946 = vmatpush1.msra.mxu0 %v883
    %947 = vmatprep.subr.mxu0 %v888
    %948 = vmatpush1.msra.mxu0 %v887
    %949 = vmatprep.subr.mxu0 %v892
    %950 = vmatpush1.msra.mxu0 %v891
    %951 = vmatprep.subr.mxu0 %v896
    %952 = vmatpush1.msra.mxu0 %v895
    %953 = vmatprep.subr.mxu0 %v900
    %954 = vmatpush1.msra.mxu0 %v899
    %955 = vmatprep.subr.mxu0 %v904
    %956 = vmatpush1.msra.mxu0 %v903
    %957 = vmatprep.subr.mxu0 %v908
    %958 = vmatpush1.msra.mxu0 %v907
    %959 = vmatprep.subr.mxu0 %v912
    %960 = vmatpush1.msra.mxu0 %v911
    %961 = vmatprep.subr.mxu0 %v916
    %962 = vmatpush1.msra.mxu0 %v915
    %963 = vmatprep.subr.mxu0 %v920
    %964 = vmatpush1.msra.mxu0 %v919
    %965 = vmatprep.subr.mxu0 %v924
    %966 = vmatpush1.msra.mxu0 %v923
    %967 = vmatprep.subr.mxu0 %v928
    %968 = vmatpush1.msra.mxu0 %v927
    %969 = vmatprep.subr.mxu0 %v932
    %970 = vmatpush1.msra.mxu0 %v931
    %971 = vmatprep.subr.mxu0 %v936
    %972 = vmatpush1.msra.mxu0 %v935
    %973 = vmatprep.subr.mxu0 %v940
    %974 = vmatpush1.msra.mxu0 %v939
    %975 = vmatprep.subr.mxu0 0.0
    %976 = vmatpush1.msra.mxu0 0.0
    %977 = vmatprep.subr.mxu0 0.0
    %978 = vmatpush1.msra.mxu0 0.0
    %979 = vmatprep.subr.mxu0 0.0
    %980 = vmatpush1.msra.mxu0 0.0
    %981 = vmatprep.subr.mxu0 0.0
    %982 = vmatpush1.msra.mxu0 0.0
    %983 = vmatprep.subr.mxu0 0.0
    %984 = vmatpush1.msra.mxu0 0.0
    %985 = vmatprep.subr.mxu0 0.0
    %986 = vmatpush1.msra.mxu0 0.0
    %987 = vmatprep.subr.mxu0 0.0
    %988 = vmatpush1.msra.mxu0 0.0
    %989 = vmatprep.subr.mxu0 0.0
    %990 = vmatpush1.msra.mxu0 0.0
    %991 = vmatprep.subr.mxu0 0.0
    %992 = vmatpush1.msra.mxu0 0.0
    %993 = vmatprep.subr.mxu0 0.0
    %994 = vmatpush1.msra.mxu0 0.0
    %995 = vmatprep.subr.mxu0 0.0
    %996 = vmatpush1.msra.mxu0 0.0
    %997 = vmatprep.subr.mxu0 0.0
    %998 = vmatpush1.msra.mxu0 0.0
    %999 = vmatprep.subr.mxu0 0.0
    %1000 = vmatpush1.msra.mxu0 0.0
    %1001 = vmatprep.subr.mxu0 0.0
    %1002 = vmatpush1.msra.mxu0 0.0
    %1003 = vmatprep.subr.mxu0 0.0
    %1004 = vmatpush1.msra.mxu0 0.0
    %1005 = vmatprep.subr.mxu0 0.0
    %1006 = vmatpush1.msra.mxu0 0.0
    %1007 = vmatprep.mubr.f32.mxu0 0.0
    %1008 = vmatmul.mubr.f32.gmra.mrb[0].mxu0 %v339
    %v1009 = vpop.f32.mrb[0].mxu0
    %v1010 = vadd.f32 0.0, %v1009
    %v1011 = vpop.f32.mrb[0].mxu0
    %v1012 = vadd.f32 0.0, %v1011
    %1013 = vdwg.mxu0
    %1014 = vmatprep.subr.mxu0 %v882
    %1015 = vmatpush1.msra.mxu0 %v881
    %1016 = vmatprep.subr.mxu0 %v886
    %1017 = vmatpush1.msra.mxu0 %v885
    %1018 = vmatprep.subr.mxu0 %v890
    %1019 = vmatpush1.msra.mxu0 %v889
    %1020 = vmatprep.subr.mxu0 %v894
    %1021 = vmatpush1.msra.mxu0 %v893
    %1022 = vmatprep.subr.mxu0 %v898
    %1023 = vmatpush1.msra.mxu0 %v897
    %1024 = vmatprep.subr.mxu0 %v902
    %1025 = vmatpush1.msra.mxu0 %v901
    %1026 = vmatprep.subr.mxu0 %v906
    %1027 = vmatpush1.msra.mxu0 %v905
    %1028 = vmatprep.subr.mxu0 %v910
    %1029 = vmatpush1.msra.mxu0 %v909
    %1030 = vmatprep.subr.mxu0 %v914
    %1031 = vmatpush1.msra.mxu0 %v913
    %1032 = vmatprep.subr.mxu0 %v918
    %1033 = vmatpush1.msra.mxu0 %v917
    %1034 = vmatprep.subr.mxu0 %v922
    %1035 = vmatpush1.msra.mxu0 %v921
    %1036 = vmatprep.subr.mxu0 %v926
    %1037 = vmatpush1.msra.mxu0 %v925
    %1038 = vmatprep.subr.mxu0 %v930
    %1039 = vmatpush1.msra.mxu0 %v929
    %1040 = vmatprep.subr.mxu0 %v934
    %1041 = vmatpush1.msra.mxu0 %v933
    %1042 = vmatprep.subr.mxu0 %v938
    %1043 = vmatpush1.msra.mxu0 %v937
    %1044 = vmatprep.subr.mxu0 %v942
    %1045 = vmatpush1.msra.mxu0 %v941
    %1046 = vmatprep.subr.mxu0 0.0
    %1047 = vmatpush1.msra.mxu0 0.0
    %1048 = vmatprep.subr.mxu0 0.0
    %1049 = vmatpush1.msra.mxu0 0.0
    %1050 = vmatprep.subr.mxu0 0.0
    %1051 = vmatpush1.msra.mxu0 0.0
    %1052 = vmatprep.subr.mxu0 0.0
    %1053 = vmatpush1.msra.mxu0 0.0
    %1054 = vmatprep.subr.mxu0 0.0
    %1055 = vmatpush1.msra.mxu0 0.0
    %1056 = vmatprep.subr.mxu0 0.0
    %1057 = vmatpush1.msra.mxu0 0.0
    %1058 = vmatprep.subr.mxu0 0.0
    %1059 = vmatpush1.msra.mxu0 0.0
    %1060 = vmatprep.subr.mxu0 0.0
    %1061 = vmatpush1.msra.mxu0 0.0
    %1062 = vmatprep.subr.mxu0 0.0
    %1063 = vmatpush1.msra.mxu0 0.0
    %1064 = vmatprep.subr.mxu0 0.0
    %1065 = vmatpush1.msra.mxu0 0.0
    %1066 = vmatprep.subr.mxu0 0.0
    %1067 = vmatpush1.msra.mxu0 0.0
    %1068 = vmatprep.subr.mxu0 0.0
    %1069 = vmatpush1.msra.mxu0 0.0
    %1070 = vmatprep.subr.mxu0 0.0
    %1071 = vmatpush1.msra.mxu0 0.0
    %1072 = vmatprep.subr.mxu0 0.0
    %1073 = vmatpush1.msra.mxu0 0.0
    %1074 = vmatprep.subr.mxu0 0.0
    %1075 = vmatpush1.msra.mxu0 0.0
    %1076 = vmatprep.subr.mxu0 0.0
    %1077 = vmatpush1.msra.mxu0 0.0
    %1078 = vmatprep.mubr.f32.mxu0 0.0
    %1079 = vmatmul.mubr.f32.gmra.mrb[0].mxu0 %v339
    %v1080 = vpop.f32.mrb[0].mxu0
    %v1081 = vadd.f32 0.0, %v1080
    %v1082 = vpop.f32.mrb[0].mxu0
    %v1083 = vadd.f32 0.0, %v1082
    %1084 = vdwg.mxu0
    %v1085 = vadd.f32 %v875, %v1010
    %v1086 = vadd.f32 %v876, %v1012
    %v1087 = vadd.f32 %v877, %v1081
    %v1088 = vadd.f32 %v878, %v1083
    %v1089 = vxor.u32 %v1085, 2147483648
    %v1090 = vmul.f32 %v1089, 1.442695
    %v1091 = vpow.pop %v1090
    %v1092 = vadd.f32 %v1091, 1.0
    %v1093 = vrcp.pop %v1092
    %v1094 = vmul.f32 1.0, %v1093
    %v1095 = vxor.u32 %v1086, 2147483648
    %v1096 = vmul.f32 %v1095, 1.442695
    %v1097 = vpow.pop %v1096
    %v1098 = vadd.f32 %v1097, 1.0
    %v1099 = vrcp.pop %v1098
    %v1100 = vmul.f32 1.0, %v1099
    %v1101 = vtanh.pop %v1087
    %v1102 = vxor.u32 %v1088, 2147483648
    %v1103 = vmul.f32 %v1102, 1.442695
    %v1104 = vpow.pop %v1103
    %v1105 = vadd.f32 %v1104, 1.0
    %v1106 = vrcp.pop %v1105
    %v1107 = vmul.f32 1.0, %v1106
    %v1108 = vmul.f32 %v1100, %v337
    %v1109 = vmul.f32 %v1094, %v1101
    %v1110 = vadd.f32 %v1108, %v1109
    %v1111 = vtanh.pop %v1110
    %v1112 = vmul.f32 %v1107, %v1111
    %v1113 = vld [vmem:[#allocation2] sm:$0xff]
    %v1114 = vld [vmem:[#allocation2 + $0x8] sm:$0xff]
    %v1115 = vld [vmem:[#allocation2 + $0x10] sm:$0xff]
    %v1116 = vld [vmem:[#allocation2 + $0x18] sm:$0xff]
    %v1117 = vld [vmem:[#allocation2 + $0x20] sm:$0xff]
    %v1118 = vld [vmem:[#allocation2 + $0x28] sm:$0xff]
    %v1119 = vld [vmem:[#allocation2 + $0x30] sm:$0xff]
    %v1120 = vld [vmem:[#allocation2 + $0x38] sm:$0xff]
    %v1121 = vld [vmem:[#allocation2 + $0x40] sm:$0xff]
    %v1122 = vld [vmem:[#allocation2 + $0x48] sm:$0xff]
    %v1123 = vld [vmem:[#allocation2 + $0x50] sm:$0xff]
    %v1124 = vld [vmem:[#allocation2 + $0x58] sm:$0xff]
    %v1125 = vld [vmem:[#allocation2 + $0x60] sm:$0xff]
    %v1126 = vld [vmem:[#allocation2 + $0x68] sm:$0xff]
    %v1127 = vld [vmem:[#allocation2 + $0x70] sm:$0xff]
    %v1128 = vld [vmem:[#allocation2 + $0x78] sm:$0xff]
    %v1129 = vld [vmem:[#allocation2 + $0x80] sm:$0xff]
    %v1130 = vld [vmem:[#allocation2 + $0x88] sm:$0xff]
    %v1131 = vld [vmem:[#allocation2 + $0x90] sm:$0xff]
    %v1132 = vld [vmem:[#allocation2 + $0x98] sm:$0xff]
    %v1133 = vld [vmem:[#allocation2 + $0xa0] sm:$0xff]
    %v1134 = vld [vmem:[#allocation2 + $0xa8] sm:$0xff]
    %v1135 = vld [vmem:[#allocation2 + $0xb0] sm:$0xff]
    %v1136 = vld [vmem:[#allocation2 + $0xb8] sm:$0xff]
    %v1137 = vld [vmem:[#allocation2 + $0xc0] sm:$0xff]
    %v1138 = vld [vmem:[#allocation2 + $0xc8] sm:$0xff]
    %v1139 = vld [vmem:[#allocation2 + $0xd0] sm:$0xff]
    %v1140 = vld [vmem:[#allocation2 + $0xd8] sm:$0xff]
    %v1141 = vld [vmem:[#allocation2 + $0xe0] sm:$0xff]
    %v1142 = vld [vmem:[#allocation2 + $0xe8] sm:$0xff]
    %v1143 = vld [vmem:[#allocation2 + $0xf0] sm:$0xff]
    %v1144 = vld [vmem:[#allocation2 + $0xf8] sm:$0xff]
    %v1145 = vld [vmem:[#allocation2 + $0x100] sm:$0xff]
    %v1146 = vld [vmem:[#allocation2 + $0x108] sm:$0xff]
    %v1147 = vld [vmem:[#allocation2 + $0x110] sm:$0xff]
    %v1148 = vld [vmem:[#allocation2 + $0x118] sm:$0xff]
    %v1149 = vld [vmem:[#allocation2 + $0x120] sm:$0xff]
    %v1150 = vld [vmem:[#allocation2 + $0x128] sm:$0xff]
    %v1151 = vld [vmem:[#allocation2 + $0x130] sm:$0xff]
    %v1152 = vld [vmem:[#allocation2 + $0x138] sm:$0xff]
    %v1153 = vld [vmem:[#allocation2 + $0x140] sm:$0xff]
    %v1154 = vld [vmem:[#allocation2 + $0x148] sm:$0xff]
    %v1155 = vld [vmem:[#allocation2 + $0x150] sm:$0xff]
    %v1156 = vld [vmem:[#allocation2 + $0x158] sm:$0xff]
    %v1157 = vld [vmem:[#allocation2 + $0x160] sm:$0xff]
    %v1158 = vld [vmem:[#allocation2 + $0x168] sm:$0xff]
    %v1159 = vld [vmem:[#allocation2 + $0x170] sm:$0xff]
    %v1160 = vld [vmem:[#allocation2 + $0x178] sm:$0xff]
    %v1161 = vld [vmem:[#allocation2 + $0x180] sm:$0xff]
    %v1162 = vld [vmem:[#allocation2 + $0x188] sm:$0xff]
    %v1163 = vld [vmem:[#allocation2 + $0x190] sm:$0xff]
    %v1164 = vld [vmem:[#allocation2 + $0x198] sm:$0xff]
    %v1165 = vld [vmem:[#allocation2 + $0x1a0] sm:$0xff]
    %v1166 = vld [vmem:[#allocation2 + $0x1a8] sm:$0xff]
    %v1167 = vld [vmem:[#allocation2 + $0x1b0] sm:$0xff]
    %v1168 = vld [vmem:[#allocation2 + $0x1b8] sm:$0xff]
    %v1169 = vld [vmem:[#allocation2 + $0x1c0] sm:$0xff]
    %v1170 = vld [vmem:[#allocation2 + $0x1c8] sm:$0xff]
    %v1171 = vld [vmem:[#allocation2 + $0x1d0] sm:$0xff]
    %v1172 = vld [vmem:[#allocation2 + $0x1d8] sm:$0xff]
    %v1173 = vld [vmem:[#allocation2 + $0x1e0] sm:$0xff]
    %v1174 = vld [vmem:[#allocation2 + $0x1e8] sm:$0xff]
    %v1175 = vld [vmem:[#allocation2 + $0x1f0] sm:$0xff]
    %v1176 = vld [vmem:[#allocation2 + $0x1f8] sm:$0xff]
    %v1177 = vld [vmem:[%s404] sm:$0xff]
    %v1178 = vld [vmem:[%s404 + $0x8] sm:$0xff]
    %v1179 = vld [vmem:[%s404 + $0x10] sm:$0xff]
    %v1180 = vld [vmem:[%s404 + $0x18] sm:$0xff]
    %v1181 = vld [vmem:[%s404 + $0x20] sm:$0xff]
    %v1182 = vld [vmem:[%s404 + $0x28] sm:$0xff]
    %v1183 = vld [vmem:[%s404 + $0x30] sm:$0xff]
    %v1184 = vld [vmem:[%s404 + $0x38] sm:$0xff]
    %v1185 = vld [vmem:[%s404 + $0x40] sm:$0xff]
    %v1186 = vld [vmem:[%s404 + $0x48] sm:$0xff]
    %v1187 = vld [vmem:[%s404 + $0x50] sm:$0xff]
    %v1188 = vld [vmem:[%s404 + $0x58] sm:$0xff]
    %v1189 = vld [vmem:[%s404 + $0x60] sm:$0xff]
    %v1190 = vld [vmem:[%s404 + $0x68] sm:$0xff]
    %v1191 = vld [vmem:[%s404 + $0x70] sm:$0xff]
    %v1192 = vld [vmem:[%s404 + $0x78] sm:$0xff]
    %v1193 = vld [vmem:[%s404 + $0x80] sm:$0xff]
    %v1194 = vld [vmem:[%s404 + $0x88] sm:$0xff]
    %v1195 = vld [vmem:[%s404 + $0x90] sm:$0xff]
    %v1196 = vld [vmem:[%s404 + $0x98] sm:$0xff]
    %v1197 = vld [vmem:[%s404 + $0xa0] sm:$0xff]
    %v1198 = vld [vmem:[%s404 + $0xa8] sm:$0xff]
    %v1199 = vld [vmem:[%s404 + $0xb0] sm:$0xff]
    %v1200 = vld [vmem:[%s404 + $0xb8] sm:$0xff]
    %v1201 = vld [vmem:[%s404 + $0xc0] sm:$0xff]
    %v1202 = vld [vmem:[%s404 + $0xc8] sm:$0xff]
    %v1203 = vld [vmem:[%s404 + $0xd0] sm:$0xff]
    %v1204 = vld [vmem:[%s404 + $0xd8] sm:$0xff]
    %v1205 = vld [vmem:[%s404 + $0xe0] sm:$0xff]
    %v1206 = vld [vmem:[%s404 + $0xe8] sm:$0xff]
    %v1207 = vld [vmem:[%s404 + $0xf0] sm:$0xff]
    %v1208 = vld [vmem:[%s404 + $0xf8] sm:$0xff]
    %v1209 = vld [vmem:[%s404 + $0x100] sm:$0xff]
    %v1210 = vld [vmem:[%s404 + $0x108] sm:$0xff]
    %v1211 = vld [vmem:[%s404 + $0x110] sm:$0xff]
    %v1212 = vld [vmem:[%s404 + $0x118] sm:$0xff]
    %v1213 = vld [vmem:[%s404 + $0x120] sm:$0xff]
    %v1214 = vld [vmem:[%s404 + $0x128] sm:$0xff]
    %v1215 = vld [vmem:[%s404 + $0x130] sm:$0xff]
    %v1216 = vld [vmem:[%s404 + $0x138] sm:$0xff]
    %v1217 = vld [vmem:[%s404 + $0x140] sm:$0xff]
    %v1218 = vld [vmem:[%s404 + $0x148] sm:$0xff]
    %v1219 = vld [vmem:[%s404 + $0x150] sm:$0xff]
    %v1220 = vld [vmem:[%s404 + $0x158] sm:$0xff]
    %v1221 = vld [vmem:[%s404 + $0x160] sm:$0xff]
    %v1222 = vld [vmem:[%s404 + $0x168] sm:$0xff]
    %v1223 = vld [vmem:[%s404 + $0x170] sm:$0xff]
    %v1224 = vld [vmem:[%s404 + $0x178] sm:$0xff]
    %v1225 = vld [vmem:[%s404 + $0x180] sm:$0xff]
    %v1226 = vld [vmem:[%s404 + $0x188] sm:$0xff]
    %v1227 = vld [vmem:[%s404 + $0x190] sm:$0xff]
    %v1228 = vld [vmem:[%s404 + $0x198] sm:$0xff]
    %v1229 = vld [vmem:[%s404 + $0x1a0] sm:$0xff]
    %v1230 = vld [vmem:[%s404 + $0x1a8] sm:$0xff]
    %v1231 = vld [vmem:[%s404 + $0x1b0] sm:$0xff]
    %v1232 = vld [vmem:[%s404 + $0x1b8] sm:$0xff]
    %v1233 = vld [vmem:[%s404 + $0x1c0] sm:$0xff]
    %v1234 = vld [vmem:[%s404 + $0x1c8] sm:$0xff]
    %v1235 = vld [vmem:[%s404 + $0x1d0] sm:$0xff]
    %v1236 = vld [vmem:[%s404 + $0x1d8] sm:$0xff]
    %v1237 = vld [vmem:[%s404 + $0x1e0] sm:$0xff]
    %v1238 = vld [vmem:[%s404 + $0x1e8] sm:$0xff]
    %v1239 = vld [vmem:[%s404 + $0x1f0] sm:$0xff]
    %v1240 = vld [vmem:[%s404 + $0x1f8] sm:$0xff]
    %1241 = vmatprep.subr.mxu0 %v1178
    %1242 = vmatpush1.msra.mxu0 %v1177
    %1243 = vmatprep.subr.mxu0 %v1182
    %1244 = vmatpush1.msra.mxu0 %v1181
    %1245 = vmatprep.subr.mxu0 %v1186
    %1246 = vmatpush1.msra.mxu0 %v1185
    %1247 = vmatprep.subr.mxu0 %v1190
    %1248 = vmatpush1.msra.mxu0 %v1189
    %1249 = vmatprep.subr.mxu0 %v1194
    %1250 = vmatpush1.msra.mxu0 %v1193
    %1251 = vmatprep.subr.mxu0 %v1198
    %1252 = vmatpush1.msra.mxu0 %v1197
    %1253 = vmatprep.subr.mxu0 %v1202
    %1254 = vmatpush1.msra.mxu0 %v1201
    %1255 = vmatprep.subr.mxu0 %v1206
    %1256 = vmatpush1.msra.mxu0 %v1205
    %1257 = vmatprep.subr.mxu0 %v1210
    %1258 = vmatpush1.msra.mxu0 %v1209
    %1259 = vmatprep.subr.mxu0 %v1214
    %1260 = vmatpush1.msra.mxu0 %v1213
    %1261 = vmatprep.subr.mxu0 %v1218
    %1262 = vmatpush1.msra.mxu0 %v1217
    %1263 = vmatprep.subr.mxu0 %v1222
    %1264 = vmatpush1.msra.mxu0 %v1221
    %1265 = vmatprep.subr.mxu0 %v1226
    %1266 = vmatpush1.msra.mxu0 %v1225
    %1267 = vmatprep.subr.mxu0 %v1230
    %1268 = vmatpush1.msra.mxu0 %v1229
    %1269 = vmatprep.subr.mxu0 %v1234
    %1270 = vmatpush1.msra.mxu0 %v1233
    %1271 = vmatprep.subr.mxu0 %v1238
    %1272 = vmatpush1.msra.mxu0 %v1237
    %1273 = vmatprep.subr.mxu0 0.0
    %1274 = vmatpush1.msra.mxu0 0.0
    %1275 = vmatprep.subr.mxu0 0.0
    %1276 = vmatpush1.msra.mxu0 0.0
    %1277 = vmatprep.subr.mxu0 0.0
    %1278 = vmatpush1.msra.mxu0 0.0
    %1279 = vmatprep.subr.mxu0 0.0
    %1280 = vmatpush1.msra.mxu0 0.0
    %1281 = vmatprep.subr.mxu0 0.0
    %1282 = vmatpush1.msra.mxu0 0.0
    %1283 = vmatprep.subr.mxu0 0.0
    %1284 = vmatpush1.msra.mxu0 0.0
    %1285 = vmatprep.subr.mxu0 0.0
    %1286 = vmatpush1.msra.mxu0 0.0
    %1287 = vmatprep.subr.mxu0 0.0
    %1288 = vmatpush1.msra.mxu0 0.0
    %1289 = vmatprep.subr.mxu0 0.0
    %1290 = vmatpush1.msra.mxu0 0.0
    %1291 = vmatprep.subr.mxu0 0.0
    %1292 = vmatpush1.msra.mxu0 0.0
    %1293 = vmatprep.subr.mxu0 0.0
    %1294 = vmatpush1.msra.mxu0 0.0
    %1295 = vmatprep.subr.mxu0 0.0
    %1296 = vmatpush1.msra.mxu0 0.0
    %1297 = vmatprep.subr.mxu0 0.0
    %1298 = vmatpush1.msra.mxu0 0.0
    %1299 = vmatprep.subr.mxu0 0.0
    %1300 = vmatpush1.msra.mxu0 0.0
    %1301 = vmatprep.subr.mxu0 0.0
    %1302 = vmatpush1.msra.mxu0 0.0
    %1303 = vmatprep.subr.mxu0 0.0
    %1304 = vmatpush1.msra.mxu0 0.0
    %1305 = vmatprep.mubr.f32.mxu0 0.0
    %1306 = vmatmul.mubr.f32.gmra.mrb[0].mxu0 %v784
    %v1307 = vpop.f32.mrb[0].mxu0
    %v1308 = vadd.f32 0.0, %v1307
    %v1309 = vpop.f32.mrb[0].mxu0
    %v1310 = vadd.f32 0.0, %v1309
    %1311 = vdwg.mxu0
    %1312 = vmatprep.subr.mxu0 %v1180
    %1313 = vmatpush1.msra.mxu0 %v1179
    %1314 = vmatprep.subr.mxu0 %v1184
    %1315 = vmatpush1.msra.mxu0 %v1183
    %1316 = vmatprep.subr.mxu0 %v1188
    %1317 = vmatpush1.msra.mxu0 %v1187
    %1318 = vmatprep.subr.mxu0 %v1192
    %1319 = vmatpush1.msra.mxu0 %v1191
    %1320 = vmatprep.subr.mxu0 %v1196
    %1321 = vmatpush1.msra.mxu0 %v1195
    %1322 = vmatprep.subr.mxu0 %v1200
    %1323 = vmatpush1.msra.mxu0 %v1199
    %1324 = vmatprep.subr.mxu0 %v1204
    %1325 = vmatpush1.msra.mxu0 %v1203
    %1326 = vmatprep.subr.mxu0 %v1208
    %1327 = vmatpush1.msra.mxu0 %v1207
    %1328 = vmatprep.subr.mxu0 %v1212
    %1329 = vmatpush1.msra.mxu0 %v1211
    %1330 = vmatprep.subr.mxu0 %v1216
    %1331 = vmatpush1.msra.mxu0 %v1215
    %1332 = vmatprep.subr.mxu0 %v1220
    %1333 = vmatpush1.msra.mxu0 %v1219
    %1334 = vmatprep.subr.mxu0 %v1224
    %1335 = vmatpush1.msra.mxu0 %v1223
    %1336 = vmatprep.subr.mxu0 %v1228
    %1337 = vmatpush1.msra.mxu0 %v1227
    %1338 = vmatprep.subr.mxu0 %v1232
    %1339 = vmatpush1.msra.mxu0 %v1231
    %1340 = vmatprep.subr.mxu0 %v1236
    %1341 = vmatpush1.msra.mxu0 %v1235
    %1342 = vmatprep.subr.mxu0 %v1240
    %1343 = vmatpush1.msra.mxu0 %v1239
    %1344 = vmatprep.subr.mxu0 0.0
    %1345 = vmatpush1.msra.mxu0 0.0
    %1346 = vmatprep.subr.mxu0 0.0
    %1347 = vmatpush1.msra.mxu0 0.0
    %1348 = vmatprep.subr.mxu0 0.0
    %1349 = vmatpush1.msra.mxu0 0.0
    %1350 = vmatprep.subr.mxu0 0.0
    %1351 = vmatpush1.msra.mxu0 0.0
    %1352 = vmatprep.subr.mxu0 0.0
    %1353 = vmatpush1.msra.mxu0 0.0
    %1354 = vmatprep.subr.mxu0 0.0
    %1355 = vmatpush1.msra.mxu0 0.0
    %1356 = vmatprep.subr.mxu0 0.0
    %1357 = vmatpush1.msra.mxu0 0.0
    %1358 = vmatprep.subr.mxu0 0.0
    %1359 = vmatpush1.msra.mxu0 0.0
    %1360 = vmatprep.subr.mxu0 0.0
    %1361 = vmatpush1.msra.mxu0 0.0
    %1362 = vmatprep.subr.mxu0 0.0
    %1363 = vmatpush1.msra.mxu0 0.0
    %1364 = vmatprep.subr.mxu0 0.0
    %1365 = vmatpush1.msra.mxu0 0.0
    %1366 = vmatprep.subr.mxu0 0.0
    %1367 = vmatpush1.msra.mxu0 0.0
    %1368 = vmatprep.subr.mxu0 0.0
    %1369 = vmatpush1.msra.mxu0 0.0
    %1370 = vmatprep.subr.mxu0 0.0
    %1371 = vmatpush1.msra.mxu0 0.0
    %1372 = vmatprep.subr.mxu0 0.0
    %1373 = vmatpush1.msra.mxu0 0.0
    %1374 = vmatprep.subr.mxu0 0.0
    %1375 = vmatpush1.msra.mxu0 0.0
    %1376 = vmatprep.mubr.f32.mxu0 0.0
    %1377 = vmatmul.mubr.f32.gmra.mrb[0].mxu0 %v784
    %v1378 = vpop.f32.mrb[0].mxu0
    %v1379 = vadd.f32 0.0, %v1378
    %v1380 = vpop.f32.mrb[0].mxu0
    %v1381 = vadd.f32 0.0, %v1380
    %1382 = vdwg.mxu0
    %1383 = vmatprep.subr.mxu0 %v1114
    %1384 = vmatpush1.msra.mxu0 %v1113
    %1385 = vmatprep.subr.mxu0 %v1118
    %1386 = vmatpush1.msra.mxu0 %v1117
    %1387 = vmatprep.subr.mxu0 %v1122
    %1388 = vmatpush1.msra.mxu0 %v1121
    %1389 = vmatprep.subr.mxu0 %v1126
    %1390 = vmatpush1.msra.mxu0 %v1125
    %1391 = vmatprep.subr.mxu0 %v1130
    %1392 = vmatpush1.msra.mxu0 %v1129
    %1393 = vmatprep.subr.mxu0 %v1134
    %1394 = vmatpush1.msra.mxu0 %v1133
    %1395 = vmatprep.subr.mxu0 %v1138
    %1396 = vmatpush1.msra.mxu0 %v1137
    %1397 = vmatprep.subr.mxu0 %v1142
    %1398 = vmatpush1.msra.mxu0 %v1141
    %1399 = vmatprep.subr.mxu0 %v1146
    %1400 = vmatpush1.msra.mxu0 %v1145
    %1401 = vmatprep.subr.mxu0 %v1150
    %1402 = vmatpush1.msra.mxu0 %v1149
    %1403 = vmatprep.subr.mxu0 %v1154
    %1404 = vmatpush1.msra.mxu0 %v1153
    %1405 = vmatprep.subr.mxu0 %v1158
    %1406 = vmatpush1.msra.mxu0 %v1157
    %1407 = vmatprep.subr.mxu0 %v1162
    %1408 = vmatpush1.msra.mxu0 %v1161
    %1409 = vmatprep.subr.mxu0 %v1166
    %1410 = vmatpush1.msra.mxu0 %v1165
    %1411 = vmatprep.subr.mxu0 %v1170
    %1412 = vmatpush1.msra.mxu0 %v1169
    %1413 = vmatprep.subr.mxu0 %v1174
    %1414 = vmatpush1.msra.mxu0 %v1173
    %1415 = vmatprep.subr.mxu0 0.0
    %1416 = vmatpush1.msra.mxu0 0.0
    %1417 = vmatprep.subr.mxu0 0.0
    %1418 = vmatpush1.msra.mxu0 0.0
    %1419 = vmatprep.subr.mxu0 0.0
    %1420 = vmatpush1.msra.mxu0 0.0
    %1421 = vmatprep.subr.mxu0 0.0
    %1422 = vmatpush1.msra.mxu0 0.0
    %1423 = vmatprep.subr.mxu0 0.0
    %1424 = vmatpush1.msra.mxu0 0.0
    %1425 = vmatprep.subr.mxu0 0.0
    %1426 = vmatpush1.msra.mxu0 0.0
    %1427 = vmatprep.subr.mxu0 0.0
    %1428 = vmatpush1.msra.mxu0 0.0
    %1429 = vmatprep.subr.mxu0 0.0
    %1430 = vmatpush1.msra.mxu0 0.0
    %1431 = vmatprep.subr.mxu0 0.0
    %1432 = vmatpush1.msra.mxu0 0.0
    %1433 = vmatprep.subr.mxu0 0.0
    %1434 = vmatpush1.msra.mxu0 0.0
    %1435 = vmatprep.subr.mxu0 0.0
    %1436 = vmatpush1.msra.mxu0 0.0
    %1437 = vmatprep.subr.mxu0 0.0
    %1438 = vmatpush1.msra.mxu0 0.0
    %1439 = vmatprep.subr.mxu0 0.0
    %1440 = vmatpush1.msra.mxu0 0.0
    %1441 = vmatprep.subr.mxu0 0.0
    %1442 = vmatpush1.msra.mxu0 0.0
    %1443 = vmatprep.subr.mxu0 0.0
    %1444 = vmatpush1.msra.mxu0 0.0
    %1445 = vmatprep.subr.mxu0 0.0
    %1446 = vmatpush1.msra.mxu0 0.0
    %1447 = vmatprep.mubr.f32.mxu0 0.0
    %1448 = vmatmul.mubr.f32.gmra.mrb[0].mxu0 %v1112
    %v1449 = vpop.f32.mrb[0].mxu0
    %v1450 = vadd.f32 %v1308, %v1449
    %v1451 = vpop.f32.mrb[0].mxu0
    %v1452 = vadd.f32 %v1310, %v1451
    %1453 = vdwg.mxu0
    %1454 = vmatprep.subr.mxu0 %v1116
    %1455 = vmatpush1.msra.mxu0 %v1115
    %1456 = vmatprep.subr.mxu0 %v1120
    %1457 = vmatpush1.msra.mxu0 %v1119
    %1458 = vmatprep.subr.mxu0 %v1124
    %1459 = vmatpush1.msra.mxu0 %v1123
    %1460 = vmatprep.subr.mxu0 %v1128
    %1461 = vmatpush1.msra.mxu0 %v1127
    %1462 = vmatprep.subr.mxu0 %v1132
    %1463 = vmatpush1.msra.mxu0 %v1131
    %1464 = vmatprep.subr.mxu0 %v1136
    %1465 = vmatpush1.msra.mxu0 %v1135
    %1466 = vmatprep.subr.mxu0 %v1140
    %1467 = vmatpush1.msra.mxu0 %v1139
    %1468 = vmatprep.subr.mxu0 %v1144
    %1469 = vmatpush1.msra.mxu0 %v1143
    %1470 = vmatprep.subr.mxu0 %v1148
    %1471 = vmatpush1.msra.mxu0 %v1147
    %1472 = vmatprep.subr.mxu0 %v1152
    %1473 = vmatpush1.msra.mxu0 %v1151
    %1474 = vmatprep.subr.mxu0 %v1156
    %1475 = vmatpush1.msra.mxu0 %v1155
    %1476 = vmatprep.subr.mxu0 %v1160
    %1477 = vmatpush1.msra.mxu0 %v1159
    %1478 = vmatprep.subr.mxu0 %v1164
    %1479 = vmatpush1.msra.mxu0 %v1163
    %1480 = vmatprep.subr.mxu0 %v1168
    %1481 = vmatpush1.msra.mxu0 %v1167
    %1482 = vmatprep.subr.mxu0 %v1172
    %1483 = vmatpush1.msra.mxu0 %v1171
    %1484 = vmatprep.subr.mxu0 %v1176
    %1485 = vmatpush1.msra.mxu0 %v1175
    %1486 = vmatprep.subr.mxu0 0.0
    %1487 = vmatpush1.msra.mxu0 0.0
    %1488 = vmatprep.subr.mxu0 0.0
    %1489 = vmatpush1.msra.mxu0 0.0
    %1490 = vmatprep.subr.mxu0 0.0
    %1491 = vmatpush1.msra.mxu0 0.0
    %1492 = vmatprep.subr.mxu0 0.0
    %1493 = vmatpush1.msra.mxu0 0.0
    %1494 = vmatprep.subr.mxu0 0.0
    %1495 = vmatpush1.msra.mxu0 0.0
    %1496 = vmatprep.subr.mxu0 0.0
    %1497 = vmatpush1.msra.mxu0 0.0
    %1498 = vmatprep.subr.mxu0 0.0
    %1499 = vmatpush1.msra.mxu0 0.0
    %1500 = vmatprep.subr.mxu0 0.0
    %1501 = vmatpush1.msra.mxu0 0.0
    %1502 = vmatprep.subr.mxu0 0.0
    %1503 = vmatpush1.msra.mxu0 0.0
    %1504 = vmatprep.subr.mxu0 0.0
    %1505 = vmatpush1.msra.mxu0 0.0
    %1506 = vmatprep.subr.mxu0 0.0
    %1507 = vmatpush1.msra.mxu0 0.0
    %1508 = vmatprep.subr.mxu0 0.0
    %1509 = vmatpush1.msra.mxu0 0.0
    %1510 = vmatprep.subr.mxu0 0.0
    %1511 = vmatpush1.msra.mxu0 0.0
    %1512 = vmatprep.subr.mxu0 0.0
    %1513 = vmatpush1.msra.mxu0 0.0
    %1514 = vmatprep.subr.mxu0 0.0
    %1515 = vmatpush1.msra.mxu0 0.0
    %1516 = vmatprep.subr.mxu0 0.0
    %1517 = vmatpush1.msra.mxu0 0.0
    %1518 = vmatprep.mubr.f32.mxu0 0.0
    %1519 = vmatmul.mubr.f32.gmra.mrb[0].mxu0 %v1112
    %v1520 = vpop.f32.mrb[0].mxu0
    %v1521 = vadd.f32 %v1379, %v1520
    %v1522 = vpop.f32.mrb[0].mxu0
    %v1523 = vadd.f32 %v1381, %v1522
    %1524 = vdwg.mxu0
    %v1525 = vld [vmem:[%s5] sm:$0xff]
    %v1526 = vld [vmem:[%s5 + $0x8] sm:$0xff]
    %v1527 = vld [vmem:[%s5 + $0x10] sm:$0xff]
    %v1528 = vld [vmem:[%s5 + $0x18] sm:$0xff]
    %v1529 = vadd.f32 %v1450, %v1525
    %v1530 = vadd.f32 %v1452, %v1526
    %v1531 = vadd.f32 %v1521, %v1527
    %v1532 = vadd.f32 %v1523, %v1528
    %v1533 = vxor.u32 %v1529, 2147483648
    %v1534 = vmul.f32 %v1533, 1.442695
    %v1535 = vpow.pop %v1534
    %v1536 = vadd.f32 %v1535, 1.0
    %v1537 = vrcp.pop %v1536
    %v1538 = vmul.f32 1.0, %v1537
    %v1539 = vxor.u32 %v1530, 2147483648
    %v1540 = vmul.f32 %v1539, 1.442695
    %v1541 = vpow.pop %v1540
    %v1542 = vadd.f32 %v1541, 1.0
    %v1543 = vrcp.pop %v1542
    %v1544 = vmul.f32 1.0, %v1543
    %v1545 = vtanh.pop %v1531
    %v1546 = vxor.u32 %v1532, 2147483648
    %v1547 = vmul.f32 %v1546, 1.442695
    %v1548 = vpow.pop %v1547
    %v1549 = vadd.f32 %v1548, 1.0
    %v1550 = vrcp.pop %v1549
    %v1551 = vmul.f32 1.0, %v1550
    %v1552 = vmul.f32 %v1544, %v782
    %v1553 = vmul.f32 %v1538, %v1545
    %v1554 = vadd.f32 %v1552, %v1553
    %v1555 = vtanh.pop %v1554
    %v1556 = vmul.f32 %v1551, %v1555
    %1557 = vmatprep.subr.mxu0 %v63
    %1558 = vmatpush1.msra.mxu0 %v62
    %1559 = vmatprep.subr.mxu0 %v65
    %1560 = vmatpush1.msra.mxu0 %v64
    %1561 = vmatprep.subr.mxu0 %v67
    %1562 = vmatpush1.msra.mxu0 %v66
    %1563 = vmatprep.subr.mxu0 %v69
    %1564 = vmatpush1.msra.mxu0 %v68
    %1565 = vmatprep.subr.mxu0 %v71
    %1566 = vmatpush1.msra.mxu0 %v70
    %1567 = vmatprep.subr.mxu0 %v73
    %1568 = vmatpush1.msra.mxu0 %v72
    %1569 = vmatprep.subr.mxu0 %v75
    %1570 = vmatpush1.msra.mxu0 %v74
    %1571 = vmatprep.subr.mxu0 %v77
    %1572 = vmatpush1.msra.mxu0 %v76
    %1573 = vmatprep.subr.mxu0 %v79
    %1574 = vmatpush1.msra.mxu0 %v78
    %1575 = vmatprep.subr.mxu0 %v81
    %1576 = vmatpush1.msra.mxu0 %v80
    %1577 = vmatprep.subr.mxu0 %v83
    %1578 = vmatpush1.msra.mxu0 %v82
    %1579 = vmatprep.subr.mxu0 %v85
    %1580 = vmatpush1.msra.mxu0 %v84
    %1581 = vmatprep.subr.mxu0 %v87
    %1582 = vmatpush1.msra.mxu0 %v86
    %1583 = vmatprep.subr.mxu0 %v89
    %1584 = vmatpush1.msra.mxu0 %v88
    %1585 = vmatprep.subr.mxu0 %v91
    %1586 = vmatpush1.msra.mxu0 %v90
    %1587 = vmatprep.subr.mxu0 %v93
    %1588 = vmatpush1.msra.mxu0 %v92
    %1589 = vmatprep.subr.mxu0 0.0
    %1590 = vmatpush1.msra.mxu0 0.0
    %1591 = vmatprep.subr.mxu0 0.0
    %1592 = vmatpush1.msra.mxu0 0.0
    %1593 = vmatprep.subr.mxu0 0.0
    %1594 = vmatpush1.msra.mxu0 0.0
    %1595 = vmatprep.subr.mxu0 0.0
    %1596 = vmatpush1.msra.mxu0 0.0
    %1597 = vmatprep.subr.mxu0 0.0
    %1598 = vmatpush1.msra.mxu0 0.0
    %1599 = vmatprep.subr.mxu0 0.0
    %1600 = vmatpush1.msra.mxu0 0.0
    %1601 = vmatprep.subr.mxu0 0.0
    %1602 = vmatpush1.msra.mxu0 0.0
    %1603 = vmatprep.subr.mxu0 0.0
    %1604 = vmatpush1.msra.mxu0 0.0
    %1605 = vmatprep.subr.mxu0 0.0
    %1606 = vmatpush1.msra.mxu0 0.0
    %1607 = vmatprep.subr.mxu0 0.0
    %1608 = vmatpush1.msra.mxu0 0.0
    %1609 = vmatprep.subr.mxu0 0.0
    %1610 = vmatpush1.msra.mxu0 0.0
    %1611 = vmatprep.subr.mxu0 0.0
    %1612 = vmatpush1.msra.mxu0 0.0
    %1613 = vmatprep.subr.mxu0 0.0
    %1614 = vmatpush1.msra.mxu0 0.0
    %1615 = vmatprep.subr.mxu0 0.0
    %1616 = vmatpush1.msra.mxu0 0.0
    %1617 = vmatprep.subr.mxu0 0.0
    %1618 = vmatpush1.msra.mxu0 0.0
    %1619 = vmatprep.subr.mxu0 0.0
    %1620 = vmatpush1.msra.mxu0 0.0
    %1621 = vmatprep.mubr.f32.mxu0 0.0
    %1622 = vmatmul.mubr.f32.gmra.mrb[0].mxu0 %v1556
    %v1623 = vpop.f32.mrb[0].mxu0
    %v1624 = vadd.f32 %v94, %v1623
    %v1625 = vpop.f32.mrb[0].mxu0
    %v1626 = vadd.f32 %v95, %v1625
    %1627 = vdwg.mxu0
    %v1628 = vmax.f32 %v1624, %v1626
    %1629 = vmax.xlane.f32.xlu0 %v1628
    %v1630 = vpop.xlane.xlu0 %1629
    %v1631 = vsub.f32 %v1624, %v1630
    %v1632 = vsub.f32 %v1626, %v1630
    %v1633 = vmul.f32 %v1631, 1.442695
    %v1634 = vpow.pop %v1633
    %v1635 = vmul.f32 %v1632, 1.442695
    %v1636 = vpow.pop %v1635
    %v1637 = vadd.f32 %v1634, %v1636
    %1638 = vadd.xlane.f32.xlu0 %v1637
    %v1639 = vpop.xlane.xlu0 %1638
    %v1640 = vlog2.pop %v1639
    %v1641 = vmul.f32 %v1640, 0.6931472
    %v1642 = vsub.f32 %v1631, %v1641
    %v1643 = vsub.f32 %v1632, %v1641
    %s1644 = scalar_lea.vmem [#allocation7], 16
    %1645 = vst [vmem:[%s1644] sm:$0xff] %v1642
    %1646 = vst [vmem:[%s1644 + $0x8] sm:$0xff] %v1643
    %s1647 = scalar_lea.vmem %s0, 64
    %v1648 = vld [vmem:[%s1647] sm:$0xff]
    %v1649 = vld [vmem:[%s1647 + $0x8] sm:$0xff]
    %v1650 = vld [vmem:[%s1647 + $0x10] sm:$0xff]
    %v1651 = vld [vmem:[%s1647 + $0x18] sm:$0xff]
    %v1652 = vld [vmem:[%s3] sm:$0xff]
    %v1653 = vld [vmem:[%s3 + $0x8] sm:$0xff]
    %v1654 = vld [vmem:[%s3 + $0x10] sm:$0xff]
    %v1655 = vld [vmem:[%s3 + $0x18] sm:$0xff]
    %v1656 = vld [vmem:[%s3 + $0x20] sm:$0xff]
    %v1657 = vld [vmem:[%s3 + $0x28] sm:$0xff]
    %v1658 = vld [vmem:[%s3 + $0x30] sm:$0xff]
    %v1659 = vld [vmem:[%s3 + $0x38] sm:$0xff]
    %v1660 = vld [vmem:[%s3 + $0x40] sm:$0xff]
    %v1661 = vld [vmem:[%s3 + $0x48] sm:$0xff]
    %v1662 = vld [vmem:[%s3 + $0x50] sm:$0xff]
    %v1663 = vld [vmem:[%s3 + $0x58] sm:$0xff]
    %v1664 = vld [vmem:[%s3 + $0x60] sm:$0xff]
    %v1665 = vld [vmem:[%s3 + $0x68] sm:$0xff]
    %v1666 = vld [vmem:[%s3 + $0x70] sm:$0xff]
    %v1667 = vld [vmem:[%s3 + $0x78] sm:$0xff]
    %v1668 = vld [vmem:[%s3 + $0x80] sm:$0xff]
    %v1669 = vld [vmem:[%s3 + $0x88] sm:$0xff]
    %v1670 = vld [vmem:[%s3 + $0x90] sm:$0xff]
    %v1671 = vld [vmem:[%s3 + $0x98] sm:$0xff]
    %v1672 = vld [vmem:[%s3 + $0xa0] sm:$0xff]
    %v1673 = vld [vmem:[%s3 + $0xa8] sm:$0xff]
    %v1674 = vld [vmem:[%s3 + $0xb0] sm:$0xff]
    %v1675 = vld [vmem:[%s3 + $0xb8] sm:$0xff]
    %v1676 = vld [vmem:[%s3 + $0xc0] sm:$0xff]
    %v1677 = vld [vmem:[%s3 + $0xc8] sm:$0xff]
    %v1678 = vld [vmem:[%s3 + $0xd0] sm:$0xff]
    %v1679 = vld [vmem:[%s3 + $0xd8] sm:$0xff]
    %v1680 = vld [vmem:[%s3 + $0xe0] sm:$0xff]
    %v1681 = vld [vmem:[%s3 + $0xe8] sm:$0xff]
    %v1682 = vld [vmem:[%s3 + $0xf0] sm:$0xff]
    %v1683 = vld [vmem:[%s3 + $0xf8] sm:$0xff]
    %v1684 = vld [vmem:[%s3 + $0x100] sm:$0xff]
    %v1685 = vld [vmem:[%s3 + $0x108] sm:$0xff]
    %v1686 = vld [vmem:[%s3 + $0x110] sm:$0xff]
    %v1687 = vld [vmem:[%s3 + $0x118] sm:$0xff]
    %v1688 = vld [vmem:[%s3 + $0x120] sm:$0xff]
    %v1689 = vld [vmem:[%s3 + $0x128] sm:$0xff]
    %v1690 = vld [vmem:[%s3 + $0x130] sm:$0xff]
    %v1691 = vld [vmem:[%s3 + $0x138] sm:$0xff]
    %v1692 = vld [vmem:[%s3 + $0x140] sm:$0xff]
    %v1693 = vld [vmem:[%s3 + $0x148] sm:$0xff]
    %v1694 = vld [vmem:[%s3 + $0x150] sm:$0xff]
    %v1695 = vld [vmem:[%s3 + $0x158] sm:$0xff]
    %v1696 = vld [vmem:[%s3 + $0x160] sm:$0xff]
    %v1697 = vld [vmem:[%s3 + $0x168] sm:$0xff]
    %v1698 = vld [vmem:[%s3 + $0x170] sm:$0xff]
    %v1699 = vld [vmem:[%s3 + $0x178] sm:$0xff]
    %v1700 = vld [vmem:[%s3 + $0x180] sm:$0xff]
    %v1701 = vld [vmem:[%s3 + $0x188] sm:$0xff]
    %v1702 = vld [vmem:[%s3 + $0x190] sm:$0xff]
    %v1703 = vld [vmem:[%s3 + $0x198] sm:$0xff]
    %v1704 = vld [vmem:[%s3 + $0x1a0] sm:$0xff]
    %v1705 = vld [vmem:[%s3 + $0x1a8] sm:$0xff]
    %v1706 = vld [vmem:[%s3 + $0x1b0] sm:$0xff]
    %v1707 = vld [vmem:[%s3 + $0x1b8] sm:$0xff]
    %v1708 = vld [vmem:[%s3 + $0x1c0] sm:$0xff]
    %v1709 = vld [vmem:[%s3 + $0x1c8] sm:$0xff]
    %v1710 = vld [vmem:[%s3 + $0x1d0] sm:$0xff]
    %v1711 = vld [vmem:[%s3 + $0x1d8] sm:$0xff]
    %v1712 = vld [vmem:[%s3 + $0x1e0] sm:$0xff]
    %v1713 = vld [vmem:[%s3 + $0x1e8] sm:$0xff]
    %v1714 = vld [vmem:[%s3 + $0x1f0] sm:$0xff]
    %v1715 = vld [vmem:[%s3 + $0x1f8] sm:$0xff]
    %1716 = vmatprep.subr.mxu0 %v1653
    %1717 = vmatpush1.msra.mxu0 %v1652
    %1718 = vmatprep.subr.mxu0 %v1657
    %1719 = vmatpush1.msra.mxu0 %v1656
    %1720 = vmatprep.subr.mxu0 %v1661
    %1721 = vmatpush1.msra.mxu0 %v1660
    %1722 = vmatprep.subr.mxu0 %v1665
    %1723 = vmatpush1.msra.mxu0 %v1664
    %1724 = vmatprep.subr.mxu0 %v1669
    %1725 = vmatpush1.msra.mxu0 %v1668
    %1726 = vmatprep.subr.mxu0 %v1673
    %1727 = vmatpush1.msra.mxu0 %v1672
    %1728 = vmatprep.subr.mxu0 %v1677
    %1729 = vmatpush1.msra.mxu0 %v1676
    %1730 = vmatprep.subr.mxu0 %v1681
    %1731 = vmatpush1.msra.mxu0 %v1680
    %1732 = vmatprep.subr.mxu0 %v1685
    %1733 = vmatpush1.msra.mxu0 %v1684
    %1734 = vmatprep.subr.mxu0 %v1689
    %1735 = vmatpush1.msra.mxu0 %v1688
    %1736 = vmatprep.subr.mxu0 %v1693
    %1737 = vmatpush1.msra.mxu0 %v1692
    %1738 = vmatprep.subr.mxu0 %v1697
    %1739 = vmatpush1.msra.mxu0 %v1696
    %1740 = vmatprep.subr.mxu0 %v1701
    %1741 = vmatpush1.msra.mxu0 %v1700
    %1742 = vmatprep.subr.mxu0 %v1705
    %1743 = vmatpush1.msra.mxu0 %v1704
    %1744 = vmatprep.subr.mxu0 %v1709
    %1745 = vmatpush1.msra.mxu0 %v1708
    %1746 = vmatprep.subr.mxu0 %v1713
    %1747 = vmatpush1.msra.mxu0 %v1712
    %1748 = vmatprep.subr.mxu0 0.0
    %1749 = vmatpush1.msra.mxu0 0.0
    %1750 = vmatprep.subr.mxu0 0.0
    %1751 = vmatpush1.msra.mxu0 0.0
    %1752 = vmatprep.subr.mxu0 0.0
    %1753 = vmatpush1.msra.mxu0 0.0
    %1754 = vmatprep.subr.mxu0 0.0
    %1755 = vmatpush1.msra.mxu0 0.0
    %1756 = vmatprep.subr.mxu0 0.0
    %1757 = vmatpush1.msra.mxu0 0.0
    %1758 = vmatprep.subr.mxu0 0.0
    %1759 = vmatpush1.msra.mxu0 0.0
    %1760 = vmatprep.subr.mxu0 0.0
    %1761 = vmatpush1.msra.mxu0 0.0
    %1762 = vmatprep.subr.mxu0 0.0
    %1763 = vmatpush1.msra.mxu0 0.0
    %1764 = vmatprep.subr.mxu0 0.0
    %1765 = vmatpush1.msra.mxu0 0.0
    %1766 = vmatprep.subr.mxu0 0.0
    %1767 = vmatpush1.msra.mxu0 0.0
    %1768 = vmatprep.subr.mxu0 0.0
    %1769 = vmatpush1.msra.mxu0 0.0
    %1770 = vmatprep.subr.mxu0 0.0
    %1771 = vmatpush1.msra.mxu0 0.0
    %1772 = vmatprep.subr.mxu0 0.0
    %1773 = vmatpush1.msra.mxu0 0.0
    %1774 = vmatprep.subr.mxu0 0.0
    %1775 = vmatpush1.msra.mxu0 0.0
    %1776 = vmatprep.subr.mxu0 0.0
    %1777 = vmatpush1.msra.mxu0 0.0
    %1778 = vmatprep.subr.mxu0 0.0
    %1779 = vmatpush1.msra.mxu0 0.0
    %1780 = vmatprep.mubr.f32.mxu0 0.0
    %1781 = vmatmul.mubr.f32.gmra.mrb[0].mxu0 %v1112
    %v1782 = vpop.f32.mrb[0].mxu0
    %v1783 = vadd.f32 0.0, %v1782
    %v1784 = vpop.f32.mrb[0].mxu0
    %v1785 = vadd.f32 0.0, %v1784
    %1786 = vdwg.mxu0
    %1787 = vmatprep.subr.mxu0 %v1655
    %1788 = vmatpush1.msra.mxu0 %v1654
    %1789 = vmatprep.subr.mxu0 %v1659
    %1790 = vmatpush1.msra.mxu0 %v1658
    %1791 = vmatprep.subr.mxu0 %v1663
    %1792 = vmatpush1.msra.mxu0 %v1662
    %1793 = vmatprep.subr.mxu0 %v1667
    %1794 = vmatpush1.msra.mxu0 %v1666
    %1795 = vmatprep.subr.mxu0 %v1671
    %1796 = vmatpush1.msra.mxu0 %v1670
    %1797 = vmatprep.subr.mxu0 %v1675
    %1798 = vmatpush1.msra.mxu0 %v1674
    %1799 = vmatprep.subr.mxu0 %v1679
    %1800 = vmatpush1.msra.mxu0 %v1678
    %1801 = vmatprep.subr.mxu0 %v1683
    %1802 = vmatpush1.msra.mxu0 %v1682
    %1803 = vmatprep.subr.mxu0 %v1687
    %1804 = vmatpush1.msra.mxu0 %v1686
    %1805 = vmatprep.subr.mxu0 %v1691
    %1806 = vmatpush1.msra.mxu0 %v1690
    %1807 = vmatprep.subr.mxu0 %v1695
    %1808 = vmatpush1.msra.mxu0 %v1694
    %1809 = vmatprep.subr.mxu0 %v1699
    %1810 = vmatpush1.msra.mxu0 %v1698
    %1811 = vmatprep.subr.mxu0 %v1703
    %1812 = vmatpush1.msra.mxu0 %v1702
    %1813 = vmatprep.subr.mxu0 %v1707
    %1814 = vmatpush1.msra.mxu0 %v1706
    %1815 = vmatprep.subr.mxu0 %v1711
    %1816 = vmatpush1.msra.mxu0 %v1710
    %1817 = vmatprep.subr.mxu0 %v1715
    %1818 = vmatpush1.msra.mxu0 %v1714
    %1819 = vmatprep.subr.mxu0 0.0
    %1820 = vmatpush1.msra.mxu0 0.0
    %1821 = vmatprep.subr.mxu0 0.0
    %1822 = vmatpush1.msra.mxu0 0.0
    %1823 = vmatprep.subr.mxu0 0.0
    %1824 = vmatpush1.msra.mxu0 0.0
    %1825 = vmatprep.subr.mxu0 0.0
    %1826 = vmatpush1.msra.mxu0 0.0
    %1827 = vmatprep.subr.mxu0 0.0
    %1828 = vmatpush1.msra.mxu0 0.0
    %1829 = vmatprep.subr.mxu0 0.0
    %1830 = vmatpush1.msra.mxu0 0.0
    %1831 = vmatprep.subr.mxu0 0.0
    %1832 = vmatpush1.msra.mxu0 0.0
    %1833 = vmatprep.subr.mxu0 0.0
    %1834 = vmatpush1.msra.mxu0 0.0
    %1835 = vmatprep.subr.mxu0 0.0
    %1836 = vmatpush1.msra.mxu0 0.0
    %1837 = vmatprep.subr.mxu0 0.0
    %1838 = vmatpush1.msra.mxu0 0.0
    %1839 = vmatprep.subr.mxu0 0.0
    %1840 = vmatpush1.msra.mxu0 0.0
    %1841 = vmatprep.subr.mxu0 0.0
    %1842 = vmatpush1.msra.mxu0 0.0
    %1843 = vmatprep.subr.mxu0 0.0
    %1844 = vmatpush1.msra.mxu0 0.0
    %1845 = vmatprep.subr.mxu0 0.0
    %1846 = vmatpush1.msra.mxu0 0.0
    %1847 = vmatprep.subr.mxu0 0.0
    %1848 = vmatpush1.msra.mxu0 0.0
    %1849 = vmatprep.subr.mxu0 0.0
    %1850 = vmatpush1.msra.mxu0 0.0
    %1851 = vmatprep.mubr.f32.mxu0 0.0
    %1852 = vmatmul.mubr.f32.gmra.mrb[0].mxu0 %v1112
    %v1853 = vpop.f32.mrb[0].mxu0
    %v1854 = vadd.f32 0.0, %v1853
    %v1855 = vpop.f32.mrb[0].mxu0
    %v1856 = vadd.f32 0.0, %v1855
    %1857 = vdwg.mxu0
    %v1858 = vadd.f32 %v1648, %v1783
    %v1859 = vadd.f32 %v1649, %v1785
    %v1860 = vadd.f32 %v1650, %v1854
    %v1861 = vadd.f32 %v1651, %v1856
    %v1862 = vxor.u32 %v1858, 2147483648
    %v1863 = vmul.f32 %v1862, 1.442695
    %v1864 = vpow.pop %v1863
    %v1865 = vadd.f32 %v1864, 1.0
    %v1866 = vrcp.pop %v1865
    %v1867 = vmul.f32 1.0, %v1866
    %v1868 = vxor.u32 %v1859, 2147483648
    %v1869 = vmul.f32 %v1868, 1.442695
    %v1870 = vpow.pop %v1869
    %v1871 = vadd.f32 %v1870, 1.0
    %v1872 = vrcp.pop %v1871
    %v1873 = vmul.f32 1.0, %v1872
    %v1874 = vtanh.pop %v1860
    %v1875 = vxor.u32 %v1861, 2147483648
    %v1876 = vmul.f32 %v1875, 1.442695
    %v1877 = vpow.pop %v1876
    %v1878 = vadd.f32 %v1877, 1.0
    %v1879 = vrcp.pop %v1878
    %v1880 = vmul.f32 1.0, %v1879
    %v1881 = vmul.f32 %v1873, %v1110
    %v1882 = vmul.f32 %v1867, %v1874
    %v1883 = vadd.f32 %v1881, %v1882
    %v1884 = vtanh.pop %v1883
    %v1885 = vmul.f32 %v1880, %v1884
    %v1886 = vld [vmem:[#allocation2] sm:$0xff]
    %v1887 = vld [vmem:[#allocation2 + $0x8] sm:$0xff]
    %v1888 = vld [vmem:[#allocation2 + $0x10] sm:$0xff]
    %v1889 = vld [vmem:[#allocation2 + $0x18] sm:$0xff]
    %v1890 = vld [vmem:[#allocation2 + $0x20] sm:$0xff]
    %v1891 = vld [vmem:[#allocation2 + $0x28] sm:$0xff]
    %v1892 = vld [vmem:[#allocation2 + $0x30] sm:$0xff]
    %v1893 = vld [vmem:[#allocation2 + $0x38] sm:$0xff]
    %v1894 = vld [vmem:[#allocation2 + $0x40] sm:$0xff]
    %v1895 = vld [vmem:[#allocation2 + $0x48] sm:$0xff]
    %v1896 = vld [vmem:[#allocation2 + $0x50] sm:$0xff]
    %v1897 = vld [vmem:[#allocation2 + $0x58] sm:$0xff]
    %v1898 = vld [vmem:[#allocation2 + $0x60] sm:$0xff]
    %v1899 = vld [vmem:[#allocation2 + $0x68] sm:$0xff]
    %v1900 = vld [vmem:[#allocation2 + $0x70] sm:$0xff]
    %v1901 = vld [vmem:[#allocation2 + $0x78] sm:$0xff]
    %v1902 = vld [vmem:[#allocation2 + $0x80] sm:$0xff]
    %v1903 = vld [vmem:[#allocation2 + $0x88] sm:$0xff]
    %v1904 = vld [vmem:[#allocation2 + $0x90] sm:$0xff]
    %v1905 = vld [vmem:[#allocation2 + $0x98] sm:$0xff]
    %v1906 = vld [vmem:[#allocation2 + $0xa0] sm:$0xff]
    %v1907 = vld [vmem:[#allocation2 + $0xa8] sm:$0xff]
    %v1908 = vld [vmem:[#allocation2 + $0xb0] sm:$0xff]
    %v1909 = vld [vmem:[#allocation2 + $0xb8] sm:$0xff]
    %v1910 = vld [vmem:[#allocation2 + $0xc0] sm:$0xff]
    %v1911 = vld [vmem:[#allocation2 + $0xc8] sm:$0xff]
    %v1912 = vld [vmem:[#allocation2 + $0xd0] sm:$0xff]
    %v1913 = vld [vmem:[#allocation2 + $0xd8] sm:$0xff]
    %v1914 = vld [vmem:[#allocation2 + $0xe0] sm:$0xff]
    %v1915 = vld [vmem:[#allocation2 + $0xe8] sm:$0xff]
    %v1916 = vld [vmem:[#allocation2 + $0xf0] sm:$0xff]
    %v1917 = vld [vmem:[#allocation2 + $0xf8] sm:$0xff]
    %v1918 = vld [vmem:[#allocation2 + $0x100] sm:$0xff]
    %v1919 = vld [vmem:[#allocation2 + $0x108] sm:$0xff]
    %v1920 = vld [vmem:[#allocation2 + $0x110] sm:$0xff]
    %v1921 = vld [vmem:[#allocation2 + $0x118] sm:$0xff]
    %v1922 = vld [vmem:[#allocation2 + $0x120] sm:$0xff]
    %v1923 = vld [vmem:[#allocation2 + $0x128] sm:$0xff]
    %v1924 = vld [vmem:[#allocation2 + $0x130] sm:$0xff]
    %v1925 = vld [vmem:[#allocation2 + $0x138] sm:$0xff]
    %v1926 = vld [vmem:[#allocation2 + $0x140] sm:$0xff]
    %v1927 = vld [vmem:[#allocation2 + $0x148] sm:$0xff]
    %v1928 = vld [vmem:[#allocation2 + $0x150] sm:$0xff]
    %v1929 = vld [vmem:[#allocation2 + $0x158] sm:$0xff]
    %v1930 = vld [vmem:[#allocation2 + $0x160] sm:$0xff]
    %v1931 = vld [vmem:[#allocation2 + $0x168] sm:$0xff]
    %v1932 = vld [vmem:[#allocation2 + $0x170] sm:$0xff]
    %v1933 = vld [vmem:[#allocation2 + $0x178] sm:$0xff]
    %v1934 = vld [vmem:[#allocation2 + $0x180] sm:$0xff]
    %v1935 = vld [vmem:[#allocation2 + $0x188] sm:$0xff]
    %v1936 = vld [vmem:[#allocation2 + $0x190] sm:$0xff]
    %v1937 = vld [vmem:[#allocation2 + $0x198] sm:$0xff]
    %v1938 = vld [vmem:[#allocation2 + $0x1a0] sm:$0xff]
    %v1939 = vld [vmem:[#allocation2 + $0x1a8] sm:$0xff]
    %v1940 = vld [vmem:[#allocation2 + $0x1b0] sm:$0xff]
    %v1941 = vld [vmem:[#allocation2 + $0x1b8] sm:$0xff]
    %v1942 = vld [vmem:[#allocation2 + $0x1c0] sm:$0xff]
    %v1943 = vld [vmem:[#allocation2 + $0x1c8] sm:$0xff]
    %v1944 = vld [vmem:[#allocation2 + $0x1d0] sm:$0xff]
    %v1945 = vld [vmem:[#allocation2 + $0x1d8] sm:$0xff]
    %v1946 = vld [vmem:[#allocation2 + $0x1e0] sm:$0xff]
    %v1947 = vld [vmem:[#allocation2 + $0x1e8] sm:$0xff]
    %v1948 = vld [vmem:[#allocation2 + $0x1f0] sm:$0xff]
    %v1949 = vld [vmem:[#allocation2 + $0x1f8] sm:$0xff]
    %v1950 = vld [vmem:[%s404] sm:$0xff]
    %v1951 = vld [vmem:[%s404 + $0x8] sm:$0xff]
    %v1952 = vld [vmem:[%s404 + $0x10] sm:$0xff]
    %v1953 = vld [vmem:[%s404 + $0x18] sm:$0xff]
    %v1954 = vld [vmem:[%s404 + $0x20] sm:$0xff]
    %v1955 = vld [vmem:[%s404 + $0x28] sm:$0xff]
    %v1956 = vld [vmem:[%s404 + $0x30] sm:$0xff]
    %v1957 = vld [vmem:[%s404 + $0x38] sm:$0xff]
    %v1958 = vld [vmem:[%s404 + $0x40] sm:$0xff]
    %v1959 = vld [vmem:[%s404 + $0x48] sm:$0xff]
    %v1960 = vld [vmem:[%s404 + $0x50] sm:$0xff]
    %v1961 = vld [vmem:[%s404 + $0x58] sm:$0xff]
    %v1962 = vld [vmem:[%s404 + $0x60] sm:$0xff]
    %v1963 = vld [vmem:[%s404 + $0x68] sm:$0xff]
    %v1964 = vld [vmem:[%s404 + $0x70] sm:$0xff]
    %v1965 = vld [vmem:[%s404 + $0x78] sm:$0xff]
    %v1966 = vld [vmem:[%s404 + $0x80] sm:$0xff]
    %v1967 = vld [vmem:[%s404 + $0x88] sm:$0xff]
    %v1968 = vld [vmem:[%s404 + $0x90] sm:$0xff]
    %v1969 = vld [vmem:[%s404 + $0x98] sm:$0xff]
    %v1970 = vld [vmem:[%s404 + $0xa0] sm:$0xff]
    %v1971 = vld [vmem:[%s404 + $0xa8] sm:$0xff]
    %v1972 = vld [vmem:[%s404 + $0xb0] sm:$0xff]
    %v1973 = vld [vmem:[%s404 + $0xb8] sm:$0xff]
    %v1974 = vld [vmem:[%s404 + $0xc0] sm:$0xff]
    %v1975 = vld [vmem:[%s404 + $0xc8] sm:$0xff]
    %v1976 = vld [vmem:[%s404 + $0xd0] sm:$0xff]
    %v1977 = vld [vmem:[%s404 + $0xd8] sm:$0xff]
    %v1978 = vld [vmem:[%s404 + $0xe0] sm:$0xff]
    %v1979 = vld [vmem:[%s404 + $0xe8] sm:$0xff]
    %v1980 = vld [vmem:[%s404 + $0xf0] sm:$0xff]
    %v1981 = vld [vmem:[%s404 + $0xf8] sm:$0xff]
    %v1982 = vld [vmem:[%s404 + $0x100] sm:$0xff]
    %v1983 = vld [vmem:[%s404 + $0x108] sm:$0xff]
    %v1984 = vld [vmem:[%s404 + $0x110] sm:$0xff]
    %v1985 = vld [vmem:[%s404 + $0x118] sm:$0xff]
    %v1986 = vld [vmem:[%s404 + $0x120] sm:$0xff]
    %v1987 = vld [vmem:[%s404 + $0x128] sm:$0xff]
    %v1988 = vld [vmem:[%s404 + $0x130] sm:$0xff]
    %v1989 = vld [vmem:[%s404 + $0x138] sm:$0xff]
    %v1990 = vld [vmem:[%s404 + $0x140] sm:$0xff]
    %v1991 = vld [vmem:[%s404 + $0x148] sm:$0xff]
    %v1992 = vld [vmem:[%s404 + $0x150] sm:$0xff]
    %v1993 = vld [vmem:[%s404 + $0x158] sm:$0xff]
    %v1994 = vld [vmem:[%s404 + $0x160] sm:$0xff]
    %v1995 = vld [vmem:[%s404 + $0x168] sm:$0xff]
    %v1996 = vld [vmem:[%s404 + $0x170] sm:$0xff]
    %v1997 = vld [vmem:[%s404 + $0x178] sm:$0xff]
    %v1998 = vld [vmem:[%s404 + $0x180] sm:$0xff]
    %v1999 = vld [vmem:[%s404 + $0x188] sm:$0xff]
    %v2000 = vld [vmem:[%s404 + $0x190] sm:$0xff]
    %v2001 = vld [vmem:[%s404 + $0x198] sm:$0xff]
    %v2002 = vld [vmem:[%s404 + $0x1a0] sm:$0xff]
    %v2003 = vld [vmem:[%s404 + $0x1a8] sm:$0xff]
    %v2004 = vld [vmem:[%s404 + $0x1b0] sm:$0xff]
    %v2005 = vld [vmem:[%s404 + $0x1b8] sm:$0xff]
    %v2006 = vld [vmem:[%s404 + $0x1c0] sm:$0xff]
    %v2007 = vld [vmem:[%s404 + $0x1c8] sm:$0xff]
    %v2008 = vld [vmem:[%s404 + $0x1d0] sm:$0xff]
    %v2009 = vld [vmem:[%s404 + $0x1d8] sm:$0xff]
    %v2010 = vld [vmem:[%s404 + $0x1e0] sm:$0xff]
    %v2011 = vld [vmem:[%s404 + $0x1e8] sm:$0xff]
    %v2012 = vld [vmem:[%s404 + $0x1f0] sm:$0xff]
    %v2013 = vld [vmem:[%s404 + $0x1f8] sm:$0xff]
    %2014 = vmatprep.subr.mxu0 %v1951
    %2015 = vmatpush1.msra.mxu0 %v1950
    %2016 = vmatprep.subr.mxu0 %v1955
    %2017 = vmatpush1.msra.mxu0 %v1954
    %2018 = vmatprep.subr.mxu0 %v1959
    %2019 = vmatpush1.msra.mxu0 %v1958
    %2020 = vmatprep.subr.mxu0 %v1963
    %2021 = vmatpush1.msra.mxu0 %v1962
    %2022 = vmatprep.subr.mxu0 %v1967
    %2023 = vmatpush1.msra.mxu0 %v1966
    %2024 = vmatprep.subr.mxu0 %v1971
    %2025 = vmatpush1.msra.mxu0 %v1970
    %2026 = vmatprep.subr.mxu0 %v1975
    %2027 = vmatpush1.msra.mxu0 %v1974
    %2028 = vmatprep.subr.mxu0 %v1979
    %2029 = vmatpush1.msra.mxu0 %v1978
    %2030 = vmatprep.subr.mxu0 %v1983
    %2031 = vmatpush1.msra.mxu0 %v1982
    %2032 = vmatprep.subr.mxu0 %v1987
    %2033 = vmatpush1.msra.mxu0 %v1986
    %2034 = vmatprep.subr.mxu0 %v1991
    %2035 = vmatpush1.msra.mxu0 %v1990
    %2036 = vmatprep.subr.mxu0 %v1995
    %2037 = vmatpush1.msra.mxu0 %v1994
    %2038 = vmatprep.subr.mxu0 %v1999
    %2039 = vmatpush1.msra.mxu0 %v1998
    %2040 = vmatprep.subr.mxu0 %v2003
    %2041 = vmatpush1.msra.mxu0 %v2002
    %2042 = vmatprep.subr.mxu0 %v2007
    %2043 = vmatpush1.msra.mxu0 %v2006
    %2044 = vmatprep.subr.mxu0 %v2011
    %2045 = vmatpush1.msra.mxu0 %v2010
    %2046 = vmatprep.subr.mxu0 0.0
    %2047 = vmatpush1.msra.mxu0 0.0
    %2048 = vmatprep.subr.mxu0 0.0
    %2049 = vmatpush1.msra.mxu0 0.0
    %2050 = vmatprep.subr.mxu0 0.0
    %2051 = vmatpush1.msra.mxu0 0.0
    %2052 = vmatprep.subr.mxu0 0.0
    %2053 = vmatpush1.msra.mxu0 0.0
    %2054 = vmatprep.subr.mxu0 0.0
    %2055 = vmatpush1.msra.mxu0 0.0
    %2056 = vmatprep.subr.mxu0 0.0
    %2057 = vmatpush1.msra.mxu0 0.0
    %2058 = vmatprep.subr.mxu0 0.0
    %2059 = vmatpush1.msra.mxu0 0.0
    %2060 = vmatprep.subr.mxu0 0.0
    %2061 = vmatpush1.msra.mxu0 0.0
    %2062 = vmatprep.subr.mxu0 0.0
    %2063 = vmatpush1.msra.mxu0 0.0
    %2064 = vmatprep.subr.mxu0 0.0
    %2065 = vmatpush1.msra.mxu0 0.0
    %2066 = vmatprep.subr.mxu0 0.0
    %2067 = vmatpush1.msra.mxu0 0.0
    %2068 = vmatprep.subr.mxu0 0.0
    %2069 = vmatpush1.msra.mxu0 0.0
    %2070 = vmatprep.subr.mxu0 0.0
    %2071 = vmatpush1.msra.mxu0 0.0
    %2072 = vmatprep.subr.mxu0 0.0
    %2073 = vmatpush1.msra.mxu0 0.0
    %2074 = vmatprep.subr.mxu0 0.0
    %2075 = vmatpush1.msra.mxu0 0.0
    %2076 = vmatprep.subr.mxu0 0.0
    %2077 = vmatpush1.msra.mxu0 0.0
    %2078 = vmatprep.mubr.f32.mxu0 0.0
    %2079 = vmatmul.mubr.f32.gmra.mrb[0].mxu0 %v1556
    %v2080 = vpop.f32.mrb[0].mxu0
    %v2081 = vadd.f32 0.0, %v2080
    %v2082 = vpop.f32.mrb[0].mxu0
    %v2083 = vadd.f32 0.0, %v2082
    %2084 = vdwg.mxu0
    %2085 = vmatprep.subr.mxu0 %v1953
    %2086 = vmatpush1.msra.mxu0 %v1952
    %2087 = vmatprep.subr.mxu0 %v1957
    %2088 = vmatpush1.msra.mxu0 %v1956
    %2089 = vmatprep.subr.mxu0 %v1961
    %2090 = vmatpush1.msra.mxu0 %v1960
    %2091 = vmatprep.subr.mxu0 %v1965
    %2092 = vmatpush1.msra.mxu0 %v1964
    %2093 = vmatprep.subr.mxu0 %v1969
    %2094 = vmatpush1.msra.mxu0 %v1968
    %2095 = vmatprep.subr.mxu0 %v1973
    %2096 = vmatpush1.msra.mxu0 %v1972
    %2097 = vmatprep.subr.mxu0 %v1977
    %2098 = vmatpush1.msra.mxu0 %v1976
    %2099 = vmatprep.subr.mxu0 %v1981
    %2100 = vmatpush1.msra.mxu0 %v1980
    %2101 = vmatprep.subr.mxu0 %v1985
    %2102 = vmatpush1.msra.mxu0 %v1984
    %2103 = vmatprep.subr.mxu0 %v1989
    %2104 = vmatpush1.msra.mxu0 %v1988
    %2105 = vmatprep.subr.mxu0 %v1993
    %2106 = vmatpush1.msra.mxu0 %v1992
    %2107 = vmatprep.subr.mxu0 %v1997
    %2108 = vmatpush1.msra.mxu0 %v1996
    %2109 = vmatprep.subr.mxu0 %v2001
    %2110 = vmatpush1.msra.mxu0 %v2000
    %2111 = vmatprep.subr.mxu0 %v2005
    %2112 = vmatpush1.msra.mxu0 %v2004
    %2113 = vmatprep.subr.mxu0 %v2009
    %2114 = vmatpush1.msra.mxu0 %v2008
    %2115 = vmatprep.subr.mxu0 %v2013
    %2116 = vmatpush1.msra.mxu0 %v2012
    %2117 = vmatprep.subr.mxu0 0.0
    %2118 = vmatpush1.msra.mxu0 0.0
    %2119 = vmatprep.subr.mxu0 0.0
    %2120 = vmatpush1.msra.mxu0 0.0
    %2121 = vmatprep.subr.mxu0 0.0
    %2122 = vmatpush1.msra.mxu0 0.0
    %2123 = vmatprep.subr.mxu0 0.0
    %2124 = vmatpush1.msra.mxu0 0.0
    %2125 = vmatprep.subr.mxu0 0.0
    %2126 = vmatpush1.msra.mxu0 0.0
    %2127 = vmatprep.subr.mxu0 0.0
    %2128 = vmatpush1.msra.mxu0 0.0
    %2129 = vmatprep.subr.mxu0 0.0
    %2130 = vmatpush1.msra.mxu0 0.0
    %2131 = vmatprep.subr.mxu0 0.0
    %2132 = vmatpush1.msra.mxu0 0.0
    %2133 = vmatprep.subr.mxu0 0.0
    %2134 = vmatpush1.msra.mxu0 0.0
    %2135 = vmatprep.subr.mxu0 0.0
    %2136 = vmatpush1.msra.mxu0 0.0
    %2137 = vmatprep.subr.mxu0 0.0
    %2138 = vmatpush1.msra.mxu0 0.0
    %2139 = vmatprep.subr.mxu0 0.0
    %2140 = vmatpush1.msra.mxu0 0.0
    %2141 = vmatprep.subr.mxu0 0.0
    %2142 = vmatpush1.msra.mxu0 0.0
    %2143 = vmatprep.subr.mxu0 0.0
    %2144 = vmatpush1.msra.mxu0 0.0
    %2145 = vmatprep.subr.mxu0 0.0
    %2146 = vmatpush1.msra.mxu0 0.0
    %2147 = vmatprep.subr.mxu0 0.0
    %2148 = vmatpush1.msra.mxu0 0.0
    %2149 = vmatprep.mubr.f32.mxu0 0.0
    %2150 = vmatmul.mubr.f32.gmra.mrb[0].mxu0 %v1556
    %v2151 = vpop.f32.mrb[0].mxu0
    %v2152 = vadd.f32 0.0, %v2151
    %v2153 = vpop.f32.mrb[0].mxu0
    %v2154 = vadd.f32 0.0, %v2153
    %2155 = vdwg.mxu0
    %2156 = vmatprep.subr.mxu0 %v1887
    %2157 = vmatpush1.msra.mxu0 %v1886
    %2158 = vmatprep.subr.mxu0 %v1891
    %2159 = vmatpush1.msra.mxu0 %v1890
    %2160 = vmatprep.subr.mxu0 %v1895
    %2161 = vmatpush1.msra.mxu0 %v1894
    %2162 = vmatprep.subr.mxu0 %v1899
    %2163 = vmatpush1.msra.mxu0 %v1898
    %2164 = vmatprep.subr.mxu0 %v1903
    %2165 = vmatpush1.msra.mxu0 %v1902
    %2166 = vmatprep.subr.mxu0 %v1907
    %2167 = vmatpush1.msra.mxu0 %v1906
    %2168 = vmatprep.subr.mxu0 %v1911
    %2169 = vmatpush1.msra.mxu0 %v1910
    %2170 = vmatprep.subr.mxu0 %v1915
    %2171 = vmatpush1.msra.mxu0 %v1914
    %2172 = vmatprep.subr.mxu0 %v1919
    %2173 = vmatpush1.msra.mxu0 %v1918
    %2174 = vmatprep.subr.mxu0 %v1923
    %2175 = vmatpush1.msra.mxu0 %v1922
    %2176 = vmatprep.subr.mxu0 %v1927
    %2177 = vmatpush1.msra.mxu0 %v1926
    %2178 = vmatprep.subr.mxu0 %v1931
    %2179 = vmatpush1.msra.mxu0 %v1930
    %2180 = vmatprep.subr.mxu0 %v1935
    %2181 = vmatpush1.msra.mxu0 %v1934
    %2182 = vmatprep.subr.mxu0 %v1939
    %2183 = vmatpush1.msra.mxu0 %v1938
    %2184 = vmatprep.subr.mxu0 %v1943
    %2185 = vmatpush1.msra.mxu0 %v1942
    %2186 = vmatprep.subr.mxu0 %v1947
    %2187 = vmatpush1.msra.mxu0 %v1946
    %2188 = vmatprep.subr.mxu0 0.0
    %2189 = vmatpush1.msra.mxu0 0.0
    %2190 = vmatprep.subr.mxu0 0.0
    %2191 = vmatpush1.msra.mxu0 0.0
    %2192 = vmatprep.subr.mxu0 0.0
    %2193 = vmatpush1.msra.mxu0 0.0
    %2194 = vmatprep.subr.mxu0 0.0
    %2195 = vmatpush1.msra.mxu0 0.0
    %2196 = vmatprep.subr.mxu0 0.0
    %2197 = vmatpush1.msra.mxu0 0.0
    %2198 = vmatprep.subr.mxu0 0.0
    %2199 = vmatpush1.msra.mxu0 0.0
    %2200 = vmatprep.subr.mxu0 0.0
    %2201 = vmatpush1.msra.mxu0 0.0
    %2202 = vmatprep.subr.mxu0 0.0
    %2203 = vmatpush1.msra.mxu0 0.0
    %2204 = vmatprep.subr.mxu0 0.0
    %2205 = vmatpush1.msra.mxu0 0.0
    %2206 = vmatprep.subr.mxu0 0.0
    %2207 = vmatpush1.msra.mxu0 0.0
    %2208 = vmatprep.subr.mxu0 0.0
    %2209 = vmatpush1.msra.mxu0 0.0
    %2210 = vmatprep.subr.mxu0 0.0
    %2211 = vmatpush1.msra.mxu0 0.0
    %2212 = vmatprep.subr.mxu0 0.0
    %2213 = vmatpush1.msra.mxu0 0.0
    %2214 = vmatprep.subr.mxu0 0.0
    %2215 = vmatpush1.msra.mxu0 0.0
    %2216 = vmatprep.subr.mxu0 0.0
    %2217 = vmatpush1.msra.mxu0 0.0
    %2218 = vmatprep.subr.mxu0 0.0
    %2219 = vmatpush1.msra.mxu0 0.0
    %2220 = vmatprep.mubr.f32.mxu0 0.0
    %2221 = vmatmul.mubr.f32.gmra.mrb[0].mxu0 %v1885
    %v2222 = vpop.f32.mrb[0].mxu0
    %v2223 = vadd.f32 %v2081, %v2222
    %v2224 = vpop.f32.mrb[0].mxu0
    %v2225 = vadd.f32 %v2083, %v2224
    %2226 = vdwg.mxu0
    %2227 = vmatprep.subr.mxu0 %v1889
    %2228 = vmatpush1.msra.mxu0 %v1888
    %2229 = vmatprep.subr.mxu0 %v1893
    %2230 = vmatpush1.msra.mxu0 %v1892
    %2231 = vmatprep.subr.mxu0 %v1897
    %2232 = vmatpush1.msra.mxu0 %v1896
    %2233 = vmatprep.subr.mxu0 %v1901
    %2234 = vmatpush1.msra.mxu0 %v1900
    %2235 = vmatprep.subr.mxu0 %v1905
    %2236 = vmatpush1.msra.mxu0 %v1904
    %2237 = vmatprep.subr.mxu0 %v1909
    %2238 = vmatpush1.msra.mxu0 %v1908
    %2239 = vmatprep.subr.mxu0 %v1913
    %2240 = vmatpush1.msra.mxu0 %v1912
    %2241 = vmatprep.subr.mxu0 %v1917
    %2242 = vmatpush1.msra.mxu0 %v1916
    %2243 = vmatprep.subr.mxu0 %v1921
    %2244 = vmatpush1.msra.mxu0 %v1920
    %2245 = vmatprep.subr.mxu0 %v1925
    %2246 = vmatpush1.msra.mxu0 %v1924
    %2247 = vmatprep.subr.mxu0 %v1929
    %2248 = vmatpush1.msra.mxu0 %v1928
    %2249 = vmatprep.subr.mxu0 %v1933
    %2250 = vmatpush1.msra.mxu0 %v1932
    %2251 = vmatprep.subr.mxu0 %v1937
    %2252 = vmatpush1.msra.mxu0 %v1936
    %2253 = vmatprep.subr.mxu0 %v1941
    %2254 = vmatpush1.msra.mxu0 %v1940
    %2255 = vmatprep.subr.mxu0 %v1945
    %2256 = vmatpush1.msra.mxu0 %v1944
    %2257 = vmatprep.subr.mxu0 %v1949
    %2258 = vmatpush1.msra.mxu0 %v1948
    %2259 = vmatprep.subr.mxu0 0.0
    %2260 = vmatpush1.msra.mxu0 0.0
    %2261 = vmatprep.subr.mxu0 0.0
    %2262 = vmatpush1.msra.mxu0 0.0
    %2263 = vmatprep.subr.mxu0 0.0
    %2264 = vmatpush1.msra.mxu0 0.0
    %2265 = vmatprep.subr.mxu0 0.0
    %2266 = vmatpush1.msra.mxu0 0.0
    %2267 = vmatprep.subr.mxu0 0.0
    %2268 = vmatpush1.msra.mxu0 0.0
    %2269 = vmatprep.subr.mxu0 0.0
    %2270 = vmatpush1.msra.mxu0 0.0
    %2271 = vmatprep.subr.mxu0 0.0
    %2272 = vmatpush1.msra.mxu0 0.0
    %2273 = vmatprep.subr.mxu0 0.0
    %2274 = vmatpush1.msra.mxu0 0.0
    %2275 = vmatprep.subr.mxu0 0.0
    %2276 = vmatpush1.msra.mxu0 0.0
    %2277 = vmatprep.subr.mxu0 0.0
    %2278 = vmatpush1.msra.mxu0 0.0
    %2279 = vmatprep.subr.mxu0 0.0
    %2280 = vmatpush1.msra.mxu0 0.0
    %2281 = vmatprep.subr.mxu0 0.0
    %2282 = vmatpush1.msra.mxu0 0.0
    %2283 = vmatprep.subr.mxu0 0.0
    %2284 = vmatpush1.msra.mxu0 0.0
    %2285 = vmatprep.subr.mxu0 0.0
    %2286 = vmatpush1.msra.mxu0 0.0
    %2287 = vmatprep.subr.mxu0 0.0
    %2288 = vmatpush1.msra.mxu0 0.0
    %2289 = vmatprep.subr.mxu0 0.0
    %2290 = vmatpush1.msra.mxu0 0.0
    %2291 = vmatprep.mubr.f32.mxu0 0.0
    %2292 = vmatmul.mubr.f32.gmra.mrb[0].mxu0 %v1885
    %v2293 = vpop.f32.mrb[0].mxu0
    %v2294 = vadd.f32 %v2152, %v2293
    %v2295 = vpop.f32.mrb[0].mxu0
    %v2296 = vadd.f32 %v2154, %v2295
    %2297 = vdwg.mxu0
    %v2298 = vld [vmem:[%s5] sm:$0xff]
    %v2299 = vld [vmem:[%s5 + $0x8] sm:$0xff]
    %v2300 = vld [vmem:[%s5 + $0x10] sm:$0xff]
    %v2301 = vld [vmem:[%s5 + $0x18] sm:$0xff]
    %v2302 = vadd.f32 %v2223, %v2298
    %v2303 = vadd.f32 %v2225, %v2299
    %v2304 = vadd.f32 %v2294, %v2300
    %v2305 = vadd.f32 %v2296, %v2301
    %v2306 = vxor.u32 %v2302, 2147483648
    %v2307 = vmul.f32 %v2306, 1.442695
    %v2308 = vpow.pop %v2307
    %v2309 = vadd.f32 %v2308, 1.0
    %v2310 = vrcp.pop %v2309
    %v2311 = vmul.f32 1.0, %v2310
    %v2312 = vxor.u32 %v2303, 2147483648
    %v2313 = vmul.f32 %v2312, 1.442695
    %v2314 = vpow.pop %v2313
    %v2315 = vadd.f32 %v2314, 1.0
    %v2316 = vrcp.pop %v2315
    %v2317 = vmul.f32 1.0, %v2316
    %v2318 = vtanh.pop %v2304
    %v2319 = vxor.u32 %v2305, 2147483648
    %v2320 = vmul.f32 %v2319, 1.442695
    %v2321 = vpow.pop %v2320
    %v2322 = vadd.f32 %v2321, 1.0
    %v2323 = vrcp.pop %v2322
    %v2324 = vmul.f32 1.0, %v2323
    %v2325 = vmul.f32 %v2317, %v1554
    %v2326 = vmul.f32 %v2311, %v2318
    %v2327 = vadd.f32 %v2325, %v2326
    %v2328 = vtanh.pop %v2327
    %v2329 = vmul.f32 %v2324, %v2328
    %2330 = vmatprep.subr.mxu0 %v63
    %2331 = vmatpush1.msra.mxu0 %v62
    %2332 = vmatprep.subr.mxu0 %v65
    %2333 = vmatpush1.msra.mxu0 %v64
    %2334 = vmatprep.subr.mxu0 %v67
    %2335 = vmatpush1.msra.mxu0 %v66
    %2336 = vmatprep.subr.mxu0 %v69
    %2337 = vmatpush1.msra.mxu0 %v68
    %2338 = vmatprep.subr.mxu0 %v71
    %2339 = vmatpush1.msra.mxu0 %v70
    %2340 = vmatprep.subr.mxu0 %v73
    %2341 = vmatpush1.msra.mxu0 %v72
    %2342 = vmatprep.subr.mxu0 %v75
    %2343 = vmatpush1.msra.mxu0 %v74
    %2344 = vmatprep.subr.mxu0 %v77
    %2345 = vmatpush1.msra.mxu0 %v76
    %2346 = vmatprep.subr.mxu0 %v79
    %2347 = vmatpush1.msra.mxu0 %v78
    %2348 = vmatprep.subr.mxu0 %v81
    %2349 = vmatpush1.msra.mxu0 %v80
    %2350 = vmatprep.subr.mxu0 %v83
    %2351 = vmatpush1.msra.mxu0 %v82
    %2352 = vmatprep.subr.mxu0 %v85
    %2353 = vmatpush1.msra.mxu0 %v84
    %2354 = vmatprep.subr.mxu0 %v87
    %2355 = vmatpush1.msra.mxu0 %v86
    %2356 = vmatprep.subr.mxu0 %v89
    %2357 = vmatpush1.msra.mxu0 %v88
    %2358 = vmatprep.subr.mxu0 %v91
    %2359 = vmatpush1.msra.mxu0 %v90
    %2360 = vmatprep.subr.mxu0 %v93
    %2361 = vmatpush1.msra.mxu0 %v92
    %2362 = vmatprep.subr.mxu0 0.0
    %2363 = vmatpush1.msra.mxu0 0.0
    %2364 = vmatprep.subr.mxu0 0.0
    %2365 = vmatpush1.msra.mxu0 0.0
    %2366 = vmatprep.subr.mxu0 0.0
    %2367 = vmatpush1.msra.mxu0 0.0
    %2368 = vmatprep.subr.mxu0 0.0
    %2369 = vmatpush1.msra.mxu0 0.0
    %2370 = vmatprep.subr.mxu0 0.0
    %2371 = vmatpush1.msra.mxu0 0.0
    %2372 = vmatprep.subr.mxu0 0.0
    %2373 = vmatpush1.msra.mxu0 0.0
    %2374 = vmatprep.subr.mxu0 0.0
    %2375 = vmatpush1.msra.mxu0 0.0
    %2376 = vmatprep.subr.mxu0 0.0
    %2377 = vmatpush1.msra.mxu0 0.0
    %2378 = vmatprep.subr.mxu0 0.0
    %2379 = vmatpush1.msra.mxu0 0.0
    %2380 = vmatprep.subr.mxu0 0.0
    %2381 = vmatpush1.msra.mxu0 0.0
    %2382 = vmatprep.subr.mxu0 0.0
    %2383 = vmatpush1.msra.mxu0 0.0
    %2384 = vmatprep.subr.mxu0 0.0
    %2385 = vmatpush1.msra.mxu0 0.0
    %2386 = vmatprep.subr.mxu0 0.0
    %2387 = vmatpush1.msra.mxu0 0.0
    %2388 = vmatprep.subr.mxu0 0.0
    %2389 = vmatpush1.msra.mxu0 0.0
    %2390 = vmatprep.subr.mxu0 0.0
    %2391 = vmatpush1.msra.mxu0 0.0
    %2392 = vmatprep.subr.mxu0 0.0
    %2393 = vmatpush1.msra.mxu0 0.0
    %2394 = vmatprep.mubr.f32.mxu0 0.0
    %2395 = vmatmul.mubr.f32.gmra.mrb[0].mxu0 %v2329
    %v2396 = vpop.f32.mrb[0].mxu0
    %v2397 = vadd.f32 %v94, %v2396
    %v2398 = vpop.f32.mrb[0].mxu0
    %v2399 = vadd.f32 %v95, %v2398
    %2400 = vdwg.mxu0
    %v2401 = vmax.f32 %v2397, %v2399
    %2402 = vmax.xlane.f32.xlu0 %v2401
    %v2403 = vpop.xlane.xlu0 %2402
    %v2404 = vsub.f32 %v2397, %v2403
    %v2405 = vsub.f32 %v2399, %v2403
    %v2406 = vmul.f32 %v2404, 1.442695
    %v2407 = vpow.pop %v2406
    %v2408 = vmul.f32 %v2405, 1.442695
    %v2409 = vpow.pop %v2408
    %v2410 = vadd.f32 %v2407, %v2409
    %2411 = vadd.xlane.f32.xlu0 %v2410
    %v2412 = vpop.xlane.xlu0 %2411
    %v2413 = vlog2.pop %v2412
    %v2414 = vmul.f32 %v2413, 0.6931472
    %v2415 = vsub.f32 %v2404, %v2414
    %v2416 = vsub.f32 %v2405, %v2414
    %s2417 = scalar_lea.vmem [#allocation7], 32
    %2418 = vst [vmem:[%s2417] sm:$0xff] %v2415
    %2419 = vst [vmem:[%s2417 + $0x8] sm:$0xff] %v2416
    %s2420 = scalar_lea.vmem %s0, 96
    %v2421 = vld [vmem:[%s2420] sm:$0xff]
    %v2422 = vld [vmem:[%s2420 + $0x8] sm:$0xff]
    %v2423 = vld [vmem:[%s2420 + $0x10] sm:$0xff]
    %v2424 = vld [vmem:[%s2420 + $0x18] sm:$0xff]
    %v2425 = vld [vmem:[%s3] sm:$0xff]
    %v2426 = vld [vmem:[%s3 + $0x8] sm:$0xff]
    %v2427 = vld [vmem:[%s3 + $0x10] sm:$0xff]
    %v2428 = vld [vmem:[%s3 + $0x18] sm:$0xff]
    %v2429 = vld [vmem:[%s3 + $0x20] sm:$0xff]
    %v2430 = vld [vmem:[%s3 + $0x28] sm:$0xff]
    %v2431 = vld [vmem:[%s3 + $0x30] sm:$0xff]
    %v2432 = vld [vmem:[%s3 + $0x38] sm:$0xff]
    %v2433 = vld [vmem:[%s3 + $0x40] sm:$0xff]
    %v2434 = vld [vmem:[%s3 + $0x48] sm:$0xff]
    %v2435 = vld [vmem:[%s3 + $0x50] sm:$0xff]
    %v2436 = vld [vmem:[%s3 + $0x58] sm:$0xff]
    %v2437 = vld [vmem:[%s3 + $0x60] sm:$0xff]
    %v2438 = vld [vmem:[%s3 + $0x68] sm:$0xff]
    %v2439 = vld [vmem:[%s3 + $0x70] sm:$0xff]
    %v2440 = vld [vmem:[%s3 + $0x78] sm:$0xff]
    %v2441 = vld [vmem:[%s3 + $0x80] sm:$0xff]
    %v2442 = vld [vmem:[%s3 + $0x88] sm:$0xff]
    %v2443 = vld [vmem:[%s3 + $0x90] sm:$0xff]
    %v2444 = vld [vmem:[%s3 + $0x98] sm:$0xff]
    %v2445 = vld [vmem:[%s3 + $0xa0] sm:$0xff]
    %v2446 = vld [vmem:[%s3 + $0xa8] sm:$0xff]
    %v2447 = vld [vmem:[%s3 + $0xb0] sm:$0xff]
    %v2448 = vld [vmem:[%s3 + $0xb8] sm:$0xff]
    %v2449 = vld [vmem:[%s3 + $0xc0] sm:$0xff]
    %v2450 = vld [vmem:[%s3 + $0xc8] sm:$0xff]
    %v2451 = vld [vmem:[%s3 + $0xd0] sm:$0xff]
    %v2452 = vld [vmem:[%s3 + $0xd8] sm:$0xff]
    %v2453 = vld [vmem:[%s3 + $0xe0] sm:$0xff]
    %v2454 = vld [vmem:[%s3 + $0xe8] sm:$0xff]
    %v2455 = vld [vmem:[%s3 + $0xf0] sm:$0xff]
    %v2456 = vld [vmem:[%s3 + $0xf8] sm:$0xff]
    %v2457 = vld [vmem:[%s3 + $0x100] sm:$0xff]
    %v2458 = vld [vmem:[%s3 + $0x108] sm:$0xff]
    %v2459 = vld [vmem:[%s3 + $0x110] sm:$0xff]
    %v2460 = vld [vmem:[%s3 + $0x118] sm:$0xff]
    %v2461 = vld [vmem:[%s3 + $0x120] sm:$0xff]
    %v2462 = vld [vmem:[%s3 + $0x128] sm:$0xff]
    %v2463 = vld [vmem:[%s3 + $0x130] sm:$0xff]
    %v2464 = vld [vmem:[%s3 + $0x138] sm:$0xff]
    %v2465 = vld [vmem:[%s3 + $0x140] sm:$0xff]
    %v2466 = vld [vmem:[%s3 + $0x148] sm:$0xff]
    %v2467 = vld [vmem:[%s3 + $0x150] sm:$0xff]
    %v2468 = vld [vmem:[%s3 + $0x158] sm:$0xff]
    %v2469 = vld [vmem:[%s3 + $0x160] sm:$0xff]
    %v2470 = vld [vmem:[%s3 + $0x168] sm:$0xff]
    %v2471 = vld [vmem:[%s3 + $0x170] sm:$0xff]
    %v2472 = vld [vmem:[%s3 + $0x178] sm:$0xff]
    %v2473 = vld [vmem:[%s3 + $0x180] sm:$0xff]
    %v2474 = vld [vmem:[%s3 + $0x188] sm:$0xff]
    %v2475 = vld [vmem:[%s3 + $0x190] sm:$0xff]
    %v2476 = vld [vmem:[%s3 + $0x198] sm:$0xff]
    %v2477 = vld [vmem:[%s3 + $0x1a0] sm:$0xff]
    %v2478 = vld [vmem:[%s3 + $0x1a8] sm:$0xff]
    %v2479 = vld [vmem:[%s3 + $0x1b0] sm:$0xff]
    %v2480 = vld [vmem:[%s3 + $0x1b8] sm:$0xff]
    %v2481 = vld [vmem:[%s3 + $0x1c0] sm:$0xff]
    %v2482 = vld [vmem:[%s3 + $0x1c8] sm:$0xff]
    %v2483 = vld [vmem:[%s3 + $0x1d0] sm:$0xff]
    %v2484 = vld [vmem:[%s3 + $0x1d8] sm:$0xff]
    %v2485 = vld [vmem:[%s3 + $0x1e0] sm:$0xff]
    %v2486 = vld [vmem:[%s3 + $0x1e8] sm:$0xff]
    %v2487 = vld [vmem:[%s3 + $0x1f0] sm:$0xff]
    %v2488 = vld [vmem:[%s3 + $0x1f8] sm:$0xff]
    %2489 = vmatprep.subr.mxu0 %v2426
    %2490 = vmatpush1.msra.mxu0 %v2425
    %2491 = vmatprep.subr.mxu0 %v2430
    %2492 = vmatpush1.msra.mxu0 %v2429
    %2493 = vmatprep.subr.mxu0 %v2434
    %2494 = vmatpush1.msra.mxu0 %v2433
    %2495 = vmatprep.subr.mxu0 %v2438
    %2496 = vmatpush1.msra.mxu0 %v2437
    %2497 = vmatprep.subr.mxu0 %v2442
    %2498 = vmatpush1.msra.mxu0 %v2441
    %2499 = vmatprep.subr.mxu0 %v2446
    %2500 = vmatpush1.msra.mxu0 %v2445
    %2501 = vmatprep.subr.mxu0 %v2450
    %2502 = vmatpush1.msra.mxu0 %v2449
    %2503 = vmatprep.subr.mxu0 %v2454
    %2504 = vmatpush1.msra.mxu0 %v2453
    %2505 = vmatprep.subr.mxu0 %v2458
    %2506 = vmatpush1.msra.mxu0 %v2457
    %2507 = vmatprep.subr.mxu0 %v2462
    %2508 = vmatpush1.msra.mxu0 %v2461
    %2509 = vmatprep.subr.mxu0 %v2466
    %2510 = vmatpush1.msra.mxu0 %v2465
    %2511 = vmatprep.subr.mxu0 %v2470
    %2512 = vmatpush1.msra.mxu0 %v2469
    %2513 = vmatprep.subr.mxu0 %v2474
    %2514 = vmatpush1.msra.mxu0 %v2473
    %2515 = vmatprep.subr.mxu0 %v2478
    %2516 = vmatpush1.msra.mxu0 %v2477
    %2517 = vmatprep.subr.mxu0 %v2482
    %2518 = vmatpush1.msra.mxu0 %v2481
    %2519 = vmatprep.subr.mxu0 %v2486
    %2520 = vmatpush1.msra.mxu0 %v2485
    %2521 = vmatprep.subr.mxu0 0.0
    %2522 = vmatpush1.msra.mxu0 0.0
    %2523 = vmatprep.subr.mxu0 0.0
    %2524 = vmatpush1.msra.mxu0 0.0
    %2525 = vmatprep.subr.mxu0 0.0
    %2526 = vmatpush1.msra.mxu0 0.0
    %2527 = vmatprep.subr.mxu0 0.0
    %2528 = vmatpush1.msra.mxu0 0.0
    %2529 = vmatprep.subr.mxu0 0.0
    %2530 = vmatpush1.msra.mxu0 0.0
    %2531 = vmatprep.subr.mxu0 0.0
    %2532 = vmatpush1.msra.mxu0 0.0
    %2533 = vmatprep.subr.mxu0 0.0
    %2534 = vmatpush1.msra.mxu0 0.0
    %2535 = vmatprep.subr.mxu0 0.0
    %2536 = vmatpush1.msra.mxu0 0.0
    %2537 = vmatprep.subr.mxu0 0.0
    %2538 = vmatpush1.msra.mxu0 0.0
    %2539 = vmatprep.subr.mxu0 0.0
    %2540 = vmatpush1.msra.mxu0 0.0
    %2541 = vmatprep.subr.mxu0 0.0
    %2542 = vmatpush1.msra.mxu0 0.0
    %2543 = vmatprep.subr.mxu0 0.0
    %2544 = vmatpush1.msra.mxu0 0.0
    %2545 = vmatprep.subr.mxu0 0.0
    %2546 = vmatpush1.msra.mxu0 0.0
    %2547 = vmatprep.subr.mxu0 0.0
    %2548 = vmatpush1.msra.mxu0 0.0
    %2549 = vmatprep.subr.mxu0 0.0
    %2550 = vmatpush1.msra.mxu0 0.0
    %2551 = vmatprep.subr.mxu0 0.0
    %2552 = vmatpush1.msra.mxu0 0.0
    %2553 = vmatprep.mubr.f32.mxu0 0.0
    %2554 = vmatmul.mubr.f32.gmra.mrb[0].mxu0 %v1885
    %v2555 = vpop.f32.mrb[0].mxu0
    %v2556 = vadd.f32 0.0, %v2555
    %v2557 = vpop.f32.mrb[0].mxu0
    %v2558 = vadd.f32 0.0, %v2557
    %2559 = vdwg.mxu0
    %2560 = vmatprep.subr.mxu0 %v2428
    %2561 = vmatpush1.msra.mxu0 %v2427
    %2562 = vmatprep.subr.mxu0 %v2432
    %2563 = vmatpush1.msra.mxu0 %v2431
    %2564 = vmatprep.subr.mxu0 %v2436
    %2565 = vmatpush1.msra.mxu0 %v2435
    %2566 = vmatprep.subr.mxu0 %v2440
    %2567 = vmatpush1.msra.mxu0 %v2439
    %2568 = vmatprep.subr.mxu0 %v2444
    %2569 = vmatpush1.msra.mxu0 %v2443
    %2570 = vmatprep.subr.mxu0 %v2448
    %2571 = vmatpush1.msra.mxu0 %v2447
    %2572 = vmatprep.subr.mxu0 %v2452
    %2573 = vmatpush1.msra.mxu0 %v2451
    %2574 = vmatprep.subr.mxu0 %v2456
    %2575 = vmatpush1.msra.mxu0 %v2455
    %2576 = vmatprep.subr.mxu0 %v2460
    %2577 = vmatpush1.msra.mxu0 %v2459
    %2578 = vmatprep.subr.mxu0 %v2464
    %2579 = vmatpush1.msra.mxu0 %v2463
    %2580 = vmatprep.subr.mxu0 %v2468
    %2581 = vmatpush1.msra.mxu0 %v2467
    %2582 = vmatprep.subr.mxu0 %v2472
    %2583 = vmatpush1.msra.mxu0 %v2471
    %2584 = vmatprep.subr.mxu0 %v2476
    %2585 = vmatpush1.msra.mxu0 %v2475
    %2586 = vmatprep.subr.mxu0 %v2480
    %2587 = vmatpush1.msra.mxu0 %v2479
    %2588 = vmatprep.subr.mxu0 %v2484
    %2589 = vmatpush1.msra.mxu0 %v2483
    %2590 = vmatprep.subr.mxu0 %v2488
    %2591 = vmatpush1.msra.mxu0 %v2487
    %2592 = vmatprep.subr.mxu0 0.0
    %2593 = vmatpush1.msra.mxu0 0.0
    %2594 = vmatprep.subr.mxu0 0.0
    %2595 = vmatpush1.msra.mxu0 0.0
    %2596 = vmatprep.subr.mxu0 0.0
    %2597 = vmatpush1.msra.mxu0 0.0
    %2598 = vmatprep.subr.mxu0 0.0
    %2599 = vmatpush1.msra.mxu0 0.0
    %2600 = vmatprep.subr.mxu0 0.0
    %2601 = vmatpush1.msra.mxu0 0.0
    %2602 = vmatprep.subr.mxu0 0.0
    %2603 = vmatpush1.msra.mxu0 0.0
    %2604 = vmatprep.subr.mxu0 0.0
    %2605 = vmatpush1.msra.mxu0 0.0
    %2606 = vmatprep.subr.mxu0 0.0
    %2607 = vmatpush1.msra.mxu0 0.0
    %2608 = vmatprep.subr.mxu0 0.0
    %2609 = vmatpush1.msra.mxu0 0.0
    %2610 = vmatprep.subr.mxu0 0.0
    %2611 = vmatpush1.msra.mxu0 0.0
    %2612 = vmatprep.subr.mxu0 0.0
    %2613 = vmatpush1.msra.mxu0 0.0
    %2614 = vmatprep.subr.mxu0 0.0
    %2615 = vmatpush1.msra.mxu0 0.0
    %2616 = vmatprep.subr.mxu0 0.0
    %2617 = vmatpush1.msra.mxu0 0.0
    %2618 = vmatprep.subr.mxu0 0.0
    %2619 = vmatpush1.msra.mxu0 0.0
    %2620 = vmatprep.subr.mxu0 0.0
    %2621 = vmatpush1.msra.mxu0 0.0
    %2622 = vmatprep.subr.mxu0 0.0
    %2623 = vmatpush1.msra.mxu0 0.0
    %2624 = vmatprep.mubr.f32.mxu0 0.0
    %2625 = vmatmul.mubr.f32.gmra.mrb[0].mxu0 %v1885
    %v2626 = vpop.f32.mrb[0].mxu0
    %v2627 = vadd.f32 0.0, %v2626
    %v2628 = vpop.f32.mrb[0].mxu0
    %v2629 = vadd.f32 0.0, %v2628
    %2630 = vdwg.mxu0
    %v2631 = vadd.f32 %v2421, %v2556
    %v2632 = vadd.f32 %v2422, %v2558
    %v2633 = vadd.f32 %v2423, %v2627
    %v2634 = vadd.f32 %v2424, %v2629
    %v2635 = vxor.u32 %v2631, 2147483648
    %v2636 = vmul.f32 %v2635, 1.442695
    %v2637 = vpow.pop %v2636
    %v2638 = vadd.f32 %v2637, 1.0
    %v2639 = vrcp.pop %v2638
    %v2640 = vmul.f32 1.0, %v2639
    %v2641 = vxor.u32 %v2632, 2147483648
    %v2642 = vmul.f32 %v2641, 1.442695
    %v2643 = vpow.pop %v2642
    %v2644 = vadd.f32 %v2643, 1.0
    %v2645 = vrcp.pop %v2644
    %v2646 = vmul.f32 1.0, %v2645
    %v2647 = vtanh.pop %v2633
    %v2648 = vxor.u32 %v2634, 2147483648
    %v2649 = vmul.f32 %v2648, 1.442695
    %v2650 = vpow.pop %v2649
    %v2651 = vadd.f32 %v2650, 1.0
    %v2652 = vrcp.pop %v2651
    %v2653 = vmul.f32 1.0, %v2652
    %v2654 = vmul.f32 %v2646, %v1883
    %v2655 = vmul.f32 %v2640, %v2647
    %v2656 = vadd.f32 %v2654, %v2655
    %v2657 = vtanh.pop %v2656
    %v2658 = vmul.f32 %v2653, %v2657
    %v2659 = vld [vmem:[#allocation2] sm:$0xff]
    %v2660 = vld [vmem:[#allocation2 + $0x8] sm:$0xff]
    %v2661 = vld [vmem:[#allocation2 + $0x10] sm:$0xff]
    %v2662 = vld [vmem:[#allocation2 + $0x18] sm:$0xff]
    %v2663 = vld [vmem:[#allocation2 + $0x20] sm:$0xff]
    %v2664 = vld [vmem:[#allocation2 + $0x28] sm:$0xff]
    %v2665 = vld [vmem:[#allocation2 + $0x30] sm:$0xff]
    %v2666 = vld [vmem:[#allocation2 + $0x38] sm:$0xff]
    %v2667 = vld [vmem:[#allocation2 + $0x40] sm:$0xff]
    %v2668 = vld [vmem:[#allocation2 + $0x48] sm:$0xff]
    %v2669 = vld [vmem:[#allocation2 + $0x50] sm:$0xff]
    %v2670 = vld [vmem:[#allocation2 + $0x58] sm:$0xff]
    %v2671 = vld [vmem:[#allocation2 + $0x60] sm:$0xff]
    %v2672 = vld [vmem:[#allocation2 + $0x68] sm:$0xff]
    %v2673 = vld [vmem:[#allocation2 + $0x70] sm:$0xff]
    %v2674 = vld [vmem:[#allocation2 + $0x78] sm:$0xff]
    %v2675 = vld [vmem:[#allocation2 + $0x80] sm:$0xff]
    %v2676 = vld [vmem:[#allocation2 + $0x88] sm:$0xff]
    %v2677 = vld [vmem:[#allocation2 + $0x90] sm:$0xff]
    %v2678 = vld [vmem:[#allocation2 + $0x98] sm:$0xff]
    %v2679 = vld [vmem:[#allocation2 + $0xa0] sm:$0xff]
    %v2680 = vld [vmem:[#allocation2 + $0xa8] sm:$0xff]
    %v2681 = vld [vmem:[#allocation2 + $0xb0] sm:$0xff]
    %v2682 = vld [vmem:[#allocation2 + $0xb8] sm:$0xff]
    %v2683 = vld [vmem:[#allocation2 + $0xc0] sm:$0xff]
    %v2684 = vld [vmem:[#allocation2 + $0xc8] sm:$0xff]
    %v2685 = vld [vmem:[#allocation2 + $0xd0] sm:$0xff]
    %v2686 = vld [vmem:[#allocation2 + $0xd8] sm:$0xff]
    %v2687 = vld [vmem:[#allocation2 + $0xe0] sm:$0xff]
    %v2688 = vld [vmem:[#allocation2 + $0xe8] sm:$0xff]
    %v2689 = vld [vmem:[#allocation2 + $0xf0] sm:$0xff]
    %v2690 = vld [vmem:[#allocation2 + $0xf8] sm:$0xff]
    %v2691 = vld [vmem:[#allocation2 + $0x100] sm:$0xff]
    %v2692 = vld [vmem:[#allocation2 + $0x108] sm:$0xff]
    %v2693 = vld [vmem:[#allocation2 + $0x110] sm:$0xff]
    %v2694 = vld [vmem:[#allocation2 + $0x118] sm:$0xff]
    %v2695 = vld [vmem:[#allocation2 + $0x120] sm:$0xff]
    %v2696 = vld [vmem:[#allocation2 + $0x128] sm:$0xff]
    %v2697 = vld [vmem:[#allocation2 + $0x130] sm:$0xff]
    %v2698 = vld [vmem:[#allocation2 + $0x138] sm:$0xff]
    %v2699 = vld [vmem:[#allocation2 + $0x140] sm:$0xff]
    %v2700 = vld [vmem:[#allocation2 + $0x148] sm:$0xff]
    %v2701 = vld [vmem:[#allocation2 + $0x150] sm:$0xff]
    %v2702 = vld [vmem:[#allocation2 + $0x158] sm:$0xff]
    %v2703 = vld [vmem:[#allocation2 + $0x160] sm:$0xff]
    %v2704 = vld [vmem:[#allocation2 + $0x168] sm:$0xff]
    %v2705 = vld [vmem:[#allocation2 + $0x170] sm:$0xff]
    %v2706 = vld [vmem:[#allocation2 + $0x178] sm:$0xff]
    %v2707 = vld [vmem:[#allocation2 + $0x180] sm:$0xff]
    %v2708 = vld [vmem:[#allocation2 + $0x188] sm:$0xff]
    %v2709 = vld [vmem:[#allocation2 + $0x190] sm:$0xff]
    %v2710 = vld [vmem:[#allocation2 + $0x198] sm:$0xff]
    %v2711 = vld [vmem:[#allocation2 + $0x1a0] sm:$0xff]
    %v2712 = vld [vmem:[#allocation2 + $0x1a8] sm:$0xff]
    %v2713 = vld [vmem:[#allocation2 + $0x1b0] sm:$0xff]
    %v2714 = vld [vmem:[#allocation2 + $0x1b8] sm:$0xff]
    %v2715 = vld [vmem:[#allocation2 + $0x1c0] sm:$0xff]
    %v2716 = vld [vmem:[#allocation2 + $0x1c8] sm:$0xff]
    %v2717 = vld [vmem:[#allocation2 + $0x1d0] sm:$0xff]
    %v2718 = vld [vmem:[#allocation2 + $0x1d8] sm:$0xff]
    %v2719 = vld [vmem:[#allocation2 + $0x1e0] sm:$0xff]
    %v2720 = vld [vmem:[#allocation2 + $0x1e8] sm:$0xff]
    %v2721 = vld [vmem:[#allocation2 + $0x1f0] sm:$0xff]
    %v2722 = vld [vmem:[#allocation2 + $0x1f8] sm:$0xff]
    %v2723 = vld [vmem:[%s404] sm:$0xff]
    %v2724 = vld [vmem:[%s404 + $0x8] sm:$0xff]
    %v2725 = vld [vmem:[%s404 + $0x10] sm:$0xff]
    %v2726 = vld [vmem:[%s404 + $0x18] sm:$0xff]
    %v2727 = vld [vmem:[%s404 + $0x20] sm:$0xff]
    %v2728 = vld [vmem:[%s404 + $0x28] sm:$0xff]
    %v2729 = vld [vmem:[%s404 + $0x30] sm:$0xff]
    %v2730 = vld [vmem:[%s404 + $0x38] sm:$0xff]
    %v2731 = vld [vmem:[%s404 + $0x40] sm:$0xff]
    %v2732 = vld [vmem:[%s404 + $0x48] sm:$0xff]
    %v2733 = vld [vmem:[%s404 + $0x50] sm:$0xff]
    %v2734 = vld [vmem:[%s404 + $0x58] sm:$0xff]
    %v2735 = vld [vmem:[%s404 + $0x60] sm:$0xff]
    %v2736 = vld [vmem:[%s404 + $0x68] sm:$0xff]
    %v2737 = vld [vmem:[%s404 + $0x70] sm:$0xff]
    %v2738 = vld [vmem:[%s404 + $0x78] sm:$0xff]
    %v2739 = vld [vmem:[%s404 + $0x80] sm:$0xff]
    %v2740 = vld [vmem:[%s404 + $0x88] sm:$0xff]
    %v2741 = vld [vmem:[%s404 + $0x90] sm:$0xff]
    %v2742 = vld [vmem:[%s404 + $0x98] sm:$0xff]
    %v2743 = vld [vmem:[%s404 + $0xa0] sm:$0xff]
    %v2744 = vld [vmem:[%s404 + $0xa8] sm:$0xff]
    %v2745 = vld [vmem:[%s404 + $0xb0] sm:$0xff]
    %v2746 = vld [vmem:[%s404 + $0xb8] sm:$0xff]
    %v2747 = vld [vmem:[%s404 + $0xc0] sm:$0xff]
    %v2748 = vld [vmem:[%s404 + $0xc8] sm:$0xff]
    %v2749 = vld [vmem:[%s404 + $0xd0] sm:$0xff]
    %v2750 = vld [vmem:[%s404 + $0xd8] sm:$0xff]
    %v2751 = vld [vmem:[%s404 + $0xe0] sm:$0xff]
    %v2752 = vld [vmem:[%s404 + $0xe8] sm:$0xff]
    %v2753 = vld [vmem:[%s404 + $0xf0] sm:$0xff]
    %v2754 = vld [vmem:[%s404 + $0xf8] sm:$0xff]
    %v2755 = vld [vmem:[%s404 + $0x100] sm:$0xff]
    %v2756 = vld [vmem:[%s404 + $0x108] sm:$0xff]
    %v2757 = vld [vmem:[%s404 + $0x110] sm:$0xff]
    %v2758 = vld [vmem:[%s404 + $0x118] sm:$0xff]
    %v2759 = vld [vmem:[%s404 + $0x120] sm:$0xff]
    %v2760 = vld [vmem:[%s404 + $0x128] sm:$0xff]
    %v2761 = vld [vmem:[%s404 + $0x130] sm:$0xff]
    %v2762 = vld [vmem:[%s404 + $0x138] sm:$0xff]
    %v2763 = vld [vmem:[%s404 + $0x140] sm:$0xff]
    %v2764 = vld [vmem:[%s404 + $0x148] sm:$0xff]
    %v2765 = vld [vmem:[%s404 + $0x150] sm:$0xff]
    %v2766 = vld [vmem:[%s404 + $0x158] sm:$0xff]
    %v2767 = vld [vmem:[%s404 + $0x160] sm:$0xff]
    %v2768 = vld [vmem:[%s404 + $0x168] sm:$0xff]
    %v2769 = vld [vmem:[%s404 + $0x170] sm:$0xff]
    %v2770 = vld [vmem:[%s404 + $0x178] sm:$0xff]
    %v2771 = vld [vmem:[%s404 + $0x180] sm:$0xff]
    %v2772 = vld [vmem:[%s404 + $0x188] sm:$0xff]
    %v2773 = vld [vmem:[%s404 + $0x190] sm:$0xff]
    %v2774 = vld [vmem:[%s404 + $0x198] sm:$0xff]
    %v2775 = vld [vmem:[%s404 + $0x1a0] sm:$0xff]
    %v2776 = vld [vmem:[%s404 + $0x1a8] sm:$0xff]
    %v2777 = vld [vmem:[%s404 + $0x1b0] sm:$0xff]
    %v2778 = vld [vmem:[%s404 + $0x1b8] sm:$0xff]
    %v2779 = vld [vmem:[%s404 + $0x1c0] sm:$0xff]
    %v2780 = vld [vmem:[%s404 + $0x1c8] sm:$0xff]
    %v2781 = vld [vmem:[%s404 + $0x1d0] sm:$0xff]
    %v2782 = vld [vmem:[%s404 + $0x1d8] sm:$0xff]
    %v2783 = vld [vmem:[%s404 + $0x1e0] sm:$0xff]
    %v2784 = vld [vmem:[%s404 + $0x1e8] sm:$0xff]
    %v2785 = vld [vmem:[%s404 + $0x1f0] sm:$0xff]
    %v2786 = vld [vmem:[%s404 + $0x1f8] sm:$0xff]
    %2787 = vmatprep.subr.mxu0 %v2724
    %2788 = vmatpush1.msra.mxu0 %v2723
    %2789 = vmatprep.subr.mxu0 %v2728
    %2790 = vmatpush1.msra.mxu0 %v2727
    %2791 = vmatprep.subr.mxu0 %v2732
    %2792 = vmatpush1.msra.mxu0 %v2731
    %2793 = vmatprep.subr.mxu0 %v2736
    %2794 = vmatpush1.msra.mxu0 %v2735
    %2795 = vmatprep.subr.mxu0 %v2740
    %2796 = vmatpush1.msra.mxu0 %v2739
    %2797 = vmatprep.subr.mxu0 %v2744
    %2798 = vmatpush1.msra.mxu0 %v2743
    %2799 = vmatprep.subr.mxu0 %v2748
    %2800 = vmatpush1.msra.mxu0 %v2747
    %2801 = vmatprep.subr.mxu0 %v2752
    %2802 = vmatpush1.msra.mxu0 %v2751
    %2803 = vmatprep.subr.mxu0 %v2756
    %2804 = vmatpush1.msra.mxu0 %v2755
    %2805 = vmatprep.subr.mxu0 %v2760
    %2806 = vmatpush1.msra.mxu0 %v2759
    %2807 = vmatprep.subr.mxu0 %v2764
    %2808 = vmatpush1.msra.mxu0 %v2763
    %2809 = vmatprep.subr.mxu0 %v2768
    %2810 = vmatpush1.msra.mxu0 %v2767
    %2811 = vmatprep.subr.mxu0 %v2772
    %2812 = vmatpush1.msra.mxu0 %v2771
    %2813 = vmatprep.subr.mxu0 %v2776
    %2814 = vmatpush1.msra.mxu0 %v2775
    %2815 = vmatprep.subr.mxu0 %v2780
    %2816 = vmatpush1.msra.mxu0 %v2779
    %2817 = vmatprep.subr.mxu0 %v2784
    %2818 = vmatpush1.msra.mxu0 %v2783
    %2819 = vmatprep.subr.mxu0 0.0
    %2820 = vmatpush1.msra.mxu0 0.0
    %2821 = vmatprep.subr.mxu0 0.0
    %2822 = vmatpush1.msra.mxu0 0.0
    %2823 = vmatprep.subr.mxu0 0.0
    %2824 = vmatpush1.msra.mxu0 0.0
    %2825 = vmatprep.subr.mxu0 0.0
    %2826 = vmatpush1.msra.mxu0 0.0
    %2827 = vmatprep.subr.mxu0 0.0
    %2828 = vmatpush1.msra.mxu0 0.0
    %2829 = vmatprep.subr.mxu0 0.0
    %2830 = vmatpush1.msra.mxu0 0.0
    %2831 = vmatprep.subr.mxu0 0.0
    %2832 = vmatpush1.msra.mxu0 0.0
    %2833 = vmatprep.subr.mxu0 0.0
    %2834 = vmatpush1.msra.mxu0 0.0
    %2835 = vmatprep.subr.mxu0 0.0
    %2836 = vmatpush1.msra.mxu0 0.0
    %2837 = vmatprep.subr.mxu0 0.0
    %2838 = vmatpush1.msra.mxu0 0.0
    %2839 = vmatprep.subr.mxu0 0.0
    %2840 = vmatpush1.msra.mxu0 0.0
    %2841 = vmatprep.subr.mxu0 0.0
    %2842 = vmatpush1.msra.mxu0 0.0
    %2843 = vmatprep.subr.mxu0 0.0
    %2844 = vmatpush1.msra.mxu0 0.0
    %2845 = vmatprep.subr.mxu0 0.0
    %2846 = vmatpush1.msra.mxu0 0.0
    %2847 = vmatprep.subr.mxu0 0.0
    %2848 = vmatpush1.msra.mxu0 0.0
    %2849 = vmatprep.subr.mxu0 0.0
    %2850 = vmatpush1.msra.mxu0 0.0
    %2851 = vmatprep.mubr.f32.mxu0 0.0
    %2852 = vmatmul.mubr.f32.gmra.mrb[0].mxu0 %v2329
    %v2853 = vpop.f32.mrb[0].mxu0
    %v2854 = vadd.f32 0.0, %v2853
    %v2855 = vpop.f32.mrb[0].mxu0
    %v2856 = vadd.f32 0.0, %v2855
    %2857 = vdwg.mxu0
    %2858 = vmatprep.subr.mxu0 %v2726
    %2859 = vmatpush1.msra.mxu0 %v2725
    %2860 = vmatprep.subr.mxu0 %v2730
    %2861 = vmatpush1.msra.mxu0 %v2729
    %2862 = vmatprep.subr.mxu0 %v2734
    %2863 = vmatpush1.msra.mxu0 %v2733
    %2864 = vmatprep.subr.mxu0 %v2738
    %2865 = vmatpush1.msra.mxu0 %v2737
    %2866 = vmatprep.subr.mxu0 %v2742
    %2867 = vmatpush1.msra.mxu0 %v2741
    %2868 = vmatprep.subr.mxu0 %v2746
    %2869 = vmatpush1.msra.mxu0 %v2745
    %2870 = vmatprep.subr.mxu0 %v2750
    %2871 = vmatpush1.msra.mxu0 %v2749
    %2872 = vmatprep.subr.mxu0 %v2754
    %2873 = vmatpush1.msra.mxu0 %v2753
    %2874 = vmatprep.subr.mxu0 %v2758
    %2875 = vmatpush1.msra.mxu0 %v2757
    %2876 = vmatprep.subr.mxu0 %v2762
    %2877 = vmatpush1.msra.mxu0 %v2761
    %2878 = vmatprep.subr.mxu0 %v2766
    %2879 = vmatpush1.msra.mxu0 %v2765
    %2880 = vmatprep.subr.mxu0 %v2770
    %2881 = vmatpush1.msra.mxu0 %v2769
    %2882 = vmatprep.subr.mxu0 %v2774
    %2883 = vmatpush1.msra.mxu0 %v2773
    %2884 = vmatprep.subr.mxu0 %v2778
    %2885 = vmatpush1.msra.mxu0 %v2777
    %2886 = vmatprep.subr.mxu0 %v2782
    %2887 = vmatpush1.msra.mxu0 %v2781
    %2888 = vmatprep.subr.mxu0 %v2786
    %2889 = vmatpush1.msra.mxu0 %v2785
    %2890 = vmatprep.subr.mxu0 0.0
    %2891 = vmatpush1.msra.mxu0 0.0
    %2892 = vmatprep.subr.mxu0 0.0
    %2893 = vmatpush1.msra.mxu0 0.0
    %2894 = vmatprep.subr.mxu0 0.0
    %2895 = vmatpush1.msra.mxu0 0.0
    %2896 = vmatprep.subr.mxu0 0.0
    %2897 = vmatpush1.msra.mxu0 0.0
    %2898 = vmatprep.subr.mxu0 0.0
    %2899 = vmatpush1.msra.mxu0 0.0
    %2900 = vmatprep.subr.mxu0 0.0
    %2901 = vmatpush1.msra.mxu0 0.0
    %2902 = vmatprep.subr.mxu0 0.0
    %2903 = vmatpush1.msra.mxu0 0.0
    %2904 = vmatprep.subr.mxu0 0.0
    %2905 = vmatpush1.msra.mxu0 0.0
    %2906 = vmatprep.subr.mxu0 0.0
    %2907 = vmatpush1.msra.mxu0 0.0
    %2908 = vmatprep.subr.mxu0 0.0
    %2909 = vmatpush1.msra.mxu0 0.0
    %2910 = vmatprep.subr.mxu0 0.0
    %2911 = vmatpush1.msra.mxu0 0.0
    %2912 = vmatprep.subr.mxu0 0.0
    %2913 = vmatpush1.msra.mxu0 0.0
    %2914 = vmatprep.subr.mxu0 0.0
    %2915 = vmatpush1.msra.mxu0 0.0
    %2916 = vmatprep.subr.mxu0 0.0
    %2917 = vmatpush1.msra.mxu0 0.0
    %2918 = vmatprep.subr.mxu0 0.0
    %2919 = vmatpush1.msra.mxu0 0.0
    %2920 = vmatprep.subr.mxu0 0.0
    %2921 = vmatpush1.msra.mxu0 0.0
    %2922 = vmatprep.mubr.f32.mxu0 0.0
    %2923 = vmatmul.mubr.f32.gmra.mrb[0].mxu0 %v2329
    %v2924 = vpop.f32.mrb[0].mxu0
    %v2925 = vadd.f32 0.0, %v2924
    %v2926 = vpop.f32.mrb[0].mxu0
    %v2927 = vadd.f32 0.0, %v2926
    %2928 = vdwg.mxu0
    %2929 = vmatprep.subr.mxu0 %v2660
    %2930 = vmatpush1.msra.mxu0 %v2659
    %2931 = vmatprep.subr.mxu0 %v2664
    %2932 = vmatpush1.msra.mxu0 %v2663
    %2933 = vmatprep.subr.mxu0 %v2668
    %2934 = vmatpush1.msra.mxu0 %v2667
    %2935 = vmatprep.subr.mxu0 %v2672
    %2936 = vmatpush1.msra.mxu0 %v2671
    %2937 = vmatprep.subr.mxu0 %v2676
    %2938 = vmatpush1.msra.mxu0 %v2675
    %2939 = vmatprep.subr.mxu0 %v2680
    %2940 = vmatpush1.msra.mxu0 %v2679
    %2941 = vmatprep.subr.mxu0 %v2684
    %2942 = vmatpush1.msra.mxu0 %v2683
    %2943 = vmatprep.subr.mxu0 %v2688
    %2944 = vmatpush1.msra.mxu0 %v2687
    %2945 = vmatprep.subr.mxu0 %v2692
    %2946 = vmatpush1.msra.mxu0 %v2691
    %2947 = vmatprep.subr.mxu0 %v2696
    %2948 = vmatpush1.msra.mxu0 %v2695
    %2949 = vmatprep.subr.mxu0 %v2700
    %2950 = vmatpush1.msra.mxu0 %v2699
    %2951 = vmatprep.subr.mxu0 %v2704
    %2952 = vmatpush1.msra.mxu0 %v2703
    %2953 = vmatprep.subr.mxu0 %v2708
    %2954 = vmatpush1.msra.mxu0 %v2707
    %2955 = vmatprep.subr.mxu0 %v2712
    %2956 = vmatpush1.msra.mxu0 %v2711
    %2957 = vmatprep.subr.mxu0 %v2716
    %2958 = vmatpush1.msra.mxu0 %v2715
    %2959 = vmatprep.subr.mxu0 %v2720
    %2960 = vmatpush1.msra.mxu0 %v2719
    %2961 = vmatprep.subr.mxu0 0.0
    %2962 = vmatpush1.msra.mxu0 0.0
    %2963 = vmatprep.subr.mxu0 0.0
    %2964 = vmatpush1.msra.mxu0 0.0
    %2965 = vmatprep.subr.mxu0 0.0
    %2966 = vmatpush1.msra.mxu0 0.0
    %2967 = vmatprep.subr.mxu0 0.0
    %2968 = vmatpush1.msra.mxu0 0.0
    %2969 = vmatprep.subr.mxu0 0.0
    %2970 = vmatpush1.msra.mxu0 0.0
    %2971 = vmatprep.subr.mxu0 0.0
    %2972 = vmatpush1.msra.mxu0 0.0
    %2973 = vmatprep.subr.mxu0 0.0
    %2974 = vmatpush1.msra.mxu0 0.0
    %2975 = vmatprep.subr.mxu0 0.0
    %2976 = vmatpush1.msra.mxu0 0.0
    %2977 = vmatprep.subr.mxu0 0.0
    %2978 = vmatpush1.msra.mxu0 0.0
    %2979 = vmatprep.subr.mxu0 0.0
    %2980 = vmatpush1.msra.mxu0 0.0
    %2981 = vmatprep.subr.mxu0 0.0
    %2982 = vmatpush1.msra.mxu0 0.0
    %2983 = vmatprep.subr.mxu0 0.0
    %2984 = vmatpush1.msra.mxu0 0.0
    %2985 = vmatprep.subr.mxu0 0.0
    %2986 = vmatpush1.msra.mxu0 0.0
    %2987 = vmatprep.subr.mxu0 0.0
    %2988 = vmatpush1.msra.mxu0 0.0
    %2989 = vmatprep.subr.mxu0 0.0
    %2990 = vmatpush1.msra.mxu0 0.0
    %2991 = vmatprep.subr.mxu0 0.0
    %2992 = vmatpush1.msra.mxu0 0.0
    %2993 = vmatprep.mubr.f32.mxu0 0.0
    %2994 = vmatmul.mubr.f32.gmra.mrb[0].mxu0 %v2658
    %v2995 = vpop.f32.mrb[0].mxu0
    %v2996 = vadd.f32 %v2854, %v2995
    %v2997 = vpop.f32.mrb[0].mxu0
    %v2998 = vadd.f32 %v2856, %v2997
    %2999 = vdwg.mxu0
    %3000 = vmatprep.subr.mxu0 %v2662
    %3001 = vmatpush1.msra.mxu0 %v2661
    %3002 = vmatprep.subr.mxu0 %v2666
    %3003 = vmatpush1.msra.mxu0 %v2665
    %3004 = vmatprep.subr.mxu0 %v2670
    %3005 = vmatpush1.msra.mxu0 %v2669
    %3006 = vmatprep.subr.mxu0 %v2674
    %3007 = vmatpush1.msra.mxu0 %v2673
    %3008 = vmatprep.subr.mxu0 %v2678
    %3009 = vmatpush1.msra.mxu0 %v2677
    %3010 = vmatprep.subr.mxu0 %v2682
    %3011 = vmatpush1.msra.mxu0 %v2681
    %3012 = vmatprep.subr.mxu0 %v2686
    %3013 = vmatpush1.msra.mxu0 %v2685
    %3014 = vmatprep.subr.mxu0 %v2690
    %3015 = vmatpush1.msra.mxu0 %v2689
    %3016 = vmatprep.subr.mxu0 %v2694
    %3017 = vmatpush1.msra.mxu0 %v2693
    %3018 = vmatprep.subr.mxu0 %v2698
    %3019 = vmatpush1.msra.mxu0 %v2697
    %3020 = vmatprep.subr.mxu0 %v2702
    %3021 = vmatpush1.msra.mxu0 %v2701
    %3022 = vmatprep.subr.mxu0 %v2706
    %3023 = vmatpush1.msra.mxu0 %v2705
    %3024 = vmatprep.subr.mxu0 %v2710
    %3025 = vmatpush1.msra.mxu0 %v2709
    %3026 = vmatprep.subr.mxu0 %v2714
    %3027 = vmatpush1.msra.mxu0 %v2713
    %3028 = vmatprep.subr.mxu0 %v2718
    %3029 = vmatpush1.msra.mxu0 %v2717
    %3030 = vmatprep.subr.mxu0 %v2722
    %3031 = vmatpush1.msra.mxu0 %v2721
    %3032 = vmatprep.subr.mxu0 0.0
    %3033 = vmatpush1.msra.mxu0 0.0
    %3034 = vmatprep.subr.mxu0 0.0
    %3035 = vmatpush1.msra.mxu0 0.0
    %3036 = vmatprep.subr.mxu0 0.0
    %3037 = vmatpush1.msra.mxu0 0.0
    %3038 = vmatprep.subr.mxu0 0.0
    %3039 = vmatpush1.msra.mxu0 0.0
    %3040 = vmatprep.subr.mxu0 0.0
    %3041 = vmatpush1.msra.mxu0 0.0
    %3042 = vmatprep.subr.mxu0 0.0
    %3043 = vmatpush1.msra.mxu0 0.0
    %3044 = vmatprep.subr.mxu0 0.0
    %3045 = vmatpush1.msra.mxu0 0.0
    %3046 = vmatprep.subr.mxu0 0.0
    %3047 = vmatpush1.msra.mxu0 0.0
    %3048 = vmatprep.subr.mxu0 0.0
    %3049 = vmatpush1.msra.mxu0 0.0
    %3050 = vmatprep.subr.mxu0 0.0
    %3051 = vmatpush1.msra.mxu0 0.0
    %3052 = vmatprep.subr.mxu0 0.0
    %3053 = vmatpush1.msra.mxu0 0.0
    %3054 = vmatprep.subr.mxu0 0.0
    %3055 = vmatpush1.msra.mxu0 0.0
    %3056 = vmatprep.subr.mxu0 0.0
    %3057 = vmatpush1.msra.mxu0 0.0
    %3058 = vmatprep.subr.mxu0 0.0
    %3059 = vmatpush1.msra.mxu0 0.0
    %3060 = vmatprep.subr.mxu0 0.0
    %3061 = vmatpush1.msra.mxu0 0.0
    %3062 = vmatprep.subr.mxu0 0.0
    %3063 = vmatpush1.msra.mxu0 0.0
    %3064 = vmatprep.mubr.f32.mxu0 0.0
    %3065 = vmatmul.mubr.f32.gmra.mrb[0].mxu0 %v2658
    %v3066 = vpop.f32.mrb[0].mxu0
    %v3067 = vadd.f32 %v2925, %v3066
    %v3068 = vpop.f32.mrb[0].mxu0
    %v3069 = vadd.f32 %v2927, %v3068
    %3070 = vdwg.mxu0
    %v3071 = vld [vmem:[%s5] sm:$0xff]
    %v3072 = vld [vmem:[%s5 + $0x8] sm:$0xff]
    %v3073 = vld [vmem:[%s5 + $0x10] sm:$0xff]
    %v3074 = vld [vmem:[%s5 + $0x18] sm:$0xff]
    %v3075 = vadd.f32 %v2996, %v3071
    %v3076 = vadd.f32 %v2998, %v3072
    %v3077 = vadd.f32 %v3067, %v3073
    %v3078 = vadd.f32 %v3069, %v3074
    %v3079 = vxor.u32 %v3075, 2147483648
    %v3080 = vmul.f32 %v3079, 1.442695
    %v3081 = vpow.pop %v3080
    %v3082 = vadd.f32 %v3081, 1.0
    %v3083 = vrcp.pop %v3082
    %v3084 = vmul.f32 1.0, %v3083
    %v3085 = vxor.u32 %v3076, 2147483648
    %v3086 = vmul.f32 %v3085, 1.442695
    %v3087 = vpow.pop %v3086
    %v3088 = vadd.f32 %v3087, 1.0
    %v3089 = vrcp.pop %v3088
    %v3090 = vmul.f32 1.0, %v3089
    %v3091 = vtanh.pop %v3077
    %v3092 = vxor.u32 %v3078, 2147483648
    %v3093 = vmul.f32 %v3092, 1.442695
    %v3094 = vpow.pop %v3093
    %v3095 = vadd.f32 %v3094, 1.0
    %v3096 = vrcp.pop %v3095
    %v3097 = vmul.f32 1.0, %v3096
    %v3098 = vmul.f32 %v3090, %v2327
    %v3099 = vmul.f32 %v3084, %v3091
    %v3100 = vadd.f32 %v3098, %v3099
    %v3101 = vtanh.pop %v3100
    %v3102 = vmul.f32 %v3097, %v3101
    %3103 = vmatprep.subr.mxu0 %v63
    %3104 = vmatpush1.msra.mxu0 %v62
    %3105 = vmatprep.subr.mxu0 %v65
    %3106 = vmatpush1.msra.mxu0 %v64
    %3107 = vmatprep.subr.mxu0 %v67
    %3108 = vmatpush1.msra.mxu0 %v66
    %3109 = vmatprep.subr.mxu0 %v69
    %3110 = vmatpush1.msra.mxu0 %v68
    %3111 = vmatprep.subr.mxu0 %v71
    %3112 = vmatpush1.msra.mxu0 %v70
    %3113 = vmatprep.subr.mxu0 %v73
    %3114 = vmatpush1.msra.mxu0 %v72
    %3115 = vmatprep.subr.mxu0 %v75
    %3116 = vmatpush1.msra.mxu0 %v74
    %3117 = vmatprep.subr.mxu0 %v77
    %3118 = vmatpush1.msra.mxu0 %v76
    %3119 = vmatprep.subr.mxu0 %v79
    %3120 = vmatpush1.msra.mxu0 %v78
    %3121 = vmatprep.subr.mxu0 %v81
    %3122 = vmatpush1.msra.mxu0 %v80
    %3123 = vmatprep.subr.mxu0 %v83
    %3124 = vmatpush1.msra.mxu0 %v82
    %3125 = vmatprep.subr.mxu0 %v85
    %3126 = vmatpush1.msra.mxu0 %v84
    %3127 = vmatprep.subr.mxu0 %v87
    %3128 = vmatpush1.msra.mxu0 %v86
    %3129 = vmatprep.subr.mxu0 %v89
    %3130 = vmatpush1.msra.mxu0 %v88
    %3131 = vmatprep.subr.mxu0 %v91
    %3132 = vmatpush1.msra.mxu0 %v90
    %3133 = vmatprep.subr.mxu0 %v93
    %3134 = vmatpush1.msra.mxu0 %v92
    %3135 = vmatprep.subr.mxu0 0.0
    %3136 = vmatpush1.msra.mxu0 0.0
    %3137 = vmatprep.subr.mxu0 0.0
    %3138 = vmatpush1.msra.mxu0 0.0
    %3139 = vmatprep.subr.mxu0 0.0
    %3140 = vmatpush1.msra.mxu0 0.0
    %3141 = vmatprep.subr.mxu0 0.0
    %3142 = vmatpush1.msra.mxu0 0.0
    %3143 = vmatprep.subr.mxu0 0.0
    %3144 = vmatpush1.msra.mxu0 0.0
    %3145 = vmatprep.subr.mxu0 0.0
    %3146 = vmatpush1.msra.mxu0 0.0
    %3147 = vmatprep.subr.mxu0 0.0
    %3148 = vmatpush1.msra.mxu0 0.0
    %3149 = vmatprep.subr.mxu0 0.0
    %3150 = vmatpush1.msra.mxu0 0.0
    %3151 = vmatprep.subr.mxu0 0.0
    %3152 = vmatpush1.msra.mxu0 0.0
    %3153 = vmatprep.subr.mxu0 0.0
    %3154 = vmatpush1.msra.mxu0 0.0
    %3155 = vmatprep.subr.mxu0 0.0
    %3156 = vmatpush1.msra.mxu0 0.0
    %3157 = vmatprep.subr.mxu0 0.0
    %3158 = vmatpush1.msra.mxu0 0.0
    %3159 = vmatprep.subr.mxu0 0.0
    %3160 = vmatpush1.msra.mxu0 0.0
    %3161 = vmatprep.subr.mxu0 0.0
    %3162 = vmatpush1.msra.mxu0 0.0
    %3163 = vmatprep.subr.mxu0 0.0
    %3164 = vmatpush1.msra.mxu0 0.0
    %3165 = vmatprep.subr.mxu0 0.0
    %3166 = vmatpush1.msra.mxu0 0.0
    %3167 = vmatprep.mubr.f32.mxu0 0.0
    %3168 = vmatmul.mubr.f32.gmra.mrb[0].mxu0 %v3102
    %v3169 = vpop.f32.mrb[0].mxu0
    %v3170 = vadd.f32 %v94, %v3169
    %v3171 = vpop.f32.mrb[0].mxu0
    %v3172 = vadd.f32 %v95, %v3171
    %3173 = vdwg.mxu0
    %v3174 = vmax.f32 %v3170, %v3172
    %3175 = vmax.xlane.f32.xlu0 %v3174
    %v3176 = vpop.xlane.xlu0 %3175
    %v3177 = vsub.f32 %v3170, %v3176
    %v3178 = vsub.f32 %v3172, %v3176
    %v3179 = vmul.f32 %v3177, 1.442695
    %v3180 = vpow.pop %v3179
    %v3181 = vmul.f32 %v3178, 1.442695
    %v3182 = vpow.pop %v3181
    %v3183 = vadd.f32 %v3180, %v3182
    %3184 = vadd.xlane.f32.xlu0 %v3183
    %v3185 = vpop.xlane.xlu0 %3184
    %v3186 = vlog2.pop %v3185
    %v3187 = vmul.f32 %v3186, 0.6931472
    %v3188 = vsub.f32 %v3177, %v3187
    %v3189 = vsub.f32 %v3178, %v3187
    %s3190 = scalar_lea.vmem [#allocation7], 48
    %3191 = vst [vmem:[%s3190] sm:$0xff] %v3188
    %3192 = vst [vmem:[%s3190 + $0x8] sm:$0xff] %v3189
    %s3193 = scalar_lea.vmem %s0, 128
    %v3194 = vld [vmem:[%s3193] sm:$0xff]
    %v3195 = vld [vmem:[%s3193 + $0x8] sm:$0xff]
    %v3196 = vld [vmem:[%s3193 + $0x10] sm:$0xff]
    %v3197 = vld [vmem:[%s3193 + $0x18] sm:$0xff]
    %v3198 = vld [vmem:[%s3] sm:$0xff]
    %v3199 = vld [vmem:[%s3 + $0x8] sm:$0xff]
    %v3200 = vld [vmem:[%s3 + $0x10] sm:$0xff]
    %v3201 = vld [vmem:[%s3 + $0x18] sm:$0xff]
    %v3202 = vld [vmem:[%s3 + $0x20] sm:$0xff]
    %v3203 = vld [vmem:[%s3 + $0x28] sm:$0xff]
    %v3204 = vld [vmem:[%s3 + $0x30] sm:$0xff]
    %v3205 = vld [vmem:[%s3 + $0x38] sm:$0xff]
    %v3206 = vld [vmem:[%s3 + $0x40] sm:$0xff]
    %v3207 = vld [vmem:[%s3 + $0x48] sm:$0xff]
    %v3208 = vld [vmem:[%s3 + $0x50] sm:$0xff]
    %v3209 = vld [vmem:[%s3 + $0x58] sm:$0xff]
    %v3210 = vld [vmem:[%s3 + $0x60] sm:$0xff]
    %v3211 = vld [vmem:[%s3 + $0x68] sm:$0xff]
    %v3212 = vld [vmem:[%s3 + $0x70] sm:$0xff]
    %v3213 = vld [vmem:[%s3 + $0x78] sm:$0xff]
    %v3214 = vld [vmem:[%s3 + $0x80] sm:$0xff]
    %v3215 = vld [vmem:[%s3 + $0x88] sm:$0xff]
    %v3216 = vld [vmem:[%s3 + $0x90] sm:$0xff]
    %v3217 = vld [vmem:[%s3 + $0x98] sm:$0xff]
    %v3218 = vld [vmem:[%s3 + $0xa0] sm:$0xff]
    %v3219 = vld [vmem:[%s3 + $0xa8] sm:$0xff]
    %v3220 = vld [vmem:[%s3 + $0xb0] sm:$0xff]
    %v3221 = vld [vmem:[%s3 + $0xb8] sm:$0xff]
    %v3222 = vld [vmem:[%s3 + $0xc0] sm:$0xff]
    %v3223 = vld [vmem:[%s3 + $0xc8] sm:$0xff]
    %v3224 = vld [vmem:[%s3 + $0xd0] sm:$0xff]
    %v3225 = vld [vmem:[%s3 + $0xd8] sm:$0xff]
    %v3226 = vld [vmem:[%s3 + $0xe0] sm:$0xff]
    %v3227 = vld [vmem:[%s3 + $0xe8] sm:$0xff]
    %v3228 = vld [vmem:[%s3 + $0xf0] sm:$0xff]
    %v3229 = vld [vmem:[%s3 + $0xf8] sm:$0xff]
    %v3230 = vld [vmem:[%s3 + $0x100] sm:$0xff]
    %v3231 = vld [vmem:[%s3 + $0x108] sm:$0xff]
    %v3232 = vld [vmem:[%s3 + $0x110] sm:$0xff]
    %v3233 = vld [vmem:[%s3 + $0x118] sm:$0xff]
    %v3234 = vld [vmem:[%s3 + $0x120] sm:$0xff]
    %v3235 = vld [vmem:[%s3 + $0x128] sm:$0xff]
    %v3236 = vld [vmem:[%s3 + $0x130] sm:$0xff]
    %v3237 = vld [vmem:[%s3 + $0x138] sm:$0xff]
    %v3238 = vld [vmem:[%s3 + $0x140] sm:$0xff]
    %v3239 = vld [vmem:[%s3 + $0x148] sm:$0xff]
    %v3240 = vld [vmem:[%s3 + $0x150] sm:$0xff]
    %v3241 = vld [vmem:[%s3 + $0x158] sm:$0xff]
    %v3242 = vld [vmem:[%s3 + $0x160] sm:$0xff]
    %v3243 = vld [vmem:[%s3 + $0x168] sm:$0xff]
    %v3244 = vld [vmem:[%s3 + $0x170] sm:$0xff]
    %v3245 = vld [vmem:[%s3 + $0x178] sm:$0xff]
    %v3246 = vld [vmem:[%s3 + $0x180] sm:$0xff]
    %v3247 = vld [vmem:[%s3 + $0x188] sm:$0xff]
    %v3248 = vld [vmem:[%s3 + $0x190] sm:$0xff]
    %v3249 = vld [vmem:[%s3 + $0x198] sm:$0xff]
    %v3250 = vld [vmem:[%s3 + $0x1a0] sm:$0xff]
    %v3251 = vld [vmem:[%s3 + $0x1a8] sm:$0xff]
    %v3252 = vld [vmem:[%s3 + $0x1b0] sm:$0xff]
    %v3253 = vld [vmem:[%s3 + $0x1b8] sm:$0xff]
    %v3254 = vld [vmem:[%s3 + $0x1c0] sm:$0xff]
    %v3255 = vld [vmem:[%s3 + $0x1c8] sm:$0xff]
    %v3256 = vld [vmem:[%s3 + $0x1d0] sm:$0xff]
    %v3257 = vld [vmem:[%s3 + $0x1d8] sm:$0xff]
    %v3258 = vld [vmem:[%s3 + $0x1e0] sm:$0xff]
    %v3259 = vld [vmem:[%s3 + $0x1e8] sm:$0xff]
    %v3260 = vld [vmem:[%s3 + $0x1f0] sm:$0xff]
    %v3261 = vld [vmem:[%s3 + $0x1f8] sm:$0xff]
    %3262 = vmatprep.subr.mxu0 %v3199
    %3263 = vmatpush1.msra.mxu0 %v3198
    %3264 = vmatprep.subr.mxu0 %v3203
    %3265 = vmatpush1.msra.mxu0 %v3202
    %3266 = vmatprep.subr.mxu0 %v3207
    %3267 = vmatpush1.msra.mxu0 %v3206
    %3268 = vmatprep.subr.mxu0 %v3211
    %3269 = vmatpush1.msra.mxu0 %v3210
    %3270 = vmatprep.subr.mxu0 %v3215
    %3271 = vmatpush1.msra.mxu0 %v3214
    %3272 = vmatprep.subr.mxu0 %v3219
    %3273 = vmatpush1.msra.mxu0 %v3218
    %3274 = vmatprep.subr.mxu0 %v3223
    %3275 = vmatpush1.msra.mxu0 %v3222
    %3276 = vmatprep.subr.mxu0 %v3227
    %3277 = vmatpush1.msra.mxu0 %v3226
    %3278 = vmatprep.subr.mxu0 %v3231
    %3279 = vmatpush1.msra.mxu0 %v3230
    %3280 = vmatprep.subr.mxu0 %v3235
    %3281 = vmatpush1.msra.mxu0 %v3234
    %3282 = vmatprep.subr.mxu0 %v3239
    %3283 = vmatpush1.msra.mxu0 %v3238
    %3284 = vmatprep.subr.mxu0 %v3243
    %3285 = vmatpush1.msra.mxu0 %v3242
    %3286 = vmatprep.subr.mxu0 %v3247
    %3287 = vmatpush1.msra.mxu0 %v3246
    %3288 = vmatprep.subr.mxu0 %v3251
    %3289 = vmatpush1.msra.mxu0 %v3250
    %3290 = vmatprep.subr.mxu0 %v3255
    %3291 = vmatpush1.msra.mxu0 %v3254
    %3292 = vmatprep.subr.mxu0 %v3259
    %3293 = vmatpush1.msra.mxu0 %v3258
    %3294 = vmatprep.subr.mxu0 0.0
    %3295 = vmatpush1.msra.mxu0 0.0
    %3296 = vmatprep.subr.mxu0 0.0
    %3297 = vmatpush1.msra.mxu0 0.0
    %3298 = vmatprep.subr.mxu0 0.0
    %3299 = vmatpush1.msra.mxu0 0.0
    %3300 = vmatprep.subr.mxu0 0.0
    %3301 = vmatpush1.msra.mxu0 0.0
    %3302 = vmatprep.subr.mxu0 0.0
    %3303 = vmatpush1.msra.mxu0 0.0
    %3304 = vmatprep.subr.mxu0 0.0
    %3305 = vmatpush1.msra.mxu0 0.0
    %3306 = vmatprep.subr.mxu0 0.0
    %3307 = vmatpush1.msra.mxu0 0.0
    %3308 = vmatprep.subr.mxu0 0.0
    %3309 = vmatpush1.msra.mxu0 0.0
    %3310 = vmatprep.subr.mxu0 0.0
    %3311 = vmatpush1.msra.mxu0 0.0
    %3312 = vmatprep.subr.mxu0 0.0
    %3313 = vmatpush1.msra.mxu0 0.0
    %3314 = vmatprep.subr.mxu0 0.0
    %3315 = vmatpush1.msra.mxu0 0.0
    %3316 = vmatprep.subr.mxu0 0.0
    %3317 = vmatpush1.msra.mxu0 0.0
    %3318 = vmatprep.subr.mxu0 0.0
    %3319 = vmatpush1.msra.mxu0 0.0
    %3320 = vmatprep.subr.mxu0 0.0
    %3321 = vmatpush1.msra.mxu0 0.0
    %3322 = vmatprep.subr.mxu0 0.0
    %3323 = vmatpush1.msra.mxu0 0.0
    %3324 = vmatprep.subr.mxu0 0.0
    %3325 = vmatpush1.msra.mxu0 0.0
    %3326 = vmatprep.mubr.f32.mxu0 0.0
    %3327 = vmatmul.mubr.f32.gmra.mrb[0].mxu0 %v2658
    %v3328 = vpop.f32.mrb[0].mxu0
    %v3329 = vadd.f32 0.0, %v3328
    %v3330 = vpop.f32.mrb[0].mxu0
    %v3331 = vadd.f32 0.0, %v3330
    %3332 = vdwg.mxu0
    %3333 = vmatprep.subr.mxu0 %v3201
    %3334 = vmatpush1.msra.mxu0 %v3200
    %3335 = vmatprep.subr.mxu0 %v3205
    %3336 = vmatpush1.msra.mxu0 %v3204
    %3337 = vmatprep.subr.mxu0 %v3209
    %3338 = vmatpush1.msra.mxu0 %v3208
    %3339 = vmatprep.subr.mxu0 %v3213
    %3340 = vmatpush1.msra.mxu0 %v3212
    %3341 = vmatprep.subr.mxu0 %v3217
    %3342 = vmatpush1.msra.mxu0 %v3216
    %3343 = vmatprep.subr.mxu0 %v3221
    %3344 = vmatpush1.msra.mxu0 %v3220
    %3345 = vmatprep.subr.mxu0 %v3225
    %3346 = vmatpush1.msra.mxu0 %v3224
    %3347 = vmatprep.subr.mxu0 %v3229
    %3348 = vmatpush1.msra.mxu0 %v3228
    %3349 = vmatprep.subr.mxu0 %v3233
    %3350 = vmatpush1.msra.mxu0 %v3232
    %3351 = vmatprep.subr.mxu0 %v3237
    %3352 = vmatpush1.msra.mxu0 %v3236
    %3353 = vmatprep.subr.mxu0 %v3241
    %3354 = vmatpush1.msra.mxu0 %v3240
    %3355 = vmatprep.subr.mxu0 %v3245
    %3356 = vmatpush1.msra.mxu0 %v3244
    %3357 = vmatprep.subr.mxu0 %v3249
    %3358 = vmatpush1.msra.mxu0 %v3248
    %3359 = vmatprep.subr.mxu0 %v3253
    %3360 = vmatpush1.msra.mxu0 %v3252
    %3361 = vmatprep.subr.mxu0 %v3257
    %3362 = vmatpush1.msra.mxu0 %v3256
    %3363 = vmatprep.subr.mxu0 %v3261
    %3364 = vmatpush1.msra.mxu0 %v3260
    %3365 = vmatprep.subr.mxu0 0.0
    %3366 = vmatpush1.msra.mxu0 0.0
    %3367 = vmatprep.subr.mxu0 0.0
    %3368 = vmatpush1.msra.mxu0 0.0
    %3369 = vmatprep.subr.mxu0 0.0
    %3370 = vmatpush1.msra.mxu0 0.0
    %3371 = vmatprep.subr.mxu0 0.0
    %3372 = vmatpush1.msra.mxu0 0.0
    %3373 = vmatprep.subr.mxu0 0.0
    %3374 = vmatpush1.msra.mxu0 0.0
    %3375 = vmatprep.subr.mxu0 0.0
    %3376 = vmatpush1.msra.mxu0 0.0
    %3377 = vmatprep.subr.mxu0 0.0
    %3378 = vmatpush1.msra.mxu0 0.0
    %3379 = vmatprep.subr.mxu0 0.0
    %3380 = vmatpush1.msra.mxu0 0.0
    %3381 = vmatprep.subr.mxu0 0.0
    %3382 = vmatpush1.msra.mxu0 0.0
    %3383 = vmatprep.subr.mxu0 0.0
    %3384 = vmatpush1.msra.mxu0 0.0
    %3385 = vmatprep.subr.mxu0 0.0
    %3386 = vmatpush1.msra.mxu0 0.0
    %3387 = vmatprep.subr.mxu0 0.0
    %3388 = vmatpush1.msra.mxu0 0.0
    %3389 = vmatprep.subr.mxu0 0.0
    %3390 = vmatpush1.msra.mxu0 0.0
    %3391 = vmatprep.subr.mxu0 0.0
    %3392 = vmatpush1.msra.mxu0 0.0
    %3393 = vmatprep.subr.mxu0 0.0
    %3394 = vmatpush1.msra.mxu0 0.0
    %3395 = vmatprep.subr.mxu0 0.0
    %3396 = vmatpush1.msra.mxu0 0.0
    %3397 = vmatprep.mubr.f32.mxu0 0.0
    %3398 = vmatmul.mubr.f32.gmra.mrb[0].mxu0 %v2658
    %v3399 = vpop.f32.mrb[0].mxu0
    %v3400 = vadd.f32 0.0, %v3399
    %v3401 = vpop.f32.mrb[0].mxu0
    %v3402 = vadd.f32 0.0, %v3401
    %3403 = vdwg.mxu0
    %v3404 = vadd.f32 %v3194, %v3329
    %v3405 = vadd.f32 %v3195, %v3331
    %v3406 = vadd.f32 %v3196, %v3400
    %v3407 = vadd.f32 %v3197, %v3402
    %v3408 = vxor.u32 %v3404, 2147483648
    %v3409 = vmul.f32 %v3408, 1.442695
    %v3410 = vpow.pop %v3409
    %v3411 = vadd.f32 %v3410, 1.0
    %v3412 = vrcp.pop %v3411
    %v3413 = vmul.f32 1.0, %v3412
    %v3414 = vxor.u32 %v3405, 2147483648
    %v3415 = vmul.f32 %v3414, 1.442695
    %v3416 = vpow.pop %v3415
    %v3417 = vadd.f32 %v3416, 1.0
    %v3418 = vrcp.pop %v3417
    %v3419 = vmul.f32 1.0, %v3418
    %v3420 = vtanh.pop %v3406
    %v3421 = vxor.u32 %v3407, 2147483648
    %v3422 = vmul.f32 %v3421, 1.442695
    %v3423 = vpow.pop %v3422
    %v3424 = vadd.f32 %v3423, 1.0
    %v3425 = vrcp.pop %v3424
    %v3426 = vmul.f32 1.0, %v3425
    %v3427 = vmul.f32 %v3419, %v2656
    %v3428 = vmul.f32 %v3413, %v3420
    %v3429 = vadd.f32 %v3427, %v3428
    %v3430 = vtanh.pop %v3429
    %v3431 = vmul.f32 %v3426, %v3430
    %v3432 = vld [vmem:[#allocation2] sm:$0xff]
    %v3433 = vld [vmem:[#allocation2 + $0x8] sm:$0xff]
    %v3434 = vld [vmem:[#allocation2 + $0x10] sm:$0xff]
    %v3435 = vld [vmem:[#allocation2 + $0x18] sm:$0xff]
    %v3436 = vld [vmem:[#allocation2 + $0x20] sm:$0xff]
    %v3437 = vld [vmem:[#allocation2 + $0x28] sm:$0xff]
    %v3438 = vld [vmem:[#allocation2 + $0x30] sm:$0xff]
    %v3439 = vld [vmem:[#allocation2 + $0x38] sm:$0xff]
    %v3440 = vld [vmem:[#allocation2 + $0x40] sm:$0xff]
    %v3441 = vld [vmem:[#allocation2 + $0x48] sm:$0xff]
    %v3442 = vld [vmem:[#allocation2 + $0x50] sm:$0xff]
    %v3443 = vld [vmem:[#allocation2 + $0x58] sm:$0xff]
    %v3444 = vld [vmem:[#allocation2 + $0x60] sm:$0xff]
    %v3445 = vld [vmem:[#allocation2 + $0x68] sm:$0xff]
    %v3446 = vld [vmem:[#allocation2 + $0x70] sm:$0xff]
    %v3447 = vld [vmem:[#allocation2 + $0x78] sm:$0xff]
    %v3448 = vld [vmem:[#allocation2 + $0x80] sm:$0xff]
    %v3449 = vld [vmem:[#allocation2 + $0x88] sm:$0xff]
    %v3450 = vld [vmem:[#allocation2 + $0x90] sm:$0xff]
    %v3451 = vld [vmem:[#allocation2 + $0x98] sm:$0xff]
    %v3452 = vld [vmem:[#allocation2 + $0xa0] sm:$0xff]
    %v3453 = vld [vmem:[#allocation2 + $0xa8] sm:$0xff]
    %v3454 = vld [vmem:[#allocation2 + $0xb0] sm:$0xff]
    %v3455 = vld [vmem:[#allocation2 + $0xb8] sm:$0xff]
    %v3456 = vld [vmem:[#allocation2 + $0xc0] sm:$0xff]
    %v3457 = vld [vmem:[#allocation2 + $0xc8] sm:$0xff]
    %v3458 = vld [vmem:[#allocation2 + $0xd0] sm:$0xff]
    %v3459 = vld [vmem:[#allocation2 + $0xd8] sm:$0xff]
    %v3460 = vld [vmem:[#allocation2 + $0xe0] sm:$0xff]
    %v3461 = vld [vmem:[#allocation2 + $0xe8] sm:$0xff]
    %v3462 = vld [vmem:[#allocation2 + $0xf0] sm:$0xff]
    %v3463 = vld [vmem:[#allocation2 + $0xf8] sm:$0xff]
    %v3464 = vld [vmem:[#allocation2 + $0x100] sm:$0xff]
    %v3465 = vld [vmem:[#allocation2 + $0x108] sm:$0xff]
    %v3466 = vld [vmem:[#allocation2 + $0x110] sm:$0xff]
    %v3467 = vld [vmem:[#allocation2 + $0x118] sm:$0xff]
    %v3468 = vld [vmem:[#allocation2 + $0x120] sm:$0xff]
    %v3469 = vld [vmem:[#allocation2 + $0x128] sm:$0xff]
    %v3470 = vld [vmem:[#allocation2 + $0x130] sm:$0xff]
    %v3471 = vld [vmem:[#allocation2 + $0x138] sm:$0xff]
    %v3472 = vld [vmem:[#allocation2 + $0x140] sm:$0xff]
    %v3473 = vld [vmem:[#allocation2 + $0x148] sm:$0xff]
    %v3474 = vld [vmem:[#allocation2 + $0x150] sm:$0xff]
    %v3475 = vld [vmem:[#allocation2 + $0x158] sm:$0xff]
    %v3476 = vld [vmem:[#allocation2 + $0x160] sm:$0xff]
    %v3477 = vld [vmem:[#allocation2 + $0x168] sm:$0xff]
    %v3478 = vld [vmem:[#allocation2 + $0x170] sm:$0xff]
    %v3479 = vld [vmem:[#allocation2 + $0x178] sm:$0xff]
    %v3480 = vld [vmem:[#allocation2 + $0x180] sm:$0xff]
    %v3481 = vld [vmem:[#allocation2 + $0x188] sm:$0xff]
    %v3482 = vld [vmem:[#allocation2 + $0x190] sm:$0xff]
    %v3483 = vld [vmem:[#allocation2 + $0x198] sm:$0xff]
    %v3484 = vld [vmem:[#allocation2 + $0x1a0] sm:$0xff]
    %v3485 = vld [vmem:[#allocation2 + $0x1a8] sm:$0xff]
    %v3486 = vld [vmem:[#allocation2 + $0x1b0] sm:$0xff]
    %v3487 = vld [vmem:[#allocation2 + $0x1b8] sm:$0xff]
    %v3488 = vld [vmem:[#allocation2 + $0x1c0] sm:$0xff]
    %v3489 = vld [vmem:[#allocation2 + $0x1c8] sm:$0xff]
    %v3490 = vld [vmem:[#allocation2 + $0x1d0] sm:$0xff]
    %v3491 = vld [vmem:[#allocation2 + $0x1d8] sm:$0xff]
    %v3492 = vld [vmem:[#allocation2 + $0x1e0] sm:$0xff]
    %v3493 = vld [vmem:[#allocation2 + $0x1e8] sm:$0xff]
    %v3494 = vld [vmem:[#allocation2 + $0x1f0] sm:$0xff]
    %v3495 = vld [vmem:[#allocation2 + $0x1f8] sm:$0xff]
    %v3496 = vld [vmem:[%s404] sm:$0xff]
    %v3497 = vld [vmem:[%s404 + $0x8] sm:$0xff]
    %v3498 = vld [vmem:[%s404 + $0x10] sm:$0xff]
    %v3499 = vld [vmem:[%s404 + $0x18] sm:$0xff]
    %v3500 = vld [vmem:[%s404 + $0x20] sm:$0xff]
    %v3501 = vld [vmem:[%s404 + $0x28] sm:$0xff]
    %v3502 = vld [vmem:[%s404 + $0x30] sm:$0xff]
    %v3503 = vld [vmem:[%s404 + $0x38] sm:$0xff]
    %v3504 = vld [vmem:[%s404 + $0x40] sm:$0xff]
    %v3505 = vld [vmem:[%s404 + $0x48] sm:$0xff]
    %v3506 = vld [vmem:[%s404 + $0x50] sm:$0xff]
    %v3507 = vld [vmem:[%s404 + $0x58] sm:$0xff]
    %v3508 = vld [vmem:[%s404 + $0x60] sm:$0xff]
    %v3509 = vld [vmem:[%s404 + $0x68] sm:$0xff]
    %v3510 = vld [vmem:[%s404 + $0x70] sm:$0xff]
    %v3511 = vld [vmem:[%s404 + $0x78] sm:$0xff]
    %v3512 = vld [vmem:[%s404 + $0x80] sm:$0xff]
    %v3513 = vld [vmem:[%s404 + $0x88] sm:$0xff]
    %v3514 = vld [vmem:[%s404 + $0x90] sm:$0xff]
    %v3515 = vld [vmem:[%s404 + $0x98] sm:$0xff]
    %v3516 = vld [vmem:[%s404 + $0xa0] sm:$0xff]
    %v3517 = vld [vmem:[%s404 + $0xa8] sm:$0xff]
    %v3518 = vld [vmem:[%s404 + $0xb0] sm:$0xff]
    %v3519 = vld [vmem:[%s404 + $0xb8] sm:$0xff]
    %v3520 = vld [vmem:[%s404 + $0xc0] sm:$0xff]
    %v3521 = vld [vmem:[%s404 + $0xc8] sm:$0xff]
    %v3522 = vld [vmem:[%s404 + $0xd0] sm:$0xff]
    %v3523 = vld [vmem:[%s404 + $0xd8] sm:$0xff]
    %v3524 = vld [vmem:[%s404 + $0xe0] sm:$0xff]
    %v3525 = vld [vmem:[%s404 + $0xe8] sm:$0xff]
    %v3526 = vld [vmem:[%s404 + $0xf0] sm:$0xff]
    %v3527 = vld [vmem:[%s404 + $0xf8] sm:$0xff]
    %v3528 = vld [vmem:[%s404 + $0x100] sm:$0xff]
    %v3529 = vld [vmem:[%s404 + $0x108] sm:$0xff]
    %v3530 = vld [vmem:[%s404 + $0x110] sm:$0xff]
    %v3531 = vld [vmem:[%s404 + $0x118] sm:$0xff]
    %v3532 = vld [vmem:[%s404 + $0x120] sm:$0xff]
    %v3533 = vld [vmem:[%s404 + $0x128] sm:$0xff]
    %v3534 = vld [vmem:[%s404 + $0x130] sm:$0xff]
    %v3535 = vld [vmem:[%s404 + $0x138] sm:$0xff]
    %v3536 = vld [vmem:[%s404 + $0x140] sm:$0xff]
    %v3537 = vld [vmem:[%s404 + $0x148] sm:$0xff]
    %v3538 = vld [vmem:[%s404 + $0x150] sm:$0xff]
    %v3539 = vld [vmem:[%s404 + $0x158] sm:$0xff]
    %v3540 = vld [vmem:[%s404 + $0x160] sm:$0xff]
    %v3541 = vld [vmem:[%s404 + $0x168] sm:$0xff]
    %v3542 = vld [vmem:[%s404 + $0x170] sm:$0xff]
    %v3543 = vld [vmem:[%s404 + $0x178] sm:$0xff]
    %v3544 = vld [vmem:[%s404 + $0x180] sm:$0xff]
    %v3545 = vld [vmem:[%s404 + $0x188] sm:$0xff]
    %v3546 = vld [vmem:[%s404 + $0x190] sm:$0xff]
    %v3547 = vld [vmem:[%s404 + $0x198] sm:$0xff]
    %v3548 = vld [vmem:[%s404 + $0x1a0] sm:$0xff]
    %v3549 = vld [vmem:[%s404 + $0x1a8] sm:$0xff]
    %v3550 = vld [vmem:[%s404 + $0x1b0] sm:$0xff]
    %v3551 = vld [vmem:[%s404 + $0x1b8] sm:$0xff]
    %v3552 = vld [vmem:[%s404 + $0x1c0] sm:$0xff]
    %v3553 = vld [vmem:[%s404 + $0x1c8] sm:$0xff]
    %v3554 = vld [vmem:[%s404 + $0x1d0] sm:$0xff]
    %v3555 = vld [vmem:[%s404 + $0x1d8] sm:$0xff]
    %v3556 = vld [vmem:[%s404 + $0x1e0] sm:$0xff]
    %v3557 = vld [vmem:[%s404 + $0x1e8] sm:$0xff]
    %v3558 = vld [vmem:[%s404 + $0x1f0] sm:$0xff]
    %v3559 = vld [vmem:[%s404 + $0x1f8] sm:$0xff]
    %3560 = vmatprep.subr.mxu0 %v3497
    %3561 = vmatpush1.msra.mxu0 %v3496
    %3562 = vmatprep.subr.mxu0 %v3501
    %3563 = vmatpush1.msra.mxu0 %v3500
    %3564 = vmatprep.subr.mxu0 %v3505
    %3565 = vmatpush1.msra.mxu0 %v3504
    %3566 = vmatprep.subr.mxu0 %v3509
    %3567 = vmatpush1.msra.mxu0 %v3508
    %3568 = vmatprep.subr.mxu0 %v3513
    %3569 = vmatpush1.msra.mxu0 %v3512
    %3570 = vmatprep.subr.mxu0 %v3517
    %3571 = vmatpush1.msra.mxu0 %v3516
    %3572 = vmatprep.subr.mxu0 %v3521
    %3573 = vmatpush1.msra.mxu0 %v3520
    %3574 = vmatprep.subr.mxu0 %v3525
    %3575 = vmatpush1.msra.mxu0 %v3524
    %3576 = vmatprep.subr.mxu0 %v3529
    %3577 = vmatpush1.msra.mxu0 %v3528
    %3578 = vmatprep.subr.mxu0 %v3533
    %3579 = vmatpush1.msra.mxu0 %v3532
    %3580 = vmatprep.subr.mxu0 %v3537
    %3581 = vmatpush1.msra.mxu0 %v3536
    %3582 = vmatprep.subr.mxu0 %v3541
    %3583 = vmatpush1.msra.mxu0 %v3540
    %3584 = vmatprep.subr.mxu0 %v3545
    %3585 = vmatpush1.msra.mxu0 %v3544
    %3586 = vmatprep.subr.mxu0 %v3549
    %3587 = vmatpush1.msra.mxu0 %v3548
    %3588 = vmatprep.subr.mxu0 %v3553
    %3589 = vmatpush1.msra.mxu0 %v3552
    %3590 = vmatprep.subr.mxu0 %v3557
    %3591 = vmatpush1.msra.mxu0 %v3556
    %3592 = vmatprep.subr.mxu0 0.0
    %3593 = vmatpush1.msra.mxu0 0.0
    %3594 = vmatprep.subr.mxu0 0.0
    %3595 = vmatpush1.msra.mxu0 0.0
    %3596 = vmatprep.subr.mxu0 0.0
    %3597 = vmatpush1.msra.mxu0 0.0
    %3598 = vmatprep.subr.mxu0 0.0
    %3599 = vmatpush1.msra.mxu0 0.0
    %3600 = vmatprep.subr.mxu0 0.0
    %3601 = vmatpush1.msra.mxu0 0.0
    %3602 = vmatprep.subr.mxu0 0.0
    %3603 = vmatpush1.msra.mxu0 0.0
    %3604 = vmatprep.subr.mxu0 0.0
    %3605 = vmatpush1.msra.mxu0 0.0
    %3606 = vmatprep.subr.mxu0 0.0
    %3607 = vmatpush1.msra.mxu0 0.0
    %3608 = vmatprep.subr.mxu0 0.0
    %3609 = vmatpush1.msra.mxu0 0.0
    %3610 = vmatprep.subr.mxu0 0.0
    %3611 = vmatpush1.msra.mxu0 0.0
    %3612 = vmatprep.subr.mxu0 0.0
    %3613 = vmatpush1.msra.mxu0 0.0
    %3614 = vmatprep.subr.mxu0 0.0
    %3615 = vmatpush1.msra.mxu0 0.0
    %3616 = vmatprep.subr.mxu0 0.0
    %3617 = vmatpush1.msra.mxu0 0.0
    %3618 = vmatprep.subr.mxu0 0.0
    %3619 = vmatpush1.msra.mxu0 0.0
    %3620 = vmatprep.subr.mxu0 0.0
    %3621 = vmatpush1.msra.mxu0 0.0
    %3622 = vmatprep.subr.mxu0 0.0
    %3623 = vmatpush1.msra.mxu0 0.0
    %3624 = vmatprep.mubr.f32.mxu0 0.0
    %3625 = vmatmul.mubr.f32.gmra.mrb[0].mxu0 %v3102
    %v3626 = vpop.f32.mrb[0].mxu0
    %v3627 = vadd.f32 0.0, %v3626
    %v3628 = vpop.f32.mrb[0].mxu0
    %v3629 = vadd.f32 0.0, %v3628
    %3630 = vdwg.mxu0
    %3631 = vmatprep.subr.mxu0 %v3499
    %3632 = vmatpush1.msra.mxu0 %v3498
    %3633 = vmatprep.subr.mxu0 %v3503
    %3634 = vmatpush1.msra.mxu0 %v3502
    %3635 = vmatprep.subr.mxu0 %v3507
    %3636 = vmatpush1.msra.mxu0 %v3506
    %3637 = vmatprep.subr.mxu0 %v3511
    %3638 = vmatpush1.msra.mxu0 %v3510
    %3639 = vmatprep.subr.mxu0 %v3515
    %3640 = vmatpush1.msra.mxu0 %v3514
    %3641 = vmatprep.subr.mxu0 %v3519
    %3642 = vmatpush1.msra.mxu0 %v3518
    %3643 = vmatprep.subr.mxu0 %v3523
    %3644 = vmatpush1.msra.mxu0 %v3522
    %3645 = vmatprep.subr.mxu0 %v3527
    %3646 = vmatpush1.msra.mxu0 %v3526
    %3647 = vmatprep.subr.mxu0 %v3531
    %3648 = vmatpush1.msra.mxu0 %v3530
    %3649 = vmatprep.subr.mxu0 %v3535
    %3650 = vmatpush1.msra.mxu0 %v3534
    %3651 = vmatprep.subr.mxu0 %v3539
    %3652 = vmatpush1.msra.mxu0 %v3538
    %3653 = vmatprep.subr.mxu0 %v3543
    %3654 = vmatpush1.msra.mxu0 %v3542
    %3655 = vmatprep.subr.mxu0 %v3547
    %3656 = vmatpush1.msra.mxu0 %v3546
    %3657 = vmatprep.subr.mxu0 %v3551
    %3658 = vmatpush1.msra.mxu0 %v3550
    %3659 = vmatprep.subr.mxu0 %v3555
    %3660 = vmatpush1.msra.mxu0 %v3554
    %3661 = vmatprep.subr.mxu0 %v3559
    %3662 = vmatpush1.msra.mxu0 %v3558
    %3663 = vmatprep.subr.mxu0 0.0
    %3664 = vmatpush1.msra.mxu0 0.0
    %3665 = vmatprep.subr.mxu0 0.0
    %3666 = vmatpush1.msra.mxu0 0.0
    %3667 = vmatprep.subr.mxu0 0.0
    %3668 = vmatpush1.msra.mxu0 0.0
    %3669 = vmatprep.subr.mxu0 0.0
    %3670 = vmatpush1.msra.mxu0 0.0
    %3671 = vmatprep.subr.mxu0 0.0
    %3672 = vmatpush1.msra.mxu0 0.0
    %3673 = vmatprep.subr.mxu0 0.0
    %3674 = vmatpush1.msra.mxu0 0.0
    %3675 = vmatprep.subr.mxu0 0.0
    %3676 = vmatpush1.msra.mxu0 0.0
    %3677 = vmatprep.subr.mxu0 0.0
    %3678 = vmatpush1.msra.mxu0 0.0
    %3679 = vmatprep.subr.mxu0 0.0
    %3680 = vmatpush1.msra.mxu0 0.0
    %3681 = vmatprep.subr.mxu0 0.0
    %3682 = vmatpush1.msra.mxu0 0.0
    %3683 = vmatprep.subr.mxu0 0.0
    %3684 = vmatpush1.msra.mxu0 0.0
    %3685 = vmatprep.subr.mxu0 0.0
    %3686 = vmatpush1.msra.mxu0 0.0
    %3687 = vmatprep.subr.mxu0 0.0
    %3688 = vmatpush1.msra.mxu0 0.0
    %3689 = vmatprep.subr.mxu0 0.0
    %3690 = vmatpush1.msra.mxu0 0.0
    %3691 = vmatprep.subr.mxu0 0.0
    %3692 = vmatpush1.msra.mxu0 0.0
    %3693 = vmatprep.subr.mxu0 0.0
    %3694 = vmatpush1.msra.mxu0 0.0
    %3695 = vmatprep.mubr.f32.mxu0 0.0
    %3696 = vmatmul.mubr.f32.gmra.mrb[0].mxu0 %v3102
    %v3697 = vpop.f32.mrb[0].mxu0
    %v3698 = vadd.f32 0.0, %v3697
    %v3699 = vpop.f32.mrb[0].mxu0
    %v3700 = vadd.f32 0.0, %v3699
    %3701 = vdwg.mxu0
    %3702 = vmatprep.subr.mxu0 %v3433
    %3703 = vmatpush1.msra.mxu0 %v3432
    %3704 = vmatprep.subr.mxu0 %v3437
    %3705 = vmatpush1.msra.mxu0 %v3436
    %3706 = vmatprep.subr.mxu0 %v3441
    %3707 = vmatpush1.msra.mxu0 %v3440
    %3708 = vmatprep.subr.mxu0 %v3445
    %3709 = vmatpush1.msra.mxu0 %v3444
    %3710 = vmatprep.subr.mxu0 %v3449
    %3711 = vmatpush1.msra.mxu0 %v3448
    %3712 = vmatprep.subr.mxu0 %v3453
    %3713 = vmatpush1.msra.mxu0 %v3452
    %3714 = vmatprep.subr.mxu0 %v3457
    %3715 = vmatpush1.msra.mxu0 %v3456
    %3716 = vmatprep.subr.mxu0 %v3461
    %3717 = vmatpush1.msra.mxu0 %v3460
    %3718 = vmatprep.subr.mxu0 %v3465
    %3719 = vmatpush1.msra.mxu0 %v3464
    %3720 = vmatprep.subr.mxu0 %v3469
    %3721 = vmatpush1.msra.mxu0 %v3468
    %3722 = vmatprep.subr.mxu0 %v3473
    %3723 = vmatpush1.msra.mxu0 %v3472
    %3724 = vmatprep.subr.mxu0 %v3477
    %3725 = vmatpush1.msra.mxu0 %v3476
    %3726 = vmatprep.subr.mxu0 %v3481
    %3727 = vmatpush1.msra.mxu0 %v3480
    %3728 = vmatprep.subr.mxu0 %v3485
    %3729 = vmatpush1.msra.mxu0 %v3484
    %3730 = vmatprep.subr.mxu0 %v3489
    %3731 = vmatpush1.msra.mxu0 %v3488
    %3732 = vmatprep.subr.mxu0 %v3493
    %3733 = vmatpush1.msra.mxu0 %v3492
    %3734 = vmatprep.subr.mxu0 0.0
    %3735 = vmatpush1.msra.mxu0 0.0
    %3736 = vmatprep.subr.mxu0 0.0
    %3737 = vmatpush1.msra.mxu0 0.0
    %3738 = vmatprep.subr.mxu0 0.0
    %3739 = vmatpush1.msra.mxu0 0.0
    %3740 = vmatprep.subr.mxu0 0.0
    %3741 = vmatpush1.msra.mxu0 0.0
    %3742 = vmatprep.subr.mxu0 0.0
    %3743 = vmatpush1.msra.mxu0 0.0
    %3744 = vmatprep.subr.mxu0 0.0
    %3745 = vmatpush1.msra.mxu0 0.0
    %3746 = vmatprep.subr.mxu0 0.0
    %3747 = vmatpush1.msra.mxu0 0.0
    %3748 = vmatprep.subr.mxu0 0.0
    %3749 = vmatpush1.msra.mxu0 0.0
    %3750 = vmatprep.subr.mxu0 0.0
    %3751 = vmatpush1.msra.mxu0 0.0
    %3752 = vmatprep.subr.mxu0 0.0
    %3753 = vmatpush1.msra.mxu0 0.0
    %3754 = vmatprep.subr.mxu0 0.0
    %3755 = vmatpush1.msra.mxu0 0.0
    %3756 = vmatprep.subr.mxu0 0.0
    %3757 = vmatpush1.msra.mxu0 0.0
    %3758 = vmatprep.subr.mxu0 0.0
    %3759 = vmatpush1.msra.mxu0 0.0
    %3760 = vmatprep.subr.mxu0 0.0
    %3761 = vmatpush1.msra.mxu0 0.0
    %3762 = vmatprep.subr.mxu0 0.0
    %3763 = vmatpush1.msra.mxu0 0.0
    %3764 = vmatprep.subr.mxu0 0.0
    %3765 = vmatpush1.msra.mxu0 0.0
    %3766 = vmatprep.mubr.f32.mxu0 0.0
    %3767 = vmatmul.mubr.f32.gmra.mrb[0].mxu0 %v3431
    %v3768 = vpop.f32.mrb[0].mxu0
    %v3769 = vadd.f32 %v3627, %v3768
    %v3770 = vpop.f32.mrb[0].mxu0
    %v3771 = vadd.f32 %v3629, %v3770
    %3772 = vdwg.mxu0
    %3773 = vmatprep.subr.mxu0 %v3435
    %3774 = vmatpush1.msra.mxu0 %v3434
    %3775 = vmatprep.subr.mxu0 %v3439
    %3776 = vmatpush1.msra.mxu0 %v3438
    %3777 = vmatprep.subr.mxu0 %v3443
    %3778 = vmatpush1.msra.mxu0 %v3442
    %3779 = vmatprep.subr.mxu0 %v3447
    %3780 = vmatpush1.msra.mxu0 %v3446
    %3781 = vmatprep.subr.mxu0 %v3451
    %3782 = vmatpush1.msra.mxu0 %v3450
    %3783 = vmatprep.subr.mxu0 %v3455
    %3784 = vmatpush1.msra.mxu0 %v3454
    %3785 = vmatprep.subr.mxu0 %v3459
    %3786 = vmatpush1.msra.mxu0 %v3458
    %3787 = vmatprep.subr.mxu0 %v3463
    %3788 = vmatpush1.msra.mxu0 %v3462
    %3789 = vmatprep.subr.mxu0 %v3467
    %3790 = vmatpush1.msra.mxu0 %v3466
    %3791 = vmatprep.subr.mxu0 %v3471
    %3792 = vmatpush1.msra.mxu0 %v3470
    %3793 = vmatprep.subr.mxu0 %v3475
    %3794 = vmatpush1.msra.mxu0 %v3474
    %3795 = vmatprep.subr.mxu0 %v3479
    %3796 = vmatpush1.msra.mxu0 %v3478
    %3797 = vmatprep.subr.mxu0 %v3483
    %3798 = vmatpush1.msra.mxu0 %v3482
    %3799 = vmatprep.subr.mxu0 %v3487
    %3800 = vmatpush1.msra.mxu0 %v3486
    %3801 = vmatprep.subr.mxu0 %v3491
    %3802 = vmatpush1.msra.mxu0 %v3490
    %3803 = vmatprep.subr.mxu0 %v3495
    %3804 = vmatpush1.msra.mxu0 %v3494
    %3805 = vmatprep.subr.mxu0 0.0
    %3806 = vmatpush1.msra.mxu0 0.0
    %3807 = vmatprep.subr.mxu0 0.0
    %3808 = vmatpush1.msra.mxu0 0.0
    %3809 = vmatprep.subr.mxu0 0.0
    %3810 = vmatpush1.msra.mxu0 0.0
    %3811 = vmatprep.subr.mxu0 0.0
    %3812 = vmatpush1.msra.mxu0 0.0
    %3813 = vmatprep.subr.mxu0 0.0
    %3814 = vmatpush1.msra.mxu0 0.0
    %3815 = vmatprep.subr.mxu0 0.0
    %3816 = vmatpush1.msra.mxu0 0.0
    %3817 = vmatprep.subr.mxu0 0.0
    %3818 = vmatpush1.msra.mxu0 0.0
    %3819 = vmatprep.subr.mxu0 0.0
    %3820 = vmatpush1.msra.mxu0 0.0
    %3821 = vmatprep.subr.mxu0 0.0
    %3822 = vmatpush1.msra.mxu0 0.0
    %3823 = vmatprep.subr.mxu0 0.0
    %3824 = vmatpush1.msra.mxu0 0.0
    %3825 = vmatprep.subr.mxu0 0.0
    %3826 = vmatpush1.msra.mxu0 0.0
    %3827 = vmatprep.subr.mxu0 0.0
    %3828 = vmatpush1.msra.mxu0 0.0
    %3829 = vmatprep.subr.mxu0 0.0
    %3830 = vmatpush1.msra.mxu0 0.0
    %3831 = vmatprep.subr.mxu0 0.0
    %3832 = vmatpush1.msra.mxu0 0.0
    %3833 = vmatprep.subr.mxu0 0.0
    %3834 = vmatpush1.msra.mxu0 0.0
    %3835 = vmatprep.subr.mxu0 0.0
    %3836 = vmatpush1.msra.mxu0 0.0
    %3837 = vmatprep.mubr.f32.mxu0 0.0
    %3838 = vmatmul.mubr.f32.gmra.mrb[0].mxu0 %v3431
    %v3839 = vpop.f32.mrb[0].mxu0
    %v3840 = vadd.f32 %v3698, %v3839
    %v3841 = vpop.f32.mrb[0].mxu0
    %v3842 = vadd.f32 %v3700, %v3841
    %3843 = vdwg.mxu0
    %v3844 = vld [vmem:[%s5] sm:$0xff]
    %v3845 = vld [vmem:[%s5 + $0x8] sm:$0xff]
    %v3846 = vld [vmem:[%s5 + $0x10] sm:$0xff]
    %v3847 = vld [vmem:[%s5 + $0x18] sm:$0xff]
    %v3848 = vadd.f32 %v3769, %v3844
    %v3849 = vadd.f32 %v3771, %v3845
    %v3850 = vadd.f32 %v3840, %v3846
    %v3851 = vadd.f32 %v3842, %v3847
    %v3852 = vxor.u32 %v3848, 2147483648
    %v3853 = vmul.f32 %v3852, 1.442695
    %v3854 = vpow.pop %v3853
    %v3855 = vadd.f32 %v3854, 1.0
    %v3856 = vrcp.pop %v3855
    %v3857 = vmul.f32 1.0, %v3856
    %v3858 = vxor.u32 %v3849, 2147483648
    %v3859 = vmul.f32 %v3858, 1.442695
    %v3860 = vpow.pop %v3859
    %v3861 = vadd.f32 %v3860, 1.0
    %v3862 = vrcp.pop %v3861
    %v3863 = vmul.f32 1.0, %v3862
    %v3864 = vtanh.pop %v3850
    %v3865 = vxor.u32 %v3851, 2147483648
    %v3866 = vmul.f32 %v3865, 1.442695
    %v3867 = vpow.pop %v3866
    %v3868 = vadd.f32 %v3867, 1.0
    %v3869 = vrcp.pop %v3868
    %v3870 = vmul.f32 1.0, %v3869
    %v3871 = vmul.f32 %v3863, %v3100
    %v3872 = vmul.f32 %v3857, %v3864
    %v3873 = vadd.f32 %v3871, %v3872
    %v3874 = vtanh.pop %v3873
    %v3875 = vmul.f32 %v3870, %v3874
    %3876 = vmatprep.subr.mxu0 %v63
    %3877 = vmatpush1.msra.mxu0 %v62
    %3878 = vmatprep.subr.mxu0 %v65
    %3879 = vmatpush1.msra.mxu0 %v64
    %3880 = vmatprep.subr.mxu0 %v67
    %3881 = vmatpush1.msra.mxu0 %v66
    %3882 = vmatprep.subr.mxu0 %v69
    %3883 = vmatpush1.msra.mxu0 %v68
    %3884 = vmatprep.subr.mxu0 %v71
    %3885 = vmatpush1.msra.mxu0 %v70
    %3886 = vmatprep.subr.mxu0 %v73
    %3887 = vmatpush1.msra.mxu0 %v72
    %3888 = vmatprep.subr.mxu0 %v75
    %3889 = vmatpush1.msra.mxu0 %v74
    %3890 = vmatprep.subr.mxu0 %v77
    %3891 = vmatpush1.msra.mxu0 %v76
    %3892 = vmatprep.subr.mxu0 %v79
    %3893 = vmatpush1.msra.mxu0 %v78
    %3894 = vmatprep.subr.mxu0 %v81
    %3895 = vmatpush1.msra.mxu0 %v80
    %3896 = vmatprep.subr.mxu0 %v83
    %3897 = vmatpush1.msra.mxu0 %v82
    %3898 = vmatprep.subr.mxu0 %v85
    %3899 = vmatpush1.msra.mxu0 %v84
    %3900 = vmatprep.subr.mxu0 %v87
    %3901 = vmatpush1.msra.mxu0 %v86
    %3902 = vmatprep.subr.mxu0 %v89
    %3903 = vmatpush1.msra.mxu0 %v88
    %3904 = vmatprep.subr.mxu0 %v91
    %3905 = vmatpush1.msra.mxu0 %v90
    %3906 = vmatprep.subr.mxu0 %v93
    %3907 = vmatpush1.msra.mxu0 %v92
    %3908 = vmatprep.subr.mxu0 0.0
    %3909 = vmatpush1.msra.mxu0 0.0
    %3910 = vmatprep.subr.mxu0 0.0
    %3911 = vmatpush1.msra.mxu0 0.0
    %3912 = vmatprep.subr.mxu0 0.0
    %3913 = vmatpush1.msra.mxu0 0.0
    %3914 = vmatprep.subr.mxu0 0.0
    %3915 = vmatpush1.msra.mxu0 0.0
    %3916 = vmatprep.subr.mxu0 0.0
    %3917 = vmatpush1.msra.mxu0 0.0
    %3918 = vmatprep.subr.mxu0 0.0
    %3919 = vmatpush1.msra.mxu0 0.0
    %3920 = vmatprep.subr.mxu0 0.0
    %3921 = vmatpush1.msra.mxu0 0.0
    %3922 = vmatprep.subr.mxu0 0.0
    %3923 = vmatpush1.msra.mxu0 0.0
    %3924 = vmatprep.subr.mxu0 0.0
    %3925 = vmatpush1.msra.mxu0 0.0
    %3926 = vmatprep.subr.mxu0 0.0
    %3927 = vmatpush1.msra.mxu0 0.0
    %3928 = vmatprep.subr.mxu0 0.0
    %3929 = vmatpush1.msra.mxu0 0.0
    %3930 = vmatprep.subr.mxu0 0.0
    %3931 = vmatpush1.msra.mxu0 0.0
    %3932 = vmatprep.subr.mxu0 0.0
    %3933 = vmatpush1.msra.mxu0 0.0
    %3934 = vmatprep.subr.mxu0 0.0
    %3935 = vmatpush1.msra.mxu0 0.0
    %3936 = vmatprep.subr.mxu0 0.0
    %3937 = vmatpush1.msra.mxu0 0.0
    %3938 = vmatprep.subr.mxu0 0.0
    %3939 = vmatpush1.msra.mxu0 0.0
    %3940 = vmatprep.mubr.f32.mxu0 0.0
    %3941 = vmatmul.mubr.f32.gmra.mrb[0].mxu0 %v3875
    %v3942 = vpop.f32.mrb[0].mxu0
    %v3943 = vadd.f32 %v94, %v3942
    %v3944 = vpop.f32.mrb[0].mxu0
    %v3945 = vadd.f32 %v95, %v3944
    %3946 = vdwg.mxu0
    %v3947 = vmax.f32 %v3943, %v3945
    %3948 = vmax.xlane.f32.xlu0 %v3947
    %v3949 = vpop.xlane.xlu0 %3948
    %v3950 = vsub.f32 %v3943, %v3949
    %v3951 = vsub.f32 %v3945, %v3949
    %v3952 = vmul.f32 %v3950, 1.442695
    %v3953 = vpow.pop %v3952
    %v3954 = vmul.f32 %v3951, 1.442695
    %v3955 = vpow.pop %v3954
    %v3956 = vadd.f32 %v3953, %v3955
    %3957 = vadd.xlane.f32.xlu0 %v3956
    %v3958 = vpop.xlane.xlu0 %3957
    %v3959 = vlog2.pop %v3958
    %v3960 = vmul.f32 %v3959, 0.6931472
    %v3961 = vsub.f32 %v3950, %v3960
    %v3962 = vsub.f32 %v3951, %v3960
    %s3963 = scalar_lea.vmem [#allocation7], 64
    %3964 = vst [vmem:[%s3963] sm:$0xff] %v3961
    %3965 = vst [vmem:[%s3963 + $0x8] sm:$0xff] %v3962
    %s3966 = scalar_lea.vmem %s0, 160
    %v3967 = vld [vmem:[%s3966] sm:$0xff]
    %v3968 = vld [vmem:[%s3966 + $0x8] sm:$0xff]
    %v3969 = vld [vmem:[%s3966 + $0x10] sm:$0xff]
    %v3970 = vld [vmem:[%s3966 + $0x18] sm:$0xff]
    %v3971 = vld [vmem:[%s3] sm:$0xff]
    %v3972 = vld [vmem:[%s3 + $0x8] sm:$0xff]
    %v3973 = vld [vmem:[%s3 + $0x10] sm:$0xff]
    %v3974 = vld [vmem:[%s3 + $0x18] sm:$0xff]
    %v3975 = vld [vmem:[%s3 + $0x20] sm:$0xff]
    %v3976 = vld [vmem:[%s3 + $0x28] sm:$0xff]
    %v3977 = vld [vmem:[%s3 + $0x30] sm:$0xff]
    %v3978 = vld [vmem:[%s3 + $0x38] sm:$0xff]
    %v3979 = vld [vmem:[%s3 + $0x40] sm:$0xff]
    %v3980 = vld [vmem:[%s3 + $0x48] sm:$0xff]
    %v3981 = vld [vmem:[%s3 + $0x50] sm:$0xff]
    %v3982 = vld [vmem:[%s3 + $0x58] sm:$0xff]
    %v3983 = vld [vmem:[%s3 + $0x60] sm:$0xff]
    %v3984 = vld [vmem:[%s3 + $0x68] sm:$0xff]
    %v3985 = vld [vmem:[%s3 + $0x70] sm:$0xff]
    %v3986 = vld [vmem:[%s3 + $0x78] sm:$0xff]
    %v3987 = vld [vmem:[%s3 + $0x80] sm:$0xff]
    %v3988 = vld [vmem:[%s3 + $0x88] sm:$0xff]
    %v3989 = vld [vmem:[%s3 + $0x90] sm:$0xff]
    %v3990 = vld [vmem:[%s3 + $0x98] sm:$0xff]
    %v3991 = vld [vmem:[%s3 + $0xa0] sm:$0xff]
    %v3992 = vld [vmem:[%s3 + $0xa8] sm:$0xff]
    %v3993 = vld [vmem:[%s3 + $0xb0] sm:$0xff]
    %v3994 = vld [vmem:[%s3 + $0xb8] sm:$0xff]
    %v3995 = vld [vmem:[%s3 + $0xc0] sm:$0xff]
    %v3996 = vld [vmem:[%s3 + $0xc8] sm:$0xff]
    %v3997 = vld [vmem:[%s3 + $0xd0] sm:$0xff]
    %v3998 = vld [vmem:[%s3 + $0xd8] sm:$0xff]
    %v3999 = vld [vmem:[%s3 + $0xe0] sm:$0xff]
    %v4000 = vld [vmem:[%s3 + $0xe8] sm:$0xff]
    %v4001 = vld [vmem:[%s3 + $0xf0] sm:$0xff]
    %v4002 = vld [vmem:[%s3 + $0xf8] sm:$0xff]
    %v4003 = vld [vmem:[%s3 + $0x100] sm:$0xff]
    %v4004 = vld [vmem:[%s3 + $0x108] sm:$0xff]
    %v4005 = vld [vmem:[%s3 + $0x110] sm:$0xff]
    %v4006 = vld [vmem:[%s3 + $0x118] sm:$0xff]
    %v4007 = vld [vmem:[%s3 + $0x120] sm:$0xff]
    %v4008 = vld [vmem:[%s3 + $0x128] sm:$0xff]
    %v4009 = vld [vmem:[%s3 + $0x130] sm:$0xff]
    %v4010 = vld [vmem:[%s3 + $0x138] sm:$0xff]
    %v4011 = vld [vmem:[%s3 + $0x140] sm:$0xff]
    %v4012 = vld [vmem:[%s3 + $0x148] sm:$0xff]
    %v4013 = vld [vmem:[%s3 + $0x150] sm:$0xff]
    %v4014 = vld [vmem:[%s3 + $0x158] sm:$0xff]
    %v4015 = vld [vmem:[%s3 + $0x160] sm:$0xff]
    %v4016 = vld [vmem:[%s3 + $0x168] sm:$0xff]
    %v4017 = vld [vmem:[%s3 + $0x170] sm:$0xff]
    %v4018 = vld [vmem:[%s3 + $0x178] sm:$0xff]
    %v4019 = vld [vmem:[%s3 + $0x180] sm:$0xff]
    %v4020 = vld [vmem:[%s3 + $0x188] sm:$0xff]
    %v4021 = vld [vmem:[%s3 + $0x190] sm:$0xff]
    %v4022 = vld [vmem:[%s3 + $0x198] sm:$0xff]
    %v4023 = vld [vmem:[%s3 + $0x1a0] sm:$0xff]
    %v4024 = vld [vmem:[%s3 + $0x1a8] sm:$0xff]
    %v4025 = vld [vmem:[%s3 + $0x1b0] sm:$0xff]
    %v4026 = vld [vmem:[%s3 + $0x1b8] sm:$0xff]
    %v4027 = vld [vmem:[%s3 + $0x1c0] sm:$0xff]
    %v4028 = vld [vmem:[%s3 + $0x1c8] sm:$0xff]
    %v4029 = vld [vmem:[%s3 + $0x1d0] sm:$0xff]
    %v4030 = vld [vmem:[%s3 + $0x1d8] sm:$0xff]
    %v4031 = vld [vmem:[%s3 + $0x1e0] sm:$0xff]
    %v4032 = vld [vmem:[%s3 + $0x1e8] sm:$0xff]
    %v4033 = vld [vmem:[%s3 + $0x1f0] sm:$0xff]
    %v4034 = vld [vmem:[%s3 + $0x1f8] sm:$0xff]
    %4035 = vmatprep.subr.mxu0 %v3972
    %4036 = vmatpush1.msra.mxu0 %v3971
    %4037 = vmatprep.subr.mxu0 %v3976
    %4038 = vmatpush1.msra.mxu0 %v3975
    %4039 = vmatprep.subr.mxu0 %v3980
    %4040 = vmatpush1.msra.mxu0 %v3979
    %4041 = vmatprep.subr.mxu0 %v3984
    %4042 = vmatpush1.msra.mxu0 %v3983
    %4043 = vmatprep.subr.mxu0 %v3988
    %4044 = vmatpush1.msra.mxu0 %v3987
    %4045 = vmatprep.subr.mxu0 %v3992
    %4046 = vmatpush1.msra.mxu0 %v3991
    %4047 = vmatprep.subr.mxu0 %v3996
    %4048 = vmatpush1.msra.mxu0 %v3995
    %4049 = vmatprep.subr.mxu0 %v4000
    %4050 = vmatpush1.msra.mxu0 %v3999
    %4051 = vmatprep.subr.mxu0 %v4004
    %4052 = vmatpush1.msra.mxu0 %v4003
    %4053 = vmatprep.subr.mxu0 %v4008
    %4054 = vmatpush1.msra.mxu0 %v4007
    %4055 = vmatprep.subr.mxu0 %v4012
    %4056 = vmatpush1.msra.mxu0 %v4011
    %4057 = vmatprep.subr.mxu0 %v4016
    %4058 = vmatpush1.msra.mxu0 %v4015
    %4059 = vmatprep.subr.mxu0 %v4020
    %4060 = vmatpush1.msra.mxu0 %v4019
    %4061 = vmatprep.subr.mxu0 %v4024
    %4062 = vmatpush1.msra.mxu0 %v4023
    %4063 = vmatprep.subr.mxu0 %v4028
    %4064 = vmatpush1.msra.mxu0 %v4027
    %4065 = vmatprep.subr.mxu0 %v4032
    %4066 = vmatpush1.msra.mxu0 %v4031
    %4067 = vmatprep.subr.mxu0 0.0
    %4068 = vmatpush1.msra.mxu0 0.0
    %4069 = vmatprep.subr.mxu0 0.0
    %4070 = vmatpush1.msra.mxu0 0.0
    %4071 = vmatprep.subr.mxu0 0.0
    %4072 = vmatpush1.msra.mxu0 0.0
    %4073 = vmatprep.subr.mxu0 0.0
    %4074 = vmatpush1.msra.mxu0 0.0
    %4075 = vmatprep.subr.mxu0 0.0
    %4076 = vmatpush1.msra.mxu0 0.0
    %4077 = vmatprep.subr.mxu0 0.0
    %4078 = vmatpush1.msra.mxu0 0.0
    %4079 = vmatprep.subr.mxu0 0.0
    %4080 = vmatpush1.msra.mxu0 0.0
    %4081 = vmatprep.subr.mxu0 0.0
    %4082 = vmatpush1.msra.mxu0 0.0
    %4083 = vmatprep.subr.mxu0 0.0
    %4084 = vmatpush1.msra.mxu0 0.0
    %4085 = vmatprep.subr.mxu0 0.0
    %4086 = vmatpush1.msra.mxu0 0.0
    %4087 = vmatprep.subr.mxu0 0.0
    %4088 = vmatpush1.msra.mxu0 0.0
    %4089 = vmatprep.subr.mxu0 0.0
    %4090 = vmatpush1.msra.mxu0 0.0
    %4091 = vmatprep.subr.mxu0 0.0
    %4092 = vmatpush1.msra.mxu0 0.0
    %4093 = vmatprep.subr.mxu0 0.0
    %4094 = vmatpush1.msra.mxu0 0.0
    %4095 = vmatprep.subr.mxu0 0.0
    %4096 = vmatpush1.msra.mxu0 0.0
    %4097 = vmatprep.subr.mxu0 0.0
    %4098 = vmatpush1.msra.mxu0 0.0
    %4099 = vmatprep.mubr.f32.mxu0 0.0
    %4100 = vmatmul.mubr.f32.gmra.mrb[0].mxu0 %v3431
    %v4101 = vpop.f32.mrb[0].mxu0
    %v4102 = vadd.f32 0.0, %v4101
    %v4103 = vpop.f32.mrb[0].mxu0
    %v4104 = vadd.f32 0.0, %v4103
    %4105 = vdwg.mxu0
    %4106 = vmatprep.subr.mxu0 %v3974
    %4107 = vmatpush1.msra.mxu0 %v3973
    %4108 = vmatprep.subr.mxu0 %v3978
    %4109 = vmatpush1.msra.mxu0 %v3977
    %4110 = vmatprep.subr.mxu0 %v3982
    %4111 = vmatpush1.msra.mxu0 %v3981
    %4112 = vmatprep.subr.mxu0 %v3986
    %4113 = vmatpush1.msra.mxu0 %v3985
    %4114 = vmatprep.subr.mxu0 %v3990
    %4115 = vmatpush1.msra.mxu0 %v3989
    %4116 = vmatprep.subr.mxu0 %v3994
    %4117 = vmatpush1.msra.mxu0 %v3993
    %4118 = vmatprep.subr.mxu0 %v3998
    %4119 = vmatpush1.msra.mxu0 %v3997
    %4120 = vmatprep.subr.mxu0 %v4002
    %4121 = vmatpush1.msra.mxu0 %v4001
    %4122 = vmatprep.subr.mxu0 %v4006
    %4123 = vmatpush1.msra.mxu0 %v4005
    %4124 = vmatprep.subr.mxu0 %v4010
    %4125 = vmatpush1.msra.mxu0 %v4009
    %4126 = vmatprep.subr.mxu0 %v4014
    %4127 = vmatpush1.msra.mxu0 %v4013
    %4128 = vmatprep.subr.mxu0 %v4018
    %4129 = vmatpush1.msra.mxu0 %v4017
    %4130 = vmatprep.subr.mxu0 %v4022
    %4131 = vmatpush1.msra.mxu0 %v4021
    %4132 = vmatprep.subr.mxu0 %v4026
    %4133 = vmatpush1.msra.mxu0 %v4025
    %4134 = vmatprep.subr.mxu0 %v4030
    %4135 = vmatpush1.msra.mxu0 %v4029
    %4136 = vmatprep.subr.mxu0 %v4034
    %4137 = vmatpush1.msra.mxu0 %v4033
    %4138 = vmatprep.subr.mxu0 0.0
    %4139 = vmatpush1.msra.mxu0 0.0
    %4140 = vmatprep.subr.mxu0 0.0
    %4141 = vmatpush1.msra.mxu0 0.0
    %4142 = vmatprep.subr.mxu0 0.0
    %4143 = vmatpush1.msra.mxu0 0.0
    %4144 = vmatprep.subr.mxu0 0.0
    %4145 = vmatpush1.msra.mxu0 0.0
    %4146 = vmatprep.subr.mxu0 0.0
    %4147 = vmatpush1.msra.mxu0 0.0
    %4148 = vmatprep.subr.mxu0 0.0
    %4149 = vmatpush1.msra.mxu0 0.0
    %4150 = vmatprep.subr.mxu0 0.0
    %4151 = vmatpush1.msra.mxu0 0.0
    %4152 = vmatprep.subr.mxu0 0.0
    %4153 = vmatpush1.msra.mxu0 0.0
    %4154 = vmatprep.subr.mxu0 0.0
    %4155 = vmatpush1.msra.mxu0 0.0
    %4156 = vmatprep.subr.mxu0 0.0
    %4157 = vmatpush1.msra.mxu0 0.0
    %4158 = vmatprep.subr.mxu0 0.0
    %4159 = vmatpush1.msra.mxu0 0.0
    %4160 = vmatprep.subr.mxu0 0.0
    %4161 = vmatpush1.msra.mxu0 0.0
    %4162 = vmatprep.subr.mxu0 0.0
    %4163 = vmatpush1.msra.mxu0 0.0
    %4164 = vmatprep.subr.mxu0 0.0
    %4165 = vmatpush1.msra.mxu0 0.0
    %4166 = vmatprep.subr.mxu0 0.0
    %4167 = vmatpush1.msra.mxu0 0.0
    %4168 = vmatprep.subr.mxu0 0.0
    %4169 = vmatpush1.msra.mxu0 0.0
    %4170 = vmatprep.mubr.f32.mxu0 0.0
    %4171 = vmatmul.mubr.f32.gmra.mrb[0].mxu0 %v3431
    %v4172 = vpop.f32.mrb[0].mxu0
    %v4173 = vadd.f32 0.0, %v4172
    %v4174 = vpop.f32.mrb[0].mxu0
    %v4175 = vadd.f32 0.0, %v4174
    %4176 = vdwg.mxu0
    %v4177 = vadd.f32 %v3967, %v4102
    %v4178 = vadd.f32 %v3968, %v4104
    %v4179 = vadd.f32 %v3969, %v4173
    %v4180 = vadd.f32 %v3970, %v4175
    %v4181 = vxor.u32 %v4177, 2147483648
    %v4182 = vmul.f32 %v4181, 1.442695
    %v4183 = vpow.pop %v4182
    %v4184 = vadd.f32 %v4183, 1.0
    %v4185 = vrcp.pop %v4184
    %v4186 = vmul.f32 1.0, %v4185
    %v4187 = vxor.u32 %v4178, 2147483648
    %v4188 = vmul.f32 %v4187, 1.442695
    %v4189 = vpow.pop %v4188
    %v4190 = vadd.f32 %v4189, 1.0
    %v4191 = vrcp.pop %v4190
    %v4192 = vmul.f32 1.0, %v4191
    %v4193 = vtanh.pop %v4179
    %v4194 = vxor.u32 %v4180, 2147483648
    %v4195 = vmul.f32 %v4194, 1.442695
    %v4196 = vpow.pop %v4195
    %v4197 = vadd.f32 %v4196, 1.0
    %v4198 = vrcp.pop %v4197
    %v4199 = vmul.f32 1.0, %v4198
    %v4200 = vmul.f32 %v4192, %v3429
    %v4201 = vmul.f32 %v4186, %v4193
    %v4202 = vadd.f32 %v4200, %v4201
    %v4203 = vtanh.pop %v4202
    %v4204 = vmul.f32 %v4199, %v4203
    %v4205 = vld [vmem:[#allocation2] sm:$0xff]
    %v4206 = vld [vmem:[#allocation2 + $0x8] sm:$0xff]
    %v4207 = vld [vmem:[#allocation2 + $0x10] sm:$0xff]
    %v4208 = vld [vmem:[#allocation2 + $0x18] sm:$0xff]
    %v4209 = vld [vmem:[#allocation2 + $0x20] sm:$0xff]
    %v4210 = vld [vmem:[#allocation2 + $0x28] sm:$0xff]
    %v4211 = vld [vmem:[#allocation2 + $0x30] sm:$0xff]
    %v4212 = vld [vmem:[#allocation2 + $0x38] sm:$0xff]
    %v4213 = vld [vmem:[#allocation2 + $0x40] sm:$0xff]
    %v4214 = vld [vmem:[#allocation2 + $0x48] sm:$0xff]
    %v4215 = vld [vmem:[#allocation2 + $0x50] sm:$0xff]
    %v4216 = vld [vmem:[#allocation2 + $0x58] sm:$0xff]
    %v4217 = vld [vmem:[#allocation2 + $0x60] sm:$0xff]
    %v4218 = vld [vmem:[#allocation2 + $0x68] sm:$0xff]
    %v4219 = vld [vmem:[#allocation2 + $0x70] sm:$0xff]
    %v4220 = vld [vmem:[#allocation2 + $0x78] sm:$0xff]
    %v4221 = vld [vmem:[#allocation2 + $0x80] sm:$0xff]
    %v4222 = vld [vmem:[#allocation2 + $0x88] sm:$0xff]
    %v4223 = vld [vmem:[#allocation2 + $0x90] sm:$0xff]
    %v4224 = vld [vmem:[#allocation2 + $0x98] sm:$0xff]
    %v4225 = vld [vmem:[#allocation2 + $0xa0] sm:$0xff]
    %v4226 = vld [vmem:[#allocation2 + $0xa8] sm:$0xff]
    %v4227 = vld [vmem:[#allocation2 + $0xb0] sm:$0xff]
    %v4228 = vld [vmem:[#allocation2 + $0xb8] sm:$0xff]
    %v4229 = vld [vmem:[#allocation2 + $0xc0] sm:$0xff]
    %v4230 = vld [vmem:[#allocation2 + $0xc8] sm:$0xff]
    %v4231 = vld [vmem:[#allocation2 + $0xd0] sm:$0xff]
    %v4232 = vld [vmem:[#allocation2 + $0xd8] sm:$0xff]
    %v4233 = vld [vmem:[#allocation2 + $0xe0] sm:$0xff]
    %v4234 = vld [vmem:[#allocation2 + $0xe8] sm:$0xff]
    %v4235 = vld [vmem:[#allocation2 + $0xf0] sm:$0xff]
    %v4236 = vld [vmem:[#allocation2 + $0xf8] sm:$0xff]
    %v4237 = vld [vmem:[#allocation2 + $0x100] sm:$0xff]
    %v4238 = vld [vmem:[#allocation2 + $0x108] sm:$0xff]
    %v4239 = vld [vmem:[#allocation2 + $0x110] sm:$0xff]
    %v4240 = vld [vmem:[#allocation2 + $0x118] sm:$0xff]
    %v4241 = vld [vmem:[#allocation2 + $0x120] sm:$0xff]
    %v4242 = vld [vmem:[#allocation2 + $0x128] sm:$0xff]
    %v4243 = vld [vmem:[#allocation2 + $0x130] sm:$0xff]
    %v4244 = vld [vmem:[#allocation2 + $0x138] sm:$0xff]
    %v4245 = vld [vmem:[#allocation2 + $0x140] sm:$0xff]
    %v4246 = vld [vmem:[#allocation2 + $0x148] sm:$0xff]
    %v4247 = vld [vmem:[#allocation2 + $0x150] sm:$0xff]
    %v4248 = vld [vmem:[#allocation2 + $0x158] sm:$0xff]
    %v4249 = vld [vmem:[#allocation2 + $0x160] sm:$0xff]
    %v4250 = vld [vmem:[#allocation2 + $0x168] sm:$0xff]
    %v4251 = vld [vmem:[#allocation2 + $0x170] sm:$0xff]
    %v4252 = vld [vmem:[#allocation2 + $0x178] sm:$0xff]
    %v4253 = vld [vmem:[#allocation2 + $0x180] sm:$0xff]
    %v4254 = vld [vmem:[#allocation2 + $0x188] sm:$0xff]
    %v4255 = vld [vmem:[#allocation2 + $0x190] sm:$0xff]
    %v4256 = vld [vmem:[#allocation2 + $0x198] sm:$0xff]
    %v4257 = vld [vmem:[#allocation2 + $0x1a0] sm:$0xff]
    %v4258 = vld [vmem:[#allocation2 + $0x1a8] sm:$0xff]
    %v4259 = vld [vmem:[#allocation2 + $0x1b0] sm:$0xff]
    %v4260 = vld [vmem:[#allocation2 + $0x1b8] sm:$0xff]
    %v4261 = vld [vmem:[#allocation2 + $0x1c0] sm:$0xff]
    %v4262 = vld [vmem:[#allocation2 + $0x1c8] sm:$0xff]
    %v4263 = vld [vmem:[#allocation2 + $0x1d0] sm:$0xff]
    %v4264 = vld [vmem:[#allocation2 + $0x1d8] sm:$0xff]
    %v4265 = vld [vmem:[#allocation2 + $0x1e0] sm:$0xff]
    %v4266 = vld [vmem:[#allocation2 + $0x1e8] sm:$0xff]
    %v4267 = vld [vmem:[#allocation2 + $0x1f0] sm:$0xff]
    %v4268 = vld [vmem:[#allocation2 + $0x1f8] sm:$0xff]
    %v4269 = vld [vmem:[%s404] sm:$0xff]
    %v4270 = vld [vmem:[%s404 + $0x8] sm:$0xff]
    %v4271 = vld [vmem:[%s404 + $0x10] sm:$0xff]
    %v4272 = vld [vmem:[%s404 + $0x18] sm:$0xff]
    %v4273 = vld [vmem:[%s404 + $0x20] sm:$0xff]
    %v4274 = vld [vmem:[%s404 + $0x28] sm:$0xff]
    %v4275 = vld [vmem:[%s404 + $0x30] sm:$0xff]
    %v4276 = vld [vmem:[%s404 + $0x38] sm:$0xff]
    %v4277 = vld [vmem:[%s404 + $0x40] sm:$0xff]
    %v4278 = vld [vmem:[%s404 + $0x48] sm:$0xff]
    %v4279 = vld [vmem:[%s404 + $0x50] sm:$0xff]
    %v4280 = vld [vmem:[%s404 + $0x58] sm:$0xff]
    %v4281 = vld [vmem:[%s404 + $0x60] sm:$0xff]
    %v4282 = vld [vmem:[%s404 + $0x68] sm:$0xff]
    %v4283 = vld [vmem:[%s404 + $0x70] sm:$0xff]
    %v4284 = vld [vmem:[%s404 + $0x78] sm:$0xff]
    %v4285 = vld [vmem:[%s404 + $0x80] sm:$0xff]
    %v4286 = vld [vmem:[%s404 + $0x88] sm:$0xff]
    %v4287 = vld [vmem:[%s404 + $0x90] sm:$0xff]
    %v4288 = vld [vmem:[%s404 + $0x98] sm:$0xff]
    %v4289 = vld [vmem:[%s404 + $0xa0] sm:$0xff]
    %v4290 = vld [vmem:[%s404 + $0xa8] sm:$0xff]
    %v4291 = vld [vmem:[%s404 + $0xb0] sm:$0xff]
    %v4292 = vld [vmem:[%s404 + $0xb8] sm:$0xff]
    %v4293 = vld [vmem:[%s404 + $0xc0] sm:$0xff]
    %v4294 = vld [vmem:[%s404 + $0xc8] sm:$0xff]
    %v4295 = vld [vmem:[%s404 + $0xd0] sm:$0xff]
    %v4296 = vld [vmem:[%s404 + $0xd8] sm:$0xff]
    %v4297 = vld [vmem:[%s404 + $0xe0] sm:$0xff]
    %v4298 = vld [vmem:[%s404 + $0xe8] sm:$0xff]
    %v4299 = vld [vmem:[%s404 + $0xf0] sm:$0xff]
    %v4300 = vld [vmem:[%s404 + $0xf8] sm:$0xff]
    %v4301 = vld [vmem:[%s404 + $0x100] sm:$0xff]
    %v4302 = vld [vmem:[%s404 + $0x108] sm:$0xff]
    %v4303 = vld [vmem:[%s404 + $0x110] sm:$0xff]
    %v4304 = vld [vmem:[%s404 + $0x118] sm:$0xff]
    %v4305 = vld [vmem:[%s404 + $0x120] sm:$0xff]
    %v4306 = vld [vmem:[%s404 + $0x128] sm:$0xff]
    %v4307 = vld [vmem:[%s404 + $0x130] sm:$0xff]
    %v4308 = vld [vmem:[%s404 + $0x138] sm:$0xff]
    %v4309 = vld [vmem:[%s404 + $0x140] sm:$0xff]
    %v4310 = vld [vmem:[%s404 + $0x148] sm:$0xff]
    %v4311 = vld [vmem:[%s404 + $0x150] sm:$0xff]
    %v4312 = vld [vmem:[%s404 + $0x158] sm:$0xff]
    %v4313 = vld [vmem:[%s404 + $0x160] sm:$0xff]
    %v4314 = vld [vmem:[%s404 + $0x168] sm:$0xff]
    %v4315 = vld [vmem:[%s404 + $0x170] sm:$0xff]
    %v4316 = vld [vmem:[%s404 + $0x178] sm:$0xff]
    %v4317 = vld [vmem:[%s404 + $0x180] sm:$0xff]
    %v4318 = vld [vmem:[%s404 + $0x188] sm:$0xff]
    %v4319 = vld [vmem:[%s404 + $0x190] sm:$0xff]
    %v4320 = vld [vmem:[%s404 + $0x198] sm:$0xff]
    %v4321 = vld [vmem:[%s404 + $0x1a0] sm:$0xff]
    %v4322 = vld [vmem:[%s404 + $0x1a8] sm:$0xff]
    %v4323 = vld [vmem:[%s404 + $0x1b0] sm:$0xff]
    %v4324 = vld [vmem:[%s404 + $0x1b8] sm:$0xff]
    %v4325 = vld [vmem:[%s404 + $0x1c0] sm:$0xff]
    %v4326 = vld [vmem:[%s404 + $0x1c8] sm:$0xff]
    %v4327 = vld [vmem:[%s404 + $0x1d0] sm:$0xff]
    %v4328 = vld [vmem:[%s404 + $0x1d8] sm:$0xff]
    %v4329 = vld [vmem:[%s404 + $0x1e0] sm:$0xff]
    %v4330 = vld [vmem:[%s404 + $0x1e8] sm:$0xff]
    %v4331 = vld [vmem:[%s404 + $0x1f0] sm:$0xff]
    %v4332 = vld [vmem:[%s404 + $0x1f8] sm:$0xff]
    %4333 = vmatprep.subr.mxu0 %v4270
    %4334 = vmatpush1.msra.mxu0 %v4269
    %4335 = vmatprep.subr.mxu0 %v4274
    %4336 = vmatpush1.msra.mxu0 %v4273
    %4337 = vmatprep.subr.mxu0 %v4278
    %4338 = vmatpush1.msra.mxu0 %v4277
    %4339 = vmatprep.subr.mxu0 %v4282
    %4340 = vmatpush1.msra.mxu0 %v4281
    %4341 = vmatprep.subr.mxu0 %v4286
    %4342 = vmatpush1.msra.mxu0 %v4285
    %4343 = vmatprep.subr.mxu0 %v4290
    %4344 = vmatpush1.msra.mxu0 %v4289
    %4345 = vmatprep.subr.mxu0 %v4294
    %4346 = vmatpush1.msra.mxu0 %v4293
    %4347 = vmatprep.subr.mxu0 %v4298
    %4348 = vmatpush1.msra.mxu0 %v4297
    %4349 = vmatprep.subr.mxu0 %v4302
    %4350 = vmatpush1.msra.mxu0 %v4301
    %4351 = vmatprep.subr.mxu0 %v4306
    %4352 = vmatpush1.msra.mxu0 %v4305
    %4353 = vmatprep.subr.mxu0 %v4310
    %4354 = vmatpush1.msra.mxu0 %v4309
    %4355 = vmatprep.subr.mxu0 %v4314
    %4356 = vmatpush1.msra.mxu0 %v4313
    %4357 = vmatprep.subr.mxu0 %v4318
    %4358 = vmatpush1.msra.mxu0 %v4317
    %4359 = vmatprep.subr.mxu0 %v4322
    %4360 = vmatpush1.msra.mxu0 %v4321
    %4361 = vmatprep.subr.mxu0 %v4326
    %4362 = vmatpush1.msra.mxu0 %v4325
    %4363 = vmatprep.subr.mxu0 %v4330
    %4364 = vmatpush1.msra.mxu0 %v4329
    %4365 = vmatprep.subr.mxu0 0.0
    %4366 = vmatpush1.msra.mxu0 0.0
    %4367 = vmatprep.subr.mxu0 0.0
    %4368 = vmatpush1.msra.mxu0 0.0
    %4369 = vmatprep.subr.mxu0 0.0
    %4370 = vmatpush1.msra.mxu0 0.0
    %4371 = vmatprep.subr.mxu0 0.0
    %4372 = vmatpush1.msra.mxu0 0.0
    %4373 = vmatprep.subr.mxu0 0.0
    %4374 = vmatpush1.msra.mxu0 0.0
    %4375 = vmatprep.subr.mxu0 0.0
    %4376 = vmatpush1.msra.mxu0 0.0
    %4377 = vmatprep.subr.mxu0 0.0
    %4378 = vmatpush1.msra.mxu0 0.0
    %4379 = vmatprep.subr.mxu0 0.0
    %4380 = vmatpush1.msra.mxu0 0.0
    %4381 = vmatprep.subr.mxu0 0.0
    %4382 = vmatpush1.msra.mxu0 0.0
    %4383 = vmatprep.subr.mxu0 0.0
    %4384 = vmatpush1.msra.mxu0 0.0
    %4385 = vmatprep.subr.mxu0 0.0
    %4386 = vmatpush1.msra.mxu0 0.0
    %4387 = vmatprep.subr.mxu0 0.0
    %4388 = vmatpush1.msra.mxu0 0.0
    %4389 = vmatprep.subr.mxu0 0.0
    %4390 = vmatpush1.msra.mxu0 0.0
    %4391 = vmatprep.subr.mxu0 0.0
    %4392 = vmatpush1.msra.mxu0 0.0
    %4393 = vmatprep.subr.mxu0 0.0
    %4394 = vmatpush1.msra.mxu0 0.0
    %4395 = vmatprep.subr.mxu0 0.0
    %4396 = vmatpush1.msra.mxu0 0.0
    %4397 = vmatprep.mubr.f32.mxu0 0.0
    %4398 = vmatmul.mubr.f32.gmra.mrb[0].mxu0 %v3875
    %v4399 = vpop.f32.mrb[0].mxu0
    %v4400 = vadd.f32 0.0, %v4399
    %v4401 = vpop.f32.mrb[0].mxu0
    %v4402 = vadd.f32 0.0, %v4401
    %4403 = vdwg.mxu0
    %4404 = vmatprep.subr.mxu0 %v4272
    %4405 = vmatpush1.msra.mxu0 %v4271
    %4406 = vmatprep.subr.mxu0 %v4276
    %4407 = vmatpush1.msra.mxu0 %v4275
    %4408 = vmatprep.subr.mxu0 %v4280
    %4409 = vmatpush1.msra.mxu0 %v4279
    %4410 = vmatprep.subr.mxu0 %v4284
    %4411 = vmatpush1.msra.mxu0 %v4283
    %4412 = vmatprep.subr.mxu0 %v4288
    %4413 = vmatpush1.msra.mxu0 %v4287
    %4414 = vmatprep.subr.mxu0 %v4292
    %4415 = vmatpush1.msra.mxu0 %v4291
    %4416 = vmatprep.subr.mxu0 %v4296
    %4417 = vmatpush1.msra.mxu0 %v4295
    %4418 = vmatprep.subr.mxu0 %v4300
    %4419 = vmatpush1.msra.mxu0 %v4299
    %4420 = vmatprep.subr.mxu0 %v4304
    %4421 = vmatpush1.msra.mxu0 %v4303
    %4422 = vmatprep.subr.mxu0 %v4308
    %4423 = vmatpush1.msra.mxu0 %v4307
    %4424 = vmatprep.subr.mxu0 %v4312
    %4425 = vmatpush1.msra.mxu0 %v4311
    %4426 = vmatprep.subr.mxu0 %v4316
    %4427 = vmatpush1.msra.mxu0 %v4315
    %4428 = vmatprep.subr.mxu0 %v4320
    %4429 = vmatpush1.msra.mxu0 %v4319
    %4430 = vmatprep.subr.mxu0 %v4324
    %4431 = vmatpush1.msra.mxu0 %v4323
    %4432 = vmatprep.subr.mxu0 %v4328
    %4433 = vmatpush1.msra.mxu0 %v4327
    %4434 = vmatprep.subr.mxu0 %v4332
    %4435 = vmatpush1.msra.mxu0 %v4331
    %4436 = vmatprep.subr.mxu0 0.0
    %4437 = vmatpush1.msra.mxu0 0.0
    %4438 = vmatprep.subr.mxu0 0.0
    %4439 = vmatpush1.msra.mxu0 0.0
    %4440 = vmatprep.subr.mxu0 0.0
    %4441 = vmatpush1.msra.mxu0 0.0
    %4442 = vmatprep.subr.mxu0 0.0
    %4443 = vmatpush1.msra.mxu0 0.0
    %4444 = vmatprep.subr.mxu0 0.0
    %4445 = vmatpush1.msra.mxu0 0.0
    %4446 = vmatprep.subr.mxu0 0.0
    %4447 = vmatpush1.msra.mxu0 0.0
    %4448 = vmatprep.subr.mxu0 0.0
    %4449 = vmatpush1.msra.mxu0 0.0
    %4450 = vmatprep.subr.mxu0 0.0
    %4451 = vmatpush1.msra.mxu0 0.0
    %4452 = vmatprep.subr.mxu0 0.0
    %4453 = vmatpush1.msra.mxu0 0.0
    %4454 = vmatprep.subr.mxu0 0.0
    %4455 = vmatpush1.msra.mxu0 0.0
    %4456 = vmatprep.subr.mxu0 0.0
    %4457 = vmatpush1.msra.mxu0 0.0
    %4458 = vmatprep.subr.mxu0 0.0
    %4459 = vmatpush1.msra.mxu0 0.0
    %4460 = vmatprep.subr.mxu0 0.0
    %4461 = vmatpush1.msra.mxu0 0.0
    %4462 = vmatprep.subr.mxu0 0.0
    %4463 = vmatpush1.msra.mxu0 0.0
    %4464 = vmatprep.subr.mxu0 0.0
    %4465 = vmatpush1.msra.mxu0 0.0
    %4466 = vmatprep.subr.mxu0 0.0
    %4467 = vmatpush1.msra.mxu0 0.0
    %4468 = vmatprep.mubr.f32.mxu0 0.0
    %4469 = vmatmul.mubr.f32.gmra.mrb[0].mxu0 %v3875
    %v4470 = vpop.f32.mrb[0].mxu0
    %v4471 = vadd.f32 0.0, %v4470
    %v4472 = vpop.f32.mrb[0].mxu0
    %v4473 = vadd.f32 0.0, %v4472
    %4474 = vdwg.mxu0
    %4475 = vmatprep.subr.mxu0 %v4206
    %4476 = vmatpush1.msra.mxu0 %v4205
    %4477 = vmatprep.subr.mxu0 %v4210
    %4478 = vmatpush1.msra.mxu0 %v4209
    %4479 = vmatprep.subr.mxu0 %v4214
    %4480 = vmatpush1.msra.mxu0 %v4213
    %4481 = vmatprep.subr.mxu0 %v4218
    %4482 = vmatpush1.msra.mxu0 %v4217
    %4483 = vmatprep.subr.mxu0 %v4222
    %4484 = vmatpush1.msra.mxu0 %v4221
    %4485 = vmatprep.subr.mxu0 %v4226
    %4486 = vmatpush1.msra.mxu0 %v4225
    %4487 = vmatprep.subr.mxu0 %v4230
    %4488 = vmatpush1.msra.mxu0 %v4229
    %4489 = vmatprep.subr.mxu0 %v4234
    %4490 = vmatpush1.msra.mxu0 %v4233
    %4491 = vmatprep.subr.mxu0 %v4238
    %4492 = vmatpush1.msra.mxu0 %v4237
    %4493 = vmatprep.subr.mxu0 %v4242
    %4494 = vmatpush1.msra.mxu0 %v4241
    %4495 = vmatprep.subr.mxu0 %v4246
    %4496 = vmatpush1.msra.mxu0 %v4245
    %4497 = vmatprep.subr.mxu0 %v4250
    %4498 = vmatpush1.msra.mxu0 %v4249
    %4499 = vmatprep.subr.mxu0 %v4254
    %4500 = vmatpush1.msra.mxu0 %v4253
    %4501 = vmatprep.subr.mxu0 %v4258
    %4502 = vmatpush1.msra.mxu0 %v4257
    %4503 = vmatprep.subr.mxu0 %v4262
    %4504 = vmatpush1.msra.mxu0 %v4261
    %4505 = vmatprep.subr.mxu0 %v4266
    %4506 = vmatpush1.msra.mxu0 %v4265
    %4507 = vmatprep.subr.mxu0 0.0
    %4508 = vmatpush1.msra.mxu0 0.0
    %4509 = vmatprep.subr.mxu0 0.0
    %4510 = vmatpush1.msra.mxu0 0.0
    %4511 = vmatprep.subr.mxu0 0.0
    %4512 = vmatpush1.msra.mxu0 0.0
    %4513 = vmatprep.subr.mxu0 0.0
    %4514 = vmatpush1.msra.mxu0 0.0
    %4515 = vmatprep.subr.mxu0 0.0
    %4516 = vmatpush1.msra.mxu0 0.0
    %4517 = vmatprep.subr.mxu0 0.0
    %4518 = vmatpush1.msra.mxu0 0.0
    %4519 = vmatprep.subr.mxu0 0.0
    %4520 = vmatpush1.msra.mxu0 0.0
    %4521 = vmatprep.subr.mxu0 0.0
    %4522 = vmatpush1.msra.mxu0 0.0
    %4523 = vmatprep.subr.mxu0 0.0
    %4524 = vmatpush1.msra.mxu0 0.0
    %4525 = vmatprep.subr.mxu0 0.0
    %4526 = vmatpush1.msra.mxu0 0.0
    %4527 = vmatprep.subr.mxu0 0.0
    %4528 = vmatpush1.msra.mxu0 0.0
    %4529 = vmatprep.subr.mxu0 0.0
    %4530 = vmatpush1.msra.mxu0 0.0
    %4531 = vmatprep.subr.mxu0 0.0
    %4532 = vmatpush1.msra.mxu0 0.0
    %4533 = vmatprep.subr.mxu0 0.0
    %4534 = vmatpush1.msra.mxu0 0.0
    %4535 = vmatprep.subr.mxu0 0.0
    %4536 = vmatpush1.msra.mxu0 0.0
    %4537 = vmatprep.subr.mxu0 0.0
    %4538 = vmatpush1.msra.mxu0 0.0
    %4539 = vmatprep.mubr.f32.mxu0 0.0
    %4540 = vmatmul.mubr.f32.gmra.mrb[0].mxu0 %v4204
    %v4541 = vpop.f32.mrb[0].mxu0
    %v4542 = vadd.f32 %v4400, %v4541
    %v4543 = vpop.f32.mrb[0].mxu0
    %v4544 = vadd.f32 %v4402, %v4543
    %4545 = vdwg.mxu0
    %4546 = vmatprep.subr.mxu0 %v4208
    %4547 = vmatpush1.msra.mxu0 %v4207
    %4548 = vmatprep.subr.mxu0 %v4212
    %4549 = vmatpush1.msra.mxu0 %v4211
    %4550 = vmatprep.subr.mxu0 %v4216
    %4551 = vmatpush1.msra.mxu0 %v4215
    %4552 = vmatprep.subr.mxu0 %v4220
    %4553 = vmatpush1.msra.mxu0 %v4219
    %4554 = vmatprep.subr.mxu0 %v4224
    %4555 = vmatpush1.msra.mxu0 %v4223
    %4556 = vmatprep.subr.mxu0 %v4228
    %4557 = vmatpush1.msra.mxu0 %v4227
    %4558 = vmatprep.subr.mxu0 %v4232
    %4559 = vmatpush1.msra.mxu0 %v4231
    %4560 = vmatprep.subr.mxu0 %v4236
    %4561 = vmatpush1.msra.mxu0 %v4235
    %4562 = vmatprep.subr.mxu0 %v4240
    %4563 = vmatpush1.msra.mxu0 %v4239
    %4564 = vmatprep.subr.mxu0 %v4244
    %4565 = vmatpush1.msra.mxu0 %v4243
    %4566 = vmatprep.subr.mxu0 %v4248
    %4567 = vmatpush1.msra.mxu0 %v4247
    %4568 = vmatprep.subr.mxu0 %v4252
    %4569 = vmatpush1.msra.mxu0 %v4251
    %4570 = vmatprep.subr.mxu0 %v4256
    %4571 = vmatpush1.msra.mxu0 %v4255
    %4572 = vmatprep.subr.mxu0 %v4260
    %4573 = vmatpush1.msra.mxu0 %v4259
    %4574 = vmatprep.subr.mxu0 %v4264
    %4575 = vmatpush1.msra.mxu0 %v4263
    %4576 = vmatprep.subr.mxu0 %v4268
    %4577 = vmatpush1.msra.mxu0 %v4267
    %4578 = vmatprep.subr.mxu0 0.0
    %4579 = vmatpush1.msra.mxu0 0.0
    %4580 = vmatprep.subr.mxu0 0.0
    %4581 = vmatpush1.msra.mxu0 0.0
    %4582 = vmatprep.subr.mxu0 0.0
    %4583 = vmatpush1.msra.mxu0 0.0
    %4584 = vmatprep.subr.mxu0 0.0
    %4585 = vmatpush1.msra.mxu0 0.0
    %4586 = vmatprep.subr.mxu0 0.0
    %4587 = vmatpush1.msra.mxu0 0.0
    %4588 = vmatprep.subr.mxu0 0.0
    %4589 = vmatpush1.msra.mxu0 0.0
    %4590 = vmatprep.subr.mxu0 0.0
    %4591 = vmatpush1.msra.mxu0 0.0
    %4592 = vmatprep.subr.mxu0 0.0
    %4593 = vmatpush1.msra.mxu0 0.0
    %4594 = vmatprep.subr.mxu0 0.0
    %4595 = vmatpush1.msra.mxu0 0.0
    %4596 = vmatprep.subr.mxu0 0.0
    %4597 = vmatpush1.msra.mxu0 0.0
    %4598 = vmatprep.subr.mxu0 0.0
    %4599 = vmatpush1.msra.mxu0 0.0
    %4600 = vmatprep.subr.mxu0 0.0
    %4601 = vmatpush1.msra.mxu0 0.0
    %4602 = vmatprep.subr.mxu0 0.0
    %4603 = vmatpush1.msra.mxu0 0.0
    %4604 = vmatprep.subr.mxu0 0.0
    %4605 = vmatpush1.msra.mxu0 0.0
    %4606 = vmatprep.subr.mxu0 0.0
    %4607 = vmatpush1.msra.mxu0 0.0
    %4608 = vmatprep.subr.mxu0 0.0
    %4609 = vmatpush1.msra.mxu0 0.0
    %4610 = vmatprep.mubr.f32.mxu0 0.0
    %4611 = vmatmul.mubr.f32.gmra.mrb[0].mxu0 %v4204
    %v4612 = vpop.f32.mrb[0].mxu0
    %v4613 = vadd.f32 %v4471, %v4612
    %v4614 = vpop.f32.mrb[0].mxu0
    %v4615 = vadd.f32 %v4473, %v4614
    %4616 = vdwg.mxu0
    %v4617 = vld [vmem:[%s5] sm:$0xff]
    %v4618 = vld [vmem:[%s5 + $0x8] sm:$0xff]
    %v4619 = vld [vmem:[%s5 + $0x10] sm:$0xff]
    %v4620 = vld [vmem:[%s5 + $0x18] sm:$0xff]
    %v4621 = vadd.f32 %v4542, %v4617
    %v4622 = vadd.f32 %v4544, %v4618
    %v4623 = vadd.f32 %v4613, %v4619
    %v4624 = vadd.f32 %v4615, %v4620
    %v4625 = vxor.u32 %v4621, 2147483648
    %v4626 = vmul.f32 %v4625, 1.442695
    %v4627 = vpow.pop %v4626
    %v4628 = vadd.f32 %v4627, 1.0
    %v4629 = vrcp.pop %v4628
    %v4630 = vmul.f32 1.0, %v4629
    %v4631 = vxor.u32 %v4622, 2147483648
    %v4632 = vmul.f32 %v4631, 1.442695
    %v4633 = vpow.pop %v4632
    %v4634 = vadd.f32 %v4633, 1.0
    %v4635 = vrcp.pop %v4634
    %v4636 = vmul.f32 1.0, %v4635
    %v4637 = vtanh.pop %v4623
    %v4638 = vxor.u32 %v4624, 2147483648
    %v4639 = vmul.f32 %v4638, 1.442695
    %v4640 = vpow.pop %v4639
    %v4641 = vadd.f32 %v4640, 1.0
    %v4642 = vrcp.pop %v4641
    %v4643 = vmul.f32 1.0, %v4642
    %v4644 = vmul.f32 %v4636, %v3873
    %v4645 = vmul.f32 %v4630, %v4637
    %v4646 = vadd.f32 %v4644, %v4645
    %v4647 = vtanh.pop %v4646
    %v4648 = vmul.f32 %v4643, %v4647
    %4649 = vmatprep.subr.mxu0 %v63
    %4650 = vmatpush1.msra.mxu0 %v62
    %4651 = vmatprep.subr.mxu0 %v65
    %4652 = vmatpush1.msra.mxu0 %v64
    %4653 = vmatprep.subr.mxu0 %v67
    %4654 = vmatpush1.msra.mxu0 %v66
    %4655 = vmatprep.subr.mxu0 %v69
    %4656 = vmatpush1.msra.mxu0 %v68
    %4657 = vmatprep.subr.mxu0 %v71
    %4658 = vmatpush1.msra.mxu0 %v70
    %4659 = vmatprep.subr.mxu0 %v73
    %4660 = vmatpush1.msra.mxu0 %v72
    %4661 = vmatprep.subr.mxu0 %v75
    %4662 = vmatpush1.msra.mxu0 %v74
    %4663 = vmatprep.subr.mxu0 %v77
    %4664 = vmatpush1.msra.mxu0 %v76
    %4665 = vmatprep.subr.mxu0 %v79
    %4666 = vmatpush1.msra.mxu0 %v78
    %4667 = vmatprep.subr.mxu0 %v81
    %4668 = vmatpush1.msra.mxu0 %v80
    %4669 = vmatprep.subr.mxu0 %v83
    %4670 = vmatpush1.msra.mxu0 %v82
    %4671 = vmatprep.subr.mxu0 %v85
    %4672 = vmatpush1.msra.mxu0 %v84
    %4673 = vmatprep.subr.mxu0 %v87
    %4674 = vmatpush1.msra.mxu0 %v86
    %4675 = vmatprep.subr.mxu0 %v89
    %4676 = vmatpush1.msra.mxu0 %v88
    %4677 = vmatprep.subr.mxu0 %v91
    %4678 = vmatpush1.msra.mxu0 %v90
    %4679 = vmatprep.subr.mxu0 %v93
    %4680 = vmatpush1.msra.mxu0 %v92
    %4681 = vmatprep.subr.mxu0 0.0
    %4682 = vmatpush1.msra.mxu0 0.0
    %4683 = vmatprep.subr.mxu0 0.0
    %4684 = vmatpush1.msra.mxu0 0.0
    %4685 = vmatprep.subr.mxu0 0.0
    %4686 = vmatpush1.msra.mxu0 0.0
    %4687 = vmatprep.subr.mxu0 0.0
    %4688 = vmatpush1.msra.mxu0 0.0
    %4689 = vmatprep.subr.mxu0 0.0
    %4690 = vmatpush1.msra.mxu0 0.0
    %4691 = vmatprep.subr.mxu0 0.0
    %4692 = vmatpush1.msra.mxu0 0.0
    %4693 = vmatprep.subr.mxu0 0.0
    %4694 = vmatpush1.msra.mxu0 0.0
    %4695 = vmatprep.subr.mxu0 0.0
    %4696 = vmatpush1.msra.mxu0 0.0
    %4697 = vmatprep.subr.mxu0 0.0
    %4698 = vmatpush1.msra.mxu0 0.0
    %4699 = vmatprep.subr.mxu0 0.0
    %4700 = vmatpush1.msra.mxu0 0.0
    %4701 = vmatprep.subr.mxu0 0.0
    %4702 = vmatpush1.msra.mxu0 0.0
    %4703 = vmatprep.subr.mxu0 0.0
    %4704 = vmatpush1.msra.mxu0 0.0
    %4705 = vmatprep.subr.mxu0 0.0
    %4706 = vmatpush1.msra.mxu0 0.0
    %4707 = vmatprep.subr.mxu0 0.0
    %4708 = vmatpush1.msra.mxu0 0.0
    %4709 = vmatprep.subr.mxu0 0.0
    %4710 = vmatpush1.msra.mxu0 0.0
    %4711 = vmatprep.subr.mxu0 0.0
    %4712 = vmatpush1.msra.mxu0 0.0
    %4713 = vmatprep.mubr.f32.mxu0 0.0
    %4714 = vmatmul.mubr.f32.gmra.mrb[0].mxu0 %v4648
    %v4715 = vpop.f32.mrb[0].mxu0
    %v4716 = vadd.f32 %v94, %v4715
    %v4717 = vpop.f32.mrb[0].mxu0
    %v4718 = vadd.f32 %v95, %v4717
    %4719 = vdwg.mxu0
    %v4720 = vmax.f32 %v4716, %v4718
    %4721 = vmax.xlane.f32.xlu0 %v4720
    %v4722 = vpop.xlane.xlu0 %4721
    %v4723 = vsub.f32 %v4716, %v4722
    %v4724 = vsub.f32 %v4718, %v4722
    %v4725 = vmul.f32 %v4723, 1.442695
    %v4726 = vpow.pop %v4725
    %v4727 = vmul.f32 %v4724, 1.442695
    %v4728 = vpow.pop %v4727
    %v4729 = vadd.f32 %v4726, %v4728
    %4730 = vadd.xlane.f32.xlu0 %v4729
    %v4731 = vpop.xlane.xlu0 %4730
    %v4732 = vlog2.pop %v4731
    %v4733 = vmul.f32 %v4732, 0.6931472
    %v4734 = vsub.f32 %v4723, %v4733
    %v4735 = vsub.f32 %v4724, %v4733
    %s4736 = scalar_lea.vmem [#allocation7], 80
    %4737 = vst [vmem:[%s4736] sm:$0xff] %v4734
    %4738 = vst [vmem:[%s4736 + $0x8] sm:$0xff] %v4735
    %s4739 = scalar_lea.vmem %s0, 192
    %v4740 = vld [vmem:[%s4739] sm:$0xff]
    %v4741 = vld [vmem:[%s4739 + $0x8] sm:$0xff]
    %v4742 = vld [vmem:[%s4739 + $0x10] sm:$0xff]
    %v4743 = vld [vmem:[%s4739 + $0x18] sm:$0xff]
    %v4744 = vld [vmem:[%s3] sm:$0xff]
    %v4745 = vld [vmem:[%s3 + $0x8] sm:$0xff]
    %v4746 = vld [vmem:[%s3 + $0x10] sm:$0xff]
    %v4747 = vld [vmem:[%s3 + $0x18] sm:$0xff]
    %v4748 = vld [vmem:[%s3 + $0x20] sm:$0xff]
    %v4749 = vld [vmem:[%s3 + $0x28] sm:$0xff]
    %v4750 = vld [vmem:[%s3 + $0x30] sm:$0xff]
    %v4751 = vld [vmem:[%s3 + $0x38] sm:$0xff]
    %v4752 = vld [vmem:[%s3 + $0x40] sm:$0xff]
    %v4753 = vld [vmem:[%s3 + $0x48] sm:$0xff]
    %v4754 = vld [vmem:[%s3 + $0x50] sm:$0xff]
    %v4755 = vld [vmem:[%s3 + $0x58] sm:$0xff]
    %v4756 = vld [vmem:[%s3 + $0x60] sm:$0xff]
    %v4757 = vld [vmem:[%s3 + $0x68] sm:$0xff]
    %v4758 = vld [vmem:[%s3 + $0x70] sm:$0xff]
    %v4759 = vld [vmem:[%s3 + $0x78] sm:$0xff]
    %v4760 = vld [vmem:[%s3 + $0x80] sm:$0xff]
    %v4761 = vld [vmem:[%s3 + $0x88] sm:$0xff]
    %v4762 = vld [vmem:[%s3 + $0x90] sm:$0xff]
    %v4763 = vld [vmem:[%s3 + $0x98] sm:$0xff]
    %v4764 = vld [vmem:[%s3 + $0xa0] sm:$0xff]
    %v4765 = vld [vmem:[%s3 + $0xa8] sm:$0xff]
    %v4766 = vld [vmem:[%s3 + $0xb0] sm:$0xff]
    %v4767 = vld [vmem:[%s3 + $0xb8] sm:$0xff]
    %v4768 = vld [vmem:[%s3 + $0xc0] sm:$0xff]
    %v4769 = vld [vmem:[%s3 + $0xc8] sm:$0xff]
    %v4770 = vld [vmem:[%s3 + $0xd0] sm:$0xff]
    %v4771 = vld [vmem:[%s3 + $0xd8] sm:$0xff]
    %v4772 = vld [vmem:[%s3 + $0xe0] sm:$0xff]
    %v4773 = vld [vmem:[%s3 + $0xe8] sm:$0xff]
    %v4774 = vld [vmem:[%s3 + $0xf0] sm:$0xff]
    %v4775 = vld [vmem:[%s3 + $0xf8] sm:$0xff]
    %v4776 = vld [vmem:[%s3 + $0x100] sm:$0xff]
    %v4777 = vld [vmem:[%s3 + $0x108] sm:$0xff]
    %v4778 = vld [vmem:[%s3 + $0x110] sm:$0xff]
    %v4779 = vld [vmem:[%s3 + $0x118] sm:$0xff]
    %v4780 = vld [vmem:[%s3 + $0x120] sm:$0xff]
    %v4781 = vld [vmem:[%s3 + $0x128] sm:$0xff]
    %v4782 = vld [vmem:[%s3 + $0x130] sm:$0xff]
    %v4783 = vld [vmem:[%s3 + $0x138] sm:$0xff]
    %v4784 = vld [vmem:[%s3 + $0x140] sm:$0xff]
    %v4785 = vld [vmem:[%s3 + $0x148] sm:$0xff]
    %v4786 = vld [vmem:[%s3 + $0x150] sm:$0xff]
    %v4787 = vld [vmem:[%s3 + $0x158] sm:$0xff]
    %v4788 = vld [vmem:[%s3 + $0x160] sm:$0xff]
    %v4789 = vld [vmem:[%s3 + $0x168] sm:$0xff]
    %v4790 = vld [vmem:[%s3 + $0x170] sm:$0xff]
    %v4791 = vld [vmem:[%s3 + $0x178] sm:$0xff]
    %v4792 = vld [vmem:[%s3 + $0x180] sm:$0xff]
    %v4793 = vld [vmem:[%s3 + $0x188] sm:$0xff]
    %v4794 = vld [vmem:[%s3 + $0x190] sm:$0xff]
    %v4795 = vld [vmem:[%s3 + $0x198] sm:$0xff]
    %v4796 = vld [vmem:[%s3 + $0x1a0] sm:$0xff]
    %v4797 = vld [vmem:[%s3 + $0x1a8] sm:$0xff]
    %v4798 = vld [vmem:[%s3 + $0x1b0] sm:$0xff]
    %v4799 = vld [vmem:[%s3 + $0x1b8] sm:$0xff]
    %v4800 = vld [vmem:[%s3 + $0x1c0] sm:$0xff]
    %v4801 = vld [vmem:[%s3 + $0x1c8] sm:$0xff]
    %v4802 = vld [vmem:[%s3 + $0x1d0] sm:$0xff]
    %v4803 = vld [vmem:[%s3 + $0x1d8] sm:$0xff]
    %v4804 = vld [vmem:[%s3 + $0x1e0] sm:$0xff]
    %v4805 = vld [vmem:[%s3 + $0x1e8] sm:$0xff]
    %v4806 = vld [vmem:[%s3 + $0x1f0] sm:$0xff]
    %v4807 = vld [vmem:[%s3 + $0x1f8] sm:$0xff]
    %4808 = vmatprep.subr.mxu0 %v4745
    %4809 = vmatpush1.msra.mxu0 %v4744
    %4810 = vmatprep.subr.mxu0 %v4749
    %4811 = vmatpush1.msra.mxu0 %v4748
    %4812 = vmatprep.subr.mxu0 %v4753
    %4813 = vmatpush1.msra.mxu0 %v4752
    %4814 = vmatprep.subr.mxu0 %v4757
    %4815 = vmatpush1.msra.mxu0 %v4756
    %4816 = vmatprep.subr.mxu0 %v4761
    %4817 = vmatpush1.msra.mxu0 %v4760
    %4818 = vmatprep.subr.mxu0 %v4765
    %4819 = vmatpush1.msra.mxu0 %v4764
    %4820 = vmatprep.subr.mxu0 %v4769
    %4821 = vmatpush1.msra.mxu0 %v4768
    %4822 = vmatprep.subr.mxu0 %v4773
    %4823 = vmatpush1.msra.mxu0 %v4772
    %4824 = vmatprep.subr.mxu0 %v4777
    %4825 = vmatpush1.msra.mxu0 %v4776
    %4826 = vmatprep.subr.mxu0 %v4781
    %4827 = vmatpush1.msra.mxu0 %v4780
    %4828 = vmatprep.subr.mxu0 %v4785
    %4829 = vmatpush1.msra.mxu0 %v4784
    %4830 = vmatprep.subr.mxu0 %v4789
    %4831 = vmatpush1.msra.mxu0 %v4788
    %4832 = vmatprep.subr.mxu0 %v4793
    %4833 = vmatpush1.msra.mxu0 %v4792
    %4834 = vmatprep.subr.mxu0 %v4797
    %4835 = vmatpush1.msra.mxu0 %v4796
    %4836 = vmatprep.subr.mxu0 %v4801
    %4837 = vmatpush1.msra.mxu0 %v4800
    %4838 = vmatprep.subr.mxu0 %v4805
    %4839 = vmatpush1.msra.mxu0 %v4804
    %4840 = vmatprep.subr.mxu0 0.0
    %4841 = vmatpush1.msra.mxu0 0.0
    %4842 = vmatprep.subr.mxu0 0.0
    %4843 = vmatpush1.msra.mxu0 0.0
    %4844 = vmatprep.subr.mxu0 0.0
    %4845 = vmatpush1.msra.mxu0 0.0
    %4846 = vmatprep.subr.mxu0 0.0
    %4847 = vmatpush1.msra.mxu0 0.0
    %4848 = vmatprep.subr.mxu0 0.0
    %4849 = vmatpush1.msra.mxu0 0.0
    %4850 = vmatprep.subr.mxu0 0.0
    %4851 = vmatpush1.msra.mxu0 0.0
    %4852 = vmatprep.subr.mxu0 0.0
    %4853 = vmatpush1.msra.mxu0 0.0
    %4854 = vmatprep.subr.mxu0 0.0
    %4855 = vmatpush1.msra.mxu0 0.0
    %4856 = vmatprep.subr.mxu0 0.0
    %4857 = vmatpush1.msra.mxu0 0.0
    %4858 = vmatprep.subr.mxu0 0.0
    %4859 = vmatpush1.msra.mxu0 0.0
    %4860 = vmatprep.subr.mxu0 0.0
    %4861 = vmatpush1.msra.mxu0 0.0
    %4862 = vmatprep.subr.mxu0 0.0
    %4863 = vmatpush1.msra.mxu0 0.0
    %4864 = vmatprep.subr.mxu0 0.0
    %4865 = vmatpush1.msra.mxu0 0.0
    %4866 = vmatprep.subr.mxu0 0.0
    %4867 = vmatpush1.msra.mxu0 0.0
    %4868 = vmatprep.subr.mxu0 0.0
    %4869 = vmatpush1.msra.mxu0 0.0
    %4870 = vmatprep.subr.mxu0 0.0
    %4871 = vmatpush1.msra.mxu0 0.0
    %4872 = vmatprep.mubr.f32.mxu0 0.0
    %4873 = vmatmul.mubr.f32.gmra.mrb[0].mxu0 %v4204
    %v4874 = vpop.f32.mrb[0].mxu0
    %v4875 = vadd.f32 0.0, %v4874
    %v4876 = vpop.f32.mrb[0].mxu0
    %v4877 = vadd.f32 0.0, %v4876
    %4878 = vdwg.mxu0
    %4879 = vmatprep.subr.mxu0 %v4747
    %4880 = vmatpush1.msra.mxu0 %v4746
    %4881 = vmatprep.subr.mxu0 %v4751
    %4882 = vmatpush1.msra.mxu0 %v4750
    %4883 = vmatprep.subr.mxu0 %v4755
    %4884 = vmatpush1.msra.mxu0 %v4754
    %4885 = vmatprep.subr.mxu0 %v4759
    %4886 = vmatpush1.msra.mxu0 %v4758
    %4887 = vmatprep.subr.mxu0 %v4763
    %4888 = vmatpush1.msra.mxu0 %v4762
    %4889 = vmatprep.subr.mxu0 %v4767
    %4890 = vmatpush1.msra.mxu0 %v4766
    %4891 = vmatprep.subr.mxu0 %v4771
    %4892 = vmatpush1.msra.mxu0 %v4770
    %4893 = vmatprep.subr.mxu0 %v4775
    %4894 = vmatpush1.msra.mxu0 %v4774
    %4895 = vmatprep.subr.mxu0 %v4779
    %4896 = vmatpush1.msra.mxu0 %v4778
    %4897 = vmatprep.subr.mxu0 %v4783
    %4898 = vmatpush1.msra.mxu0 %v4782
    %4899 = vmatprep.subr.mxu0 %v4787
    %4900 = vmatpush1.msra.mxu0 %v4786
    %4901 = vmatprep.subr.mxu0 %v4791
    %4902 = vmatpush1.msra.mxu0 %v4790
    %4903 = vmatprep.subr.mxu0 %v4795
    %4904 = vmatpush1.msra.mxu0 %v4794
    %4905 = vmatprep.subr.mxu0 %v4799
    %4906 = vmatpush1.msra.mxu0 %v4798
    %4907 = vmatprep.subr.mxu0 %v4803
    %4908 = vmatpush1.msra.mxu0 %v4802
    %4909 = vmatprep.subr.mxu0 %v4807
    %4910 = vmatpush1.msra.mxu0 %v4806
    %4911 = vmatprep.subr.mxu0 0.0
    %4912 = vmatpush1.msra.mxu0 0.0
    %4913 = vmatprep.subr.mxu0 0.0
    %4914 = vmatpush1.msra.mxu0 0.0
    %4915 = vmatprep.subr.mxu0 0.0
    %4916 = vmatpush1.msra.mxu0 0.0
    %4917 = vmatprep.subr.mxu0 0.0
    %4918 = vmatpush1.msra.mxu0 0.0
    %4919 = vmatprep.subr.mxu0 0.0
    %4920 = vmatpush1.msra.mxu0 0.0
    %4921 = vmatprep.subr.mxu0 0.0
    %4922 = vmatpush1.msra.mxu0 0.0
    %4923 = vmatprep.subr.mxu0 0.0
    %4924 = vmatpush1.msra.mxu0 0.0
    %4925 = vmatprep.subr.mxu0 0.0
    %4926 = vmatpush1.msra.mxu0 0.0
    %4927 = vmatprep.subr.mxu0 0.0
    %4928 = vmatpush1.msra.mxu0 0.0
    %4929 = vmatprep.subr.mxu0 0.0
    %4930 = vmatpush1.msra.mxu0 0.0
    %4931 = vmatprep.subr.mxu0 0.0
    %4932 = vmatpush1.msra.mxu0 0.0
    %4933 = vmatprep.subr.mxu0 0.0
    %4934 = vmatpush1.msra.mxu0 0.0
    %4935 = vmatprep.subr.mxu0 0.0
    %4936 = vmatpush1.msra.mxu0 0.0
    %4937 = vmatprep.subr.mxu0 0.0
    %4938 = vmatpush1.msra.mxu0 0.0
    %4939 = vmatprep.subr.mxu0 0.0
    %4940 = vmatpush1.msra.mxu0 0.0
    %4941 = vmatprep.subr.mxu0 0.0
    %4942 = vmatpush1.msra.mxu0 0.0
    %4943 = vmatprep.mubr.f32.mxu0 0.0
    %4944 = vmatmul.mubr.f32.gmra.mrb[0].mxu0 %v4204
    %v4945 = vpop.f32.mrb[0].mxu0
    %v4946 = vadd.f32 0.0, %v4945
    %v4947 = vpop.f32.mrb[0].mxu0
    %v4948 = vadd.f32 0.0, %v4947
    %4949 = vdwg.mxu0
    %v4950 = vadd.f32 %v4740, %v4875
    %v4951 = vadd.f32 %v4741, %v4877
    %v4952 = vadd.f32 %v4742, %v4946
    %v4953 = vadd.f32 %v4743, %v4948
    %v4954 = vxor.u32 %v4950, 2147483648
    %v4955 = vmul.f32 %v4954, 1.442695
    %v4956 = vpow.pop %v4955
    %v4957 = vadd.f32 %v4956, 1.0
    %v4958 = vrcp.pop %v4957
    %v4959 = vmul.f32 1.0, %v4958
    %v4960 = vxor.u32 %v4951, 2147483648
    %v4961 = vmul.f32 %v4960, 1.442695
    %v4962 = vpow.pop %v4961
    %v4963 = vadd.f32 %v4962, 1.0
    %v4964 = vrcp.pop %v4963
    %v4965 = vmul.f32 1.0, %v4964
    %v4966 = vtanh.pop %v4952
    %v4967 = vxor.u32 %v4953, 2147483648
    %v4968 = vmul.f32 %v4967, 1.442695
    %v4969 = vpow.pop %v4968
    %v4970 = vadd.f32 %v4969, 1.0
    %v4971 = vrcp.pop %v4970
    %v4972 = vmul.f32 1.0, %v4971
    %v4973 = vmul.f32 %v4965, %v4202
    %v4974 = vmul.f32 %v4959, %v4966
    %v4975 = vadd.f32 %v4973, %v4974
    %v4976 = vtanh.pop %v4975
    %v4977 = vmul.f32 %v4972, %v4976
    %v4978 = vld [vmem:[#allocation2] sm:$0xff]
    %v4979 = vld [vmem:[#allocation2 + $0x8] sm:$0xff]
    %v4980 = vld [vmem:[#allocation2 + $0x10] sm:$0xff]
    %v4981 = vld [vmem:[#allocation2 + $0x18] sm:$0xff]
    %v4982 = vld [vmem:[#allocation2 + $0x20] sm:$0xff]
    %v4983 = vld [vmem:[#allocation2 + $0x28] sm:$0xff]
    %v4984 = vld [vmem:[#allocation2 + $0x30] sm:$0xff]
    %v4985 = vld [vmem:[#allocation2 + $0x38] sm:$0xff]
    %v4986 = vld [vmem:[#allocation2 + $0x40] sm:$0xff]
    %v4987 = vld [vmem:[#allocation2 + $0x48] sm:$0xff]
    %v4988 = vld [vmem:[#allocation2 + $0x50] sm:$0xff]
    %v4989 = vld [vmem:[#allocation2 + $0x58] sm:$0xff]
    %v4990 = vld [vmem:[#allocation2 + $0x60] sm:$0xff]
    %v4991 = vld [vmem:[#allocation2 + $0x68] sm:$0xff]
    %v4992 = vld [vmem:[#allocation2 + $0x70] sm:$0xff]
    %v4993 = vld [vmem:[#allocation2 + $0x78] sm:$0xff]
    %v4994 = vld [vmem:[#allocation2 + $0x80] sm:$0xff]
    %v4995 = vld [vmem:[#allocation2 + $0x88] sm:$0xff]
    %v4996 = vld [vmem:[#allocation2 + $0x90] sm:$0xff]
    %v4997 = vld [vmem:[#allocation2 + $0x98] sm:$0xff]
    %v4998 = vld [vmem:[#allocation2 + $0xa0] sm:$0xff]
    %v4999 = vld [vmem:[#allocation2 + $0xa8] sm:$0xff]
    %v5000 = vld [vmem:[#allocation2 + $0xb0] sm:$0xff]
    %v5001 = vld [vmem:[#allocation2 + $0xb8] sm:$0xff]
    %v5002 = vld [vmem:[#allocation2 + $0xc0] sm:$0xff]
    %v5003 = vld [vmem:[#allocation2 + $0xc8] sm:$0xff]
    %v5004 = vld [vmem:[#allocation2 + $0xd0] sm:$0xff]
    %v5005 = vld [vmem:[#allocation2 + $0xd8] sm:$0xff]
    %v5006 = vld [vmem:[#allocation2 + $0xe0] sm:$0xff]
    %v5007 = vld [vmem:[#allocation2 + $0xe8] sm:$0xff]
    %v5008 = vld [vmem:[#allocation2 + $0xf0] sm:$0xff]
    %v5009 = vld [vmem:[#allocation2 + $0xf8] sm:$0xff]
    %v5010 = vld [vmem:[#allocation2 + $0x100] sm:$0xff]
    %v5011 = vld [vmem:[#allocation2 + $0x108] sm:$0xff]
    %v5012 = vld [vmem:[#allocation2 + $0x110] sm:$0xff]
    %v5013 = vld [vmem:[#allocation2 + $0x118] sm:$0xff]
    %v5014 = vld [vmem:[#allocation2 + $0x120] sm:$0xff]
    %v5015 = vld [vmem:[#allocation2 + $0x128] sm:$0xff]
    %v5016 = vld [vmem:[#allocation2 + $0x130] sm:$0xff]
    %v5017 = vld [vmem:[#allocation2 + $0x138] sm:$0xff]
    %v5018 = vld [vmem:[#allocation2 + $0x140] sm:$0xff]
    %v5019 = vld [vmem:[#allocation2 + $0x148] sm:$0xff]
    %v5020 = vld [vmem:[#allocation2 + $0x150] sm:$0xff]
    %v5021 = vld [vmem:[#allocation2 + $0x158] sm:$0xff]
    %v5022 = vld [vmem:[#allocation2 + $0x160] sm:$0xff]
    %v5023 = vld [vmem:[#allocation2 + $0x168] sm:$0xff]
    %v5024 = vld [vmem:[#allocation2 + $0x170] sm:$0xff]
    %v5025 = vld [vmem:[#allocation2 + $0x178] sm:$0xff]
    %v5026 = vld [vmem:[#allocation2 + $0x180] sm:$0xff]
    %v5027 = vld [vmem:[#allocation2 + $0x188] sm:$0xff]
    %v5028 = vld [vmem:[#allocation2 + $0x190] sm:$0xff]
    %v5029 = vld [vmem:[#allocation2 + $0x198] sm:$0xff]
    %v5030 = vld [vmem:[#allocation2 + $0x1a0] sm:$0xff]
    %v5031 = vld [vmem:[#allocation2 + $0x1a8] sm:$0xff]
    %v5032 = vld [vmem:[#allocation2 + $0x1b0] sm:$0xff]
    %v5033 = vld [vmem:[#allocation2 + $0x1b8] sm:$0xff]
    %v5034 = vld [vmem:[#allocation2 + $0x1c0] sm:$0xff]
    %v5035 = vld [vmem:[#allocation2 + $0x1c8] sm:$0xff]
    %v5036 = vld [vmem:[#allocation2 + $0x1d0] sm:$0xff]
    %v5037 = vld [vmem:[#allocation2 + $0x1d8] sm:$0xff]
    %v5038 = vld [vmem:[#allocation2 + $0x1e0] sm:$0xff]
    %v5039 = vld [vmem:[#allocation2 + $0x1e8] sm:$0xff]
    %v5040 = vld [vmem:[#allocation2 + $0x1f0] sm:$0xff]
    %v5041 = vld [vmem:[#allocation2 + $0x1f8] sm:$0xff]
    %v5042 = vld [vmem:[%s404] sm:$0xff]
    %v5043 = vld [vmem:[%s404 + $0x8] sm:$0xff]
    %v5044 = vld [vmem:[%s404 + $0x10] sm:$0xff]
    %v5045 = vld [vmem:[%s404 + $0x18] sm:$0xff]
    %v5046 = vld [vmem:[%s404 + $0x20] sm:$0xff]
    %v5047 = vld [vmem:[%s404 + $0x28] sm:$0xff]
    %v5048 = vld [vmem:[%s404 + $0x30] sm:$0xff]
    %v5049 = vld [vmem:[%s404 + $0x38] sm:$0xff]
    %v5050 = vld [vmem:[%s404 + $0x40] sm:$0xff]
    %v5051 = vld [vmem:[%s404 + $0x48] sm:$0xff]
    %v5052 = vld [vmem:[%s404 + $0x50] sm:$0xff]
    %v5053 = vld [vmem:[%s404 + $0x58] sm:$0xff]
    %v5054 = vld [vmem:[%s404 + $0x60] sm:$0xff]
    %v5055 = vld [vmem:[%s404 + $0x68] sm:$0xff]
    %v5056 = vld [vmem:[%s404 + $0x70] sm:$0xff]
    %v5057 = vld [vmem:[%s404 + $0x78] sm:$0xff]
    %v5058 = vld [vmem:[%s404 + $0x80] sm:$0xff]
    %v5059 = vld [vmem:[%s404 + $0x88] sm:$0xff]
    %v5060 = vld [vmem:[%s404 + $0x90] sm:$0xff]
    %v5061 = vld [vmem:[%s404 + $0x98] sm:$0xff]
    %v5062 = vld [vmem:[%s404 + $0xa0] sm:$0xff]
    %v5063 = vld [vmem:[%s404 + $0xa8] sm:$0xff]
    %v5064 = vld [vmem:[%s404 + $0xb0] sm:$0xff]
    %v5065 = vld [vmem:[%s404 + $0xb8] sm:$0xff]
    %v5066 = vld [vmem:[%s404 + $0xc0] sm:$0xff]
    %v5067 = vld [vmem:[%s404 + $0xc8] sm:$0xff]
    %v5068 = vld [vmem:[%s404 + $0xd0] sm:$0xff]
    %v5069 = vld [vmem:[%s404 + $0xd8] sm:$0xff]
    %v5070 = vld [vmem:[%s404 + $0xe0] sm:$0xff]
    %v5071 = vld [vmem:[%s404 + $0xe8] sm:$0xff]
    %v5072 = vld [vmem:[%s404 + $0xf0] sm:$0xff]
    %v5073 = vld [vmem:[%s404 + $0xf8] sm:$0xff]
    %v5074 = vld [vmem:[%s404 + $0x100] sm:$0xff]
    %v5075 = vld [vmem:[%s404 + $0x108] sm:$0xff]
    %v5076 = vld [vmem:[%s404 + $0x110] sm:$0xff]
    %v5077 = vld [vmem:[%s404 + $0x118] sm:$0xff]
    %v5078 = vld [vmem:[%s404 + $0x120] sm:$0xff]
    %v5079 = vld [vmem:[%s404 + $0x128] sm:$0xff]
    %v5080 = vld [vmem:[%s404 + $0x130] sm:$0xff]
    %v5081 = vld [vmem:[%s404 + $0x138] sm:$0xff]
    %v5082 = vld [vmem:[%s404 + $0x140] sm:$0xff]
    %v5083 = vld [vmem:[%s404 + $0x148] sm:$0xff]
    %v5084 = vld [vmem:[%s404 + $0x150] sm:$0xff]
    %v5085 = vld [vmem:[%s404 + $0x158] sm:$0xff]
    %v5086 = vld [vmem:[%s404 + $0x160] sm:$0xff]
    %v5087 = vld [vmem:[%s404 + $0x168] sm:$0xff]
    %v5088 = vld [vmem:[%s404 + $0x170] sm:$0xff]
    %v5089 = vld [vmem:[%s404 + $0x178] sm:$0xff]
    %v5090 = vld [vmem:[%s404 + $0x180] sm:$0xff]
    %v5091 = vld [vmem:[%s404 + $0x188] sm:$0xff]
    %v5092 = vld [vmem:[%s404 + $0x190] sm:$0xff]
    %v5093 = vld [vmem:[%s404 + $0x198] sm:$0xff]
    %v5094 = vld [vmem:[%s404 + $0x1a0] sm:$0xff]
    %v5095 = vld [vmem:[%s404 + $0x1a8] sm:$0xff]
    %v5096 = vld [vmem:[%s404 + $0x1b0] sm:$0xff]
    %v5097 = vld [vmem:[%s404 + $0x1b8] sm:$0xff]
    %v5098 = vld [vmem:[%s404 + $0x1c0] sm:$0xff]
    %v5099 = vld [vmem:[%s404 + $0x1c8] sm:$0xff]
    %v5100 = vld [vmem:[%s404 + $0x1d0] sm:$0xff]
    %v5101 = vld [vmem:[%s404 + $0x1d8] sm:$0xff]
    %v5102 = vld [vmem:[%s404 + $0x1e0] sm:$0xff]
    %v5103 = vld [vmem:[%s404 + $0x1e8] sm:$0xff]
    %v5104 = vld [vmem:[%s404 + $0x1f0] sm:$0xff]
    %v5105 = vld [vmem:[%s404 + $0x1f8] sm:$0xff]
    %5106 = vmatprep.subr.mxu0 %v5043
    %5107 = vmatpush1.msra.mxu0 %v5042
    %5108 = vmatprep.subr.mxu0 %v5047
    %5109 = vmatpush1.msra.mxu0 %v5046
    %5110 = vmatprep.subr.mxu0 %v5051
    %5111 = vmatpush1.msra.mxu0 %v5050
    %5112 = vmatprep.subr.mxu0 %v5055
    %5113 = vmatpush1.msra.mxu0 %v5054
    %5114 = vmatprep.subr.mxu0 %v5059
    %5115 = vmatpush1.msra.mxu0 %v5058
    %5116 = vmatprep.subr.mxu0 %v5063
    %5117 = vmatpush1.msra.mxu0 %v5062
    %5118 = vmatprep.subr.mxu0 %v5067
    %5119 = vmatpush1.msra.mxu0 %v5066
    %5120 = vmatprep.subr.mxu0 %v5071
    %5121 = vmatpush1.msra.mxu0 %v5070
    %5122 = vmatprep.subr.mxu0 %v5075
    %5123 = vmatpush1.msra.mxu0 %v5074
    %5124 = vmatprep.subr.mxu0 %v5079
    %5125 = vmatpush1.msra.mxu0 %v5078
    %5126 = vmatprep.subr.mxu0 %v5083
    %5127 = vmatpush1.msra.mxu0 %v5082
    %5128 = vmatprep.subr.mxu0 %v5087
    %5129 = vmatpush1.msra.mxu0 %v5086
    %5130 = vmatprep.subr.mxu0 %v5091
    %5131 = vmatpush1.msra.mxu0 %v5090
    %5132 = vmatprep.subr.mxu0 %v5095
    %5133 = vmatpush1.msra.mxu0 %v5094
    %5134 = vmatprep.subr.mxu0 %v5099
    %5135 = vmatpush1.msra.mxu0 %v5098
    %5136 = vmatprep.subr.mxu0 %v5103
    %5137 = vmatpush1.msra.mxu0 %v5102
    %5138 = vmatprep.subr.mxu0 0.0
    %5139 = vmatpush1.msra.mxu0 0.0
    %5140 = vmatprep.subr.mxu0 0.0
    %5141 = vmatpush1.msra.mxu0 0.0
    %5142 = vmatprep.subr.mxu0 0.0
    %5143 = vmatpush1.msra.mxu0 0.0
    %5144 = vmatprep.subr.mxu0 0.0
    %5145 = vmatpush1.msra.mxu0 0.0
    %5146 = vmatprep.subr.mxu0 0.0
    %5147 = vmatpush1.msra.mxu0 0.0
    %5148 = vmatprep.subr.mxu0 0.0
    %5149 = vmatpush1.msra.mxu0 0.0
    %5150 = vmatprep.subr.mxu0 0.0
    %5151 = vmatpush1.msra.mxu0 0.0
    %5152 = vmatprep.subr.mxu0 0.0
    %5153 = vmatpush1.msra.mxu0 0.0
    %5154 = vmatprep.subr.mxu0 0.0
    %5155 = vmatpush1.msra.mxu0 0.0
    %5156 = vmatprep.subr.mxu0 0.0
    %5157 = vmatpush1.msra.mxu0 0.0
    %5158 = vmatprep.subr.mxu0 0.0
    %5159 = vmatpush1.msra.mxu0 0.0
    %5160 = vmatprep.subr.mxu0 0.0
    %5161 = vmatpush1.msra.mxu0 0.0
    %5162 = vmatprep.subr.mxu0 0.0
    %5163 = vmatpush1.msra.mxu0 0.0
    %5164 = vmatprep.subr.mxu0 0.0
    %5165 = vmatpush1.msra.mxu0 0.0
    %5166 = vmatprep.subr.mxu0 0.0
    %5167 = vmatpush1.msra.mxu0 0.0
    %5168 = vmatprep.subr.mxu0 0.0
    %5169 = vmatpush1.msra.mxu0 0.0
    %5170 = vmatprep.mubr.f32.mxu0 0.0
    %5171 = vmatmul.mubr.f32.gmra.mrb[0].mxu0 %v4648
    %v5172 = vpop.f32.mrb[0].mxu0
    %v5173 = vadd.f32 0.0, %v5172
    %v5174 = vpop.f32.mrb[0].mxu0
    %v5175 = vadd.f32 0.0, %v5174
    %5176 = vdwg.mxu0
    %5177 = vmatprep.subr.mxu0 %v5045
    %5178 = vmatpush1.msra.mxu0 %v5044
    %5179 = vmatprep.subr.mxu0 %v5049
    %5180 = vmatpush1.msra.mxu0 %v5048
    %5181 = vmatprep.subr.mxu0 %v5053
    %5182 = vmatpush1.msra.mxu0 %v5052
    %5183 = vmatprep.subr.mxu0 %v5057
    %5184 = vmatpush1.msra.mxu0 %v5056
    %5185 = vmatprep.subr.mxu0 %v5061
    %5186 = vmatpush1.msra.mxu0 %v5060
    %5187 = vmatprep.subr.mxu0 %v5065
    %5188 = vmatpush1.msra.mxu0 %v5064
    %5189 = vmatprep.subr.mxu0 %v5069
    %5190 = vmatpush1.msra.mxu0 %v5068
    %5191 = vmatprep.subr.mxu0 %v5073
    %5192 = vmatpush1.msra.mxu0 %v5072
    %5193 = vmatprep.subr.mxu0 %v5077
    %5194 = vmatpush1.msra.mxu0 %v5076
    %5195 = vmatprep.subr.mxu0 %v5081
    %5196 = vmatpush1.msra.mxu0 %v5080
    %5197 = vmatprep.subr.mxu0 %v5085
    %5198 = vmatpush1.msra.mxu0 %v5084
    %5199 = vmatprep.subr.mxu0 %v5089
    %5200 = vmatpush1.msra.mxu0 %v5088
    %5201 = vmatprep.subr.mxu0 %v5093
    %5202 = vmatpush1.msra.mxu0 %v5092
    %5203 = vmatprep.subr.mxu0 %v5097
    %5204 = vmatpush1.msra.mxu0 %v5096
    %5205 = vmatprep.subr.mxu0 %v5101
    %5206 = vmatpush1.msra.mxu0 %v5100
    %5207 = vmatprep.subr.mxu0 %v5105
    %5208 = vmatpush1.msra.mxu0 %v5104
    %5209 = vmatprep.subr.mxu0 0.0
    %5210 = vmatpush1.msra.mxu0 0.0
    %5211 = vmatprep.subr.mxu0 0.0
    %5212 = vmatpush1.msra.mxu0 0.0
    %5213 = vmatprep.subr.mxu0 0.0
    %5214 = vmatpush1.msra.mxu0 0.0
    %5215 = vmatprep.subr.mxu0 0.0
    %5216 = vmatpush1.msra.mxu0 0.0
    %5217 = vmatprep.subr.mxu0 0.0
    %5218 = vmatpush1.msra.mxu0 0.0
    %5219 = vmatprep.subr.mxu0 0.0
    %5220 = vmatpush1.msra.mxu0 0.0
    %5221 = vmatprep.subr.mxu0 0.0
    %5222 = vmatpush1.msra.mxu0 0.0
    %5223 = vmatprep.subr.mxu0 0.0
    %5224 = vmatpush1.msra.mxu0 0.0
    %5225 = vmatprep.subr.mxu0 0.0
    %5226 = vmatpush1.msra.mxu0 0.0
    %5227 = vmatprep.subr.mxu0 0.0
    %5228 = vmatpush1.msra.mxu0 0.0
    %5229 = vmatprep.subr.mxu0 0.0
    %5230 = vmatpush1.msra.mxu0 0.0
    %5231 = vmatprep.subr.mxu0 0.0
    %5232 = vmatpush1.msra.mxu0 0.0
    %5233 = vmatprep.subr.mxu0 0.0
    %5234 = vmatpush1.msra.mxu0 0.0
    %5235 = vmatprep.subr.mxu0 0.0
    %5236 = vmatpush1.msra.mxu0 0.0
    %5237 = vmatprep.subr.mxu0 0.0
    %5238 = vmatpush1.msra.mxu0 0.0
    %5239 = vmatprep.subr.mxu0 0.0
    %5240 = vmatpush1.msra.mxu0 0.0
    %5241 = vmatprep.mubr.f32.mxu0 0.0
    %5242 = vmatmul.mubr.f32.gmra.mrb[0].mxu0 %v4648
    %v5243 = vpop.f32.mrb[0].mxu0
    %v5244 = vadd.f32 0.0, %v5243
    %v5245 = vpop.f32.mrb[0].mxu0
    %v5246 = vadd.f32 0.0, %v5245
    %5247 = vdwg.mxu0
    %5248 = vmatprep.subr.mxu0 %v4979
    %5249 = vmatpush1.msra.mxu0 %v4978
    %5250 = vmatprep.subr.mxu0 %v4983
    %5251 = vmatpush1.msra.mxu0 %v4982
    %5252 = vmatprep.subr.mxu0 %v4987
    %5253 = vmatpush1.msra.mxu0 %v4986
    %5254 = vmatprep.subr.mxu0 %v4991
    %5255 = vmatpush1.msra.mxu0 %v4990
    %5256 = vmatprep.subr.mxu0 %v4995
    %5257 = vmatpush1.msra.mxu0 %v4994
    %5258 = vmatprep.subr.mxu0 %v4999
    %5259 = vmatpush1.msra.mxu0 %v4998
    %5260 = vmatprep.subr.mxu0 %v5003
    %5261 = vmatpush1.msra.mxu0 %v5002
    %5262 = vmatprep.subr.mxu0 %v5007
    %5263 = vmatpush1.msra.mxu0 %v5006
    %5264 = vmatprep.subr.mxu0 %v5011
    %5265 = vmatpush1.msra.mxu0 %v5010
    %5266 = vmatprep.subr.mxu0 %v5015
    %5267 = vmatpush1.msra.mxu0 %v5014
    %5268 = vmatprep.subr.mxu0 %v5019
    %5269 = vmatpush1.msra.mxu0 %v5018
    %5270 = vmatprep.subr.mxu0 %v5023
    %5271 = vmatpush1.msra.mxu0 %v5022
    %5272 = vmatprep.subr.mxu0 %v5027
    %5273 = vmatpush1.msra.mxu0 %v5026
    %5274 = vmatprep.subr.mxu0 %v5031
    %5275 = vmatpush1.msra.mxu0 %v5030
    %5276 = vmatprep.subr.mxu0 %v5035
    %5277 = vmatpush1.msra.mxu0 %v5034
    %5278 = vmatprep.subr.mxu0 %v5039
    %5279 = vmatpush1.msra.mxu0 %v5038
    %5280 = vmatprep.subr.mxu0 0.0
    %5281 = vmatpush1.msra.mxu0 0.0
    %5282 = vmatprep.subr.mxu0 0.0
    %5283 = vmatpush1.msra.mxu0 0.0
    %5284 = vmatprep.subr.mxu0 0.0
    %5285 = vmatpush1.msra.mxu0 0.0
    %5286 = vmatprep.subr.mxu0 0.0
    %5287 = vmatpush1.msra.mxu0 0.0
    %5288 = vmatprep.subr.mxu0 0.0
    %5289 = vmatpush1.msra.mxu0 0.0
    %5290 = vmatprep.subr.mxu0 0.0
    %5291 = vmatpush1.msra.mxu0 0.0
    %5292 = vmatprep.subr.mxu0 0.0
    %5293 = vmatpush1.msra.mxu0 0.0
    %5294 = vmatprep.subr.mxu0 0.0
    %5295 = vmatpush1.msra.mxu0 0.0
    %5296 = vmatprep.subr.mxu0 0.0
    %5297 = vmatpush1.msra.mxu0 0.0
    %5298 = vmatprep.subr.mxu0 0.0
    %5299 = vmatpush1.msra.mxu0 0.0
    %5300 = vmatprep.subr.mxu0 0.0
    %5301 = vmatpush1.msra.mxu0 0.0
    %5302 = vmatprep.subr.mxu0 0.0
    %5303 = vmatpush1.msra.mxu0 0.0
    %5304 = vmatprep.subr.mxu0 0.0
    %5305 = vmatpush1.msra.mxu0 0.0
    %5306 = vmatprep.subr.mxu0 0.0
    %5307 = vmatpush1.msra.mxu0 0.0
    %5308 = vmatprep.subr.mxu0 0.0
    %5309 = vmatpush1.msra.mxu0 0.0
    %5310 = vmatprep.subr.mxu0 0.0
    %5311 = vmatpush1.msra.mxu0 0.0
    %5312 = vmatprep.mubr.f32.mxu0 0.0
    %5313 = vmatmul.mubr.f32.gmra.mrb[0].mxu0 %v4977
    %v5314 = vpop.f32.mrb[0].mxu0
    %v5315 = vadd.f32 %v5173, %v5314
    %v5316 = vpop.f32.mrb[0].mxu0
    %v5317 = vadd.f32 %v5175, %v5316
    %5318 = vdwg.mxu0
    %5319 = vmatprep.subr.mxu0 %v4981
    %5320 = vmatpush1.msra.mxu0 %v4980
    %5321 = vmatprep.subr.mxu0 %v4985
    %5322 = vmatpush1.msra.mxu0 %v4984
    %5323 = vmatprep.subr.mxu0 %v4989
    %5324 = vmatpush1.msra.mxu0 %v4988
    %5325 = vmatprep.subr.mxu0 %v4993
    %5326 = vmatpush1.msra.mxu0 %v4992
    %5327 = vmatprep.subr.mxu0 %v4997
    %5328 = vmatpush1.msra.mxu0 %v4996
    %5329 = vmatprep.subr.mxu0 %v5001
    %5330 = vmatpush1.msra.mxu0 %v5000
    %5331 = vmatprep.subr.mxu0 %v5005
    %5332 = vmatpush1.msra.mxu0 %v5004
    %5333 = vmatprep.subr.mxu0 %v5009
    %5334 = vmatpush1.msra.mxu0 %v5008
    %5335 = vmatprep.subr.mxu0 %v5013
    %5336 = vmatpush1.msra.mxu0 %v5012
    %5337 = vmatprep.subr.mxu0 %v5017
    %5338 = vmatpush1.msra.mxu0 %v5016
    %5339 = vmatprep.subr.mxu0 %v5021
    %5340 = vmatpush1.msra.mxu0 %v5020
    %5341 = vmatprep.subr.mxu0 %v5025
    %5342 = vmatpush1.msra.mxu0 %v5024
    %5343 = vmatprep.subr.mxu0 %v5029
    %5344 = vmatpush1.msra.mxu0 %v5028
    %5345 = vmatprep.subr.mxu0 %v5033
    %5346 = vmatpush1.msra.mxu0 %v5032
    %5347 = vmatprep.subr.mxu0 %v5037
    %5348 = vmatpush1.msra.mxu0 %v5036
    %5349 = vmatprep.subr.mxu0 %v5041
    %5350 = vmatpush1.msra.mxu0 %v5040
    %5351 = vmatprep.subr.mxu0 0.0
    %5352 = vmatpush1.msra.mxu0 0.0
    %5353 = vmatprep.subr.mxu0 0.0
    %5354 = vmatpush1.msra.mxu0 0.0
    %5355 = vmatprep.subr.mxu0 0.0
    %5356 = vmatpush1.msra.mxu0 0.0
    %5357 = vmatprep.subr.mxu0 0.0
    %5358 = vmatpush1.msra.mxu0 0.0
    %5359 = vmatprep.subr.mxu0 0.0
    %5360 = vmatpush1.msra.mxu0 0.0
    %5361 = vmatprep.subr.mxu0 0.0
    %5362 = vmatpush1.msra.mxu0 0.0
    %5363 = vmatprep.subr.mxu0 0.0
    %5364 = vmatpush1.msra.mxu0 0.0
    %5365 = vmatprep.subr.mxu0 0.0
    %5366 = vmatpush1.msra.mxu0 0.0
    %5367 = vmatprep.subr.mxu0 0.0
    %5368 = vmatpush1.msra.mxu0 0.0
    %5369 = vmatprep.subr.mxu0 0.0
    %5370 = vmatpush1.msra.mxu0 0.0
    %5371 = vmatprep.subr.mxu0 0.0
    %5372 = vmatpush1.msra.mxu0 0.0
    %5373 = vmatprep.subr.mxu0 0.0
    %5374 = vmatpush1.msra.mxu0 0.0
    %5375 = vmatprep.subr.mxu0 0.0
    %5376 = vmatpush1.msra.mxu0 0.0
    %5377 = vmatprep.subr.mxu0 0.0
    %5378 = vmatpush1.msra.mxu0 0.0
    %5379 = vmatprep.subr.mxu0 0.0
    %5380 = vmatpush1.msra.mxu0 0.0
    %5381 = vmatprep.subr.mxu0 0.0
    %5382 = vmatpush1.msra.mxu0 0.0
    %5383 = vmatprep.mubr.f32.mxu0 0.0
    %5384 = vmatmul.mubr.f32.gmra.mrb[0].mxu0 %v4977
    %v5385 = vpop.f32.mrb[0].mxu0
    %v5386 = vadd.f32 %v5244, %v5385
    %v5387 = vpop.f32.mrb[0].mxu0
    %v5388 = vadd.f32 %v5246, %v5387
    %5389 = vdwg.mxu0
    %v5390 = vld [vmem:[%s5] sm:$0xff]
    %v5391 = vld [vmem:[%s5 + $0x8] sm:$0xff]
    %v5392 = vld [vmem:[%s5 + $0x10] sm:$0xff]
    %v5393 = vld [vmem:[%s5 + $0x18] sm:$0xff]
    %v5394 = vadd.f32 %v5315, %v5390
    %v5395 = vadd.f32 %v5317, %v5391
    %v5396 = vadd.f32 %v5386, %v5392
    %v5397 = vadd.f32 %v5388, %v5393
    %v5398 = vxor.u32 %v5394, 2147483648
    %v5399 = vmul.f32 %v5398, 1.442695
    %v5400 = vpow.pop %v5399
    %v5401 = vadd.f32 %v5400, 1.0
    %v5402 = vrcp.pop %v5401
    %v5403 = vmul.f32 1.0, %v5402
    %v5404 = vxor.u32 %v5395, 2147483648
    %v5405 = vmul.f32 %v5404, 1.442695
    %v5406 = vpow.pop %v5405
    %v5407 = vadd.f32 %v5406, 1.0
    %v5408 = vrcp.pop %v5407
    %v5409 = vmul.f32 1.0, %v5408
    %v5410 = vtanh.pop %v5396
    %v5411 = vxor.u32 %v5397, 2147483648
    %v5412 = vmul.f32 %v5411, 1.442695
    %v5413 = vpow.pop %v5412
    %v5414 = vadd.f32 %v5413, 1.0
    %v5415 = vrcp.pop %v5414
    %v5416 = vmul.f32 1.0, %v5415
    %v5417 = vmul.f32 %v5409, %v4646
    %v5418 = vmul.f32 %v5403, %v5410
    %v5419 = vadd.f32 %v5417, %v5418
    %v5420 = vtanh.pop %v5419
    %v5421 = vmul.f32 %v5416, %v5420
    %5422 = vmatprep.subr.mxu0 %v63
    %5423 = vmatpush1.msra.mxu0 %v62
    %5424 = vmatprep.subr.mxu0 %v65
    %5425 = vmatpush1.msra.mxu0 %v64
    %5426 = vmatprep.subr.mxu0 %v67
    %5427 = vmatpush1.msra.mxu0 %v66
    %5428 = vmatprep.subr.mxu0 %v69
    %5429 = vmatpush1.msra.mxu0 %v68
    %5430 = vmatprep.subr.mxu0 %v71
    %5431 = vmatpush1.msra.mxu0 %v70
    %5432 = vmatprep.subr.mxu0 %v73
    %5433 = vmatpush1.msra.mxu0 %v72
    %5434 = vmatprep.subr.mxu0 %v75
    %5435 = vmatpush1.msra.mxu0 %v74
    %5436 = vmatprep.subr.mxu0 %v77
    %5437 = vmatpush1.msra.mxu0 %v76
    %5438 = vmatprep.subr.mxu0 %v79
    %5439 = vmatpush1.msra.mxu0 %v78
    %5440 = vmatprep.subr.mxu0 %v81
    %5441 = vmatpush1.msra.mxu0 %v80
    %5442 = vmatprep.subr.mxu0 %v83
    %5443 = vmatpush1.msra.mxu0 %v82
    %5444 = vmatprep.subr.mxu0 %v85
    %5445 = vmatpush1.msra.mxu0 %v84
    %5446 = vmatprep.subr.mxu0 %v87
    %5447 = vmatpush1.msra.mxu0 %v86
    %5448 = vmatprep.subr.mxu0 %v89
    %5449 = vmatpush1.msra.mxu0 %v88
    %5450 = vmatprep.subr.mxu0 %v91
    %5451 = vmatpush1.msra.mxu0 %v90
    %5452 = vmatprep.subr.mxu0 %v93
    %5453 = vmatpush1.msra.mxu0 %v92
    %5454 = vmatprep.subr.mxu0 0.0
    %5455 = vmatpush1.msra.mxu0 0.0
    %5456 = vmatprep.subr.mxu0 0.0
    %5457 = vmatpush1.msra.mxu0 0.0
    %5458 = vmatprep.subr.mxu0 0.0
    %5459 = vmatpush1.msra.mxu0 0.0
    %5460 = vmatprep.subr.mxu0 0.0
    %5461 = vmatpush1.msra.mxu0 0.0
    %5462 = vmatprep.subr.mxu0 0.0
    %5463 = vmatpush1.msra.mxu0 0.0
    %5464 = vmatprep.subr.mxu0 0.0
    %5465 = vmatpush1.msra.mxu0 0.0
    %5466 = vmatprep.subr.mxu0 0.0
    %5467 = vmatpush1.msra.mxu0 0.0
    %5468 = vmatprep.subr.mxu0 0.0
    %5469 = vmatpush1.msra.mxu0 0.0
    %5470 = vmatprep.subr.mxu0 0.0
    %5471 = vmatpush1.msra.mxu0 0.0
    %5472 = vmatprep.subr.mxu0 0.0
    %5473 = vmatpush1.msra.mxu0 0.0
    %5474 = vmatprep.subr.mxu0 0.0
    %5475 = vmatpush1.msra.mxu0 0.0
    %5476 = vmatprep.subr.mxu0 0.0
    %5477 = vmatpush1.msra.mxu0 0.0
    %5478 = vmatprep.subr.mxu0 0.0
    %5479 = vmatpush1.msra.mxu0 0.0
    %5480 = vmatprep.subr.mxu0 0.0
    %5481 = vmatpush1.msra.mxu0 0.0
    %5482 = vmatprep.subr.mxu0 0.0
    %5483 = vmatpush1.msra.mxu0 0.0
    %5484 = vmatprep.subr.mxu0 0.0
    %5485 = vmatpush1.msra.mxu0 0.0
    %5486 = vmatprep.mubr.f32.mxu0 0.0
    %5487 = vmatmul.mubr.f32.gmra.mrb[0].mxu0 %v5421
    %v5488 = vpop.f32.mrb[0].mxu0
    %v5489 = vadd.f32 %v94, %v5488
    %v5490 = vpop.f32.mrb[0].mxu0
    %v5491 = vadd.f32 %v95, %v5490
    %5492 = vdwg.mxu0
    %v5493 = vmax.f32 %v5489, %v5491
    %5494 = vmax.xlane.f32.xlu0 %v5493
    %v5495 = vpop.xlane.xlu0 %5494
    %v5496 = vsub.f32 %v5489, %v5495
    %v5497 = vsub.f32 %v5491, %v5495
    %v5498 = vmul.f32 %v5496, 1.442695
    %v5499 = vpow.pop %v5498
    %v5500 = vmul.f32 %v5497, 1.442695
    %v5501 = vpow.pop %v5500
    %v5502 = vadd.f32 %v5499, %v5501
    %5503 = vadd.xlane.f32.xlu0 %v5502
    %v5504 = vpop.xlane.xlu0 %5503
    %v5505 = vlog2.pop %v5504
    %v5506 = vmul.f32 %v5505, 0.6931472
    %v5507 = vsub.f32 %v5496, %v5506
    %v5508 = vsub.f32 %v5497, %v5506
    %s5509 = scalar_lea.vmem [#allocation7], 96
    %5510 = vst [vmem:[%s5509] sm:$0xff] %v5507
    %5511 = vst [vmem:[%s5509 + $0x8] sm:$0xff] %v5508
    %s5512 = scalar_lea.vmem %s0, 224
    %v5513 = vld [vmem:[%s5512] sm:$0xff]
    %v5514 = vld [vmem:[%s5512 + $0x8] sm:$0xff]
    %v5515 = vld [vmem:[%s5512 + $0x10] sm:$0xff]
    %v5516 = vld [vmem:[%s5512 + $0x18] sm:$0xff]
    %v5517 = vld [vmem:[%s3] sm:$0xff]
    %v5518 = vld [vmem:[%s3 + $0x8] sm:$0xff]
    %v5519 = vld [vmem:[%s3 + $0x10] sm:$0xff]
    %v5520 = vld [vmem:[%s3 + $0x18] sm:$0xff]
    %v5521 = vld [vmem:[%s3 + $0x20] sm:$0xff]
    %v5522 = vld [vmem:[%s3 + $0x28] sm:$0xff]
    %v5523 = vld [vmem:[%s3 + $0x30] sm:$0xff]
    %v5524 = vld [vmem:[%s3 + $0x38] sm:$0xff]
    %v5525 = vld [vmem:[%s3 + $0x40] sm:$0xff]
    %v5526 = vld [vmem:[%s3 + $0x48] sm:$0xff]
    %v5527 = vld [vmem:[%s3 + $0x50] sm:$0xff]
    %v5528 = vld [vmem:[%s3 + $0x58] sm:$0xff]
    %v5529 = vld [vmem:[%s3 + $0x60] sm:$0xff]
    %v5530 = vld [vmem:[%s3 + $0x68] sm:$0xff]
    %v5531 = vld [vmem:[%s3 + $0x70] sm:$0xff]
    %v5532 = vld [vmem:[%s3 + $0x78] sm:$0xff]
    %v5533 = vld [vmem:[%s3 + $0x80] sm:$0xff]
    %v5534 = vld [vmem:[%s3 + $0x88] sm:$0xff]
    %v5535 = vld [vmem:[%s3 + $0x90] sm:$0xff]
    %v5536 = vld [vmem:[%s3 + $0x98] sm:$0xff]
    %v5537 = vld [vmem:[%s3 + $0xa0] sm:$0xff]
    %v5538 = vld [vmem:[%s3 + $0xa8] sm:$0xff]
    %v5539 = vld [vmem:[%s3 + $0xb0] sm:$0xff]
    %v5540 = vld [vmem:[%s3 + $0xb8] sm:$0xff]
    %v5541 = vld [vmem:[%s3 + $0xc0] sm:$0xff]
    %v5542 = vld [vmem:[%s3 + $0xc8] sm:$0xff]
    %v5543 = vld [vmem:[%s3 + $0xd0] sm:$0xff]
    %v5544 = vld [vmem:[%s3 + $0xd8] sm:$0xff]
    %v5545 = vld [vmem:[%s3 + $0xe0] sm:$0xff]
    %v5546 = vld [vmem:[%s3 + $0xe8] sm:$0xff]
    %v5547 = vld [vmem:[%s3 + $0xf0] sm:$0xff]
    %v5548 = vld [vmem:[%s3 + $0xf8] sm:$0xff]
    %v5549 = vld [vmem:[%s3 + $0x100] sm:$0xff]
    %v5550 = vld [vmem:[%s3 + $0x108] sm:$0xff]
    %v5551 = vld [vmem:[%s3 + $0x110] sm:$0xff]
    %v5552 = vld [vmem:[%s3 + $0x118] sm:$0xff]
    %v5553 = vld [vmem:[%s3 + $0x120] sm:$0xff]
    %v5554 = vld [vmem:[%s3 + $0x128] sm:$0xff]
    %v5555 = vld [vmem:[%s3 + $0x130] sm:$0xff]
    %v5556 = vld [vmem:[%s3 + $0x138] sm:$0xff]
    %v5557 = vld [vmem:[%s3 + $0x140] sm:$0xff]
    %v5558 = vld [vmem:[%s3 + $0x148] sm:$0xff]
    %v5559 = vld [vmem:[%s3 + $0x150] sm:$0xff]
    %v5560 = vld [vmem:[%s3 + $0x158] sm:$0xff]
    %v5561 = vld [vmem:[%s3 + $0x160] sm:$0xff]
    %v5562 = vld [vmem:[%s3 + $0x168] sm:$0xff]
    %v5563 = vld [vmem:[%s3 + $0x170] sm:$0xff]
    %v5564 = vld [vmem:[%s3 + $0x178] sm:$0xff]
    %v5565 = vld [vmem:[%s3 + $0x180] sm:$0xff]
    %v5566 = vld [vmem:[%s3 + $0x188] sm:$0xff]
    %v5567 = vld [vmem:[%s3 + $0x190] sm:$0xff]
    %v5568 = vld [vmem:[%s3 + $0x198] sm:$0xff]
    %v5569 = vld [vmem:[%s3 + $0x1a0] sm:$0xff]
    %v5570 = vld [vmem:[%s3 + $0x1a8] sm:$0xff]
    %v5571 = vld [vmem:[%s3 + $0x1b0] sm:$0xff]
    %v5572 = vld [vmem:[%s3 + $0x1b8] sm:$0xff]
    %v5573 = vld [vmem:[%s3 + $0x1c0] sm:$0xff]
    %v5574 = vld [vmem:[%s3 + $0x1c8] sm:$0xff]
    %v5575 = vld [vmem:[%s3 + $0x1d0] sm:$0xff]
    %v5576 = vld [vmem:[%s3 + $0x1d8] sm:$0xff]
    %v5577 = vld [vmem:[%s3 + $0x1e0] sm:$0xff]
    %v5578 = vld [vmem:[%s3 + $0x1e8] sm:$0xff]
    %v5579 = vld [vmem:[%s3 + $0x1f0] sm:$0xff]
    %v5580 = vld [vmem:[%s3 + $0x1f8] sm:$0xff]
    %5581 = vmatprep.subr.mxu0 %v5518
    %5582 = vmatpush1.msra.mxu0 %v5517
    %5583 = vmatprep.subr.mxu0 %v5522
    %5584 = vmatpush1.msra.mxu0 %v5521
    %5585 = vmatprep.subr.mxu0 %v5526
    %5586 = vmatpush1.msra.mxu0 %v5525
    %5587 = vmatprep.subr.mxu0 %v5530
    %5588 = vmatpush1.msra.mxu0 %v5529
    %5589 = vmatprep.subr.mxu0 %v5534
    %5590 = vmatpush1.msra.mxu0 %v5533
    %5591 = vmatprep.subr.mxu0 %v5538
    %5592 = vmatpush1.msra.mxu0 %v5537
    %5593 = vmatprep.subr.mxu0 %v5542
    %5594 = vmatpush1.msra.mxu0 %v5541
    %5595 = vmatprep.subr.mxu0 %v5546
    %5596 = vmatpush1.msra.mxu0 %v5545
    %5597 = vmatprep.subr.mxu0 %v5550
    %5598 = vmatpush1.msra.mxu0 %v5549
    %5599 = vmatprep.subr.mxu0 %v5554
    %5600 = vmatpush1.msra.mxu0 %v5553
    %5601 = vmatprep.subr.mxu0 %v5558
    %5602 = vmatpush1.msra.mxu0 %v5557
    %5603 = vmatprep.subr.mxu0 %v5562
    %5604 = vmatpush1.msra.mxu0 %v5561
    %5605 = vmatprep.subr.mxu0 %v5566
    %5606 = vmatpush1.msra.mxu0 %v5565
    %5607 = vmatprep.subr.mxu0 %v5570
    %5608 = vmatpush1.msra.mxu0 %v5569
    %5609 = vmatprep.subr.mxu0 %v5574
    %5610 = vmatpush1.msra.mxu0 %v5573
    %5611 = vmatprep.subr.mxu0 %v5578
    %5612 = vmatpush1.msra.mxu0 %v5577
    %5613 = vmatprep.subr.mxu0 0.0
    %5614 = vmatpush1.msra.mxu0 0.0
    %5615 = vmatprep.subr.mxu0 0.0
    %5616 = vmatpush1.msra.mxu0 0.0
    %5617 = vmatprep.subr.mxu0 0.0
    %5618 = vmatpush1.msra.mxu0 0.0
    %5619 = vmatprep.subr.mxu0 0.0
    %5620 = vmatpush1.msra.mxu0 0.0
    %5621 = vmatprep.subr.mxu0 0.0
    %5622 = vmatpush1.msra.mxu0 0.0
    %5623 = vmatprep.subr.mxu0 0.0
    %5624 = vmatpush1.msra.mxu0 0.0
    %5625 = vmatprep.subr.mxu0 0.0
    %5626 = vmatpush1.msra.mxu0 0.0
    %5627 = vmatprep.subr.mxu0 0.0
    %5628 = vmatpush1.msra.mxu0 0.0
    %5629 = vmatprep.subr.mxu0 0.0
    %5630 = vmatpush1.msra.mxu0 0.0
    %5631 = vmatprep.subr.mxu0 0.0
    %5632 = vmatpush1.msra.mxu0 0.0
    %5633 = vmatprep.subr.mxu0 0.0
    %5634 = vmatpush1.msra.mxu0 0.0
    %5635 = vmatprep.subr.mxu0 0.0
    %5636 = vmatpush1.msra.mxu0 0.0
    %5637 = vmatprep.subr.mxu0 0.0
    %5638 = vmatpush1.msra.mxu0 0.0
    %5639 = vmatprep.subr.mxu0 0.0
    %5640 = vmatpush1.msra.mxu0 0.0
    %5641 = vmatprep.subr.mxu0 0.0
    %5642 = vmatpush1.msra.mxu0 0.0
    %5643 = vmatprep.subr.mxu0 0.0
    %5644 = vmatpush1.msra.mxu0 0.0
    %5645 = vmatprep.mubr.f32.mxu0 0.0
    %5646 = vmatmul.mubr.f32.gmra.mrb[0].mxu0 %v4977
    %v5647 = vpop.f32.mrb[0].mxu0
    %v5648 = vadd.f32 0.0, %v5647
    %v5649 = vpop.f32.mrb[0].mxu0
    %v5650 = vadd.f32 0.0, %v5649
    %5651 = vdwg.mxu0
    %5652 = vmatprep.subr.mxu0 %v5520
    %5653 = vmatpush1.msra.mxu0 %v5519
    %5654 = vmatprep.subr.mxu0 %v5524
    %5655 = vmatpush1.msra.mxu0 %v5523
    %5656 = vmatprep.subr.mxu0 %v5528
    %5657 = vmatpush1.msra.mxu0 %v5527
    %5658 = vmatprep.subr.mxu0 %v5532
    %5659 = vmatpush1.msra.mxu0 %v5531
    %5660 = vmatprep.subr.mxu0 %v5536
    %5661 = vmatpush1.msra.mxu0 %v5535
    %5662 = vmatprep.subr.mxu0 %v5540
    %5663 = vmatpush1.msra.mxu0 %v5539
    %5664 = vmatprep.subr.mxu0 %v5544
    %5665 = vmatpush1.msra.mxu0 %v5543
    %5666 = vmatprep.subr.mxu0 %v5548
    %5667 = vmatpush1.msra.mxu0 %v5547
    %5668 = vmatprep.subr.mxu0 %v5552
    %5669 = vmatpush1.msra.mxu0 %v5551
    %5670 = vmatprep.subr.mxu0 %v5556
    %5671 = vmatpush1.msra.mxu0 %v5555
    %5672 = vmatprep.subr.mxu0 %v5560
    %5673 = vmatpush1.msra.mxu0 %v5559
    %5674 = vmatprep.subr.mxu0 %v5564
    %5675 = vmatpush1.msra.mxu0 %v5563
    %5676 = vmatprep.subr.mxu0 %v5568
    %5677 = vmatpush1.msra.mxu0 %v5567
    %5678 = vmatprep.subr.mxu0 %v5572
    %5679 = vmatpush1.msra.mxu0 %v5571
    %5680 = vmatprep.subr.mxu0 %v5576
    %5681 = vmatpush1.msra.mxu0 %v5575
    %5682 = vmatprep.subr.mxu0 %v5580
    %5683 = vmatpush1.msra.mxu0 %v5579
    %5684 = vmatprep.subr.mxu0 0.0
    %5685 = vmatpush1.msra.mxu0 0.0
    %5686 = vmatprep.subr.mxu0 0.0
    %5687 = vmatpush1.msra.mxu0 0.0
    %5688 = vmatprep.subr.mxu0 0.0
    %5689 = vmatpush1.msra.mxu0 0.0
    %5690 = vmatprep.subr.mxu0 0.0
    %5691 = vmatpush1.msra.mxu0 0.0
    %5692 = vmatprep.subr.mxu0 0.0
    %5693 = vmatpush1.msra.mxu0 0.0
    %5694 = vmatprep.subr.mxu0 0.0
    %5695 = vmatpush1.msra.mxu0 0.0
    %5696 = vmatprep.subr.mxu0 0.0
    %5697 = vmatpush1.msra.mxu0 0.0
    %5698 = vmatprep.subr.mxu0 0.0
    %5699 = vmatpush1.msra.mxu0 0.0
    %5700 = vmatprep.subr.mxu0 0.0
    %5701 = vmatpush1.msra.mxu0 0.0
    %5702 = vmatprep.subr.mxu0 0.0
    %5703 = vmatpush1.msra.mxu0 0.0
    %5704 = vmatprep.subr.mxu0 0.0
    %5705 = vmatpush1.msra.mxu0 0.0
    %5706 = vmatprep.subr.mxu0 0.0
    %5707 = vmatpush1.msra.mxu0 0.0
    %5708 = vmatprep.subr.mxu0 0.0
    %5709 = vmatpush1.msra.mxu0 0.0
    %5710 = vmatprep.subr.mxu0 0.0
    %5711 = vmatpush1.msra.mxu0 0.0
    %5712 = vmatprep.subr.mxu0 0.0
    %5713 = vmatpush1.msra.mxu0 0.0
    %5714 = vmatprep.subr.mxu0 0.0
    %5715 = vmatpush1.msra.mxu0 0.0
    %5716 = vmatprep.mubr.f32.mxu0 0.0
    %5717 = vmatmul.mubr.f32.gmra.mrb[0].mxu0 %v4977
    %v5718 = vpop.f32.mrb[0].mxu0
    %v5719 = vadd.f32 0.0, %v5718
    %v5720 = vpop.f32.mrb[0].mxu0
    %v5721 = vadd.f32 0.0, %v5720
    %5722 = vdwg.mxu0
    %v5723 = vadd.f32 %v5513, %v5648
    %v5724 = vadd.f32 %v5514, %v5650
    %v5725 = vadd.f32 %v5515, %v5719
    %v5726 = vadd.f32 %v5516, %v5721
    %v5727 = vxor.u32 %v5723, 2147483648
    %v5728 = vmul.f32 %v5727, 1.442695
    %v5729 = vpow.pop %v5728
    %v5730 = vadd.f32 %v5729, 1.0
    %v5731 = vrcp.pop %v5730
    %v5732 = vmul.f32 1.0, %v5731
    %v5733 = vxor.u32 %v5724, 2147483648
    %v5734 = vmul.f32 %v5733, 1.442695
    %v5735 = vpow.pop %v5734
    %v5736 = vadd.f32 %v5735, 1.0
    %v5737 = vrcp.pop %v5736
    %v5738 = vmul.f32 1.0, %v5737
    %v5739 = vtanh.pop %v5725
    %v5740 = vxor.u32 %v5726, 2147483648
    %v5741 = vmul.f32 %v5740, 1.442695
    %v5742 = vpow.pop %v5741
    %v5743 = vadd.f32 %v5742, 1.0
    %v5744 = vrcp.pop %v5743
    %v5745 = vmul.f32 1.0, %v5744
    %v5746 = vmul.f32 %v5738, %v4975
    %v5747 = vmul.f32 %v5732, %v5739
    %v5748 = vadd.f32 %v5746, %v5747
    %v5749 = vtanh.pop %v5748
    %v5750 = vmul.f32 %v5745, %v5749
    %v5751 = vld [vmem:[#allocation2] sm:$0xff]
    %v5752 = vld [vmem:[#allocation2 + $0x8] sm:$0xff]
    %v5753 = vld [vmem:[#allocation2 + $0x10] sm:$0xff]
    %v5754 = vld [vmem:[#allocation2 + $0x18] sm:$0xff]
    %v5755 = vld [vmem:[#allocation2 + $0x20] sm:$0xff]
    %v5756 = vld [vmem:[#allocation2 + $0x28] sm:$0xff]
    %v5757 = vld [vmem:[#allocation2 + $0x30] sm:$0xff]
    %v5758 = vld [vmem:[#allocation2 + $0x38] sm:$0xff]
    %v5759 = vld [vmem:[#allocation2 + $0x40] sm:$0xff]
    %v5760 = vld [vmem:[#allocation2 + $0x48] sm:$0xff]
    %v5761 = vld [vmem:[#allocation2 + $0x50] sm:$0xff]
    %v5762 = vld [vmem:[#allocation2 + $0x58] sm:$0xff]
    %v5763 = vld [vmem:[#allocation2 + $0x60] sm:$0xff]
    %v5764 = vld [vmem:[#allocation2 + $0x68] sm:$0xff]
    %v5765 = vld [vmem:[#allocation2 + $0x70] sm:$0xff]
    %v5766 = vld [vmem:[#allocation2 + $0x78] sm:$0xff]
    %v5767 = vld [vmem:[#allocation2 + $0x80] sm:$0xff]
    %v5768 = vld [vmem:[#allocation2 + $0x88] sm:$0xff]
    %v5769 = vld [vmem:[#allocation2 + $0x90] sm:$0xff]
    %v5770 = vld [vmem:[#allocation2 + $0x98] sm:$0xff]
    %v5771 = vld [vmem:[#allocation2 + $0xa0] sm:$0xff]
    %v5772 = vld [vmem:[#allocation2 + $0xa8] sm:$0xff]
    %v5773 = vld [vmem:[#allocation2 + $0xb0] sm:$0xff]
    %v5774 = vld [vmem:[#allocation2 + $0xb8] sm:$0xff]
    %v5775 = vld [vmem:[#allocation2 + $0xc0] sm:$0xff]
    %v5776 = vld [vmem:[#allocation2 + $0xc8] sm:$0xff]
    %v5777 = vld [vmem:[#allocation2 + $0xd0] sm:$0xff]
    %v5778 = vld [vmem:[#allocation2 + $0xd8] sm:$0xff]
    %v5779 = vld [vmem:[#allocation2 + $0xe0] sm:$0xff]
    %v5780 = vld [vmem:[#allocation2 + $0xe8] sm:$0xff]
    %v5781 = vld [vmem:[#allocation2 + $0xf0] sm:$0xff]
    %v5782 = vld [vmem:[#allocation2 + $0xf8] sm:$0xff]
    %v5783 = vld [vmem:[#allocation2 + $0x100] sm:$0xff]
    %v5784 = vld [vmem:[#allocation2 + $0x108] sm:$0xff]
    %v5785 = vld [vmem:[#allocation2 + $0x110] sm:$0xff]
    %v5786 = vld [vmem:[#allocation2 + $0x118] sm:$0xff]
    %v5787 = vld [vmem:[#allocation2 + $0x120] sm:$0xff]
    %v5788 = vld [vmem:[#allocation2 + $0x128] sm:$0xff]
    %v5789 = vld [vmem:[#allocation2 + $0x130] sm:$0xff]
    %v5790 = vld [vmem:[#allocation2 + $0x138] sm:$0xff]
    %v5791 = vld [vmem:[#allocation2 + $0x140] sm:$0xff]
    %v5792 = vld [vmem:[#allocation2 + $0x148] sm:$0xff]
    %v5793 = vld [vmem:[#allocation2 + $0x150] sm:$0xff]
    %v5794 = vld [vmem:[#allocation2 + $0x158] sm:$0xff]
    %v5795 = vld [vmem:[#allocation2 + $0x160] sm:$0xff]
    %v5796 = vld [vmem:[#allocation2 + $0x168] sm:$0xff]
    %v5797 = vld [vmem:[#allocation2 + $0x170] sm:$0xff]
    %v5798 = vld [vmem:[#allocation2 + $0x178] sm:$0xff]
    %v5799 = vld [vmem:[#allocation2 + $0x180] sm:$0xff]
    %v5800 = vld [vmem:[#allocation2 + $0x188] sm:$0xff]
    %v5801 = vld [vmem:[#allocation2 + $0x190] sm:$0xff]
    %v5802 = vld [vmem:[#allocation2 + $0x198] sm:$0xff]
    %v5803 = vld [vmem:[#allocation2 + $0x1a0] sm:$0xff]
    %v5804 = vld [vmem:[#allocation2 + $0x1a8] sm:$0xff]
    %v5805 = vld [vmem:[#allocation2 + $0x1b0] sm:$0xff]
    %v5806 = vld [vmem:[#allocation2 + $0x1b8] sm:$0xff]
    %v5807 = vld [vmem:[#allocation2 + $0x1c0] sm:$0xff]
    %v5808 = vld [vmem:[#allocation2 + $0x1c8] sm:$0xff]
    %v5809 = vld [vmem:[#allocation2 + $0x1d0] sm:$0xff]
    %v5810 = vld [vmem:[#allocation2 + $0x1d8] sm:$0xff]
    %v5811 = vld [vmem:[#allocation2 + $0x1e0] sm:$0xff]
    %v5812 = vld [vmem:[#allocation2 + $0x1e8] sm:$0xff]
    %v5813 = vld [vmem:[#allocation2 + $0x1f0] sm:$0xff]
    %v5814 = vld [vmem:[#allocation2 + $0x1f8] sm:$0xff]
    %v5815 = vld [vmem:[%s404] sm:$0xff]
    %v5816 = vld [vmem:[%s404 + $0x8] sm:$0xff]
    %v5817 = vld [vmem:[%s404 + $0x10] sm:$0xff]
    %v5818 = vld [vmem:[%s404 + $0x18] sm:$0xff]
    %v5819 = vld [vmem:[%s404 + $0x20] sm:$0xff]
    %v5820 = vld [vmem:[%s404 + $0x28] sm:$0xff]
    %v5821 = vld [vmem:[%s404 + $0x30] sm:$0xff]
    %v5822 = vld [vmem:[%s404 + $0x38] sm:$0xff]
    %v5823 = vld [vmem:[%s404 + $0x40] sm:$0xff]
    %v5824 = vld [vmem:[%s404 + $0x48] sm:$0xff]
    %v5825 = vld [vmem:[%s404 + $0x50] sm:$0xff]
    %v5826 = vld [vmem:[%s404 + $0x58] sm:$0xff]
    %v5827 = vld [vmem:[%s404 + $0x60] sm:$0xff]
    %v5828 = vld [vmem:[%s404 + $0x68] sm:$0xff]
    %v5829 = vld [vmem:[%s404 + $0x70] sm:$0xff]
    %v5830 = vld [vmem:[%s404 + $0x78] sm:$0xff]
    %v5831 = vld [vmem:[%s404 + $0x80] sm:$0xff]
    %v5832 = vld [vmem:[%s404 + $0x88] sm:$0xff]
    %v5833 = vld [vmem:[%s404 + $0x90] sm:$0xff]
    %v5834 = vld [vmem:[%s404 + $0x98] sm:$0xff]
    %v5835 = vld [vmem:[%s404 + $0xa0] sm:$0xff]
    %v5836 = vld [vmem:[%s404 + $0xa8] sm:$0xff]
    %v5837 = vld [vmem:[%s404 + $0xb0] sm:$0xff]
    %v5838 = vld [vmem:[%s404 + $0xb8] sm:$0xff]
    %v5839 = vld [vmem:[%s404 + $0xc0] sm:$0xff]
    %v5840 = vld [vmem:[%s404 + $0xc8] sm:$0xff]
    %v5841 = vld [vmem:[%s404 + $0xd0] sm:$0xff]
    %v5842 = vld [vmem:[%s404 + $0xd8] sm:$0xff]
    %v5843 = vld [vmem:[%s404 + $0xe0] sm:$0xff]
    %v5844 = vld [vmem:[%s404 + $0xe8] sm:$0xff]
    %v5845 = vld [vmem:[%s404 + $0xf0] sm:$0xff]
    %v5846 = vld [vmem:[%s404 + $0xf8] sm:$0xff]
    %v5847 = vld [vmem:[%s404 + $0x100] sm:$0xff]
    %v5848 = vld [vmem:[%s404 + $0x108] sm:$0xff]
    %v5849 = vld [vmem:[%s404 + $0x110] sm:$0xff]
    %v5850 = vld [vmem:[%s404 + $0x118] sm:$0xff]
    %v5851 = vld [vmem:[%s404 + $0x120] sm:$0xff]
    %v5852 = vld [vmem:[%s404 + $0x128] sm:$0xff]
    %v5853 = vld [vmem:[%s404 + $0x130] sm:$0xff]
    %v5854 = vld [vmem:[%s404 + $0x138] sm:$0xff]
    %v5855 = vld [vmem:[%s404 + $0x140] sm:$0xff]
    %v5856 = vld [vmem:[%s404 + $0x148] sm:$0xff]
    %v5857 = vld [vmem:[%s404 + $0x150] sm:$0xff]
    %v5858 = vld [vmem:[%s404 + $0x158] sm:$0xff]
    %v5859 = vld [vmem:[%s404 + $0x160] sm:$0xff]
    %v5860 = vld [vmem:[%s404 + $0x168] sm:$0xff]
    %v5861 = vld [vmem:[%s404 + $0x170] sm:$0xff]
    %v5862 = vld [vmem:[%s404 + $0x178] sm:$0xff]
    %v5863 = vld [vmem:[%s404 + $0x180] sm:$0xff]
    %v5864 = vld [vmem:[%s404 + $0x188] sm:$0xff]
    %v5865 = vld [vmem:[%s404 + $0x190] sm:$0xff]
    %v5866 = vld [vmem:[%s404 + $0x198] sm:$0xff]
    %v5867 = vld [vmem:[%s404 + $0x1a0] sm:$0xff]
    %v5868 = vld [vmem:[%s404 + $0x1a8] sm:$0xff]
    %v5869 = vld [vmem:[%s404 + $0x1b0] sm:$0xff]
    %v5870 = vld [vmem:[%s404 + $0x1b8] sm:$0xff]
    %v5871 = vld [vmem:[%s404 + $0x1c0] sm:$0xff]
    %v5872 = vld [vmem:[%s404 + $0x1c8] sm:$0xff]
    %v5873 = vld [vmem:[%s404 + $0x1d0] sm:$0xff]
    %v5874 = vld [vmem:[%s404 + $0x1d8] sm:$0xff]
    %v5875 = vld [vmem:[%s404 + $0x1e0] sm:$0xff]
    %v5876 = vld [vmem:[%s404 + $0x1e8] sm:$0xff]
    %v5877 = vld [vmem:[%s404 + $0x1f0] sm:$0xff]
    %v5878 = vld [vmem:[%s404 + $0x1f8] sm:$0xff]
    %5879 = vmatprep.subr.mxu0 %v5816
    %5880 = vmatpush1.msra.mxu0 %v5815
    %5881 = vmatprep.subr.mxu0 %v5820
    %5882 = vmatpush1.msra.mxu0 %v5819
    %5883 = vmatprep.subr.mxu0 %v5824
    %5884 = vmatpush1.msra.mxu0 %v5823
    %5885 = vmatprep.subr.mxu0 %v5828
    %5886 = vmatpush1.msra.mxu0 %v5827
    %5887 = vmatprep.subr.mxu0 %v5832
    %5888 = vmatpush1.msra.mxu0 %v5831
    %5889 = vmatprep.subr.mxu0 %v5836
    %5890 = vmatpush1.msra.mxu0 %v5835
    %5891 = vmatprep.subr.mxu0 %v5840
    %5892 = vmatpush1.msra.mxu0 %v5839
    %5893 = vmatprep.subr.mxu0 %v5844
    %5894 = vmatpush1.msra.mxu0 %v5843
    %5895 = vmatprep.subr.mxu0 %v5848
    %5896 = vmatpush1.msra.mxu0 %v5847
    %5897 = vmatprep.subr.mxu0 %v5852
    %5898 = vmatpush1.msra.mxu0 %v5851
    %5899 = vmatprep.subr.mxu0 %v5856
    %5900 = vmatpush1.msra.mxu0 %v5855
    %5901 = vmatprep.subr.mxu0 %v5860
    %5902 = vmatpush1.msra.mxu0 %v5859
    %5903 = vmatprep.subr.mxu0 %v5864
    %5904 = vmatpush1.msra.mxu0 %v5863
    %5905 = vmatprep.subr.mxu0 %v5868
    %5906 = vmatpush1.msra.mxu0 %v5867
    %5907 = vmatprep.subr.mxu0 %v5872
    %5908 = vmatpush1.msra.mxu0 %v5871
    %5909 = vmatprep.subr.mxu0 %v5876
    %5910 = vmatpush1.msra.mxu0 %v5875
    %5911 = vmatprep.subr.mxu0 0.0
    %5912 = vmatpush1.msra.mxu0 0.0
    %5913 = vmatprep.subr.mxu0 0.0
    %5914 = vmatpush1.msra.mxu0 0.0
    %5915 = vmatprep.subr.mxu0 0.0
    %5916 = vmatpush1.msra.mxu0 0.0
    %5917 = vmatprep.subr.mxu0 0.0
    %5918 = vmatpush1.msra.mxu0 0.0
    %5919 = vmatprep.subr.mxu0 0.0
    %5920 = vmatpush1.msra.mxu0 0.0
    %5921 = vmatprep.subr.mxu0 0.0
    %5922 = vmatpush1.msra.mxu0 0.0
    %5923 = vmatprep.subr.mxu0 0.0
    %5924 = vmatpush1.msra.mxu0 0.0
    %5925 = vmatprep.subr.mxu0 0.0
    %5926 = vmatpush1.msra.mxu0 0.0
    %5927 = vmatprep.subr.mxu0 0.0
    %5928 = vmatpush1.msra.mxu0 0.0
    %5929 = vmatprep.subr.mxu0 0.0
    %5930 = vmatpush1.msra.mxu0 0.0
    %5931 = vmatprep.subr.mxu0 0.0
    %5932 = vmatpush1.msra.mxu0 0.0
    %5933 = vmatprep.subr.mxu0 0.0
    %5934 = vmatpush1.msra.mxu0 0.0
    %5935 = vmatprep.subr.mxu0 0.0
    %5936 = vmatpush1.msra.mxu0 0.0
    %5937 = vmatprep.subr.mxu0 0.0
    %5938 = vmatpush1.msra.mxu0 0.0
    %5939 = vmatprep.subr.mxu0 0.0
    %5940 = vmatpush1.msra.mxu0 0.0
    %5941 = vmatprep.subr.mxu0 0.0
    %5942 = vmatpush1.msra.mxu0 0.0
    %5943 = vmatprep.mubr.f32.mxu0 0.0
    %5944 = vmatmul.mubr.f32.gmra.mrb[0].mxu0 %v5421
    %v5945 = vpop.f32.mrb[0].mxu0
    %v5946 = vadd.f32 0.0, %v5945
    %v5947 = vpop.f32.mrb[0].mxu0
    %v5948 = vadd.f32 0.0, %v5947
    %5949 = vdwg.mxu0
    %5950 = vmatprep.subr.mxu0 %v5818
    %5951 = vmatpush1.msra.mxu0 %v5817
    %5952 = vmatprep.subr.mxu0 %v5822
    %5953 = vmatpush1.msra.mxu0 %v5821
    %5954 = vmatprep.subr.mxu0 %v5826
    %5955 = vmatpush1.msra.mxu0 %v5825
    %5956 = vmatprep.subr.mxu0 %v5830
    %5957 = vmatpush1.msra.mxu0 %v5829
    %5958 = vmatprep.subr.mxu0 %v5834
    %5959 = vmatpush1.msra.mxu0 %v5833
    %5960 = vmatprep.subr.mxu0 %v5838
    %5961 = vmatpush1.msra.mxu0 %v5837
    %5962 = vmatprep.subr.mxu0 %v5842
    %5963 = vmatpush1.msra.mxu0 %v5841
    %5964 = vmatprep.subr.mxu0 %v5846
    %5965 = vmatpush1.msra.mxu0 %v5845
    %5966 = vmatprep.subr.mxu0 %v5850
    %5967 = vmatpush1.msra.mxu0 %v5849
    %5968 = vmatprep.subr.mxu0 %v5854
    %5969 = vmatpush1.msra.mxu0 %v5853
    %5970 = vmatprep.subr.mxu0 %v5858
    %5971 = vmatpush1.msra.mxu0 %v5857
    %5972 = vmatprep.subr.mxu0 %v5862
    %5973 = vmatpush1.msra.mxu0 %v5861
    %5974 = vmatprep.subr.mxu0 %v5866
    %5975 = vmatpush1.msra.mxu0 %v5865
    %5976 = vmatprep.subr.mxu0 %v5870
    %5977 = vmatpush1.msra.mxu0 %v5869
    %5978 = vmatprep.subr.mxu0 %v5874
    %5979 = vmatpush1.msra.mxu0 %v5873
    %5980 = vmatprep.subr.mxu0 %v5878
    %5981 = vmatpush1.msra.mxu0 %v5877
    %5982 = vmatprep.subr.mxu0 0.0
    %5983 = vmatpush1.msra.mxu0 0.0
    %5984 = vmatprep.subr.mxu0 0.0
    %5985 = vmatpush1.msra.mxu0 0.0
    %5986 = vmatprep.subr.mxu0 0.0
    %5987 = vmatpush1.msra.mxu0 0.0
    %5988 = vmatprep.subr.mxu0 0.0
    %5989 = vmatpush1.msra.mxu0 0.0
    %5990 = vmatprep.subr.mxu0 0.0
    %5991 = vmatpush1.msra.mxu0 0.0
    %5992 = vmatprep.subr.mxu0 0.0
    %5993 = vmatpush1.msra.mxu0 0.0
    %5994 = vmatprep.subr.mxu0 0.0
    %5995 = vmatpush1.msra.mxu0 0.0
    %5996 = vmatprep.subr.mxu0 0.0
    %5997 = vmatpush1.msra.mxu0 0.0
    %5998 = vmatprep.subr.mxu0 0.0
    %5999 = vmatpush1.msra.mxu0 0.0
    %6000 = vmatprep.subr.mxu0 0.0
    %6001 = vmatpush1.msra.mxu0 0.0
    %6002 = vmatprep.subr.mxu0 0.0
    %6003 = vmatpush1.msra.mxu0 0.0
    %6004 = vmatprep.subr.mxu0 0.0
    %6005 = vmatpush1.msra.mxu0 0.0
    %6006 = vmatprep.subr.mxu0 0.0
    %6007 = vmatpush1.msra.mxu0 0.0
    %6008 = vmatprep.subr.mxu0 0.0
    %6009 = vmatpush1.msra.mxu0 0.0
    %6010 = vmatprep.subr.mxu0 0.0
    %6011 = vmatpush1.msra.mxu0 0.0
    %6012 = vmatprep.subr.mxu0 0.0
    %6013 = vmatpush1.msra.mxu0 0.0
    %6014 = vmatprep.mubr.f32.mxu0 0.0
    %6015 = vmatmul.mubr.f32.gmra.mrb[0].mxu0 %v5421
    %v6016 = vpop.f32.mrb[0].mxu0
    %v6017 = vadd.f32 0.0, %v6016
    %v6018 = vpop.f32.mrb[0].mxu0
    %v6019 = vadd.f32 0.0, %v6018
    %6020 = vdwg.mxu0
    %6021 = vmatprep.subr.mxu0 %v5752
    %6022 = vmatpush1.msra.mxu0 %v5751
    %6023 = vmatprep.subr.mxu0 %v5756
    %6024 = vmatpush1.msra.mxu0 %v5755
    %6025 = vmatprep.subr.mxu0 %v5760
    %6026 = vmatpush1.msra.mxu0 %v5759
    %6027 = vmatprep.subr.mxu0 %v5764
    %6028 = vmatpush1.msra.mxu0 %v5763
    %6029 = vmatprep.subr.mxu0 %v5768
    %6030 = vmatpush1.msra.mxu0 %v5767
    %6031 = vmatprep.subr.mxu0 %v5772
    %6032 = vmatpush1.msra.mxu0 %v5771
    %6033 = vmatprep.subr.mxu0 %v5776
    %6034 = vmatpush1.msra.mxu0 %v5775
    %6035 = vmatprep.subr.mxu0 %v5780
    %6036 = vmatpush1.msra.mxu0 %v5779
    %6037 = vmatprep.subr.mxu0 %v5784
    %6038 = vmatpush1.msra.mxu0 %v5783
    %6039 = vmatprep.subr.mxu0 %v5788
    %6040 = vmatpush1.msra.mxu0 %v5787
    %6041 = vmatprep.subr.mxu0 %v5792
    %6042 = vmatpush1.msra.mxu0 %v5791
    %6043 = vmatprep.subr.mxu0 %v5796
    %6044 = vmatpush1.msra.mxu0 %v5795
    %6045 = vmatprep.subr.mxu0 %v5800
    %6046 = vmatpush1.msra.mxu0 %v5799
    %6047 = vmatprep.subr.mxu0 %v5804
    %6048 = vmatpush1.msra.mxu0 %v5803
    %6049 = vmatprep.subr.mxu0 %v5808
    %6050 = vmatpush1.msra.mxu0 %v5807
    %6051 = vmatprep.subr.mxu0 %v5812
    %6052 = vmatpush1.msra.mxu0 %v5811
    %6053 = vmatprep.subr.mxu0 0.0
    %6054 = vmatpush1.msra.mxu0 0.0
    %6055 = vmatprep.subr.mxu0 0.0
    %6056 = vmatpush1.msra.mxu0 0.0
    %6057 = vmatprep.subr.mxu0 0.0
    %6058 = vmatpush1.msra.mxu0 0.0
    %6059 = vmatprep.subr.mxu0 0.0
    %6060 = vmatpush1.msra.mxu0 0.0
    %6061 = vmatprep.subr.mxu0 0.0
    %6062 = vmatpush1.msra.mxu0 0.0
    %6063 = vmatprep.subr.mxu0 0.0
    %6064 = vmatpush1.msra.mxu0 0.0
    %6065 = vmatprep.subr.mxu0 0.0
    %6066 = vmatpush1.msra.mxu0 0.0
    %6067 = vmatprep.subr.mxu0 0.0
    %6068 = vmatpush1.msra.mxu0 0.0
    %6069 = vmatprep.subr.mxu0 0.0
    %6070 = vmatpush1.msra.mxu0 0.0
    %6071 = vmatprep.subr.mxu0 0.0
    %6072 = vmatpush1.msra.mxu0 0.0
    %6073 = vmatprep.subr.mxu0 0.0
    %6074 = vmatpush1.msra.mxu0 0.0
    %6075 = vmatprep.subr.mxu0 0.0
    %6076 = vmatpush1.msra.mxu0 0.0
    %6077 = vmatprep.subr.mxu0 0.0
    %6078 = vmatpush1.msra.mxu0 0.0
    %6079 = vmatprep.subr.mxu0 0.0
    %6080 = vmatpush1.msra.mxu0 0.0
    %6081 = vmatprep.subr.mxu0 0.0
    %6082 = vmatpush1.msra.mxu0 0.0
    %6083 = vmatprep.subr.mxu0 0.0
    %6084 = vmatpush1.msra.mxu0 0.0
    %6085 = vmatprep.mubr.f32.mxu0 0.0
    %6086 = vmatmul.mubr.f32.gmra.mrb[0].mxu0 %v5750
    %v6087 = vpop.f32.mrb[0].mxu0
    %v6088 = vadd.f32 %v5946, %v6087
    %v6089 = vpop.f32.mrb[0].mxu0
    %v6090 = vadd.f32 %v5948, %v6089
    %6091 = vdwg.mxu0
    %6092 = vmatprep.subr.mxu0 %v5754
    %6093 = vmatpush1.msra.mxu0 %v5753
    %6094 = vmatprep.subr.mxu0 %v5758
    %6095 = vmatpush1.msra.mxu0 %v5757
    %6096 = vmatprep.subr.mxu0 %v5762
    %6097 = vmatpush1.msra.mxu0 %v5761
    %6098 = vmatprep.subr.mxu0 %v5766
    %6099 = vmatpush1.msra.mxu0 %v5765
    %6100 = vmatprep.subr.mxu0 %v5770
    %6101 = vmatpush1.msra.mxu0 %v5769
    %6102 = vmatprep.subr.mxu0 %v5774
    %6103 = vmatpush1.msra.mxu0 %v5773
    %6104 = vmatprep.subr.mxu0 %v5778
    %6105 = vmatpush1.msra.mxu0 %v5777
    %6106 = vmatprep.subr.mxu0 %v5782
    %6107 = vmatpush1.msra.mxu0 %v5781
    %6108 = vmatprep.subr.mxu0 %v5786
    %6109 = vmatpush1.msra.mxu0 %v5785
    %6110 = vmatprep.subr.mxu0 %v5790
    %6111 = vmatpush1.msra.mxu0 %v5789
    %6112 = vmatprep.subr.mxu0 %v5794
    %6113 = vmatpush1.msra.mxu0 %v5793
    %6114 = vmatprep.subr.mxu0 %v5798
    %6115 = vmatpush1.msra.mxu0 %v5797
    %6116 = vmatprep.subr.mxu0 %v5802
    %6117 = vmatpush1.msra.mxu0 %v5801
    %6118 = vmatprep.subr.mxu0 %v5806
    %6119 = vmatpush1.msra.mxu0 %v5805
    %6120 = vmatprep.subr.mxu0 %v5810
    %6121 = vmatpush1.msra.mxu0 %v5809
    %6122 = vmatprep.subr.mxu0 %v5814
    %6123 = vmatpush1.msra.mxu0 %v5813
    %6124 = vmatprep.subr.mxu0 0.0
    %6125 = vmatpush1.msra.mxu0 0.0
    %6126 = vmatprep.subr.mxu0 0.0
    %6127 = vmatpush1.msra.mxu0 0.0
    %6128 = vmatprep.subr.mxu0 0.0
    %6129 = vmatpush1.msra.mxu0 0.0
    %6130 = vmatprep.subr.mxu0 0.0
    %6131 = vmatpush1.msra.mxu0 0.0
    %6132 = vmatprep.subr.mxu0 0.0
    %6133 = vmatpush1.msra.mxu0 0.0
    %6134 = vmatprep.subr.mxu0 0.0
    %6135 = vmatpush1.msra.mxu0 0.0
    %6136 = vmatprep.subr.mxu0 0.0
    %6137 = vmatpush1.msra.mxu0 0.0
    %6138 = vmatprep.subr.mxu0 0.0
    %6139 = vmatpush1.msra.mxu0 0.0
    %6140 = vmatprep.subr.mxu0 0.0
    %6141 = vmatpush1.msra.mxu0 0.0
    %6142 = vmatprep.subr.mxu0 0.0
    %6143 = vmatpush1.msra.mxu0 0.0
    %6144 = vmatprep.subr.mxu0 0.0
    %6145 = vmatpush1.msra.mxu0 0.0
    %6146 = vmatprep.subr.mxu0 0.0
    %6147 = vmatpush1.msra.mxu0 0.0
    %6148 = vmatprep.subr.mxu0 0.0
    %6149 = vmatpush1.msra.mxu0 0.0
    %6150 = vmatprep.subr.mxu0 0.0
    %6151 = vmatpush1.msra.mxu0 0.0
    %6152 = vmatprep.subr.mxu0 0.0
    %6153 = vmatpush1.msra.mxu0 0.0
    %6154 = vmatprep.subr.mxu0 0.0
    %6155 = vmatpush1.msra.mxu0 0.0
    %6156 = vmatprep.mubr.f32.mxu0 0.0
    %6157 = vmatmul.mubr.f32.gmra.mrb[0].mxu0 %v5750
    %v6158 = vpop.f32.mrb[0].mxu0
    %v6159 = vadd.f32 %v6017, %v6158
    %v6160 = vpop.f32.mrb[0].mxu0
    %v6161 = vadd.f32 %v6019, %v6160
    %6162 = vdwg.mxu0
    %v6163 = vld [vmem:[%s5] sm:$0xff]
    %v6164 = vld [vmem:[%s5 + $0x8] sm:$0xff]
    %v6165 = vld [vmem:[%s5 + $0x10] sm:$0xff]
    %v6166 = vld [vmem:[%s5 + $0x18] sm:$0xff]
    %v6167 = vadd.f32 %v6088, %v6163
    %v6168 = vadd.f32 %v6090, %v6164
    %v6169 = vadd.f32 %v6159, %v6165
    %v6170 = vadd.f32 %v6161, %v6166
    %v6171 = vxor.u32 %v6167, 2147483648
    %v6172 = vmul.f32 %v6171, 1.442695
    %v6173 = vpow.pop %v6172
    %v6174 = vadd.f32 %v6173, 1.0
    %v6175 = vrcp.pop %v6174
    %v6176 = vmul.f32 1.0, %v6175
    %v6177 = vxor.u32 %v6168, 2147483648
    %v6178 = vmul.f32 %v6177, 1.442695
    %v6179 = vpow.pop %v6178
    %v6180 = vadd.f32 %v6179, 1.0
    %v6181 = vrcp.pop %v6180
    %v6182 = vmul.f32 1.0, %v6181
    %v6183 = vtanh.pop %v6169
    %v6184 = vxor.u32 %v6170, 2147483648
    %v6185 = vmul.f32 %v6184, 1.442695
    %v6186 = vpow.pop %v6185
    %v6187 = vadd.f32 %v6186, 1.0
    %v6188 = vrcp.pop %v6187
    %v6189 = vmul.f32 1.0, %v6188
    %v6190 = vmul.f32 %v6182, %v5419
    %v6191 = vmul.f32 %v6176, %v6183
    %v6192 = vadd.f32 %v6190, %v6191
    %v6193 = vtanh.pop %v6192
    %v6194 = vmul.f32 %v6189, %v6193
    %6195 = vmatprep.subr.mxu0 %v63
    %6196 = vmatpush1.msra.mxu0 %v62
    %6197 = vmatprep.subr.mxu0 %v65
    %6198 = vmatpush1.msra.mxu0 %v64
    %6199 = vmatprep.subr.mxu0 %v67
    %6200 = vmatpush1.msra.mxu0 %v66
    %6201 = vmatprep.subr.mxu0 %v69
    %6202 = vmatpush1.msra.mxu0 %v68
    %6203 = vmatprep.subr.mxu0 %v71
    %6204 = vmatpush1.msra.mxu0 %v70
    %6205 = vmatprep.subr.mxu0 %v73
    %6206 = vmatpush1.msra.mxu0 %v72
    %6207 = vmatprep.subr.mxu0 %v75
    %6208 = vmatpush1.msra.mxu0 %v74
    %6209 = vmatprep.subr.mxu0 %v77
    %6210 = vmatpush1.msra.mxu0 %v76
    %6211 = vmatprep.subr.mxu0 %v79
    %6212 = vmatpush1.msra.mxu0 %v78
    %6213 = vmatprep.subr.mxu0 %v81
    %6214 = vmatpush1.msra.mxu0 %v80
    %6215 = vmatprep.subr.mxu0 %v83
    %6216 = vmatpush1.msra.mxu0 %v82
    %6217 = vmatprep.subr.mxu0 %v85
    %6218 = vmatpush1.msra.mxu0 %v84
    %6219 = vmatprep.subr.mxu0 %v87
    %6220 = vmatpush1.msra.mxu0 %v86
    %6221 = vmatprep.subr.mxu0 %v89
    %6222 = vmatpush1.msra.mxu0 %v88
    %6223 = vmatprep.subr.mxu0 %v91
    %6224 = vmatpush1.msra.mxu0 %v90
    %6225 = vmatprep.subr.mxu0 %v93
    %6226 = vmatpush1.msra.mxu0 %v92
    %6227 = vmatprep.subr.mxu0 0.0
    %6228 = vmatpush1.msra.mxu0 0.0
    %6229 = vmatprep.subr.mxu0 0.0
    %6230 = vmatpush1.msra.mxu0 0.0
    %6231 = vmatprep.subr.mxu0 0.0
    %6232 = vmatpush1.msra.mxu0 0.0
    %6233 = vmatprep.subr.mxu0 0.0
    %6234 = vmatpush1.msra.mxu0 0.0
    %6235 = vmatprep.subr.mxu0 0.0
    %6236 = vmatpush1.msra.mxu0 0.0
    %6237 = vmatprep.subr.mxu0 0.0
    %6238 = vmatpush1.msra.mxu0 0.0
    %6239 = vmatprep.subr.mxu0 0.0
    %6240 = vmatpush1.msra.mxu0 0.0
    %6241 = vmatprep.subr.mxu0 0.0
    %6242 = vmatpush1.msra.mxu0 0.0
    %6243 = vmatprep.subr.mxu0 0.0
    %6244 = vmatpush1.msra.mxu0 0.0
    %6245 = vmatprep.subr.mxu0 0.0
    %6246 = vmatpush1.msra.mxu0 0.0
    %6247 = vmatprep.subr.mxu0 0.0
    %6248 = vmatpush1.msra.mxu0 0.0
    %6249 = vmatprep.subr.mxu0 0.0
    %6250 = vmatpush1.msra.mxu0 0.0
    %6251 = vmatprep.subr.mxu0 0.0
    %6252 = vmatpush1.msra.mxu0 0.0
    %6253 = vmatprep.subr.mxu0 0.0
    %6254 = vmatpush1.msra.mxu0 0.0
    %6255 = vmatprep.subr.mxu0 0.0
    %6256 = vmatpush1.msra.mxu0 0.0
    %6257 = vmatprep.subr.mxu0 0.0
    %6258 = vmatpush1.msra.mxu0 0.0
    %6259 = vmatprep.mubr.f32.mxu0 0.0
    %6260 = vmatmul.mubr.f32.gmra.mrb[0].mxu0 %v6194
    %v6261 = vpop.f32.mrb[0].mxu0
    %v6262 = vadd.f32 %v94, %v6261
    %v6263 = vpop.f32.mrb[0].mxu0
    %v6264 = vadd.f32 %v95, %v6263
    %6265 = vdwg.mxu0
    %v6266 = vmax.f32 %v6262, %v6264
    %6267 = vmax.xlane.f32.xlu0 %v6266
    %v6268 = vpop.xlane.xlu0 %6267
    %v6269 = vsub.f32 %v6262, %v6268
    %v6270 = vsub.f32 %v6264, %v6268
    %v6271 = vmul.f32 %v6269, 1.442695
    %v6272 = vpow.pop %v6271
    %v6273 = vmul.f32 %v6270, 1.442695
    %v6274 = vpow.pop %v6273
    %v6275 = vadd.f32 %v6272, %v6274
    %6276 = vadd.xlane.f32.xlu0 %v6275
    %v6277 = vpop.xlane.xlu0 %6276
    %v6278 = vlog2.pop %v6277
    %v6279 = vmul.f32 %v6278, 0.6931472
    %v6280 = vsub.f32 %v6269, %v6279
    %v6281 = vsub.f32 %v6270, %v6279
    %s6282 = scalar_lea.vmem [#allocation7], 112
    %6283 = vst [vmem:[%s6282] sm:$0xff] %v6280
    %6284 = vst [vmem:[%s6282 + $0x8] sm:$0xff] %v6281
    %6285 = vst [vmem:[#allocation8] sm:$0xff] %v5750
    %6286 = vst [vmem:[#allocation10] sm:$0xff] %v5748
    %s6287 = scalar_lea.vmem [#allocation8], 8
    %6288 = vst [vmem:[%s6287] sm:$0xff] %v6194
    %s6289 = scalar_lea.vmem [#allocation10], 8
    %6290 = vst [vmem:[%s6289] sm:$0xff] %v6192
    // Predicated region
    $region42: #{decoder_forward.1} parent=1 // pred_check
      _
    $region43: #{decoder_forward.1} parent=1 // pred_check_branch
      %6292 = sbr.rel (0) target = $region45
    $region44: #{decoder_forward.1} parent=1 // pred_region
      %s6294 = ssub.s32 2048, 2048
      %6295 = vsyncadd [#allocation4], %s6294
      %s6296 = sshll.u32 [#allocation7], 4
      %s6297 = int_to_ptr.vmem [resolvable:$true] %s6296
      %6302 = dma.vmem_to_hbm [thread:$0]  %s6297, 2048, %s8, [#allocation4], 256, 256, 16
    $region45: #{decoder_forward.1} parent=1 // pred_fallthru
      _
    // Predicated region
    $region46: #{decoder_forward.1} parent=1 // pred_check
      _
    $region47: #{decoder_forward.1} parent=1 // pred_check_branch
      %6304 = sbr.rel (0) target = $region49
    $region48: #{decoder_forward.1} parent=1 // pred_region
      %s6306 = ssub.s32 256, 256
      %6307 = vsyncadd [#allocation9], %s6306
      %s6308 = sshll.u32 [#allocation8], 4
      %s6309 = int_to_ptr.vmem [resolvable:$true] %s6308
      %6314 = dma.vmem_to_hbm [thread:$0]  %s6309, 256, %s9, [#allocation9], 128, 128, 8
    $region49: #{decoder_forward.1} parent=1 // pred_fallthru
      _
    // Predicated region
    $region50: #{decoder_forward.1} parent=1 // pred_check
      _
    $region51: #{decoder_forward.1} parent=1 // pred_check_branch
      %6316 = sbr.rel (0) target = $region53
    $region52: #{decoder_forward.1} parent=1 // pred_region
      %s6318 = ssub.s32 256, 256
      %6319 = vsyncadd [#allocation9], %s6318
      %s6320 = sshll.u32 [#allocation10], 4
      %s6321 = int_to_ptr.vmem [resolvable:$true] %s6320
      %6326 = dma.vmem_to_hbm [thread:$0]  %s6321, 256, %s10, [#allocation9], 128, 128, 8
    $region53: #{decoder_forward.1} parent=1 // pred_fallthru
      _
    // Predicated region
    $region54: #{decoder_forward.1} parent=1 // pred_check
      _
    $region55: #{decoder_forward.1} parent=1 // pred_check_branch
      %6328 = sbr.rel (0) target = $region57
    $region56: #{decoder_forward.1} parent=1 // pred_region
      %6329 = dma.done [#allocation4], 2048
    $region57: #{decoder_forward.1} parent=1 // pred_fallthru
      _
    // Predicated region
    $region58: #{decoder_forward.1} parent=1 // pred_check
      _
    $region59: #{decoder_forward.1} parent=1 // pred_check_branch
      %6331 = sbr.rel (0) target = $region61
    $region60: #{decoder_forward.1} parent=1 // pred_region
      %6332 = dma.done [#allocation9], 256
    $region61: #{decoder_forward.1} parent=1 // pred_fallthru
      _
    // Predicated region
    $region62: #{decoder_forward.1} parent=1 // pred_check
      _
    $region63: #{decoder_forward.1} parent=1 // pred_check_branch
      %6334 = sbr.rel (0) target = $region65
    $region64: #{decoder_forward.1} parent=1 // pred_region
      %6335 = dma.done [#allocation9], 256
    $region65: #{decoder_forward.1} parent=1 // pred_fallthru
      _
    %6336 = vsyncpa [#allocation3], 1
    %6337 = vsyncpa [#allocation6], 1
    %6338 = vsyncpa [#allocation4], 1
    %6339 = vsyncpa [#allocation9], 1

</llo_original>
